<compile_context>
chip_gen: v6e
topology: v6e:2x2x1
jax: 0.10.0
libtpu: 0.0.40
codegen_flags: <defaults>
</compile_context>

<pallas_src>
import functools

import jax
import jax.numpy as jnp
from jax.experimental import pallas as pl
from jax.experimental.pallas import tpu as pltpu


_PAD_COL = 8   # sublane-aligned column where the conv interior starts inside the pad scratch
_MAX_BN = 8    # cap on images per grid step (~2 MiB VMEM footprint per image)


# ------------------------------ fused Pallas kernel ------------------------------


def _fused_res_kernel(x_ref, w0_ref, b0_ref, w1_ref, b1_ref, w2_ref, b2_ref,
                      wh_ref, bh_ref, out_ref,
                      pad_in_ref, pad_h_ref,
                      *, H, W, bn):
    """Fused forward: stem conv -> residual block -> GAP -> [policy | value] head.

    x_ref:    (bn, H, W, Cin)          input tile (NHWC)
    w*_ref:   (9*Cin_l, Cout_l)        im2col-flattened 3x3 conv weights
    b*_ref:   (1, Cout_l)              conv biases
    wh_ref:   (C, num_outputs + 1)     concatenated policy|value head weight
    bh_ref:   (1, num_outputs + 1)     concatenated policy|value head bias
    out_ref:  (bn, 1, num_outputs + 1) fused head output
    pad_*:    VMEM scratch holding zero-padded conv inputs (pad_h_ref reused for conv1+conv2).
    """
    M = bn * H * W
    c0 = _PAD_COL - 1      # leftmost column a 3x3 tap reads (zero halo)
    c1 = _PAD_COL + W      # rightmost column a 3x3 tap reads (zero halo)

    def zero_halo(pad_ref):
        # Only the halo actually read by the taps: rows 0 and H+1, columns c0 and c1.
        # Done every grid step (parallel semantics => no reliance on program_id==0 init).
        cin = pad_ref.shape[-1]
        wp = pad_ref.shape[2]
        zrow = jnp.zeros((bn, 1, wp, cin), jnp.float32)
        zcol = jnp.zeros((bn, H, 1, cin), jnp.float32)
        pad_ref[:, 0:1, :, :] = zrow
        pad_ref[:, H + 1:H + 2, :, :] = zrow
        pad_ref[:, 1:H + 1, c0:c0 + 1, :] = zcol
        pad_ref[:, 1:H + 1, c1:c1 + 1, :] = zcol

    def write_interior(pad_ref, interior):
        # Interior starts at a sublane-aligned column offset -> aligned full-tile store.
        pad_ref[:, 1:H + 1, _PAD_COL:_PAD_COL + W, :] = interior

    def conv3x3(pad_ref, w_flat, b):
        # 9 accumulated K=Cin dots; avoids materializing / relayouting an (M, 9*Cin) patch
        # matrix.  MXU is nearly idle at these sizes, so the extra issues are free.
        cin = pad_ref.shape[-1]
        cout = w_flat.shape[-1]
        acc = jnp.zeros((M, cout), jnp.float32)
        for kh in range(3):
            for kw in range(3):
                k = kh * 3 + kw
                patch = pad_ref[:, kh:kh + H, c0 + kw:c0 + kw + W, :].reshape(M, cin)
                acc += jnp.dot(patch, w_flat[k * cin:(k + 1) * cin, :],
                               preferred_element_type=jnp.float32)
        return acc + b

    c = w0_ref.shape[-1]

    # Zero halos once per step; interiors are fully overwritten below.
    zero_halo(pad_in_ref)
    zero_halo(pad_h_ref)

    # Stem: h = relu(conv0(x) + b0)                                  -> (M, C)
    write_interior(pad_in_ref, x_ref[...])
    h = jnp.maximum(conv3x3(pad_in_ref, w0_ref[...], b0_ref[...]), 0.0)

    # Residual block conv1: h1 = relu(conv1(h) + b1)
    write_interior(pad_h_ref, h.reshape(bn, H, W, c))
    h1 = jnp.maximum(conv3x3(pad_h_ref, w1_ref[...], b1_ref[...]), 0.0)

    # Residual block conv2 + skip: h2 = relu(conv2(h1) + b2 + h)
    # pad_h_ref is reused: its previous contents are dead once conv1's taps were read,
    # and the halo is already zero so only the interior store is needed.
    write_interior(pad_h_ref, h1.reshape(bn, H, W, c))
    h2 = jnp.maximum(conv3x3(pad_h_ref, w2_ref[...], b2_ref[...]) + h, 0.0)

    # Global average pool + fused [policy | value] head.
    pooled = jnp.mean(h2.reshape(bn, H * W, c), axis=1)               # (bn, C)
    head = jnp.dot(pooled, wh_ref[...],
                   preferred_element_type=jnp.float32) + bh_ref[...]   # (bn, P)
    out_ref[...] = head.reshape(bn, 1, head.shape[-1])


# --------------------------------- JAX wrappers ----------------------------------


def _fused_forward(x_nhwc, w0, b0, w1, b1, w2, b2, wh, bh, *, bn):
    """Single pallas_call running the whole network, gridded over batch tiles of bn images."""
    N, H, W, c_in = x_nhwc.shape
    assert N % bn == 0
    c = w0.shape[-1]
    P = wh.shape[-1]
    Hp = H + 2                    # rows [1, H+1) are the interior
    Wp = W + 2 * _PAD_COL         # cols [_PAD_COL, _PAD_COL+W) are the interior (aligned)

    kernel = functools.partial(_fused_res_kernel, H=H, W=W, bn=bn)
    out = pl.pallas_call(
        kernel,
        out_shape=jax.ShapeDtypeStruct((N, 1, P), jnp.float32),
        grid=(N // bn,),
        in_specs=[
            pl.BlockSpec((bn, H, W, c_in), lambda n: (n, 0, 0, 0)),
            # Constant block indices -> weights are DMA'd once, not per grid step.
            pl.BlockSpec((9 * c_in, c), lambda n: (0, 0)),
            pl.BlockSpec((1, c), lambda n: (0, 0)),
            pl.BlockSpec((9 * c, c), lambda n: (0, 0)),
            pl.BlockSpec((1, c), lambda n: (0, 0)),
            pl.BlockSpec((9 * c, c), lambda n: (0, 0)),
            pl.BlockSpec((1, c), lambda n: (0, 0)),
            pl.BlockSpec((c, P), lambda n: (0, 0)),
            pl.BlockSpec((1, P), lambda n: (0, 0)),
        ],
        out_specs=pl.BlockSpec((bn, 1, P), lambda n: (n, 0, 0)),
        scratch_shapes=[
            pltpu.VMEM((bn, Hp, Wp, c_in), jnp.float32),   # padded stem input
            pltpu.VMEM((bn, Hp, Wp, c), jnp.float32),      # padded h / h1 (reused)
        ],
        compiler_params=pltpu.CompilerParams(
            dimension_semantics=("parallel",),
            vmem_limit_bytes=32 * 1024 * 1024),
    )(x_nhwc, w0, b0, w1, b1, w2, b2, wh, bh)
    return out.reshape(N, P)


def init_params(key, c_in=4, c=32, num_outputs=6):
    ks = jax.random.split(key, 10)
    s = 0.1
    return {
        "w0": jax.random.normal(ks[0], (3, 3, c_in, c), jnp.float32) * s,
        "b0": jax.random.normal(ks[1], (c,), jnp.float32) * s,
        "w1": jax.random.normal(ks[2], (3, 3, c, c), jnp.float32) * s,
        "b1": jax.random.normal(ks[3], (c,), jnp.float32) * s,
        "w2": jax.random.normal(ks[4], (3, 3, c, c), jnp.float32) * s,
        "b2": jax.random.normal(ks[5], (c,), jnp.float32) * s,
        "wp": jax.random.normal(ks[6], (c, num_outputs), jnp.float32) * s,
        "bp": jax.random.normal(ks[7], (num_outputs,), jnp.float32) * s,
        "wv": jax.random.normal(ks[8], (c, 1), jnp.float32) * s,
        "bv": jax.random.normal(ks[9], (1,), jnp.float32) * s,
    }


@jax.jit
def pretrained_res_forward(obs_nchw, params):
    """Equivalent of PreTrainedTorchResModel.forward + value_function.

    Returns (fc_out, value): fc_out (N, num_outputs); value (N,) (already reshaped
    with [-1] as in value_function()).
    """
    x = jnp.transpose(obs_nchw.astype(jnp.float32), (0, 2, 3, 1))     # NCHW -> NHWC
    N = x.shape[0]
    c_in = params["w0"].shape[2]
    c = params["w0"].shape[3]
    num_outputs = params["wp"].shape[1]

    # im2col-flattened conv weights (HWIO -> (9*Cin, Cout)); fused policy|value head.
    w0 = params["w0"].reshape(9 * c_in, c)
    w1 = params["w1"].reshape(9 * c, c)
    w2 = params["w2"].reshape(9 * c, c)
    b0 = params["b0"].reshape(1, c)
    b1 = params["b1"].reshape(1, c)
    b2 = params["b2"].reshape(1, c)
    wh = jnp.concatenate([params["wp"], params["wv"]], axis=1)        # (C, num_outputs+1)
    bh = jnp.concatenate([params["bp"], params["bv"]]).reshape(1, num_outputs + 1)

    # Batch tile: bn ~= N/2 (capped) keeps >=2 grid steps for the two v7x TensorCores while
    # amortizing per-step pipeline overhead; pad batch to a multiple of bn (no dropped images).
    bn = max(1, min(_MAX_BN, (N + 1) // 2))
    steps = -(-N // bn)
    n_pad = steps * bn
    if n_pad != N:
        x = jnp.pad(x, ((0, n_pad - N), (0, 0), (0, 0), (0, 0)))

    out = _fused_forward(x, w0, b0, w1, b1, w2, b2, wh, bh, bn=bn)[:N]  # (N, num_outputs+1)
    logits = out[:, :num_outputs]
    value = out[:, num_outputs]
    return logits, value


def _reference_forward(obs_nchw, params):
    """Pure-JAX reference of the same forward pass (for numerics checking)."""
    x = jnp.transpose(obs_nchw.astype(jnp.float32), (0, 2, 3, 1))

    def conv(h, w, b):
        y = jax.lax.conv_general_dilated(
            h, w, window_strides=(1, 1), padding="SAME",
            dimension_numbers=("NHWC", "HWIO", "NHWC"))
        return y + b

    h = jax.nn.relu(conv(x, params["w0"], params["b0"]))
    h1 = jax.nn.relu(conv(h, params["w1"], params["b1"]))
    h2 = jax.nn.relu(conv(h1, params["w2"], params["b2"]) + h)
    pooled = h2.mean(axis=(1, 2))
    logits = pooled @ params["wp"] + params["bp"]
    value = (pooled @ params["wv"] + params["bv"]).reshape(-1)
    return logits, value


if __name__ == "__main__":
    key = jax.random.PRNGKey(0)
    k_obs, k_par = jax.random.split(key)

    # Small synthetic observation, NCHW like PyTorch: (batch=2, channels=4, 16, 16).
    obs = jax.random.normal(k_obs, (2, 4, 16, 16), jnp.float32)
    params = init_params(k_par, c_in=4, c=32, num_outputs=6)

    fc_out, value = pretrained_res_forward(obs, params)
    jax.block_until_ready((fc_out, value))

    assert fc_out.shape == (2, 6) and value.shape == (2,)

    ref_logits, ref_value = _reference_forward(obs, params)
    assert jnp.allclose(fc_out, ref_logits, atol=1e-3, rtol=1e-3)
    assert jnp.allclose(value, ref_value, atol=1e-3, rtol=1e-3)

    print("KERNEL_OK")
</pallas_src>

<mosaic_0001>
module attributes {stable_mosaic.version = 11 : i64} {
  func.func @_fused_res_kernel(%arg0: i32, %arg1: memref<1x16x16x4xf32, #tpu.memory_space<vmem>>, %arg2: memref<36x32xf32, #tpu.memory_space<vmem>>, %arg3: memref<1x32xf32, #tpu.memory_space<vmem>>, %arg4: memref<288x32xf32, #tpu.memory_space<vmem>>, %arg5: memref<1x32xf32, #tpu.memory_space<vmem>>, %arg6: memref<288x32xf32, #tpu.memory_space<vmem>>, %arg7: memref<1x32xf32, #tpu.memory_space<vmem>>, %arg8: memref<32x7xf32, #tpu.memory_space<vmem>>, %arg9: memref<1x7xf32, #tpu.memory_space<vmem>>, %arg10: memref<1x1x7xf32, #tpu.memory_space<vmem>>, %arg11: memref<1x18x32x4xf32, #tpu.memory_space<vmem>>, %arg12: memref<1x18x32x32xf32, #tpu.memory_space<vmem>>) attributes {dimension_semantics = [#tpu.dimension_semantics<parallel>], iteration_bounds = array<i64: 2>, scalar_prefetch = 0 : i64, scratch_operands = 2 : i64, tpu.core_type = #tpu.core_type<tc>, window_params = [{transform_indices = @transform_0, window_bounds = array<i64: 1, 16, 16, 4>}, {pipeline_mode = #tpu.pipeline_mode<synchronous>, transform_indices = @transform_1, window_bounds = array<i64: 36, 32>}, {pipeline_mode = #tpu.pipeline_mode<synchronous>, transform_indices = @transform_2, window_bounds = array<i64: 1, 32>}, {pipeline_mode = #tpu.pipeline_mode<synchronous>, transform_indices = @transform_3, window_bounds = array<i64: 288, 32>}, {pipeline_mode = #tpu.pipeline_mode<synchronous>, transform_indices = @transform_4, window_bounds = array<i64: 1, 32>}, {pipeline_mode = #tpu.pipeline_mode<synchronous>, transform_indices = @transform_5, window_bounds = array<i64: 288, 32>}, {pipeline_mode = #tpu.pipeline_mode<synchronous>, transform_indices = @transform_6, window_bounds = array<i64: 1, 32>}, {pipeline_mode = #tpu.pipeline_mode<synchronous>, transform_indices = @transform_7, window_bounds = array<i64: 32, 7>}, {pipeline_mode = #tpu.pipeline_mode<synchronous>, transform_indices = @transform_8, window_bounds = array<i64: 1, 7>}, {transform_indices = @transform_9, window_bounds = array<i64: 1, 1, 7>}]} {
    %cst = arith.constant 0.000000e+00 : f32
    %0 = vector.broadcast %cst : f32 to vector<1x1x32x4xf32>
    %cst_0 = arith.constant 0.000000e+00 : f32
    %1 = vector.broadcast %cst_0 : f32 to vector<1x16x1x4xf32>
    %c0 = arith.constant 0 : index
    %c0_1 = arith.constant 0 : index
    %c0_2 = arith.constant 0 : index
    %c0_3 = arith.constant 0 : index
    %2 = vector.load %arg11[%c0, %c0_1, %c0_2, %c0_3] : memref<1x18x32x4xf32, #tpu.memory_space<vmem>>, vector<1x1x32x4xf32>
    tpu.vector_store %arg11[%c0, %c0_1, %c0_2, %c0_3], %0 {strides = array<i32>} : memref<1x18x32x4xf32, #tpu.memory_space<vmem>>, vector<1x1x32x4xf32>,
    %c0_4 = arith.constant 0 : index
    %c17 = arith.constant 17 : index
    %c0_5 = arith.constant 0 : index
    %c0_6 = arith.constant 0 : index
    %3 = vector.load %arg11[%c0_4, %c17, %c0_5, %c0_6] : memref<1x18x32x4xf32, #tpu.memory_space<vmem>>, vector<1x1x32x4xf32>
    tpu.vector_store %arg11[%c0_4, %c17, %c0_5, %c0_6], %0 {strides = array<i32>} : memref<1x18x32x4xf32, #tpu.memory_space<vmem>>, vector<1x1x32x4xf32>,
    %c0_7 = arith.constant 0 : index
    %c1 = arith.constant 1 : index
    %c7 = arith.constant 7 : index
    %c0_8 = arith.constant 0 : index
    %4 = vector.load %arg11[%c0_7, %c1, %c7, %c0_8] : memref<1x18x32x4xf32, #tpu.memory_space<vmem>>, vector<1x16x1x4xf32>
    tpu.vector_store %arg11[%c0_7, %c1, %c7, %c0_8], %1 {strides = array<i32>} : memref<1x18x32x4xf32, #tpu.memory_space<vmem>>, vector<1x16x1x4xf32>,
    %c0_9 = arith.constant 0 : index
    %c1_10 = arith.constant 1 : index
    %c24 = arith.constant 24 : index
    %c0_11 = arith.constant 0 : index
    %5 = vector.load %arg11[%c0_9, %c1_10, %c24, %c0_11] : memref<1x18x32x4xf32, #tpu.memory_space<vmem>>, vector<1x16x1x4xf32>
    tpu.vector_store %arg11[%c0_9, %c1_10, %c24, %c0_11], %1 {strides = array<i32>} : memref<1x18x32x4xf32, #tpu.memory_space<vmem>>, vector<1x16x1x4xf32>,
    %cst_12 = arith.constant 0.000000e+00 : f32
    %6 = vector.broadcast %cst_12 : f32 to vector<1x1x32x32xf32>
    %cst_13 = arith.constant 0.000000e+00 : f32
    %7 = vector.broadcast %cst_13 : f32 to vector<1x16x1x32xf32>
    %c0_14 = arith.constant 0 : index
    %c0_15 = arith.constant 0 : index
    %c0_16 = arith.constant 0 : index
    %c0_17 = arith.constant 0 : index
    %8 = vector.load %arg12[%c0_14, %c0_15, %c0_16, %c0_17] : memref<1x18x32x32xf32, #tpu.memory_space<vmem>>, vector<1x1x32x32xf32>
    tpu.vector_store %arg12[%c0_14, %c0_15, %c0_16, %c0_17], %6 {strides = array<i32>} : memref<1x18x32x32xf32, #tpu.memory_space<vmem>>, vector<1x1x32x32xf32>,
    %c0_18 = arith.constant 0 : index
    %c17_19 = arith.constant 17 : index
    %c0_20 = arith.constant 0 : index
    %c0_21 = arith.constant 0 : index
    %9 = vector.load %arg12[%c0_18, %c17_19, %c0_20, %c0_21] : memref<1x18x32x32xf32, #tpu.memory_space<vmem>>, vector<1x1x32x32xf32>
    tpu.vector_store %arg12[%c0_18, %c17_19, %c0_20, %c0_21], %6 {strides = array<i32>} : memref<1x18x32x32xf32, #tpu.memory_space<vmem>>, vector<1x1x32x32xf32>,
    %c0_22 = arith.constant 0 : index
    %c1_23 = arith.constant 1 : index
    %c7_24 = arith.constant 7 : index
    %c0_25 = arith.constant 0 : index
    %10 = vector.load %arg12[%c0_22, %c1_23, %c7_24, %c0_25] : memref<1x18x32x32xf32, #tpu.memory_space<vmem>>, vector<1x16x1x32xf32>
    tpu.vector_store %arg12[%c0_22, %c1_23, %c7_24, %c0_25], %7 {strides = array<i32>} : memref<1x18x32x32xf32, #tpu.memory_space<vmem>>, vector<1x16x1x32xf32>,
    %c0_26 = arith.constant 0 : index
    %c1_27 = arith.constant 1 : index
    %c24_28 = arith.constant 24 : index
    %c0_29 = arith.constant 0 : index
    %11 = vector.load %arg12[%c0_26, %c1_27, %c24_28, %c0_29] : memref<1x18x32x32xf32, #tpu.memory_space<vmem>>, vector<1x16x1x32xf32>
    tpu.vector_store %arg12[%c0_26, %c1_27, %c24_28, %c0_29], %7 {strides = array<i32>} : memref<1x18x32x32xf32, #tpu.memory_space<vmem>>, vector<1x16x1x32xf32>,
    %c0_30 = arith.constant 0 : index
    %c0_31 = arith.constant 0 : index
    %c0_32 = arith.constant 0 : index
    %c0_33 = arith.constant 0 : index
    %12 = vector.load %arg1[%c0_30, %c0_31, %c0_32, %c0_33] : memref<1x16x16x4xf32, #tpu.memory_space<vmem>>, vector<1x16x16x4xf32>
    %c0_34 = arith.constant 0 : index
    %c1_35 = arith.constant 1 : index
    %c8 = arith.constant 8 : index
    %c0_36 = arith.constant 0 : index
    %13 = vector.load %arg11[%c0_34, %c1_35, %c8, %c0_36] : memref<1x18x32x4xf32, #tpu.memory_space<vmem>>, vector<1x16x16x4xf32>
    tpu.vector_store %arg11[%c0_34, %c1_35, %c8, %c0_36], %12 {strides = array<i32>} : memref<1x18x32x4xf32, #tpu.memory_space<vmem>>, vector<1x16x16x4xf32>,
    %c0_37 = arith.constant 0 : index
    %c0_38 = arith.constant 0 : index
    %14 = vector.load %arg2[%c0_37, %c0_38] : memref<36x32xf32, #tpu.memory_space<vmem>>, vector<36x32xf32>
    %c0_39 = arith.constant 0 : index
    %c0_40 = arith.constant 0 : index
    %15 = vector.load %arg3[%c0_39, %c0_40] : memref<1x32xf32, #tpu.memory_space<vmem>>, vector<1x32xf32>
    %cst_41 = arith.constant 0.000000e+00 : f32
    %16 = vector.broadcast %cst_41 : f32 to vector<256x32xf32>
    %c0_42 = arith.constant 0 : index
    %c0_43 = arith.constant 0 : index
    %c7_44 = arith.constant 7 : index
    %c0_45 = arith.constant 0 : index
    %17 = vector.load %arg11[%c0_42, %c0_43, %c7_44, %c0_45] : memref<1x18x32x4xf32, #tpu.memory_space<vmem>>, vector<1x16x16x4xf32>
    %18 = vector.shape_cast %17 : vector<1x16x16x4xf32> to vector<256x4xf32>
    %19 = vector.extract_strided_slice %14 {offsets = [0, 0], sizes = [4, 32], strides = [1, 1]} : vector<36x32xf32> to vector<4x32xf32>
    %cst_46 = arith.constant dense<0.000000e+00> : vector<256x32xf32>
    %20 = tpu.matmul %18, %19, %cst_46 {dimension_numbers = #tpu.dot_dimension_numbers<[1], [0], [0], [1], [0, 0, 1, 1], [], []>} : vector<256x4xf32>, vector<4x32xf32>, vector<256x32xf32> -> vector<256x32xf32>
    %21 = arith.addf %16, %20 : vector<256x32xf32>
    %c0_47 = arith.constant 0 : index
    %c0_48 = arith.constant 0 : index
    %c8_49 = arith.constant 8 : index
    %c0_50 = arith.constant 0 : index
    %22 = vector.load %arg11[%c0_47, %c0_48, %c8_49, %c0_50] : memref<1x18x32x4xf32, #tpu.memory_space<vmem>>, vector<1x16x16x4xf32>
    %23 = vector.shape_cast %22 : vector<1x16x16x4xf32> to vector<256x4xf32>
    %24 = vector.extract_strided_slice %14 {offsets = [4, 0], sizes = [4, 32], strides = [1, 1]} : vector<36x32xf32> to vector<4x32xf32>
    %cst_51 = arith.constant dense<0.000000e+00> : vector<256x32xf32>
    %25 = tpu.matmul %23, %24, %cst_51 {dimension_numbers = #tpu.dot_dimension_numbers<[1], [0], [0], [1], [0, 0, 1, 1], [], []>} : vector<256x4xf32>, vector<4x32xf32>, vector<256x32xf32> -> vector<256x32xf32>
    %26 = arith.addf %21, %25 : vector<256x32xf32>
    %c0_52 = arith.constant 0 : index
    %c0_53 = arith.constant 0 : index
    %c9 = arith.constant 9 : index
    %c0_54 = arith.constant 0 : index
    %27 = vector.load %arg11[%c0_52, %c0_53, %c9, %c0_54] : memref<1x18x32x4xf32, #tpu.memory_space<vmem>>, vector<1x16x16x4xf32>
    %28 = vector.shape_cast %27 : vector<1x16x16x4xf32> to vector<256x4xf32>
    %29 = vector.extract_strided_slice %14 {offsets = [8, 0], sizes = [4, 32], strides = [1, 1]} : vector<36x32xf32> to vector<4x32xf32>
    %cst_55 = arith.constant dense<0.000000e+00> : vector<256x32xf32>
    %30 = tpu.matmul %28, %29, %cst_55 {dimension_numbers = #tpu.dot_dimension_numbers<[1], [0], [0], [1], [0, 0, 1, 1], [], []>} : vector<256x4xf32>, vector<4x32xf32>, vector<256x32xf32> -> vector<256x32xf32>
    %31 = arith.addf %26, %30 : vector<256x32xf32>
    %c0_56 = arith.constant 0 : index
    %c1_57 = arith.constant 1 : index
    %c7_58 = arith.constant 7 : index
    %c0_59 = arith.constant 0 : index
    %32 = vector.load %arg11[%c0_56, %c1_57, %c7_58, %c0_59] : memref<1x18x32x4xf32, #tpu.memory_space<vmem>>, vector<1x16x16x4xf32>
    %33 = vector.shape_cast %32 : vector<1x16x16x4xf32> to vector<256x4xf32>
    %34 = vector.extract_strided_slice %14 {offsets = [12, 0], sizes = [4, 32], strides = [1, 1]} : vector<36x32xf32> to vector<4x32xf32>
    %cst_60 = arith.constant dense<0.000000e+00> : vector<256x32xf32>
    %35 = tpu.matmul %33, %34, %cst_60 {dimension_numbers = #tpu.dot_dimension_numbers<[1], [0], [0], [1], [0, 0, 1, 1], [], []>} : vector<256x4xf32>, vector<4x32xf32>, vector<256x32xf32> -> vector<256x32xf32>
    %36 = arith.addf %31, %35 : vector<256x32xf32>
    %c0_61 = arith.constant 0 : index
    %c1_62 = arith.constant 1 : index
    %c8_63 = arith.constant 8 : index
    %c0_64 = arith.constant 0 : index
    %37 = vector.load %arg11[%c0_61, %c1_62, %c8_63, %c0_64] : memref<1x18x32x4xf32, #tpu.memory_space<vmem>>, vector<1x16x16x4xf32>
    %38 = vector.shape_cast %37 : vector<1x16x16x4xf32> to vector<256x4xf32>
    %39 = vector.extract_strided_slice %14 {offsets = [16, 0], sizes = [4, 32], strides = [1, 1]} : vector<36x32xf32> to vector<4x32xf32>
    %cst_65 = arith.constant dense<0.000000e+00> : vector<256x32xf32>
    %40 = tpu.matmul %38, %39, %cst_65 {dimension_numbers = #tpu.dot_dimension_numbers<[1], [0], [0], [1], [0, 0, 1, 1], [], []>} : vector<256x4xf32>, vector<4x32xf32>, vector<256x32xf32> -> vector<256x32xf32>
    %41 = arith.addf %36, %40 : vector<256x32xf32>
    %c0_66 = arith.constant 0 : index
    %c1_67 = arith.constant 1 : index
    %c9_68 = arith.constant 9 : index
    %c0_69 = arith.constant 0 : index
    %42 = vector.load %arg11[%c0_66, %c1_67, %c9_68, %c0_69] : memref<1x18x32x4xf32, #tpu.memory_space<vmem>>, vector<1x16x16x4xf32>
    %43 = vector.shape_cast %42 : vector<1x16x16x4xf32> to vector<256x4xf32>
    %44 = vector.extract_strided_slice %14 {offsets = [20, 0], sizes = [4, 32], strides = [1, 1]} : vector<36x32xf32> to vector<4x32xf32>
    %cst_70 = arith.constant dense<0.000000e+00> : vector<256x32xf32>
    %45 = tpu.matmul %43, %44, %cst_70 {dimension_numbers = #tpu.dot_dimension_numbers<[1], [0], [0], [1], [0, 0, 1, 1], [], []>} : vector<256x4xf32>, vector<4x32xf32>, vector<256x32xf32> -> vector<256x32xf32>
    %46 = arith.addf %41, %45 : vector<256x32xf32>
    %c0_71 = arith.constant 0 : index
    %c2 = arith.constant 2 : index
    %c7_72 = arith.constant 7 : index
    %c0_73 = arith.constant 0 : index
    %47 = vector.load %arg11[%c0_71, %c2, %c7_72, %c0_73] : memref<1x18x32x4xf32, #tpu.memory_space<vmem>>, vector<1x16x16x4xf32>
    %48 = vector.shape_cast %47 : vector<1x16x16x4xf32> to vector<256x4xf32>
    %49 = vector.extract_strided_slice %14 {offsets = [24, 0], sizes = [4, 32], strides = [1, 1]} : vector<36x32xf32> to vector<4x32xf32>
    %cst_74 = arith.constant dense<0.000000e+00> : vector<256x32xf32>
    %50 = tpu.matmul %48, %49, %cst_74 {dimension_numbers = #tpu.dot_dimension_numbers<[1], [0], [0], [1], [0, 0, 1, 1], [], []>} : vector<256x4xf32>, vector<4x32xf32>, vector<256x32xf32> -> vector<256x32xf32>
    %51 = arith.addf %46, %50 : vector<256x32xf32>
    %c0_75 = arith.constant 0 : index
    %c2_76 = arith.constant 2 : index
    %c8_77 = arith.constant 8 : index
    %c0_78 = arith.constant 0 : index
    %52 = vector.load %arg11[%c0_75, %c2_76, %c8_77, %c0_78] : memref<1x18x32x4xf32, #tpu.memory_space<vmem>>, vector<1x16x16x4xf32>
    %53 = vector.shape_cast %52 : vector<1x16x16x4xf32> to vector<256x4xf32>
    %54 = vector.extract_strided_slice %14 {offsets = [28, 0], sizes = [4, 32], strides = [1, 1]} : vector<36x32xf32> to vector<4x32xf32>
    %cst_79 = arith.constant dense<0.000000e+00> : vector<256x32xf32>
    %55 = tpu.matmul %53, %54, %cst_79 {dimension_numbers = #tpu.dot_dimension_numbers<[1], [0], [0], [1], [0, 0, 1, 1], [], []>} : vector<256x4xf32>, vector<4x32xf32>, vector<256x32xf32> -> vector<256x32xf32>
    %56 = arith.addf %51, %55 : vector<256x32xf32>
    %c0_80 = arith.constant 0 : index
    %c2_81 = arith.constant 2 : index
    %c9_82 = arith.constant 9 : index
    %c0_83 = arith.constant 0 : index
    %57 = vector.load %arg11[%c0_80, %c2_81, %c9_82, %c0_83] : memref<1x18x32x4xf32, #tpu.memory_space<vmem>>, vector<1x16x16x4xf32>
    %58 = vector.shape_cast %57 : vector<1x16x16x4xf32> to vector<256x4xf32>
    %59 = vector.extract_strided_slice %14 {offsets = [32, 0], sizes = [4, 32], strides = [1, 1]} : vector<36x32xf32> to vector<4x32xf32>
    %cst_84 = arith.constant dense<0.000000e+00> : vector<256x32xf32>
    %60 = tpu.matmul %58, %59, %cst_84 {dimension_numbers = #tpu.dot_dimension_numbers<[1], [0], [0], [1], [0, 0, 1, 1], [], []>} : vector<256x4xf32>, vector<4x32xf32>, vector<256x32xf32> -> vector<256x32xf32>
    %61 = arith.addf %56, %60 : vector<256x32xf32>
    %62 = vector.broadcast %15 : vector<1x32xf32> to vector<256x32xf32>
    %63 = arith.addf %61, %62 : vector<256x32xf32>
    %cst_85 = arith.constant 0.000000e+00 : f32
    %64 = vector.broadcast %cst_85 : f32 to vector<256x32xf32>
    %65 = arith.maximumf %63, %64 : vector<256x32xf32>
    %66 = vector.shape_cast %65 : vector<256x32xf32> to vector<1x16x16x32xf32>
    %c0_86 = arith.constant 0 : index
    %c1_87 = arith.constant 1 : index
    %c8_88 = arith.constant 8 : index
    %c0_89 = arith.constant 0 : index
    %67 = vector.load %arg12[%c0_86, %c1_87, %c8_88, %c0_89] : memref<1x18x32x32xf32, #tpu.memory_space<vmem>>, vector<1x16x16x32xf32>
    tpu.vector_store %arg12[%c0_86, %c1_87, %c8_88, %c0_89], %66 {strides = array<i32>} : memref<1x18x32x32xf32, #tpu.memory_space<vmem>>, vector<1x16x16x32xf32>,
    %c0_90 = arith.constant 0 : index
    %c0_91 = arith.constant 0 : index
    %68 = vector.load %arg4[%c0_90, %c0_91] : memref<288x32xf32, #tpu.memory_space<vmem>>, vector<288x32xf32>
    %c0_92 = arith.constant 0 : index
    %c0_93 = arith.constant 0 : index
    %69 = vector.load %arg5[%c0_92, %c0_93] : memref<1x32xf32, #tpu.memory_space<vmem>>, vector<1x32xf32>
    %cst_94 = arith.constant 0.000000e+00 : f32
    %70 = vector.broadcast %cst_94 : f32 to vector<256x32xf32>
    %c0_95 = arith.constant 0 : index
    %c0_96 = arith.constant 0 : index
    %c7_97 = arith.constant 7 : index
    %c0_98 = arith.constant 0 : index
    %71 = vector.load %arg12[%c0_95, %c0_96, %c7_97, %c0_98] : memref<1x18x32x32xf32, #tpu.memory_space<vmem>>, vector<1x16x16x32xf32>
    %72 = vector.shape_cast %71 : vector<1x16x16x32xf32> to vector<256x32xf32>
    %73 = vector.extract_strided_slice %68 {offsets = [0, 0], sizes = [32, 32], strides = [1, 1]} : vector<288x32xf32> to vector<32x32xf32>
    %cst_99 = arith.constant dense<0.000000e+00> : vector<256x32xf32>
    %74 = tpu.matmul %72, %73, %cst_99 {dimension_numbers = #tpu.dot_dimension_numbers<[1], [0], [0], [1], [0, 0, 1, 1], [], []>} : vector<256x32xf32>, vector<32x32xf32>, vector<256x32xf32> -> vector<256x32xf32>
    %75 = arith.addf %70, %74 : vector<256x32xf32>
    %c0_100 = arith.constant 0 : index
    %c0_101 = arith.constant 0 : index
    %c8_102 = arith.constant 8 : index
    %c0_103 = arith.constant 0 : index
    %76 = vector.load %arg12[%c0_100, %c0_101, %c8_102, %c0_103] : memref<1x18x32x32xf32, #tpu.memory_space<vmem>>, vector<1x16x16x32xf32>
    %77 = vector.shape_cast %76 : vector<1x16x16x32xf32> to vector<256x32xf32>
    %78 = vector.extract_strided_slice %68 {offsets = [32, 0], sizes = [32, 32], strides = [1, 1]} : vector<288x32xf32> to vector<32x32xf32>
    %cst_104 = arith.constant dense<0.000000e+00> : vector<256x32xf32>
    %79 = tpu.matmul %77, %78, %cst_104 {dimension_numbers = #tpu.dot_dimension_numbers<[1], [0], [0], [1], [0, 0, 1, 1], [], []>} : vector<256x32xf32>, vector<32x32xf32>, vector<256x32xf32> -> vector<256x32xf32>
    %80 = arith.addf %75, %79 : vector<256x32xf32>
    %c0_105 = arith.constant 0 : index
    %c0_106 = arith.constant 0 : index
    %c9_107 = arith.constant 9 : index
    %c0_108 = arith.constant 0 : index
    %81 = vector.load %arg12[%c0_105, %c0_106, %c9_107, %c0_108] : memref<1x18x32x32xf32, #tpu.memory_space<vmem>>, vector<1x16x16x32xf32>
    %82 = vector.shape_cast %81 : vector<1x16x16x32xf32> to vector<256x32xf32>
    %83 = vector.extract_strided_slice %68 {offsets = [64, 0], sizes = [32, 32], strides = [1, 1]} : vector<288x32xf32> to vector<32x32xf32>
    %cst_109 = arith.constant dense<0.000000e+00> : vector<256x32xf32>
    %84 = tpu.matmul %82, %83, %cst_109 {dimension_numbers = #tpu.dot_dimension_numbers<[1], [0], [0], [1], [0, 0, 1, 1], [], []>} : vector<256x32xf32>, vector<32x32xf32>, vector<256x32xf32> -> vector<256x32xf32>
    %85 = arith.addf %80, %84 : vector<256x32xf32>
    %c0_110 = arith.constant 0 : index
    %c1_111 = arith.constant 1 : index
    %c7_112 = arith.constant 7 : index
    %c0_113 = arith.constant 0 : index
    %86 = vector.load %arg12[%c0_110, %c1_111, %c7_112, %c0_113] : memref<1x18x32x32xf32, #tpu.memory_space<vmem>>, vector<1x16x16x32xf32>
    %87 = vector.shape_cast %86 : vector<1x16x16x32xf32> to vector<256x32xf32>
    %88 = vector.extract_strided_slice %68 {offsets = [96, 0], sizes = [32, 32], strides = [1, 1]} : vector<288x32xf32> to vector<32x32xf32>
    %cst_114 = arith.constant dense<0.000000e+00> : vector<256x32xf32>
    %89 = tpu.matmul %87, %88, %cst_114 {dimension_numbers = #tpu.dot_dimension_numbers<[1], [0], [0], [1], [0, 0, 1, 1], [], []>} : vector<256x32xf32>, vector<32x32xf32>, vector<256x32xf32> -> vector<256x32xf32>
    %90 = arith.addf %85, %89 : vector<256x32xf32>
    %c0_115 = arith.constant 0 : index
    %c1_116 = arith.constant 1 : index
    %c8_117 = arith.constant 8 : index
    %c0_118 = arith.constant 0 : index
    %91 = vector.load %arg12[%c0_115, %c1_116, %c8_117, %c0_118] : memref<1x18x32x32xf32, #tpu.memory_space<vmem>>, vector<1x16x16x32xf32>
    %92 = vector.shape_cast %91 : vector<1x16x16x32xf32> to vector<256x32xf32>
    %93 = vector.extract_strided_slice %68 {offsets = [128, 0], sizes = [32, 32], strides = [1, 1]} : vector<288x32xf32> to vector<32x32xf32>
    %cst_119 = arith.constant dense<0.000000e+00> : vector<256x32xf32>
    %94 = tpu.matmul %92, %93, %cst_119 {dimension_numbers = #tpu.dot_dimension_numbers<[1], [0], [0], [1], [0, 0, 1, 1], [], []>} : vector<256x32xf32>, vector<32x32xf32>, vector<256x32xf32> -> vector<256x32xf32>
    %95 = arith.addf %90, %94 : vector<256x32xf32>
    %c0_120 = arith.constant 0 : index
    %c1_121 = arith.constant 1 : index
    %c9_122 = arith.constant 9 : index
    %c0_123 = arith.constant 0 : index
    %96 = vector.load %arg12[%c0_120, %c1_121, %c9_122, %c0_123] : memref<1x18x32x32xf32, #tpu.memory_space<vmem>>, vector<1x16x16x32xf32>
    %97 = vector.shape_cast %96 : vector<1x16x16x32xf32> to vector<256x32xf32>
    %98 = vector.extract_strided_slice %68 {offsets = [160, 0], sizes = [32, 32], strides = [1, 1]} : vector<288x32xf32> to vector<32x32xf32>
    %cst_124 = arith.constant dense<0.000000e+00> : vector<256x32xf32>
    %99 = tpu.matmul %97, %98, %cst_124 {dimension_numbers = #tpu.dot_dimension_numbers<[1], [0], [0], [1], [0, 0, 1, 1], [], []>} : vector<256x32xf32>, vector<32x32xf32>, vector<256x32xf32> -> vector<256x32xf32>
    %100 = arith.addf %95, %99 : vector<256x32xf32>
    %c0_125 = arith.constant 0 : index
    %c2_126 = arith.constant 2 : index
    %c7_127 = arith.constant 7 : index
    %c0_128 = arith.constant 0 : index
    %101 = vector.load %arg12[%c0_125, %c2_126, %c7_127, %c0_128] : memref<1x18x32x32xf32, #tpu.memory_space<vmem>>, vector<1x16x16x32xf32>
    %102 = vector.shape_cast %101 : vector<1x16x16x32xf32> to vector<256x32xf32>
    %103 = vector.extract_strided_slice %68 {offsets = [192, 0], sizes = [32, 32], strides = [1, 1]} : vector<288x32xf32> to vector<32x32xf32>
    %cst_129 = arith.constant dense<0.000000e+00> : vector<256x32xf32>
    %104 = tpu.matmul %102, %103, %cst_129 {dimension_numbers = #tpu.dot_dimension_numbers<[1], [0], [0], [1], [0, 0, 1, 1], [], []>} : vector<256x32xf32>, vector<32x32xf32>, vector<256x32xf32> -> vector<256x32xf32>
    %105 = arith.addf %100, %104 : vector<256x32xf32>
    %c0_130 = arith.constant 0 : index
    %c2_131 = arith.constant 2 : index
    %c8_132 = arith.constant 8 : index
    %c0_133 = arith.constant 0 : index
    %106 = vector.load %arg12[%c0_130, %c2_131, %c8_132, %c0_133] : memref<1x18x32x32xf32, #tpu.memory_space<vmem>>, vector<1x16x16x32xf32>
    %107 = vector.shape_cast %106 : vector<1x16x16x32xf32> to vector<256x32xf32>
    %108 = vector.extract_strided_slice %68 {offsets = [224, 0], sizes = [32, 32], strides = [1, 1]} : vector<288x32xf32> to vector<32x32xf32>
    %cst_134 = arith.constant dense<0.000000e+00> : vector<256x32xf32>
    %109 = tpu.matmul %107, %108, %cst_134 {dimension_numbers = #tpu.dot_dimension_numbers<[1], [0], [0], [1], [0, 0, 1, 1], [], []>} : vector<256x32xf32>, vector<32x32xf32>, vector<256x32xf32> -> vector<256x32xf32>
    %110 = arith.addf %105, %109 : vector<256x32xf32>
    %c0_135 = arith.constant 0 : index
    %c2_136 = arith.constant 2 : index
    %c9_137 = arith.constant 9 : index
    %c0_138 = arith.constant 0 : index
    %111 = vector.load %arg12[%c0_135, %c2_136, %c9_137, %c0_138] : memref<1x18x32x32xf32, #tpu.memory_space<vmem>>, vector<1x16x16x32xf32>
    %112 = vector.shape_cast %111 : vector<1x16x16x32xf32> to vector<256x32xf32>
    %113 = vector.extract_strided_slice %68 {offsets = [256, 0], sizes = [32, 32], strides = [1, 1]} : vector<288x32xf32> to vector<32x32xf32>
    %cst_139 = arith.constant dense<0.000000e+00> : vector<256x32xf32>
    %114 = tpu.matmul %112, %113, %cst_139 {dimension_numbers = #tpu.dot_dimension_numbers<[1], [0], [0], [1], [0, 0, 1, 1], [], []>} : vector<256x32xf32>, vector<32x32xf32>, vector<256x32xf32> -> vector<256x32xf32>
    %115 = arith.addf %110, %114 : vector<256x32xf32>
    %116 = vector.broadcast %69 : vector<1x32xf32> to vector<256x32xf32>
    %117 = arith.addf %115, %116 : vector<256x32xf32>
    %cst_140 = arith.constant 0.000000e+00 : f32
    %118 = vector.broadcast %cst_140 : f32 to vector<256x32xf32>
    %119 = arith.maximumf %117, %118 : vector<256x32xf32>
    %120 = vector.shape_cast %119 : vector<256x32xf32> to vector<1x16x16x32xf32>
    %c0_141 = arith.constant 0 : index
    %c1_142 = arith.constant 1 : index
    %c8_143 = arith.constant 8 : index
    %c0_144 = arith.constant 0 : index
    %121 = vector.load %arg12[%c0_141, %c1_142, %c8_143, %c0_144] : memref<1x18x32x32xf32, #tpu.memory_space<vmem>>, vector<1x16x16x32xf32>
    tpu.vector_store %arg12[%c0_141, %c1_142, %c8_143, %c0_144], %120 {strides = array<i32>} : memref<1x18x32x32xf32, #tpu.memory_space<vmem>>, vector<1x16x16x32xf32>,
    %c0_145 = arith.constant 0 : index
    %c0_146 = arith.constant 0 : index
    %122 = vector.load %arg6[%c0_145, %c0_146] : memref<288x32xf32, #tpu.memory_space<vmem>>, vector<288x32xf32>
    %c0_147 = arith.constant 0 : index
    %c0_148 = arith.constant 0 : index
    %123 = vector.load %arg7[%c0_147, %c0_148] : memref<1x32xf32, #tpu.memory_space<vmem>>, vector<1x32xf32>
    %cst_149 = arith.constant 0.000000e+00 : f32
    %124 = vector.broadcast %cst_149 : f32 to vector<256x32xf32>
    %c0_150 = arith.constant 0 : index
    %c0_151 = arith.constant 0 : index
    %c7_152 = arith.constant 7 : index
    %c0_153 = arith.constant 0 : index
    %125 = vector.load %arg12[%c0_150, %c0_151, %c7_152, %c0_153] : memref<1x18x32x32xf32, #tpu.memory_space<vmem>>, vector<1x16x16x32xf32>
    %126 = vector.shape_cast %125 : vector<1x16x16x32xf32> to vector<256x32xf32>
    %127 = vector.extract_strided_slice %122 {offsets = [0, 0], sizes = [32, 32], strides = [1, 1]} : vector<288x32xf32> to vector<32x32xf32>
    %cst_154 = arith.constant dense<0.000000e+00> : vector<256x32xf32>
    %128 = tpu.matmul %126, %127, %cst_154 {dimension_numbers = #tpu.dot_dimension_numbers<[1], [0], [0], [1], [0, 0, 1, 1], [], []>} : vector<256x32xf32>, vector<32x32xf32>, vector<256x32xf32> -> vector<256x32xf32>
    %129 = arith.addf %124, %128 : vector<256x32xf32>
    %c0_155 = arith.constant 0 : index
    %c0_156 = arith.constant 0 : index
    %c8_157 = arith.constant 8 : index
    %c0_158 = arith.constant 0 : index
    %130 = vector.load %arg12[%c0_155, %c0_156, %c8_157, %c0_158] : memref<1x18x32x32xf32, #tpu.memory_space<vmem>>, vector<1x16x16x32xf32>
    %131 = vector.shape_cast %130 : vector<1x16x16x32xf32> to vector<256x32xf32>
    %132 = vector.extract_strided_slice %122 {offsets = [32, 0], sizes = [32, 32], strides = [1, 1]} : vector<288x32xf32> to vector<32x32xf32>
    %cst_159 = arith.constant dense<0.000000e+00> : vector<256x32xf32>
    %133 = tpu.matmul %131, %132, %cst_159 {dimension_numbers = #tpu.dot_dimension_numbers<[1], [0], [0], [1], [0, 0, 1, 1], [], []>} : vector<256x32xf32>, vector<32x32xf32>, vector<256x32xf32> -> vector<256x32xf32>
    %134 = arith.addf %129, %133 : vector<256x32xf32>
    %c0_160 = arith.constant 0 : index
    %c0_161 = arith.constant 0 : index
    %c9_162 = arith.constant 9 : index
    %c0_163 = arith.constant 0 : index
    %135 = vector.load %arg12[%c0_160, %c0_161, %c9_162, %c0_163] : memref<1x18x32x32xf32, #tpu.memory_space<vmem>>, vector<1x16x16x32xf32>
    %136 = vector.shape_cast %135 : vector<1x16x16x32xf32> to vector<256x32xf32>
    %137 = vector.extract_strided_slice %122 {offsets = [64, 0], sizes = [32, 32], strides = [1, 1]} : vector<288x32xf32> to vector<32x32xf32>
    %cst_164 = arith.constant dense<0.000000e+00> : vector<256x32xf32>
    %138 = tpu.matmul %136, %137, %cst_164 {dimension_numbers = #tpu.dot_dimension_numbers<[1], [0], [0], [1], [0, 0, 1, 1], [], []>} : vector<256x32xf32>, vector<32x32xf32>, vector<256x32xf32> -> vector<256x32xf32>
    %139 = arith.addf %134, %138 : vector<256x32xf32>
    %c0_165 = arith.constant 0 : index
    %c1_166 = arith.constant 1 : index
    %c7_167 = arith.constant 7 : index
    %c0_168 = arith.constant 0 : index
    %140 = vector.load %arg12[%c0_165, %c1_166, %c7_167, %c0_168] : memref<1x18x32x32xf32, #tpu.memory_space<vmem>>, vector<1x16x16x32xf32>
    %141 = vector.shape_cast %140 : vector<1x16x16x32xf32> to vector<256x32xf32>
    %142 = vector.extract_strided_slice %122 {offsets = [96, 0], sizes = [32, 32], strides = [1, 1]} : vector<288x32xf32> to vector<32x32xf32>
    %cst_169 = arith.constant dense<0.000000e+00> : vector<256x32xf32>
    %143 = tpu.matmul %141, %142, %cst_169 {dimension_numbers = #tpu.dot_dimension_numbers<[1], [0], [0], [1], [0, 0, 1, 1], [], []>} : vector<256x32xf32>, vector<32x32xf32>, vector<256x32xf32> -> vector<256x32xf32>
    %144 = arith.addf %139, %143 : vector<256x32xf32>
    %c0_170 = arith.constant 0 : index
    %c1_171 = arith.constant 1 : index
    %c8_172 = arith.constant 8 : index
    %c0_173 = arith.constant 0 : index
    %145 = vector.load %arg12[%c0_170, %c1_171, %c8_172, %c0_173] : memref<1x18x32x32xf32, #tpu.memory_space<vmem>>, vector<1x16x16x32xf32>
    %146 = vector.shape_cast %145 : vector<1x16x16x32xf32> to vector<256x32xf32>
    %147 = vector.extract_strided_slice %122 {offsets = [128, 0], sizes = [32, 32], strides = [1, 1]} : vector<288x32xf32> to vector<32x32xf32>
    %cst_174 = arith.constant dense<0.000000e+00> : vector<256x32xf32>
    %148 = tpu.matmul %146, %147, %cst_174 {dimension_numbers = #tpu.dot_dimension_numbers<[1], [0], [0], [1], [0, 0, 1, 1], [], []>} : vector<256x32xf32>, vector<32x32xf32>, vector<256x32xf32> -> vector<256x32xf32>
    %149 = arith.addf %144, %148 : vector<256x32xf32>
    %c0_175 = arith.constant 0 : index
    %c1_176 = arith.constant 1 : index
    %c9_177 = arith.constant 9 : index
    %c0_178 = arith.constant 0 : index
    %150 = vector.load %arg12[%c0_175, %c1_176, %c9_177, %c0_178] : memref<1x18x32x32xf32, #tpu.memory_space<vmem>>, vector<1x16x16x32xf32>
    %151 = vector.shape_cast %150 : vector<1x16x16x32xf32> to vector<256x32xf32>
    %152 = vector.extract_strided_slice %122 {offsets = [160, 0], sizes = [32, 32], strides = [1, 1]} : vector<288x32xf32> to vector<32x32xf32>
    %cst_179 = arith.constant dense<0.000000e+00> : vector<256x32xf32>
    %153 = tpu.matmul %151, %152, %cst_179 {dimension_numbers = #tpu.dot_dimension_numbers<[1], [0], [0], [1], [0, 0, 1, 1], [], []>} : vector<256x32xf32>, vector<32x32xf32>, vector<256x32xf32> -> vector<256x32xf32>
    %154 = arith.addf %149, %153 : vector<256x32xf32>
    %c0_180 = arith.constant 0 : index
    %c2_181 = arith.constant 2 : index
    %c7_182 = arith.constant 7 : index
    %c0_183 = arith.constant 0 : index
    %155 = vector.load %arg12[%c0_180, %c2_181, %c7_182, %c0_183] : memref<1x18x32x32xf32, #tpu.memory_space<vmem>>, vector<1x16x16x32xf32>
    %156 = vector.shape_cast %155 : vector<1x16x16x32xf32> to vector<256x32xf32>
    %157 = vector.extract_strided_slice %122 {offsets = [192, 0], sizes = [32, 32], strides = [1, 1]} : vector<288x32xf32> to vector<32x32xf32>
    %cst_184 = arith.constant dense<0.000000e+00> : vector<256x32xf32>
    %158 = tpu.matmul %156, %157, %cst_184 {dimension_numbers = #tpu.dot_dimension_numbers<[1], [0], [0], [1], [0, 0, 1, 1], [], []>} : vector<256x32xf32>, vector<32x32xf32>, vector<256x32xf32> -> vector<256x32xf32>
    %159 = arith.addf %154, %158 : vector<256x32xf32>
    %c0_185 = arith.constant 0 : index
    %c2_186 = arith.constant 2 : index
    %c8_187 = arith.constant 8 : index
    %c0_188 = arith.constant 0 : index
    %160 = vector.load %arg12[%c0_185, %c2_186, %c8_187, %c0_188] : memref<1x18x32x32xf32, #tpu.memory_space<vmem>>, vector<1x16x16x32xf32>
    %161 = vector.shape_cast %160 : vector<1x16x16x32xf32> to vector<256x32xf32>
    %162 = vector.extract_strided_slice %122 {offsets = [224, 0], sizes = [32, 32], strides = [1, 1]} : vector<288x32xf32> to vector<32x32xf32>
    %cst_189 = arith.constant dense<0.000000e+00> : vector<256x32xf32>
    %163 = tpu.matmul %161, %162, %cst_189 {dimension_numbers = #tpu.dot_dimension_numbers<[1], [0], [0], [1], [0, 0, 1, 1], [], []>} : vector<256x32xf32>, vector<32x32xf32>, vector<256x32xf32> -> vector<256x32xf32>
    %164 = arith.addf %159, %163 : vector<256x32xf32>
    %c0_190 = arith.constant 0 : index
    %c2_191 = arith.constant 2 : index
    %c9_192 = arith.constant 9 : index
    %c0_193 = arith.constant 0 : index
    %165 = vector.load %arg12[%c0_190, %c2_191, %c9_192, %c0_193] : memref<1x18x32x32xf32, #tpu.memory_space<vmem>>, vector<1x16x16x32xf32>
    %166 = vector.shape_cast %165 : vector<1x16x16x32xf32> to vector<256x32xf32>
    %167 = vector.extract_strided_slice %122 {offsets = [256, 0], sizes = [32, 32], strides = [1, 1]} : vector<288x32xf32> to vector<32x32xf32>
    %cst_194 = arith.constant dense<0.000000e+00> : vector<256x32xf32>
    %168 = tpu.matmul %166, %167, %cst_194 {dimension_numbers = #tpu.dot_dimension_numbers<[1], [0], [0], [1], [0, 0, 1, 1], [], []>} : vector<256x32xf32>, vector<32x32xf32>, vector<256x32xf32> -> vector<256x32xf32>
    %169 = arith.addf %164, %168 : vector<256x32xf32>
    %170 = vector.broadcast %123 : vector<1x32xf32> to vector<256x32xf32>
    %171 = arith.addf %169, %170 : vector<256x32xf32>
    %172 = arith.addf %171, %65 : vector<256x32xf32>
    %cst_195 = arith.constant 0.000000e+00 : f32
    %173 = vector.broadcast %cst_195 : f32 to vector<256x32xf32>
    %174 = arith.maximumf %172, %173 : vector<256x32xf32>
    %175 = vector.shape_cast %174 : vector<256x32xf32> to vector<1x256x32xf32>
    %cst_196 = arith.constant dense<0.000000e+00> : vector<1x32xf32>
    %176 = vector.multi_reduction <add>, %175, %cst_196 [1] : vector<1x256x32xf32> to vector<1x32xf32>
    %cst_197 = arith.constant 2.560000e+02 : f32
    %177 = vector.broadcast %cst_197 : f32 to vector<1x32xf32>
    %178 = arith.divf %176, %177 : vector<1x32xf32>
    %c0_198 = arith.constant 0 : index
    %c0_199 = arith.constant 0 : index
    %179 = vector.load %arg8[%c0_198, %c0_199] : memref<32x7xf32, #tpu.memory_space<vmem>>, vector<32x7xf32>
    %cst_200 = arith.constant dense<0.000000e+00> : vector<1x7xf32>
    %180 = tpu.matmul %178, %179, %cst_200 {dimension_numbers = #tpu.dot_dimension_numbers<[1], [0], [0], [1], [0, 0, 1, 1], [], []>} : vector<1x32xf32>, vector<32x7xf32>, vector<1x7xf32> -> vector<1x7xf32>
    %c0_201 = arith.constant 0 : index
    %c0_202 = arith.constant 0 : index
    %181 = vector.load %arg9[%c0_201, %c0_202] : memref<1x7xf32, #tpu.memory_space<vmem>>, vector<1x7xf32>
    %182 = arith.addf %180, %181 : vector<1x7xf32>
    %183 = vector.shape_cast %182 : vector<1x7xf32> to vector<1x1x7xf32>
    %c0_203 = arith.constant 0 : index
    %c0_204 = arith.constant 0 : index
    %c0_205 = arith.constant 0 : index
    %184 = vector.load %arg10[%c0_203, %c0_204, %c0_205] : memref<1x1x7xf32, #tpu.memory_space<vmem>>, vector<1x1x7xf32>
    tpu.vector_store %arg10[%c0_203, %c0_204, %c0_205], %183 {strides = array<i32>} : memref<1x1x7xf32, #tpu.memory_space<vmem>>, vector<1x1x7xf32>,
    return
  }
  func.func @transform_0(%arg0: i32) -> (i32, i32, i32, i32) {
    %c0_i32 = arith.constant 0 : i32
    %c0_i32_0 = arith.constant 0 : i32
    %c0_i32_1 = arith.constant 0 : i32
    %c0_i32_2 = arith.constant 0 : i32
    return %arg0, %c0_i32, %c0_i32_0, %c0_i32_1 : i32, i32, i32, i32
  }
  func.func @transform_1(%arg0: i32) -> (i32, i32) {
    %c0_i32 = arith.constant 0 : i32
    %c0_i32_0 = arith.constant 0 : i32
    %c0_i32_1 = arith.constant 0 : i32
    return %c0_i32, %c0_i32_0 : i32, i32
  }
  func.func @transform_2(%arg0: i32) -> (i32, i32) {
    %c0_i32 = arith.constant 0 : i32
    %c0_i32_0 = arith.constant 0 : i32
    %c0_i32_1 = arith.constant 0 : i32
    return %c0_i32, %c0_i32_0 : i32, i32
  }
  func.func @transform_3(%arg0: i32) -> (i32, i32) {
    %c0_i32 = arith.constant 0 : i32
    %c0_i32_0 = arith.constant 0 : i32
    %c0_i32_1 = arith.constant 0 : i32
    return %c0_i32, %c0_i32_0 : i32, i32
  }
  func.func @transform_4(%arg0: i32) -> (i32, i32) {
    %c0_i32 = arith.constant 0 : i32
    %c0_i32_0 = arith.constant 0 : i32
    %c0_i32_1 = arith.constant 0 : i32
    return %c0_i32, %c0_i32_0 : i32, i32
  }
  func.func @transform_5(%arg0: i32) -> (i32, i32) {
    %c0_i32 = arith.constant 0 : i32
    %c0_i32_0 = arith.constant 0 : i32
    %c0_i32_1 = arith.constant 0 : i32
    return %c0_i32, %c0_i32_0 : i32, i32
  }
  func.func @transform_6(%arg0: i32) -> (i32, i32) {
    %c0_i32 = arith.constant 0 : i32
    %c0_i32_0 = arith.constant 0 : i32
    %c0_i32_1 = arith.constant 0 : i32
    return %c0_i32, %c0_i32_0 : i32, i32
  }
  func.func @transform_7(%arg0: i32) -> (i32, i32) {
    %c0_i32 = arith.constant 0 : i32
    %c0_i32_0 = arith.constant 0 : i32
    %c0_i32_1 = arith.constant 0 : i32
    return %c0_i32, %c0_i32_0 : i32, i32
  }
  func.func @transform_8(%arg0: i32) -> (i32, i32) {
    %c0_i32 = arith.constant 0 : i32
    %c0_i32_0 = arith.constant 0 : i32
    %c0_i32_1 = arith.constant 0 : i32
    return %c0_i32, %c0_i32_0 : i32, i32
  }
  func.func @transform_9(%arg0: i32) -> (i32, i32, i32) {
    %c0_i32 = arith.constant 0 : i32
    %c0_i32_0 = arith.constant 0 : i32
    %c0_i32_1 = arith.constant 0 : i32
    return %arg0, %c0_i32, %c0_i32_0 : i32, i32, i32
  }
}

</mosaic_0001>

<llo_original>
// kernel: pretrained_res_forward.1
$region0: #{pretrained_res_forward.1}
  #allocation0 [shape = 'u32[]', space=smem, size = 0x4, offset = 0x4, fixed_abs, tag = 'smem constant byte address 0x4 - core index']
  #allocation1 [shape = 'u32[144,128]{1,0:T(1,128)}', space=vmem, size = 0x12000, scoped, tag = 'internal scratch']
  #allocation2 [shape = 'f32[1,18,32,4]{3,2,1,0:T(8,128)}', space=vmem, size = 0x48000, scoped, tag = 'scratch operand']
  #allocation3 [shape = 'f32[1,18,32,32]{3,2,1,0:T(8,128)}', space=vmem, size = 0x48000, scoped, tag = 'scratch operand']
  %s0 = inlined_call_operand.vmem [shape: f32[2,16,16,4], index: 0, kind: input, shape index: {}]
  %s1 = inlined_call_operand.vmem [shape: f32[36,32], index: 1, kind: input, shape index: {}]
  %s2 = inlined_call_operand.vmem [shape: f32[1,32], index: 2, kind: input, shape index: {}]
  %s3 = inlined_call_operand.vmem [shape: f32[288,32], index: 3, kind: input, shape index: {}]
  %s4 = inlined_call_operand.vmem [shape: f32[1,32], index: 4, kind: input, shape index: {}]
  %s5 = inlined_call_operand.vmem [shape: f32[288,32], index: 5, kind: input, shape index: {}]
  %s6 = inlined_call_operand.vmem [shape: f32[1,32], index: 6, kind: input, shape index: {}]
  %s7 = inlined_call_operand.vmem [shape: f32[32,7], index: 7, kind: input, shape index: {}]
  %s8 = inlined_call_operand.vmem [shape: f32[1,7], index: 8, kind: input, shape index: {}]
  %s9 = inlined_call_operand.vmem [shape: f32[2,1,7], index: 9, kind: output, shape index: {}]
  %s10 = sld [smem:[#allocation0]]
  $region69: #{pretrained_res_forward.1} parent=0
    _
  %s12 = ssub.s32 1, %s10
  %s13 = scalar_select 0, %s12, %s10
  loop: start=0, step=1, limit=4
  $region2: #{pretrained_res_forward.1} parent=0 // loop_pre_header
    _
  $region3: #{pretrained_res_forward.1} parent=0 // loop_header
    %s15 = sphi 0, %s19
    %p16 = scmp.ge.s32.totalorder %s15, 4
    %s25 = sphi 0, %s27
    %s28 = sphi 0, %s25
    %s29 = sphi 0, %s28
    %s45 = sphi 0, %s29
    %s49 = sphi 0, %s49
    %s51 = sphi 0, %s49
    %s52 = sphi 0, %s51
    %s66 = sphi 0, %s52
    %s70 = sphi 0, %s70
    %s72 = sphi 0, %s70
    %s73 = sphi 0, %s72
    %s87 = sphi 0, %s73
    %s91 = sphi 0, %s91
    %s93 = sphi 0, %s91
    %s94 = sphi 0, %s93
    %s108 = sphi 0, %s94
    %s112 = sphi 0, %s112
    %s114 = sphi 0, %s112
    %s115 = sphi 0, %s114
    %s129 = sphi 0, %s115
    %s133 = sphi 0, %s133
    %s135 = sphi 0, %s133
    %s136 = sphi 0, %s135
    %s150 = sphi 0, %s136
    %s154 = sphi 0, %s154
    %s156 = sphi 0, %s154
    %s157 = sphi 0, %s156
    %s171 = sphi 0, %s157
    %s175 = sphi 0, %s175
    %s177 = sphi 0, %s175
    %s178 = sphi 0, %s177
    %s192 = sphi 0, %s178
    %s196 = sphi 0, %s196
    %s198 = sphi 0, %s196
    %s199 = sphi 0, %s198
    %s213 = sphi 0, %s199
    %s219 = sphi 0, %s221
    %s222 = sphi 0, %s219
    %s223 = sphi 0, %s222
    %s239 = sphi 0, %s223
  $region4: #{pretrained_res_forward.1} parent=0 // loop_header_branch
    %18 = sbr.rel (%p16) target = $region8
  $region5: #{pretrained_res_forward.1} parent=0 // loop_body
    %s20 = ssub.s32 %s15, 1
    %s21 = ssub.s32 %s15, 2
    %s22 = sadd.s32 %s15, 1
    %s23 = ssub.s32 %s15, %s22
    %p24 = scmp.eq.s32.totalorder %s23, 0
    %s26 = sadd.s32 %s25, 1
    %s27 = scalar_select %p24, %s25, %s26
    %p30 = pneg %p24
    %p31 = scmp.eq.s32.totalorder %s15, 1
    %p32 = por %p30, %p31
    %p33 = scmp.ne.s32.totalorder %s25, %s28
    %p34 = scmp.eq.s32.totalorder %s15, 0
    %p35 = por %p33, %p34
    %p36 = scmp.ne.s32.totalorder %s25, %s28
    %p37 = scmp.eq.s32.totalorder %s20, 1
    %p38 = por %p36, %p37
    %p39 = scmp.ne.s32.totalorder %s28, %s29
    %p40 = scmp.eq.s32.totalorder %s20, 0
    %p41 = por %p39, %p40
    %p42 = scmp.ne.s32.totalorder %s28, %s29
    %p43 = scmp.eq.s32.totalorder %s21, 1
    %p44 = por %p42, %p43
    %p46 = scmp.ne.s32.totalorder %s29, %s45
    %p47 = scmp.eq.s32.totalorder %s21, 0
    %p48 = por %p46, %p47
    %s50 = sadd.s32 %s49, 1
    %p53 = scmp.eq.s32.totalorder %s15, 1
    %p54 = scmp.ne.s32.totalorder %s49, %s51
    %p55 = scmp.eq.s32.totalorder %s15, 0
    %p56 = por %p54, %p55
    %p57 = scmp.ne.s32.totalorder %s49, %s51
    %p58 = scmp.eq.s32.totalorder %s20, 1
    %p59 = por %p57, %p58
    %p60 = scmp.ne.s32.totalorder %s51, %s52
    %p61 = scmp.eq.s32.totalorder %s20, 0
    %p62 = por %p60, %p61
    %p63 = scmp.ne.s32.totalorder %s51, %s52
    %p64 = scmp.eq.s32.totalorder %s21, 1
    %p65 = por %p63, %p64
    %p67 = scmp.ne.s32.totalorder %s52, %s66
    %p68 = scmp.eq.s32.totalorder %s21, 0
    %p69 = por %p67, %p68
    %s71 = sadd.s32 %s70, 1
    %p74 = scmp.eq.s32.totalorder %s15, 1
    %p75 = scmp.ne.s32.totalorder %s70, %s72
    %p76 = scmp.eq.s32.totalorder %s15, 0
    %p77 = por %p75, %p76
    %p78 = scmp.ne.s32.totalorder %s70, %s72
    %p79 = scmp.eq.s32.totalorder %s20, 1
    %p80 = por %p78, %p79
    %p81 = scmp.ne.s32.totalorder %s72, %s73
    %p82 = scmp.eq.s32.totalorder %s20, 0
    %p83 = por %p81, %p82
    %p84 = scmp.ne.s32.totalorder %s72, %s73
    %p85 = scmp.eq.s32.totalorder %s21, 1
    %p86 = por %p84, %p85
    %p88 = scmp.ne.s32.totalorder %s73, %s87
    %p89 = scmp.eq.s32.totalorder %s21, 0
    %p90 = por %p88, %p89
    %s92 = sadd.s32 %s91, 1
    %p95 = scmp.eq.s32.totalorder %s15, 1
    %p96 = scmp.ne.s32.totalorder %s91, %s93
    %p97 = scmp.eq.s32.totalorder %s15, 0
    %p98 = por %p96, %p97
    %p99 = scmp.ne.s32.totalorder %s91, %s93
    %p100 = scmp.eq.s32.totalorder %s20, 1
    %p101 = por %p99, %p100
    %p102 = scmp.ne.s32.totalorder %s93, %s94
    %p103 = scmp.eq.s32.totalorder %s20, 0
    %p104 = por %p102, %p103
    %p105 = scmp.ne.s32.totalorder %s93, %s94
    %p106 = scmp.eq.s32.totalorder %s21, 1
    %p107 = por %p105, %p106
    %p109 = scmp.ne.s32.totalorder %s94, %s108
    %p110 = scmp.eq.s32.totalorder %s21, 0
    %p111 = por %p109, %p110
    %s113 = sadd.s32 %s112, 1
    %p116 = scmp.eq.s32.totalorder %s15, 1
    %p117 = scmp.ne.s32.totalorder %s112, %s114
    %p118 = scmp.eq.s32.totalorder %s15, 0
    %p119 = por %p117, %p118
    %p120 = scmp.ne.s32.totalorder %s112, %s114
    %p121 = scmp.eq.s32.totalorder %s20, 1
    %p122 = por %p120, %p121
    %p123 = scmp.ne.s32.totalorder %s114, %s115
    %p124 = scmp.eq.s32.totalorder %s20, 0
    %p125 = por %p123, %p124
    %p126 = scmp.ne.s32.totalorder %s114, %s115
    %p127 = scmp.eq.s32.totalorder %s21, 1
    %p128 = por %p126, %p127
    %p130 = scmp.ne.s32.totalorder %s115, %s129
    %p131 = scmp.eq.s32.totalorder %s21, 0
    %p132 = por %p130, %p131
    %s134 = sadd.s32 %s133, 1
    %p137 = scmp.eq.s32.totalorder %s15, 1
    %p138 = scmp.ne.s32.totalorder %s133, %s135
    %p139 = scmp.eq.s32.totalorder %s15, 0
    %p140 = por %p138, %p139
    %p141 = scmp.ne.s32.totalorder %s133, %s135
    %p142 = scmp.eq.s32.totalorder %s20, 1
    %p143 = por %p141, %p142
    %p144 = scmp.ne.s32.totalorder %s135, %s136
    %p145 = scmp.eq.s32.totalorder %s20, 0
    %p146 = por %p144, %p145
    %p147 = scmp.ne.s32.totalorder %s135, %s136
    %p148 = scmp.eq.s32.totalorder %s21, 1
    %p149 = por %p147, %p148
    %p151 = scmp.ne.s32.totalorder %s136, %s150
    %p152 = scmp.eq.s32.totalorder %s21, 0
    %p153 = por %p151, %p152
    %s155 = sadd.s32 %s154, 1
    %p158 = scmp.eq.s32.totalorder %s15, 1
    %p159 = scmp.ne.s32.totalorder %s154, %s156
    %p160 = scmp.eq.s32.totalorder %s15, 0
    %p161 = por %p159, %p160
    %p162 = scmp.ne.s32.totalorder %s154, %s156
    %p163 = scmp.eq.s32.totalorder %s20, 1
    %p164 = por %p162, %p163
    %p165 = scmp.ne.s32.totalorder %s156, %s157
    %p166 = scmp.eq.s32.totalorder %s20, 0
    %p167 = por %p165, %p166
    %p168 = scmp.ne.s32.totalorder %s156, %s157
    %p169 = scmp.eq.s32.totalorder %s21, 1
    %p170 = por %p168, %p169
    %p172 = scmp.ne.s32.totalorder %s157, %s171
    %p173 = scmp.eq.s32.totalorder %s21, 0
    %p174 = por %p172, %p173
    %s176 = sadd.s32 %s175, 1
    %p179 = scmp.eq.s32.totalorder %s15, 1
    %p180 = scmp.ne.s32.totalorder %s175, %s177
    %p181 = scmp.eq.s32.totalorder %s15, 0
    %p182 = por %p180, %p181
    %p183 = scmp.ne.s32.totalorder %s175, %s177
    %p184 = scmp.eq.s32.totalorder %s20, 1
    %p185 = por %p183, %p184
    %p186 = scmp.ne.s32.totalorder %s177, %s178
    %p187 = scmp.eq.s32.totalorder %s20, 0
    %p188 = por %p186, %p187
    %p189 = scmp.ne.s32.totalorder %s177, %s178
    %p190 = scmp.eq.s32.totalorder %s21, 1
    %p191 = por %p189, %p190
    %p193 = scmp.ne.s32.totalorder %s178, %s192
    %p194 = scmp.eq.s32.totalorder %s21, 0
    %p195 = por %p193, %p194
    %s197 = sadd.s32 %s196, 1
    %p200 = scmp.eq.s32.totalorder %s15, 1
    %p201 = scmp.ne.s32.totalorder %s196, %s198
    %p202 = scmp.eq.s32.totalorder %s15, 0
    %p203 = por %p201, %p202
    %p204 = scmp.ne.s32.totalorder %s196, %s198
    %p205 = scmp.eq.s32.totalorder %s20, 1
    %p206 = por %p204, %p205
    %p207 = scmp.ne.s32.totalorder %s198, %s199
    %p208 = scmp.eq.s32.totalorder %s20, 0
    %p209 = por %p207, %p208
    %p210 = scmp.ne.s32.totalorder %s198, %s199
    %p211 = scmp.eq.s32.totalorder %s21, 1
    %p212 = por %p210, %p211
    %p214 = scmp.ne.s32.totalorder %s199, %s213
    %p215 = scmp.eq.s32.totalorder %s21, 0
    %p216 = por %p214, %p215
    %s217 = ssub.s32 %s15, %s22
    %p218 = scmp.eq.s32.totalorder %s217, 0
    %s220 = sadd.s32 %s219, 1
    %s221 = scalar_select %p218, %s219, %s220
    %p224 = pneg %p218
    %p225 = scmp.eq.s32.totalorder %s15, 1
    %p226 = por %p224, %p225
    %p227 = scmp.ne.s32.totalorder %s219, %s222
    %p228 = scmp.eq.s32.totalorder %s15, 0
    %p229 = por %p227, %p228
    %p230 = scmp.ne.s32.totalorder %s219, %s222
    %p231 = scmp.eq.s32.totalorder %s20, 1
    %p232 = por %p230, %p231
    %p233 = scmp.ne.s32.totalorder %s222, %s223
    %p234 = scmp.eq.s32.totalorder %s20, 0
    %p235 = por %p233, %p234
    %p236 = scmp.ne.s32.totalorder %s222, %s223
    %p237 = scmp.eq.s32.totalorder %s21, 1
    %p238 = por %p236, %p237
    %p240 = scmp.ne.s32.totalorder %s223, %s239
    %p241 = scmp.eq.s32.totalorder %s21, 0
    %p242 = por %p240, %p241
    %p243 = scmp.le.s32.totalorder 1, %s15
    %p244 = scmp.lt.s32.totalorder %s15, 3
    %p245 = pnand %p243, %p244
    %p246 = pneg %p245
    // Predicated region
    $region9: #{pretrained_res_forward.1} parent=5 // pred_check
      _
    $region10: #{pretrained_res_forward.1} parent=5 // pred_check_branch
      %248 = sbr.rel (%p245) target = $region12
    $region11: #{pretrained_res_forward.1} parent=5 // pred_region
      %s249 = ssub.s32 %s15, 1
      // Predicated region
      $region13: #{pretrained_res_forward.1} parent=11 // pred_check
        %p250 = pneg %p62
      $region14: #{pretrained_res_forward.1} parent=11 // pred_check_branch
        %252 = sbr.rel (%p250) target = $region16
      $region15: #{pretrained_res_forward.1} parent=11 // pred_region
        _
      $region16: #{pretrained_res_forward.1} parent=11 // pred_fallthru
        _
      // Predicated region
      $region17: #{pretrained_res_forward.1} parent=11 // pred_check
        %p253 = pneg %p83
      $region18: #{pretrained_res_forward.1} parent=11 // pred_check_branch
        %255 = sbr.rel (%p253) target = $region20
      $region19: #{pretrained_res_forward.1} parent=11 // pred_region
        _
      $region20: #{pretrained_res_forward.1} parent=11 // pred_fallthru
        _
      // Predicated region
      $region21: #{pretrained_res_forward.1} parent=11 // pred_check
        %p256 = pneg %p104
      $region22: #{pretrained_res_forward.1} parent=11 // pred_check_branch
        %258 = sbr.rel (%p256) target = $region24
      $region23: #{pretrained_res_forward.1} parent=11 // pred_region
        _
      $region24: #{pretrained_res_forward.1} parent=11 // pred_fallthru
        _
      // Predicated region
      $region25: #{pretrained_res_forward.1} parent=11 // pred_check
        %p259 = pneg %p125
      $region26: #{pretrained_res_forward.1} parent=11 // pred_check_branch
        %261 = sbr.rel (%p259) target = $region28
      $region27: #{pretrained_res_forward.1} parent=11 // pred_region
        _
      $region28: #{pretrained_res_forward.1} parent=11 // pred_fallthru
        _
      // Predicated region
      $region29: #{pretrained_res_forward.1} parent=11 // pred_check
        %p262 = pneg %p146
      $region30: #{pretrained_res_forward.1} parent=11 // pred_check_branch
        %264 = sbr.rel (%p262) target = $region32
      $region31: #{pretrained_res_forward.1} parent=11 // pred_region
        _
      $region32: #{pretrained_res_forward.1} parent=11 // pred_fallthru
        _
      // Predicated region
      $region33: #{pretrained_res_forward.1} parent=11 // pred_check
        %p265 = pneg %p167
      $region34: #{pretrained_res_forward.1} parent=11 // pred_check_branch
        %267 = sbr.rel (%p265) target = $region36
      $region35: #{pretrained_res_forward.1} parent=11 // pred_region
        _
      $region36: #{pretrained_res_forward.1} parent=11 // pred_fallthru
        _
      // Predicated region
      $region37: #{pretrained_res_forward.1} parent=11 // pred_check
        %p268 = pneg %p188
      $region38: #{pretrained_res_forward.1} parent=11 // pred_check_branch
        %270 = sbr.rel (%p268) target = $region40
      $region39: #{pretrained_res_forward.1} parent=11 // pred_region
        _
      $region40: #{pretrained_res_forward.1} parent=11 // pred_fallthru
        _
      // Predicated region
      $region41: #{pretrained_res_forward.1} parent=11 // pred_check
        %p271 = pneg %p209
      $region42: #{pretrained_res_forward.1} parent=11 // pred_check_branch
        %273 = sbr.rel (%p271) target = $region44
      $region43: #{pretrained_res_forward.1} parent=11 // pred_region
        _
      $region44: #{pretrained_res_forward.1} parent=11 // pred_fallthru
        _
    $region12: #{pretrained_res_forward.1} parent=5 // pred_fallthru
      _
    %p274 = scmp.lt.s32.totalorder %s15, 2
    // Predicated region
    $region45: #{pretrained_res_forward.1} parent=5 // pred_check
      %p275 = pneg %p274
    $region46: #{pretrained_res_forward.1} parent=5 // pred_check_branch
      %277 = sbr.rel (%p275) target = $region48
    $region47: #{pretrained_res_forward.1} parent=5 // pred_region
      // Predicated region
      $region49: #{pretrained_res_forward.1} parent=47 // pred_check
        %p278 = pneg %p35
      $region50: #{pretrained_res_forward.1} parent=47 // pred_check_branch
        %280 = sbr.rel (%p278) target = $region52
      $region51: #{pretrained_res_forward.1} parent=47 // pred_region
        %p281 = scmp.lt.s32.totalorder %s15, 1
        %s282 = scalar_select %p281, %s15, 1
        %s283 = smul.addr %s282, 32
        %s284 = smul.addr %s283, 8
        %s285 = scalar_lea.vmem %s0, %s284
      $region52: #{pretrained_res_forward.1} parent=47 // pred_fallthru
        _
    $region48: #{pretrained_res_forward.1} parent=5 // pred_fallthru
      _
    %p286 = scmp.le.s32.totalorder 1, %s15
    %p287 = scmp.lt.s32.totalorder %s15, 3
    %p288 = pnand %p286, %p287
    %p289 = pneg %p288
    // Predicated region
    $region53: #{pretrained_res_forward.1} parent=5 // pred_check
      _
    $region54: #{pretrained_res_forward.1} parent=5 // pred_check_branch
      %291 = sbr.rel (%p288) target = $region56
    $region55: #{pretrained_res_forward.1} parent=5 // pred_region
      %s292 = ssub.s32 %s15, 1
      %p293 = scmp.lt.s32.totalorder %s20, 1
      %s294 = scalar_select %p293, %s20, 1
      %s295 = smul.addr %s294, 32
      %s296 = smul.addr %s295, 8
      %s297 = scalar_lea.vmem %s0, %s296
      %p298 = pneg %p41
      %p299 = pneg %p38
      %p300 = pneg %p62
      %p301 = pneg %p59
      %p302 = pneg %p83
      %p303 = pneg %p80
      %p304 = pneg %p104
      %p305 = pneg %p101
      %p306 = pneg %p125
      %p307 = pneg %p122
      %p308 = pneg %p146
      %p309 = pneg %p143
      %p310 = pneg %p167
      %p311 = pneg %p164
      %p312 = pneg %p188
      %p313 = pneg %p185
      %p314 = pneg %p209
      %p315 = pneg %p206
      %p316 = pneg %p235
      %p317 = pneg %p232
      %p318 = scmp.lt.s32.totalorder %s20, 1
      %s319 = scalar_select %p318, %s20, 1
      %s320 = scalar_lea.vmem %s9, %s319
      %p321 = scmp.lt.s32.totalorder %s20, 1
      %s322 = scalar_select %p321, %s20, 1
      %s323 = smul.addr %s322, 32
      %s324 = smul.addr %s323, 8
      %s325 = scalar_lea.vmem %s0, %s324
      %p326 = scmp.lt.s32.totalorder %s20, 1
      %s327 = scalar_select %p326, %s20, 1
      %s328 = scalar_lea.vmem %s9, %s327
      %vm329 = vcmask 31744
      %330 = vst.msk [vmem:[#allocation2] sm:$0xff] %vm329, 0.0
      %331 = vst.msk [vmem:[#allocation2 + $0x8] sm:$0xff] %vm329, 0.0
      %332 = vst.msk [vmem:[#allocation2 + $0x10] sm:$0xff] %vm329, 0.0
      %333 = vst.msk [vmem:[#allocation2 + $0x18] sm:$0xff] %vm329, 0.0
      %s334 = scalar_lea.vmem [#allocation2], 544
      %335 = vst.msk [vmem:[%s334] sm:$0xff] %vm329, 0.0
      %336 = vst.msk [vmem:[%s334 + $0x8] sm:$0xff] %vm329, 0.0
      %337 = vst.msk [vmem:[%s334 + $0x10] sm:$0xff] %vm329, 0.0
      %338 = vst.msk [vmem:[%s334 + $0x18] sm:$0xff] %vm329, 0.0
      %s339 = scalar_lea.vmem [#allocation2], 32
      %vm340 = vcmask 24576
      %341 = vst.msk [vmem:[%s339 + $0x7] sm:$0x1] %vm340, 0.0
      %342 = vst.msk [vmem:[%s339 + $0x27] sm:$0x1] %vm340, 0.0
      %343 = vst.msk [vmem:[%s339 + $0x47] sm:$0x1] %vm340, 0.0
      %344 = vst.msk [vmem:[%s339 + $0x67] sm:$0x1] %vm340, 0.0
      %345 = vst.msk [vmem:[%s339 + $0x87] sm:$0x1] %vm340, 0.0
      %346 = vst.msk [vmem:[%s339 + $0xa7] sm:$0x1] %vm340, 0.0
      %347 = vst.msk [vmem:[%s339 + $0xc7] sm:$0x1] %vm340, 0.0
      %348 = vst.msk [vmem:[%s339 + $0xe7] sm:$0x1] %vm340, 0.0
      %349 = vst.msk [vmem:[%s339 + $0x107] sm:$0x1] %vm340, 0.0
      %350 = vst.msk [vmem:[%s339 + $0x127] sm:$0x1] %vm340, 0.0
      %351 = vst.msk [vmem:[%s339 + $0x147] sm:$0x1] %vm340, 0.0
      %352 = vst.msk [vmem:[%s339 + $0x167] sm:$0x1] %vm340, 0.0
      %353 = vst.msk [vmem:[%s339 + $0x187] sm:$0x1] %vm340, 0.0
      %354 = vst.msk [vmem:[%s339 + $0x1a7] sm:$0x1] %vm340, 0.0
      %355 = vst.msk [vmem:[%s339 + $0x1c7] sm:$0x1] %vm340, 0.0
      %356 = vst.msk [vmem:[%s339 + $0x1e7] sm:$0x1] %vm340, 0.0
      %357 = vst.msk [vmem:[%s339 + $0x18] sm:$0x1] %vm340, 0.0
      %358 = vst.msk [vmem:[%s339 + $0x38] sm:$0x1] %vm340, 0.0
      %359 = vst.msk [vmem:[%s339 + $0x58] sm:$0x1] %vm340, 0.0
      %360 = vst.msk [vmem:[%s339 + $0x78] sm:$0x1] %vm340, 0.0
      %361 = vst.msk [vmem:[%s339 + $0x98] sm:$0x1] %vm340, 0.0
      %362 = vst.msk [vmem:[%s339 + $0xb8] sm:$0x1] %vm340, 0.0
      %363 = vst.msk [vmem:[%s339 + $0xd8] sm:$0x1] %vm340, 0.0
      %364 = vst.msk [vmem:[%s339 + $0xf8] sm:$0x1] %vm340, 0.0
      %365 = vst.msk [vmem:[%s339 + $0x118] sm:$0x1] %vm340, 0.0
      %366 = vst.msk [vmem:[%s339 + $0x138] sm:$0x1] %vm340, 0.0
      %367 = vst.msk [vmem:[%s339 + $0x158] sm:$0x1] %vm340, 0.0
      %368 = vst.msk [vmem:[%s339 + $0x178] sm:$0x1] %vm340, 0.0
      %369 = vst.msk [vmem:[%s339 + $0x198] sm:$0x1] %vm340, 0.0
      %370 = vst.msk [vmem:[%s339 + $0x1b8] sm:$0x1] %vm340, 0.0
      %371 = vst.msk [vmem:[%s339 + $0x1d8] sm:$0x1] %vm340, 0.0
      %372 = vst.msk [vmem:[%s339 + $0x1f8] sm:$0x1] %vm340, 0.0
      %vm373 = vcmask 261120
      %374 = vst.msk [vmem:[#allocation3] sm:$0xff] %vm373, 0.0
      %375 = vst.msk [vmem:[#allocation3 + $0x8] sm:$0xff] %vm373, 0.0
      %376 = vst.msk [vmem:[#allocation3 + $0x10] sm:$0xff] %vm373, 0.0
      %377 = vst.msk [vmem:[#allocation3 + $0x18] sm:$0xff] %vm373, 0.0
      %s378 = scalar_lea.vmem [#allocation3], 544
      %379 = vst.msk [vmem:[%s378] sm:$0xff] %vm373, 0.0
      %380 = vst.msk [vmem:[%s378 + $0x8] sm:$0xff] %vm373, 0.0
      %381 = vst.msk [vmem:[%s378 + $0x10] sm:$0xff] %vm373, 0.0
      %382 = vst.msk [vmem:[%s378 + $0x18] sm:$0xff] %vm373, 0.0
      %s383 = scalar_lea.vmem [#allocation3], 32
      %vm384 = vcmask 253952
      %385 = vst.msk [vmem:[%s383 + $0x7] sm:$0x1] %vm384, 0.0
      %386 = vst.msk [vmem:[%s383 + $0x27] sm:$0x1] %vm384, 0.0
      %387 = vst.msk [vmem:[%s383 + $0x47] sm:$0x1] %vm384, 0.0
      %388 = vst.msk [vmem:[%s383 + $0x67] sm:$0x1] %vm384, 0.0
      %389 = vst.msk [vmem:[%s383 + $0x87] sm:$0x1] %vm384, 0.0
      %390 = vst.msk [vmem:[%s383 + $0xa7] sm:$0x1] %vm384, 0.0
      %391 = vst.msk [vmem:[%s383 + $0xc7] sm:$0x1] %vm384, 0.0
      %392 = vst.msk [vmem:[%s383 + $0xe7] sm:$0x1] %vm384, 0.0
      %393 = vst.msk [vmem:[%s383 + $0x107] sm:$0x1] %vm384, 0.0
      %394 = vst.msk [vmem:[%s383 + $0x127] sm:$0x1] %vm384, 0.0
      %395 = vst.msk [vmem:[%s383 + $0x147] sm:$0x1] %vm384, 0.0
      %396 = vst.msk [vmem:[%s383 + $0x167] sm:$0x1] %vm384, 0.0
      %397 = vst.msk [vmem:[%s383 + $0x187] sm:$0x1] %vm384, 0.0
      %398 = vst.msk [vmem:[%s383 + $0x1a7] sm:$0x1] %vm384, 0.0
      %399 = vst.msk [vmem:[%s383 + $0x1c7] sm:$0x1] %vm384, 0.0
      %400 = vst.msk [vmem:[%s383 + $0x1e7] sm:$0x1] %vm384, 0.0
      %401 = vst.msk [vmem:[%s383 + $0x18] sm:$0x1] %vm384, 0.0
      %402 = vst.msk [vmem:[%s383 + $0x38] sm:$0x1] %vm384, 0.0
      %403 = vst.msk [vmem:[%s383 + $0x58] sm:$0x1] %vm384, 0.0
      %404 = vst.msk [vmem:[%s383 + $0x78] sm:$0x1] %vm384, 0.0
      %405 = vst.msk [vmem:[%s383 + $0x98] sm:$0x1] %vm384, 0.0
      %406 = vst.msk [vmem:[%s383 + $0xb8] sm:$0x1] %vm384, 0.0
      %407 = vst.msk [vmem:[%s383 + $0xd8] sm:$0x1] %vm384, 0.0
      %408 = vst.msk [vmem:[%s383 + $0xf8] sm:$0x1] %vm384, 0.0
      %409 = vst.msk [vmem:[%s383 + $0x118] sm:$0x1] %vm384, 0.0
      %410 = vst.msk [vmem:[%s383 + $0x138] sm:$0x1] %vm384, 0.0
      %411 = vst.msk [vmem:[%s383 + $0x158] sm:$0x1] %vm384, 0.0
      %412 = vst.msk [vmem:[%s383 + $0x178] sm:$0x1] %vm384, 0.0
      %413 = vst.msk [vmem:[%s383 + $0x198] sm:$0x1] %vm384, 0.0
      %414 = vst.msk [vmem:[%s383 + $0x1b8] sm:$0x1] %vm384, 0.0
      %415 = vst.msk [vmem:[%s383 + $0x1d8] sm:$0x1] %vm384, 0.0
      %416 = vst.msk [vmem:[%s383 + $0x1f8] sm:$0x1] %vm384, 0.0
      %v417 = vld [vmem:[%s325] sm:$0xff]
      %v418 = vld [vmem:[%s325 + $0x8] sm:$0xff]
      %v419 = vld [vmem:[%s325 + $0x10] sm:$0xff]
      %v420 = vld [vmem:[%s325 + $0x18] sm:$0xff]
      %v421 = vld [vmem:[%s325 + $0x20] sm:$0xff]
      %v422 = vld [vmem:[%s325 + $0x28] sm:$0xff]
      %v423 = vld [vmem:[%s325 + $0x30] sm:$0xff]
      %v424 = vld [vmem:[%s325 + $0x38] sm:$0xff]
      %v425 = vld [vmem:[%s325 + $0x40] sm:$0xff]
      %v426 = vld [vmem:[%s325 + $0x48] sm:$0xff]
      %v427 = vld [vmem:[%s325 + $0x50] sm:$0xff]
      %v428 = vld [vmem:[%s325 + $0x58] sm:$0xff]
      %v429 = vld [vmem:[%s325 + $0x60] sm:$0xff]
      %v430 = vld [vmem:[%s325 + $0x68] sm:$0xff]
      %v431 = vld [vmem:[%s325 + $0x70] sm:$0xff]
      %v432 = vld [vmem:[%s325 + $0x78] sm:$0xff]
      %v433 = vld [vmem:[%s325 + $0x80] sm:$0xff]
      %v434 = vld [vmem:[%s325 + $0x88] sm:$0xff]
      %v435 = vld [vmem:[%s325 + $0x90] sm:$0xff]
      %v436 = vld [vmem:[%s325 + $0x98] sm:$0xff]
      %v437 = vld [vmem:[%s325 + $0xa0] sm:$0xff]
      %v438 = vld [vmem:[%s325 + $0xa8] sm:$0xff]
      %v439 = vld [vmem:[%s325 + $0xb0] sm:$0xff]
      %v440 = vld [vmem:[%s325 + $0xb8] sm:$0xff]
      %v441 = vld [vmem:[%s325 + $0xc0] sm:$0xff]
      %v442 = vld [vmem:[%s325 + $0xc8] sm:$0xff]
      %v443 = vld [vmem:[%s325 + $0xd0] sm:$0xff]
      %v444 = vld [vmem:[%s325 + $0xd8] sm:$0xff]
      %v445 = vld [vmem:[%s325 + $0xe0] sm:$0xff]
      %v446 = vld [vmem:[%s325 + $0xe8] sm:$0xff]
      %v447 = vld [vmem:[%s325 + $0xf0] sm:$0xff]
      %v448 = vld [vmem:[%s325 + $0xf8] sm:$0xff]
      %449 = vst.msk [vmem:[%s339 + $0x8] sm:$0xff] %vm329, %v417
      %450 = vst.msk [vmem:[%s339 + $0x10] sm:$0xff] %vm329, %v418
      %451 = vst.msk [vmem:[%s339 + $0x28] sm:$0xff] %vm329, %v419
      %452 = vst.msk [vmem:[%s339 + $0x30] sm:$0xff] %vm329, %v420
      %453 = vst.msk [vmem:[%s339 + $0x48] sm:$0xff] %vm329, %v421
      %454 = vst.msk [vmem:[%s339 + $0x50] sm:$0xff] %vm329, %v422
      %455 = vst.msk [vmem:[%s339 + $0x68] sm:$0xff] %vm329, %v423
      %456 = vst.msk [vmem:[%s339 + $0x70] sm:$0xff] %vm329, %v424
      %457 = vst.msk [vmem:[%s339 + $0x88] sm:$0xff] %vm329, %v425
      %458 = vst.msk [vmem:[%s339 + $0x90] sm:$0xff] %vm329, %v426
      %459 = vst.msk [vmem:[%s339 + $0xa8] sm:$0xff] %vm329, %v427
      %460 = vst.msk [vmem:[%s339 + $0xb0] sm:$0xff] %vm329, %v428
      %461 = vst.msk [vmem:[%s339 + $0xc8] sm:$0xff] %vm329, %v429
      %462 = vst.msk [vmem:[%s339 + $0xd0] sm:$0xff] %vm329, %v430
      %463 = vst.msk [vmem:[%s339 + $0xe8] sm:$0xff] %vm329, %v431
      %464 = vst.msk [vmem:[%s339 + $0xf0] sm:$0xff] %vm329, %v432
      %465 = vst.msk [vmem:[%s339 + $0x108] sm:$0xff] %vm329, %v433
      %466 = vst.msk [vmem:[%s339 + $0x110] sm:$0xff] %vm329, %v434
      %467 = vst.msk [vmem:[%s339 + $0x128] sm:$0xff] %vm329, %v435
      %468 = vst.msk [vmem:[%s339 + $0x130] sm:$0xff] %vm329, %v436
      %469 = vst.msk [vmem:[%s339 + $0x148] sm:$0xff] %vm329, %v437
      %470 = vst.msk [vmem:[%s339 + $0x150] sm:$0xff] %vm329, %v438
      %471 = vst.msk [vmem:[%s339 + $0x168] sm:$0xff] %vm329, %v439
      %472 = vst.msk [vmem:[%s339 + $0x170] sm:$0xff] %vm329, %v440
      %473 = vst.msk [vmem:[%s339 + $0x188] sm:$0xff] %vm329, %v441
      %474 = vst.msk [vmem:[%s339 + $0x190] sm:$0xff] %vm329, %v442
      %475 = vst.msk [vmem:[%s339 + $0x1a8] sm:$0xff] %vm329, %v443
      %476 = vst.msk [vmem:[%s339 + $0x1b0] sm:$0xff] %vm329, %v444
      %477 = vst.msk [vmem:[%s339 + $0x1c8] sm:$0xff] %vm329, %v445
      %478 = vst.msk [vmem:[%s339 + $0x1d0] sm:$0xff] %vm329, %v446
      %479 = vst.msk [vmem:[%s339 + $0x1e8] sm:$0xff] %vm329, %v447
      %480 = vst.msk [vmem:[%s339 + $0x1f0] sm:$0xff] %vm329, %v448
      %v481 = vld [vmem:[%s1] sm:$0xff]
      %v482 = vld [vmem:[%s1 + $0x8] sm:$0xff]
      %v483 = vld [vmem:[%s1 + $0x10] sm:$0xff]
      %v484 = vld [vmem:[%s1 + $0x18] sm:$0xff]
      %v485 = vld [vmem:[%s1 + $0x20] sm:$0xf]
      %v486 = vld [vmem:[%s2] sm:$0x1]
      %v487 = vld [vmem:[#allocation2 + $0x7] sm:$0xff]
      %v488 = vld [vmem:[#allocation2 + $0xf] sm:$0xff]
      %v489 = vld [vmem:[#allocation2 + $0x27] sm:$0xff]
      %v490 = vld [vmem:[#allocation2 + $0x2f] sm:$0xff]
      %v491 = vld [vmem:[#allocation2 + $0x47] sm:$0xff]
      %v492 = vld [vmem:[#allocation2 + $0x4f] sm:$0xff]
      %v493 = vld [vmem:[#allocation2 + $0x67] sm:$0xff]
      %v494 = vld [vmem:[#allocation2 + $0x6f] sm:$0xff]
      %v495 = vld [vmem:[#allocation2 + $0x87] sm:$0xff]
      %v496 = vld [vmem:[#allocation2 + $0x8f] sm:$0xff]
      %v497 = vld [vmem:[#allocation2 + $0xa7] sm:$0xff]
      %v498 = vld [vmem:[#allocation2 + $0xaf] sm:$0xff]
      %v499 = vld [vmem:[#allocation2 + $0xc7] sm:$0xff]
      %v500 = vld [vmem:[#allocation2 + $0xcf] sm:$0xff]
      %v501 = vld [vmem:[#allocation2 + $0xe7] sm:$0xff]
      %v502 = vld [vmem:[#allocation2 + $0xef] sm:$0xff]
      %v503 = vld [vmem:[#allocation2 + $0x107] sm:$0xff]
      %v504 = vld [vmem:[#allocation2 + $0x10f] sm:$0xff]
      %v505 = vld [vmem:[#allocation2 + $0x127] sm:$0xff]
      %v506 = vld [vmem:[#allocation2 + $0x12f] sm:$0xff]
      %v507 = vld [vmem:[#allocation2 + $0x147] sm:$0xff]
      %v508 = vld [vmem:[#allocation2 + $0x14f] sm:$0xff]
      %v509 = vld [vmem:[#allocation2 + $0x167] sm:$0xff]
      %v510 = vld [vmem:[#allocation2 + $0x16f] sm:$0xff]
      %v511 = vld [vmem:[#allocation2 + $0x187] sm:$0xff]
      %v512 = vld [vmem:[#allocation2 + $0x18f] sm:$0xff]
      %v513 = vld [vmem:[#allocation2 + $0x1a7] sm:$0xff]
      %v514 = vld [vmem:[#allocation2 + $0x1af] sm:$0xff]
      %v515 = vld [vmem:[#allocation2 + $0x1c7] sm:$0xff]
      %v516 = vld [vmem:[#allocation2 + $0x1cf] sm:$0xff]
      %v517 = vld [vmem:[#allocation2 + $0x1e7] sm:$0xff]
      %v518 = vld [vmem:[#allocation2 + $0x1ef] sm:$0xff]
      %v519 = vld [vmem:[#allocation2 + $0x8] sm:$0xff]
      %v520 = vld [vmem:[#allocation2 + $0x10] sm:$0xff]
      %v521 = vld [vmem:[#allocation2 + $0x28] sm:$0xff]
      %v522 = vld [vmem:[#allocation2 + $0x30] sm:$0xff]
      %v523 = vld [vmem:[#allocation2 + $0x48] sm:$0xff]
      %v524 = vld [vmem:[#allocation2 + $0x50] sm:$0xff]
      %v525 = vld [vmem:[#allocation2 + $0x68] sm:$0xff]
      %v526 = vld [vmem:[#allocation2 + $0x70] sm:$0xff]
      %v527 = vld [vmem:[#allocation2 + $0x88] sm:$0xff]
      %v528 = vld [vmem:[#allocation2 + $0x90] sm:$0xff]
      %v529 = vld [vmem:[#allocation2 + $0xa8] sm:$0xff]
      %v530 = vld [vmem:[#allocation2 + $0xb0] sm:$0xff]
      %v531 = vld [vmem:[#allocation2 + $0xc8] sm:$0xff]
      %v532 = vld [vmem:[#allocation2 + $0xd0] sm:$0xff]
      %v533 = vld [vmem:[#allocation2 + $0xe8] sm:$0xff]
      %v534 = vld [vmem:[#allocation2 + $0xf0] sm:$0xff]
      %v535 = vld [vmem:[#allocation2 + $0x108] sm:$0xff]
      %v536 = vld [vmem:[#allocation2 + $0x110] sm:$0xff]
      %v537 = vld [vmem:[#allocation2 + $0x128] sm:$0xff]
      %v538 = vld [vmem:[#allocation2 + $0x130] sm:$0xff]
      %v539 = vld [vmem:[#allocation2 + $0x148] sm:$0xff]
      %v540 = vld [vmem:[#allocation2 + $0x150] sm:$0xff]
      %v541 = vld [vmem:[#allocation2 + $0x168] sm:$0xff]
      %v542 = vld [vmem:[#allocation2 + $0x170] sm:$0xff]
      %v543 = vld [vmem:[#allocation2 + $0x188] sm:$0xff]
      %v544 = vld [vmem:[#allocation2 + $0x190] sm:$0xff]
      %v545 = vld [vmem:[#allocation2 + $0x1a8] sm:$0xff]
      %v546 = vld [vmem:[#allocation2 + $0x1b0] sm:$0xff]
      %v547 = vld [vmem:[#allocation2 + $0x1c8] sm:$0xff]
      %v548 = vld [vmem:[#allocation2 + $0x1d0] sm:$0xff]
      %v549 = vld [vmem:[#allocation2 + $0x1e8] sm:$0xff]
      %v550 = vld [vmem:[#allocation2 + $0x1f0] sm:$0xff]
      %v552 = vrot.slane %v481, 4
      %v554 = vsel %vm329, %v519, 0
      %v557 = vsel %vm329, %v520, 0
      %v560 = vsel %vm329, %v521, 0
      %v563 = vsel %vm329, %v522, 0
      %v566 = vsel %vm329, %v523, 0
      %v569 = vsel %vm329, %v524, 0
      %v572 = vsel %vm329, %v525, 0
      %v575 = vsel %vm329, %v526, 0
      %v578 = vsel %vm329, %v527, 0
      %v581 = vsel %vm329, %v528, 0
      %v584 = vsel %vm329, %v529, 0
      %v587 = vsel %vm329, %v530, 0
      %v590 = vsel %vm329, %v531, 0
      %v593 = vsel %vm329, %v532, 0
      %v596 = vsel %vm329, %v533, 0
      %v599 = vsel %vm329, %v534, 0
      %v602 = vsel %vm329, %v535, 0
      %v605 = vsel %vm329, %v536, 0
      %v608 = vsel %vm329, %v537, 0
      %v611 = vsel %vm329, %v538, 0
      %v614 = vsel %vm329, %v539, 0
      %v617 = vsel %vm329, %v540, 0
      %v620 = vsel %vm329, %v541, 0
      %v623 = vsel %vm329, %v542, 0
      %v626 = vsel %vm329, %v543, 0
      %v629 = vsel %vm329, %v544, 0
      %v632 = vsel %vm329, %v545, 0
      %v635 = vsel %vm329, %v546, 0
      %v638 = vsel %vm329, %v547, 0
      %v641 = vsel %vm329, %v548, 0
      %v644 = vsel %vm329, %v549, 0
      %v647 = vsel %vm329, %v550, 0
      %vm649 = vcmask 1043456
      %v650 = vsel %vm649, %v552, 0
      %652 = vmatprep.subr.mxu0 0.0
      %653 = vmatpush1.msra.mxu0 0.0
      %654 = vmatprep.subr.mxu0 0.0
      %655 = vmatpush1.msra.mxu0 0.0
      %656 = vmatprep.subr.mxu0 0.0
      %657 = vmatpush1.msra.mxu0 0.0
      %658 = vmatprep.subr.mxu0 0.0
      %659 = vmatpush1.msra.mxu0 0.0
      %660 = vmatprep.subr.mxu0 0.0
      %661 = vmatpush1.msra.mxu0 0.0
      %662 = vmatprep.subr.mxu0 0.0
      %663 = vmatpush1.msra.mxu0 0.0
      %664 = vmatprep.subr.mxu0 0.0
      %665 = vmatpush1.msra.mxu0 0.0
      %666 = vmatprep.subr.mxu0 0.0
      %667 = vmatpush1.msra.mxu0 0.0
      %668 = vmatprep.subr.mxu0 0.0
      %669 = vmatpush1.msra.mxu0 0.0
      %670 = vmatprep.subr.mxu0 0.0
      %671 = vmatpush1.msra.mxu0 0.0
      %672 = vmatprep.subr.mxu0 0.0
      %673 = vmatpush1.msra.mxu0 0.0
      %674 = vmatprep.subr.mxu0 0.0
      %675 = vmatpush1.msra.mxu0 0.0
      %676 = vmatprep.subr.mxu0 0.0
      %677 = vmatpush1.msra.mxu0 0.0
      %678 = vmatprep.subr.mxu0 0.0
      %679 = vmatpush1.msra.mxu0 0.0
      %680 = vmatprep.subr.mxu0 0.0
      %681 = vmatpush1.msra.mxu0 0.0
      %682 = vmatprep.subr.mxu0 0.0
      %683 = vmatpush1.msra.mxu0 %v650
      %684 = vmatprep.subr.mxu0 0.0
      %685 = vmatpush2.msra.mxu0 0.0
      %686 = vmatprep.subr.mxu0 0.0
      %687 = vmatpush2.msra.mxu0 0.0
      %688 = vmatprep.subr.mxu0 0.0
      %689 = vmatpush2.msra.mxu0 0.0
      %690 = vmatprep.subr.mxu0 0.0
      %691 = vmatpush2.msra.mxu0 0.0
      %692 = vmatprep.subr.mxu0 0.0
      %693 = vmatpush2.msra.mxu0 0.0
      %694 = vmatprep.subr.mxu0 0.0
      %695 = vmatpush2.msra.mxu0 0.0
      %696 = vmatprep.subr.mxu0 0.0
      %697 = vmatpush2.msra.mxu0 0.0
      %698 = vmatprep.subr.mxu0 0.0
      %699 = vmatpush2.msra.mxu0 0.0
      %700 = vmatprep.subr.mxu0 0.0
      %701 = vmatpush2.msra.mxu0 0.0
      %702 = vmatprep.subr.mxu0 0.0
      %703 = vmatpush2.msra.mxu0 0.0
      %704 = vmatprep.subr.mxu0 0.0
      %705 = vmatpush2.msra.mxu0 0.0
      %706 = vmatprep.subr.mxu0 0.0
      %707 = vmatpush2.msra.mxu0 0.0
      %708 = vmatprep.subr.mxu0 0.0
      %709 = vmatpush2.msra.mxu0 0.0
      %710 = vmatprep.subr.mxu0 0.0
      %711 = vmatpush2.msra.mxu0 0.0
      %712 = vmatprep.subr.mxu0 0.0
      %713 = vmatpush2.msra.mxu0 0.0
      %714 = vmatprep.subr.mxu0 0.0
      %715 = vmatpush2.msra.mxu0 0.0
      %716 = vmatprep.mubr.f32.mxu0 0.0
      %717 = vmatmul.mubr.f32.gmra.mxu0 %v554
      %v718 = vpop.f32.mrf.mxu0
      %v719 = vadd.f32 0.0, %v718
      %v720 = vpop.f32.mrf.mxu0
      %721 = vmatprep.mubr.f32.mxu0 0.0
      %722 = vmatmul.mubr.f32.gmra.mxu0 %v557
      %v723 = vpop.f32.mrf.mxu0
      %v724 = vadd.f32 0.0, %v723
      %v725 = vpop.f32.mrf.mxu0
      %726 = vmatprep.mubr.f32.mxu0 0.0
      %727 = vmatmul.mubr.f32.gmra.mxu0 %v560
      %v728 = vpop.f32.mrf.mxu0
      %v729 = vadd.f32 0.0, %v728
      %v730 = vpop.f32.mrf.mxu0
      %731 = vmatprep.mubr.f32.mxu0 0.0
      %732 = vmatmul.mubr.f32.gmra.mxu0 %v563
      %v733 = vpop.f32.mrf.mxu0
      %v734 = vadd.f32 0.0, %v733
      %v735 = vpop.f32.mrf.mxu0
      %736 = vmatprep.mubr.f32.mxu0 0.0
      %737 = vmatmul.mubr.f32.gmra.mxu0 %v566
      %v738 = vpop.f32.mrf.mxu0
      %v739 = vadd.f32 0.0, %v738
      %v740 = vpop.f32.mrf.mxu0
      %741 = vmatprep.mubr.f32.mxu0 0.0
      %742 = vmatmul.mubr.f32.gmra.mxu0 %v569
      %v743 = vpop.f32.mrf.mxu0
      %v744 = vadd.f32 0.0, %v743
      %v745 = vpop.f32.mrf.mxu0
      %746 = vmatprep.mubr.f32.mxu0 0.0
      %747 = vmatmul.mubr.f32.gmra.mxu0 %v572
      %v748 = vpop.f32.mrf.mxu0
      %v749 = vadd.f32 0.0, %v748
      %v750 = vpop.f32.mrf.mxu0
      %751 = vmatprep.mubr.f32.mxu0 0.0
      %752 = vmatmul.mubr.f32.gmra.mxu0 %v575
      %v753 = vpop.f32.mrf.mxu0
      %v754 = vadd.f32 0.0, %v753
      %v755 = vpop.f32.mrf.mxu0
      %756 = vmatprep.mubr.f32.mxu0 0.0
      %757 = vmatmul.mubr.f32.gmra.mxu0 %v578
      %v758 = vpop.f32.mrf.mxu0
      %v759 = vadd.f32 0.0, %v758
      %v760 = vpop.f32.mrf.mxu0
      %761 = vmatprep.mubr.f32.mxu0 0.0
      %762 = vmatmul.mubr.f32.gmra.mxu0 %v581
      %v763 = vpop.f32.mrf.mxu0
      %v764 = vadd.f32 0.0, %v763
      %v765 = vpop.f32.mrf.mxu0
      %766 = vmatprep.mubr.f32.mxu0 0.0
      %767 = vmatmul.mubr.f32.gmra.mxu0 %v584
      %v768 = vpop.f32.mrf.mxu0
      %v769 = vadd.f32 0.0, %v768
      %v770 = vpop.f32.mrf.mxu0
      %771 = vmatprep.mubr.f32.mxu0 0.0
      %772 = vmatmul.mubr.f32.gmra.mxu0 %v587
      %v773 = vpop.f32.mrf.mxu0
      %v774 = vadd.f32 0.0, %v773
      %v775 = vpop.f32.mrf.mxu0
      %776 = vmatprep.mubr.f32.mxu0 0.0
      %777 = vmatmul.mubr.f32.gmra.mxu0 %v590
      %v778 = vpop.f32.mrf.mxu0
      %v779 = vadd.f32 0.0, %v778
      %v780 = vpop.f32.mrf.mxu0
      %781 = vmatprep.mubr.f32.mxu0 0.0
      %782 = vmatmul.mubr.f32.gmra.mxu0 %v593
      %v783 = vpop.f32.mrf.mxu0
      %v784 = vadd.f32 0.0, %v783
      %v785 = vpop.f32.mrf.mxu0
      %786 = vmatprep.mubr.f32.mxu0 0.0
      %787 = vmatmul.mubr.f32.gmra.mxu0 %v596
      %v788 = vpop.f32.mrf.mxu0
      %v789 = vadd.f32 0.0, %v788
      %v790 = vpop.f32.mrf.mxu0
      %791 = vmatprep.mubr.f32.mxu0 0.0
      %792 = vmatmul.mubr.f32.gmra.mxu0 %v599
      %v793 = vpop.f32.mrf.mxu0
      %v794 = vadd.f32 0.0, %v793
      %v795 = vpop.f32.mrf.mxu0
      %796 = vmatprep.mubr.f32.mxu0 0.0
      %797 = vmatmul.mubr.f32.gmra.mxu0 %v602
      %v798 = vpop.f32.mrf.mxu0
      %v799 = vadd.f32 0.0, %v798
      %v800 = vpop.f32.mrf.mxu0
      %801 = vmatprep.mubr.f32.mxu0 0.0
      %802 = vmatmul.mubr.f32.gmra.mxu0 %v605
      %v803 = vpop.f32.mrf.mxu0
      %v804 = vadd.f32 0.0, %v803
      %v805 = vpop.f32.mrf.mxu0
      %806 = vmatprep.mubr.f32.mxu0 0.0
      %807 = vmatmul.mubr.f32.gmra.mxu0 %v608
      %v808 = vpop.f32.mrf.mxu0
      %v809 = vadd.f32 0.0, %v808
      %v810 = vpop.f32.mrf.mxu0
      %811 = vmatprep.mubr.f32.mxu0 0.0
      %812 = vmatmul.mubr.f32.gmra.mxu0 %v611
      %v813 = vpop.f32.mrf.mxu0
      %v814 = vadd.f32 0.0, %v813
      %v815 = vpop.f32.mrf.mxu0
      %816 = vmatprep.mubr.f32.mxu0 0.0
      %817 = vmatmul.mubr.f32.gmra.mxu0 %v614
      %v818 = vpop.f32.mrf.mxu0
      %v819 = vadd.f32 0.0, %v818
      %v820 = vpop.f32.mrf.mxu0
      %821 = vmatprep.mubr.f32.mxu0 0.0
      %822 = vmatmul.mubr.f32.gmra.mxu0 %v617
      %v823 = vpop.f32.mrf.mxu0
      %v824 = vadd.f32 0.0, %v823
      %v825 = vpop.f32.mrf.mxu0
      %826 = vmatprep.mubr.f32.mxu0 0.0
      %827 = vmatmul.mubr.f32.gmra.mxu0 %v620
      %v828 = vpop.f32.mrf.mxu0
      %v829 = vadd.f32 0.0, %v828
      %v830 = vpop.f32.mrf.mxu0
      %831 = vmatprep.mubr.f32.mxu0 0.0
      %832 = vmatmul.mubr.f32.gmra.mxu0 %v623
      %v833 = vpop.f32.mrf.mxu0
      %v834 = vadd.f32 0.0, %v833
      %v835 = vpop.f32.mrf.mxu0
      %836 = vmatprep.mubr.f32.mxu0 0.0
      %837 = vmatmul.mubr.f32.gmra.mxu0 %v626
      %v838 = vpop.f32.mrf.mxu0
      %v839 = vadd.f32 0.0, %v838
      %v840 = vpop.f32.mrf.mxu0
      %841 = vmatprep.mubr.f32.mxu0 0.0
      %842 = vmatmul.mubr.f32.gmra.mxu0 %v629
      %v843 = vpop.f32.mrf.mxu0
      %v844 = vadd.f32 0.0, %v843
      %v845 = vpop.f32.mrf.mxu0
      %846 = vmatprep.mubr.f32.mxu0 0.0
      %847 = vmatmul.mubr.f32.gmra.mxu0 %v632
      %v848 = vpop.f32.mrf.mxu0
      %v849 = vadd.f32 0.0, %v848
      %v850 = vpop.f32.mrf.mxu0
      %851 = vmatprep.mubr.f32.mxu0 0.0
      %852 = vmatmul.mubr.f32.gmra.mxu0 %v635
      %v853 = vpop.f32.mrf.mxu0
      %v854 = vadd.f32 0.0, %v853
      %v855 = vpop.f32.mrf.mxu0
      %856 = vmatprep.mubr.f32.mxu0 0.0
      %857 = vmatmul.mubr.f32.gmra.mxu0 %v638
      %v858 = vpop.f32.mrf.mxu0
      %v859 = vadd.f32 0.0, %v858
      %v860 = vpop.f32.mrf.mxu0
      %861 = vmatprep.mubr.f32.mxu0 0.0
      %862 = vmatmul.mubr.f32.gmra.mxu0 %v641
      %v863 = vpop.f32.mrf.mxu0
      %v864 = vadd.f32 0.0, %v863
      %v865 = vpop.f32.mrf.mxu0
      %866 = vmatprep.mubr.f32.mxu0 0.0
      %867 = vmatmul.mubr.f32.gmra.mxu0 %v644
      %v868 = vpop.f32.mrf.mxu0
      %v869 = vadd.f32 0.0, %v868
      %v870 = vpop.f32.mrf.mxu0
      %871 = vmatprep.mubr.f32.mxu0 0.0
      %872 = vmatmul.mubr.f32.gmra.mxu0 %v647
      %v873 = vpop.f32.mrf.mxu0
      %v874 = vadd.f32 0.0, %v873
      %v875 = vpop.f32.mrf.mxu0
      %876 = vdwg.mxu0
      %v878 = vsel %vm329, %v487, 0
      %v881 = vsel %vm329, %v488, 0
      %v884 = vsel %vm329, %v489, 0
      %v887 = vsel %vm329, %v490, 0
      %v890 = vsel %vm329, %v491, 0
      %v893 = vsel %vm329, %v492, 0
      %v896 = vsel %vm329, %v493, 0
      %v899 = vsel %vm329, %v494, 0
      %v902 = vsel %vm329, %v495, 0
      %v905 = vsel %vm329, %v496, 0
      %v908 = vsel %vm329, %v497, 0
      %v911 = vsel %vm329, %v498, 0
      %v914 = vsel %vm329, %v499, 0
      %v917 = vsel %vm329, %v500, 0
      %v920 = vsel %vm329, %v501, 0
      %v923 = vsel %vm329, %v502, 0
      %v926 = vsel %vm329, %v503, 0
      %v929 = vsel %vm329, %v504, 0
      %v932 = vsel %vm329, %v505, 0
      %v935 = vsel %vm329, %v506, 0
      %v938 = vsel %vm329, %v507, 0
      %v941 = vsel %vm329, %v508, 0
      %v944 = vsel %vm329, %v509, 0
      %v947 = vsel %vm329, %v510, 0
      %v950 = vsel %vm329, %v511, 0
      %v953 = vsel %vm329, %v512, 0
      %v956 = vsel %vm329, %v513, 0
      %v959 = vsel %vm329, %v514, 0
      %v962 = vsel %vm329, %v515, 0
      %v965 = vsel %vm329, %v516, 0
      %v968 = vsel %vm329, %v517, 0
      %v971 = vsel %vm329, %v518, 0
      %v973 = vsel %vm649, %v481, 0
      %975 = vmatprep.subr.mxu0 0.0
      %976 = vmatpush1.msra.mxu0 0.0
      %977 = vmatprep.subr.mxu0 0.0
      %978 = vmatpush1.msra.mxu0 0.0
      %979 = vmatprep.subr.mxu0 0.0
      %980 = vmatpush1.msra.mxu0 0.0
      %981 = vmatprep.subr.mxu0 0.0
      %982 = vmatpush1.msra.mxu0 0.0
      %983 = vmatprep.subr.mxu0 0.0
      %984 = vmatpush1.msra.mxu0 0.0
      %985 = vmatprep.subr.mxu0 0.0
      %986 = vmatpush1.msra.mxu0 0.0
      %987 = vmatprep.subr.mxu0 0.0
      %988 = vmatpush1.msra.mxu0 0.0
      %989 = vmatprep.subr.mxu0 0.0
      %990 = vmatpush1.msra.mxu0 0.0
      %991 = vmatprep.subr.mxu0 0.0
      %992 = vmatpush1.msra.mxu0 0.0
      %993 = vmatprep.subr.mxu0 0.0
      %994 = vmatpush1.msra.mxu0 0.0
      %995 = vmatprep.subr.mxu0 0.0
      %996 = vmatpush1.msra.mxu0 0.0
      %997 = vmatprep.subr.mxu0 0.0
      %998 = vmatpush1.msra.mxu0 0.0
      %999 = vmatprep.subr.mxu0 0.0
      %1000 = vmatpush1.msra.mxu0 0.0
      %1001 = vmatprep.subr.mxu0 0.0
      %1002 = vmatpush1.msra.mxu0 0.0
      %1003 = vmatprep.subr.mxu0 0.0
      %1004 = vmatpush1.msra.mxu0 0.0
      %1005 = vmatprep.subr.mxu0 0.0
      %1006 = vmatpush1.msra.mxu0 %v973
      %1007 = vmatprep.subr.mxu0 0.0
      %1008 = vmatpush2.msra.mxu0 0.0
      %1009 = vmatprep.subr.mxu0 0.0
      %1010 = vmatpush2.msra.mxu0 0.0
      %1011 = vmatprep.subr.mxu0 0.0
      %1012 = vmatpush2.msra.mxu0 0.0
      %1013 = vmatprep.subr.mxu0 0.0
      %1014 = vmatpush2.msra.mxu0 0.0
      %1015 = vmatprep.subr.mxu0 0.0
      %1016 = vmatpush2.msra.mxu0 0.0
      %1017 = vmatprep.subr.mxu0 0.0
      %1018 = vmatpush2.msra.mxu0 0.0
      %1019 = vmatprep.subr.mxu0 0.0
      %1020 = vmatpush2.msra.mxu0 0.0
      %1021 = vmatprep.subr.mxu0 0.0
      %1022 = vmatpush2.msra.mxu0 0.0
      %1023 = vmatprep.subr.mxu0 0.0
      %1024 = vmatpush2.msra.mxu0 0.0
      %1025 = vmatprep.subr.mxu0 0.0
      %1026 = vmatpush2.msra.mxu0 0.0
      %1027 = vmatprep.subr.mxu0 0.0
      %1028 = vmatpush2.msra.mxu0 0.0
      %1029 = vmatprep.subr.mxu0 0.0
      %1030 = vmatpush2.msra.mxu0 0.0
      %1031 = vmatprep.subr.mxu0 0.0
      %1032 = vmatpush2.msra.mxu0 0.0
      %1033 = vmatprep.subr.mxu0 0.0
      %1034 = vmatpush2.msra.mxu0 0.0
      %1035 = vmatprep.subr.mxu0 0.0
      %1036 = vmatpush2.msra.mxu0 0.0
      %1037 = vmatprep.subr.mxu0 0.0
      %1038 = vmatpush2.msra.mxu0 0.0
      %1039 = vmatprep.mubr.f32.mxu0 0.0
      %1040 = vmatmul.mubr.f32.gmra.mxu0 %v878
      %v1041 = vpop.f32.mrf.mxu0
      %v1042 = vadd.f32 %v719, %v1041
      %v1043 = vpop.f32.mrf.mxu0
      %1044 = vmatprep.mubr.f32.mxu0 0.0
      %1045 = vmatmul.mubr.f32.gmra.mxu0 %v881
      %v1046 = vpop.f32.mrf.mxu0
      %v1047 = vadd.f32 %v724, %v1046
      %v1048 = vpop.f32.mrf.mxu0
      %1049 = vmatprep.mubr.f32.mxu0 0.0
      %1050 = vmatmul.mubr.f32.gmra.mxu0 %v884
      %v1051 = vpop.f32.mrf.mxu0
      %v1052 = vadd.f32 %v729, %v1051
      %v1053 = vpop.f32.mrf.mxu0
      %1054 = vmatprep.mubr.f32.mxu0 0.0
      %1055 = vmatmul.mubr.f32.gmra.mxu0 %v887
      %v1056 = vpop.f32.mrf.mxu0
      %v1057 = vadd.f32 %v734, %v1056
      %v1058 = vpop.f32.mrf.mxu0
      %1059 = vmatprep.mubr.f32.mxu0 0.0
      %1060 = vmatmul.mubr.f32.gmra.mxu0 %v890
      %v1061 = vpop.f32.mrf.mxu0
      %v1062 = vadd.f32 %v739, %v1061
      %v1063 = vpop.f32.mrf.mxu0
      %1064 = vmatprep.mubr.f32.mxu0 0.0
      %1065 = vmatmul.mubr.f32.gmra.mxu0 %v893
      %v1066 = vpop.f32.mrf.mxu0
      %v1067 = vadd.f32 %v744, %v1066
      %v1068 = vpop.f32.mrf.mxu0
      %1069 = vmatprep.mubr.f32.mxu0 0.0
      %1070 = vmatmul.mubr.f32.gmra.mxu0 %v896
      %v1071 = vpop.f32.mrf.mxu0
      %v1072 = vadd.f32 %v749, %v1071
      %v1073 = vpop.f32.mrf.mxu0
      %1074 = vmatprep.mubr.f32.mxu0 0.0
      %1075 = vmatmul.mubr.f32.gmra.mxu0 %v899
      %v1076 = vpop.f32.mrf.mxu0
      %v1077 = vadd.f32 %v754, %v1076
      %v1078 = vpop.f32.mrf.mxu0
      %1079 = vmatprep.mubr.f32.mxu0 0.0
      %1080 = vmatmul.mubr.f32.gmra.mxu0 %v902
      %v1081 = vpop.f32.mrf.mxu0
      %v1082 = vadd.f32 %v759, %v1081
      %v1083 = vpop.f32.mrf.mxu0
      %1084 = vmatprep.mubr.f32.mxu0 0.0
      %1085 = vmatmul.mubr.f32.gmra.mxu0 %v905
      %v1086 = vpop.f32.mrf.mxu0
      %v1087 = vadd.f32 %v764, %v1086
      %v1088 = vpop.f32.mrf.mxu0
      %1089 = vmatprep.mubr.f32.mxu0 0.0
      %1090 = vmatmul.mubr.f32.gmra.mxu0 %v908
      %v1091 = vpop.f32.mrf.mxu0
      %v1092 = vadd.f32 %v769, %v1091
      %v1093 = vpop.f32.mrf.mxu0
      %1094 = vmatprep.mubr.f32.mxu0 0.0
      %1095 = vmatmul.mubr.f32.gmra.mxu0 %v911
      %v1096 = vpop.f32.mrf.mxu0
      %v1097 = vadd.f32 %v774, %v1096
      %v1098 = vpop.f32.mrf.mxu0
      %1099 = vmatprep.mubr.f32.mxu0 0.0
      %1100 = vmatmul.mubr.f32.gmra.mxu0 %v914
      %v1101 = vpop.f32.mrf.mxu0
      %v1102 = vadd.f32 %v779, %v1101
      %v1103 = vpop.f32.mrf.mxu0
      %1104 = vmatprep.mubr.f32.mxu0 0.0
      %1105 = vmatmul.mubr.f32.gmra.mxu0 %v917
      %v1106 = vpop.f32.mrf.mxu0
      %v1107 = vadd.f32 %v784, %v1106
      %v1108 = vpop.f32.mrf.mxu0
      %1109 = vmatprep.mubr.f32.mxu0 0.0
      %1110 = vmatmul.mubr.f32.gmra.mxu0 %v920
      %v1111 = vpop.f32.mrf.mxu0
      %v1112 = vadd.f32 %v789, %v1111
      %v1113 = vpop.f32.mrf.mxu0
      %1114 = vmatprep.mubr.f32.mxu0 0.0
      %1115 = vmatmul.mubr.f32.gmra.mxu0 %v923
      %v1116 = vpop.f32.mrf.mxu0
      %v1117 = vadd.f32 %v794, %v1116
      %v1118 = vpop.f32.mrf.mxu0
      %1119 = vmatprep.mubr.f32.mxu0 0.0
      %1120 = vmatmul.mubr.f32.gmra.mxu0 %v926
      %v1121 = vpop.f32.mrf.mxu0
      %v1122 = vadd.f32 %v799, %v1121
      %v1123 = vpop.f32.mrf.mxu0
      %1124 = vmatprep.mubr.f32.mxu0 0.0
      %1125 = vmatmul.mubr.f32.gmra.mxu0 %v929
      %v1126 = vpop.f32.mrf.mxu0
      %v1127 = vadd.f32 %v804, %v1126
      %v1128 = vpop.f32.mrf.mxu0
      %1129 = vmatprep.mubr.f32.mxu0 0.0
      %1130 = vmatmul.mubr.f32.gmra.mxu0 %v932
      %v1131 = vpop.f32.mrf.mxu0
      %v1132 = vadd.f32 %v809, %v1131
      %v1133 = vpop.f32.mrf.mxu0
      %1134 = vmatprep.mubr.f32.mxu0 0.0
      %1135 = vmatmul.mubr.f32.gmra.mxu0 %v935
      %v1136 = vpop.f32.mrf.mxu0
      %v1137 = vadd.f32 %v814, %v1136
      %v1138 = vpop.f32.mrf.mxu0
      %1139 = vmatprep.mubr.f32.mxu0 0.0
      %1140 = vmatmul.mubr.f32.gmra.mxu0 %v938
      %v1141 = vpop.f32.mrf.mxu0
      %v1142 = vadd.f32 %v819, %v1141
      %v1143 = vpop.f32.mrf.mxu0
      %1144 = vmatprep.mubr.f32.mxu0 0.0
      %1145 = vmatmul.mubr.f32.gmra.mxu0 %v941
      %v1146 = vpop.f32.mrf.mxu0
      %v1147 = vadd.f32 %v824, %v1146
      %v1148 = vpop.f32.mrf.mxu0
      %1149 = vmatprep.mubr.f32.mxu0 0.0
      %1150 = vmatmul.mubr.f32.gmra.mxu0 %v944
      %v1151 = vpop.f32.mrf.mxu0
      %v1152 = vadd.f32 %v829, %v1151
      %v1153 = vpop.f32.mrf.mxu0
      %1154 = vmatprep.mubr.f32.mxu0 0.0
      %1155 = vmatmul.mubr.f32.gmra.mxu0 %v947
      %v1156 = vpop.f32.mrf.mxu0
      %v1157 = vadd.f32 %v834, %v1156
      %v1158 = vpop.f32.mrf.mxu0
      %1159 = vmatprep.mubr.f32.mxu0 0.0
      %1160 = vmatmul.mubr.f32.gmra.mxu0 %v950
      %v1161 = vpop.f32.mrf.mxu0
      %v1162 = vadd.f32 %v839, %v1161
      %v1163 = vpop.f32.mrf.mxu0
      %1164 = vmatprep.mubr.f32.mxu0 0.0
      %1165 = vmatmul.mubr.f32.gmra.mxu0 %v953
      %v1166 = vpop.f32.mrf.mxu0
      %v1167 = vadd.f32 %v844, %v1166
      %v1168 = vpop.f32.mrf.mxu0
      %1169 = vmatprep.mubr.f32.mxu0 0.0
      %1170 = vmatmul.mubr.f32.gmra.mxu0 %v956
      %v1171 = vpop.f32.mrf.mxu0
      %v1172 = vadd.f32 %v849, %v1171
      %v1173 = vpop.f32.mrf.mxu0
      %1174 = vmatprep.mubr.f32.mxu0 0.0
      %1175 = vmatmul.mubr.f32.gmra.mxu0 %v959
      %v1176 = vpop.f32.mrf.mxu0
      %v1177 = vadd.f32 %v854, %v1176
      %v1178 = vpop.f32.mrf.mxu0
      %1179 = vmatprep.mubr.f32.mxu0 0.0
      %1180 = vmatmul.mubr.f32.gmra.mxu0 %v962
      %v1181 = vpop.f32.mrf.mxu0
      %v1182 = vadd.f32 %v859, %v1181
      %v1183 = vpop.f32.mrf.mxu0
      %1184 = vmatprep.mubr.f32.mxu0 0.0
      %1185 = vmatmul.mubr.f32.gmra.mxu0 %v965
      %v1186 = vpop.f32.mrf.mxu0
      %v1187 = vadd.f32 %v864, %v1186
      %v1188 = vpop.f32.mrf.mxu0
      %1189 = vmatprep.mubr.f32.mxu0 0.0
      %1190 = vmatmul.mubr.f32.gmra.mxu0 %v968
      %v1191 = vpop.f32.mrf.mxu0
      %v1192 = vadd.f32 %v869, %v1191
      %v1193 = vpop.f32.mrf.mxu0
      %1194 = vmatprep.mubr.f32.mxu0 0.0
      %1195 = vmatmul.mubr.f32.gmra.mxu0 %v971
      %v1196 = vpop.f32.mrf.mxu0
      %v1197 = vadd.f32 %v874, %v1196
      %v1198 = vpop.f32.mrf.mxu0
      %1199 = vdwg.mxu0
      %v1200 = vld [vmem:[#allocation2 + $0x9] sm:$0xff]
      %v1201 = vld [vmem:[#allocation2 + $0x11] sm:$0xff]
      %v1202 = vld [vmem:[#allocation2 + $0x29] sm:$0xff]
      %v1203 = vld [vmem:[#allocation2 + $0x31] sm:$0xff]
      %v1204 = vld [vmem:[#allocation2 + $0x49] sm:$0xff]
      %v1205 = vld [vmem:[#allocation2 + $0x51] sm:$0xff]
      %v1206 = vld [vmem:[#allocation2 + $0x69] sm:$0xff]
      %v1207 = vld [vmem:[#allocation2 + $0x71] sm:$0xff]
      %v1208 = vld [vmem:[#allocation2 + $0x89] sm:$0xff]
      %v1209 = vld [vmem:[#allocation2 + $0x91] sm:$0xff]
      %v1210 = vld [vmem:[#allocation2 + $0xa9] sm:$0xff]
      %v1211 = vld [vmem:[#allocation2 + $0xb1] sm:$0xff]
      %v1212 = vld [vmem:[#allocation2 + $0xc9] sm:$0xff]
      %v1213 = vld [vmem:[#allocation2 + $0xd1] sm:$0xff]
      %v1214 = vld [vmem:[#allocation2 + $0xe9] sm:$0xff]
      %v1215 = vld [vmem:[#allocation2 + $0xf1] sm:$0xff]
      %v1216 = vld [vmem:[#allocation2 + $0x109] sm:$0xff]
      %v1217 = vld [vmem:[#allocation2 + $0x111] sm:$0xff]
      %v1218 = vld [vmem:[#allocation2 + $0x129] sm:$0xff]
      %v1219 = vld [vmem:[#allocation2 + $0x131] sm:$0xff]
      %v1220 = vld [vmem:[#allocation2 + $0x149] sm:$0xff]
      %v1221 = vld [vmem:[#allocation2 + $0x151] sm:$0xff]
      %v1222 = vld [vmem:[#allocation2 + $0x169] sm:$0xff]
      %v1223 = vld [vmem:[#allocation2 + $0x171] sm:$0xff]
      %v1224 = vld [vmem:[#allocation2 + $0x189] sm:$0xff]
      %v1225 = vld [vmem:[#allocation2 + $0x191] sm:$0xff]
      %v1226 = vld [vmem:[#allocation2 + $0x1a9] sm:$0xff]
      %v1227 = vld [vmem:[#allocation2 + $0x1b1] sm:$0xff]
      %v1228 = vld [vmem:[#allocation2 + $0x1c9] sm:$0xff]
      %v1229 = vld [vmem:[#allocation2 + $0x1d1] sm:$0xff]
      %v1230 = vld [vmem:[#allocation2 + $0x1e9] sm:$0xff]
      %v1231 = vld [vmem:[#allocation2 + $0x1f1] sm:$0xff]
      %v1233 = vsel %vm329, %v1200, 0
      %v1236 = vsel %vm329, %v1201, 0
      %v1239 = vsel %vm329, %v1202, 0
      %v1242 = vsel %vm329, %v1203, 0
      %v1245 = vsel %vm329, %v1204, 0
      %v1248 = vsel %vm329, %v1205, 0
      %v1251 = vsel %vm329, %v1206, 0
      %v1254 = vsel %vm329, %v1207, 0
      %v1257 = vsel %vm329, %v1208, 0
      %v1260 = vsel %vm329, %v1209, 0
      %v1263 = vsel %vm329, %v1210, 0
      %v1266 = vsel %vm329, %v1211, 0
      %v1269 = vsel %vm329, %v1212, 0
      %v1272 = vsel %vm329, %v1213, 0
      %v1275 = vsel %vm329, %v1214, 0
      %v1278 = vsel %vm329, %v1215, 0
      %v1281 = vsel %vm329, %v1216, 0
      %v1284 = vsel %vm329, %v1217, 0
      %v1287 = vsel %vm329, %v1218, 0
      %v1290 = vsel %vm329, %v1219, 0
      %v1293 = vsel %vm329, %v1220, 0
      %v1296 = vsel %vm329, %v1221, 0
      %v1299 = vsel %vm329, %v1222, 0
      %v1302 = vsel %vm329, %v1223, 0
      %v1305 = vsel %vm329, %v1224, 0
      %v1308 = vsel %vm329, %v1225, 0
      %v1311 = vsel %vm329, %v1226, 0
      %v1314 = vsel %vm329, %v1227, 0
      %v1317 = vsel %vm329, %v1228, 0
      %v1320 = vsel %vm329, %v1229, 0
      %v1323 = vsel %vm329, %v1230, 0
      %v1326 = vsel %vm329, %v1231, 0
      %v1329 = vsel %vm649, %v482, 0
      %1331 = vmatprep.subr.mxu0 0.0
      %1332 = vmatpush1.msra.mxu0 0.0
      %1333 = vmatprep.subr.mxu0 0.0
      %1334 = vmatpush1.msra.mxu0 0.0
      %1335 = vmatprep.subr.mxu0 0.0
      %1336 = vmatpush1.msra.mxu0 0.0
      %1337 = vmatprep.subr.mxu0 0.0
      %1338 = vmatpush1.msra.mxu0 0.0
      %1339 = vmatprep.subr.mxu0 0.0
      %1340 = vmatpush1.msra.mxu0 0.0
      %1341 = vmatprep.subr.mxu0 0.0
      %1342 = vmatpush1.msra.mxu0 0.0
      %1343 = vmatprep.subr.mxu0 0.0
      %1344 = vmatpush1.msra.mxu0 0.0
      %1345 = vmatprep.subr.mxu0 0.0
      %1346 = vmatpush1.msra.mxu0 0.0
      %1347 = vmatprep.subr.mxu0 0.0
      %1348 = vmatpush1.msra.mxu0 0.0
      %1349 = vmatprep.subr.mxu0 0.0
      %1350 = vmatpush1.msra.mxu0 0.0
      %1351 = vmatprep.subr.mxu0 0.0
      %1352 = vmatpush1.msra.mxu0 0.0
      %1353 = vmatprep.subr.mxu0 0.0
      %1354 = vmatpush1.msra.mxu0 0.0
      %1355 = vmatprep.subr.mxu0 0.0
      %1356 = vmatpush1.msra.mxu0 0.0
      %1357 = vmatprep.subr.mxu0 0.0
      %1358 = vmatpush1.msra.mxu0 0.0
      %1359 = vmatprep.subr.mxu0 0.0
      %1360 = vmatpush1.msra.mxu0 0.0
      %1361 = vmatprep.subr.mxu0 0.0
      %1362 = vmatpush1.msra.mxu0 %v1329
      %1363 = vmatprep.subr.mxu0 0.0
      %1364 = vmatpush2.msra.mxu0 0.0
      %1365 = vmatprep.subr.mxu0 0.0
      %1366 = vmatpush2.msra.mxu0 0.0
      %1367 = vmatprep.subr.mxu0 0.0
      %1368 = vmatpush2.msra.mxu0 0.0
      %1369 = vmatprep.subr.mxu0 0.0
      %1370 = vmatpush2.msra.mxu0 0.0
      %1371 = vmatprep.subr.mxu0 0.0
      %1372 = vmatpush2.msra.mxu0 0.0
      %1373 = vmatprep.subr.mxu0 0.0
      %1374 = vmatpush2.msra.mxu0 0.0
      %1375 = vmatprep.subr.mxu0 0.0
      %1376 = vmatpush2.msra.mxu0 0.0
      %1377 = vmatprep.subr.mxu0 0.0
      %1378 = vmatpush2.msra.mxu0 0.0
      %1379 = vmatprep.subr.mxu0 0.0
      %1380 = vmatpush2.msra.mxu0 0.0
      %1381 = vmatprep.subr.mxu0 0.0
      %1382 = vmatpush2.msra.mxu0 0.0
      %1383 = vmatprep.subr.mxu0 0.0
      %1384 = vmatpush2.msra.mxu0 0.0
      %1385 = vmatprep.subr.mxu0 0.0
      %1386 = vmatpush2.msra.mxu0 0.0
      %1387 = vmatprep.subr.mxu0 0.0
      %1388 = vmatpush2.msra.mxu0 0.0
      %1389 = vmatprep.subr.mxu0 0.0
      %1390 = vmatpush2.msra.mxu0 0.0
      %1391 = vmatprep.subr.mxu0 0.0
      %1392 = vmatpush2.msra.mxu0 0.0
      %1393 = vmatprep.subr.mxu0 0.0
      %1394 = vmatpush2.msra.mxu0 0.0
      %1395 = vmatprep.mubr.f32.mxu0 0.0
      %1396 = vmatmul.mubr.f32.gmra.mxu0 %v1233
      %v1397 = vpop.f32.mrf.mxu0
      %v1398 = vadd.f32 0.0, %v1397
      %v1399 = vpop.f32.mrf.mxu0
      %1400 = vmatprep.mubr.f32.mxu0 0.0
      %1401 = vmatmul.mubr.f32.gmra.mxu0 %v1236
      %v1402 = vpop.f32.mrf.mxu0
      %v1403 = vadd.f32 0.0, %v1402
      %v1404 = vpop.f32.mrf.mxu0
      %1405 = vmatprep.mubr.f32.mxu0 0.0
      %1406 = vmatmul.mubr.f32.gmra.mxu0 %v1239
      %v1407 = vpop.f32.mrf.mxu0
      %v1408 = vadd.f32 0.0, %v1407
      %v1409 = vpop.f32.mrf.mxu0
      %1410 = vmatprep.mubr.f32.mxu0 0.0
      %1411 = vmatmul.mubr.f32.gmra.mxu0 %v1242
      %v1412 = vpop.f32.mrf.mxu0
      %v1413 = vadd.f32 0.0, %v1412
      %v1414 = vpop.f32.mrf.mxu0
      %1415 = vmatprep.mubr.f32.mxu0 0.0
      %1416 = vmatmul.mubr.f32.gmra.mxu0 %v1245
      %v1417 = vpop.f32.mrf.mxu0
      %v1418 = vadd.f32 0.0, %v1417
      %v1419 = vpop.f32.mrf.mxu0
      %1420 = vmatprep.mubr.f32.mxu0 0.0
      %1421 = vmatmul.mubr.f32.gmra.mxu0 %v1248
      %v1422 = vpop.f32.mrf.mxu0
      %v1423 = vadd.f32 0.0, %v1422
      %v1424 = vpop.f32.mrf.mxu0
      %1425 = vmatprep.mubr.f32.mxu0 0.0
      %1426 = vmatmul.mubr.f32.gmra.mxu0 %v1251
      %v1427 = vpop.f32.mrf.mxu0
      %v1428 = vadd.f32 0.0, %v1427
      %v1429 = vpop.f32.mrf.mxu0
      %1430 = vmatprep.mubr.f32.mxu0 0.0
      %1431 = vmatmul.mubr.f32.gmra.mxu0 %v1254
      %v1432 = vpop.f32.mrf.mxu0
      %v1433 = vadd.f32 0.0, %v1432
      %v1434 = vpop.f32.mrf.mxu0
      %1435 = vmatprep.mubr.f32.mxu0 0.0
      %1436 = vmatmul.mubr.f32.gmra.mxu0 %v1257
      %v1437 = vpop.f32.mrf.mxu0
      %v1438 = vadd.f32 0.0, %v1437
      %v1439 = vpop.f32.mrf.mxu0
      %1440 = vmatprep.mubr.f32.mxu0 0.0
      %1441 = vmatmul.mubr.f32.gmra.mxu0 %v1260
      %v1442 = vpop.f32.mrf.mxu0
      %v1443 = vadd.f32 0.0, %v1442
      %v1444 = vpop.f32.mrf.mxu0
      %1445 = vmatprep.mubr.f32.mxu0 0.0
      %1446 = vmatmul.mubr.f32.gmra.mxu0 %v1263
      %v1447 = vpop.f32.mrf.mxu0
      %v1448 = vadd.f32 0.0, %v1447
      %v1449 = vpop.f32.mrf.mxu0
      %1450 = vmatprep.mubr.f32.mxu0 0.0
      %1451 = vmatmul.mubr.f32.gmra.mxu0 %v1266
      %v1452 = vpop.f32.mrf.mxu0
      %v1453 = vadd.f32 0.0, %v1452
      %v1454 = vpop.f32.mrf.mxu0
      %1455 = vmatprep.mubr.f32.mxu0 0.0
      %1456 = vmatmul.mubr.f32.gmra.mxu0 %v1269
      %v1457 = vpop.f32.mrf.mxu0
      %v1458 = vadd.f32 0.0, %v1457
      %v1459 = vpop.f32.mrf.mxu0
      %1460 = vmatprep.mubr.f32.mxu0 0.0
      %1461 = vmatmul.mubr.f32.gmra.mxu0 %v1272
      %v1462 = vpop.f32.mrf.mxu0
      %v1463 = vadd.f32 0.0, %v1462
      %v1464 = vpop.f32.mrf.mxu0
      %1465 = vmatprep.mubr.f32.mxu0 0.0
      %1466 = vmatmul.mubr.f32.gmra.mxu0 %v1275
      %v1467 = vpop.f32.mrf.mxu0
      %v1468 = vadd.f32 0.0, %v1467
      %v1469 = vpop.f32.mrf.mxu0
      %1470 = vmatprep.mubr.f32.mxu0 0.0
      %1471 = vmatmul.mubr.f32.gmra.mxu0 %v1278
      %v1472 = vpop.f32.mrf.mxu0
      %v1473 = vadd.f32 0.0, %v1472
      %v1474 = vpop.f32.mrf.mxu0
      %1475 = vmatprep.mubr.f32.mxu0 0.0
      %1476 = vmatmul.mubr.f32.gmra.mxu0 %v1281
      %v1477 = vpop.f32.mrf.mxu0
      %v1478 = vadd.f32 0.0, %v1477
      %v1479 = vpop.f32.mrf.mxu0
      %1480 = vmatprep.mubr.f32.mxu0 0.0
      %1481 = vmatmul.mubr.f32.gmra.mxu0 %v1284
      %v1482 = vpop.f32.mrf.mxu0
      %v1483 = vadd.f32 0.0, %v1482
      %v1484 = vpop.f32.mrf.mxu0
      %1485 = vmatprep.mubr.f32.mxu0 0.0
      %1486 = vmatmul.mubr.f32.gmra.mxu0 %v1287
      %v1487 = vpop.f32.mrf.mxu0
      %v1488 = vadd.f32 0.0, %v1487
      %v1489 = vpop.f32.mrf.mxu0
      %1490 = vmatprep.mubr.f32.mxu0 0.0
      %1491 = vmatmul.mubr.f32.gmra.mxu0 %v1290
      %v1492 = vpop.f32.mrf.mxu0
      %v1493 = vadd.f32 0.0, %v1492
      %v1494 = vpop.f32.mrf.mxu0
      %1495 = vmatprep.mubr.f32.mxu0 0.0
      %1496 = vmatmul.mubr.f32.gmra.mxu0 %v1293
      %v1497 = vpop.f32.mrf.mxu0
      %v1498 = vadd.f32 0.0, %v1497
      %v1499 = vpop.f32.mrf.mxu0
      %1500 = vmatprep.mubr.f32.mxu0 0.0
      %1501 = vmatmul.mubr.f32.gmra.mxu0 %v1296
      %v1502 = vpop.f32.mrf.mxu0
      %v1503 = vadd.f32 0.0, %v1502
      %v1504 = vpop.f32.mrf.mxu0
      %1505 = vmatprep.mubr.f32.mxu0 0.0
      %1506 = vmatmul.mubr.f32.gmra.mxu0 %v1299
      %v1507 = vpop.f32.mrf.mxu0
      %v1508 = vadd.f32 0.0, %v1507
      %v1509 = vpop.f32.mrf.mxu0
      %1510 = vmatprep.mubr.f32.mxu0 0.0
      %1511 = vmatmul.mubr.f32.gmra.mxu0 %v1302
      %v1512 = vpop.f32.mrf.mxu0
      %v1513 = vadd.f32 0.0, %v1512
      %v1514 = vpop.f32.mrf.mxu0
      %1515 = vmatprep.mubr.f32.mxu0 0.0
      %1516 = vmatmul.mubr.f32.gmra.mxu0 %v1305
      %v1517 = vpop.f32.mrf.mxu0
      %v1518 = vadd.f32 0.0, %v1517
      %v1519 = vpop.f32.mrf.mxu0
      %1520 = vmatprep.mubr.f32.mxu0 0.0
      %1521 = vmatmul.mubr.f32.gmra.mxu0 %v1308
      %v1522 = vpop.f32.mrf.mxu0
      %v1523 = vadd.f32 0.0, %v1522
      %v1524 = vpop.f32.mrf.mxu0
      %1525 = vmatprep.mubr.f32.mxu0 0.0
      %1526 = vmatmul.mubr.f32.gmra.mxu0 %v1311
      %v1527 = vpop.f32.mrf.mxu0
      %v1528 = vadd.f32 0.0, %v1527
      %v1529 = vpop.f32.mrf.mxu0
      %1530 = vmatprep.mubr.f32.mxu0 0.0
      %1531 = vmatmul.mubr.f32.gmra.mxu0 %v1314
      %v1532 = vpop.f32.mrf.mxu0
      %v1533 = vadd.f32 0.0, %v1532
      %v1534 = vpop.f32.mrf.mxu0
      %1535 = vmatprep.mubr.f32.mxu0 0.0
      %1536 = vmatmul.mubr.f32.gmra.mxu0 %v1317
      %v1537 = vpop.f32.mrf.mxu0
      %v1538 = vadd.f32 0.0, %v1537
      %v1539 = vpop.f32.mrf.mxu0
      %1540 = vmatprep.mubr.f32.mxu0 0.0
      %1541 = vmatmul.mubr.f32.gmra.mxu0 %v1320
      %v1542 = vpop.f32.mrf.mxu0
      %v1543 = vadd.f32 0.0, %v1542
      %v1544 = vpop.f32.mrf.mxu0
      %1545 = vmatprep.mubr.f32.mxu0 0.0
      %1546 = vmatmul.mubr.f32.gmra.mxu0 %v1323
      %v1547 = vpop.f32.mrf.mxu0
      %v1548 = vadd.f32 0.0, %v1547
      %v1549 = vpop.f32.mrf.mxu0
      %1550 = vmatprep.mubr.f32.mxu0 0.0
      %1551 = vmatmul.mubr.f32.gmra.mxu0 %v1326
      %v1552 = vpop.f32.mrf.mxu0
      %v1553 = vadd.f32 0.0, %v1552
      %v1554 = vpop.f32.mrf.mxu0
      %1555 = vdwg.mxu0
      %v1556 = vadd.f32 %v1042, %v1398
      %v1557 = vadd.f32 %v1047, %v1403
      %v1558 = vadd.f32 %v1052, %v1408
      %v1559 = vadd.f32 %v1057, %v1413
      %v1560 = vadd.f32 %v1062, %v1418
      %v1561 = vadd.f32 %v1067, %v1423
      %v1562 = vadd.f32 %v1072, %v1428
      %v1563 = vadd.f32 %v1077, %v1433
      %v1564 = vadd.f32 %v1082, %v1438
      %v1565 = vadd.f32 %v1087, %v1443
      %v1566 = vadd.f32 %v1092, %v1448
      %v1567 = vadd.f32 %v1097, %v1453
      %v1568 = vadd.f32 %v1102, %v1458
      %v1569 = vadd.f32 %v1107, %v1463
      %v1570 = vadd.f32 %v1112, %v1468
      %v1571 = vadd.f32 %v1117, %v1473
      %v1572 = vadd.f32 %v1122, %v1478
      %v1573 = vadd.f32 %v1127, %v1483
      %v1574 = vadd.f32 %v1132, %v1488
      %v1575 = vadd.f32 %v1137, %v1493
      %v1576 = vadd.f32 %v1142, %v1498
      %v1577 = vadd.f32 %v1147, %v1503
      %v1578 = vadd.f32 %v1152, %v1508
      %v1579 = vadd.f32 %v1157, %v1513
      %v1580 = vadd.f32 %v1162, %v1518
      %v1581 = vadd.f32 %v1167, %v1523
      %v1582 = vadd.f32 %v1172, %v1528
      %v1583 = vadd.f32 %v1177, %v1533
      %v1584 = vadd.f32 %v1182, %v1538
      %v1585 = vadd.f32 %v1187, %v1543
      %v1586 = vadd.f32 %v1192, %v1548
      %v1587 = vadd.f32 %v1197, %v1553
      %v1588 = vld [vmem:[%s339 + $0x7] sm:$0xff]
      %v1589 = vld [vmem:[%s339 + $0xf] sm:$0xff]
      %v1590 = vld [vmem:[%s339 + $0x27] sm:$0xff]
      %v1591 = vld [vmem:[%s339 + $0x2f] sm:$0xff]
      %v1592 = vld [vmem:[%s339 + $0x47] sm:$0xff]
      %v1593 = vld [vmem:[%s339 + $0x4f] sm:$0xff]
      %v1594 = vld [vmem:[%s339 + $0x67] sm:$0xff]
      %v1595 = vld [vmem:[%s339 + $0x6f] sm:$0xff]
      %v1596 = vld [vmem:[%s339 + $0x87] sm:$0xff]
      %v1597 = vld [vmem:[%s339 + $0x8f] sm:$0xff]
      %v1598 = vld [vmem:[%s339 + $0xa7] sm:$0xff]
      %v1599 = vld [vmem:[%s339 + $0xaf] sm:$0xff]
      %v1600 = vld [vmem:[%s339 + $0xc7] sm:$0xff]
      %v1601 = vld [vmem:[%s339 + $0xcf] sm:$0xff]
      %v1602 = vld [vmem:[%s339 + $0xe7] sm:$0xff]
      %v1603 = vld [vmem:[%s339 + $0xef] sm:$0xff]
      %v1604 = vld [vmem:[%s339 + $0x107] sm:$0xff]
      %v1605 = vld [vmem:[%s339 + $0x10f] sm:$0xff]
      %v1606 = vld [vmem:[%s339 + $0x127] sm:$0xff]
      %v1607 = vld [vmem:[%s339 + $0x12f] sm:$0xff]
      %v1608 = vld [vmem:[%s339 + $0x147] sm:$0xff]
      %v1609 = vld [vmem:[%s339 + $0x14f] sm:$0xff]
      %v1610 = vld [vmem:[%s339 + $0x167] sm:$0xff]
      %v1611 = vld [vmem:[%s339 + $0x16f] sm:$0xff]
      %v1612 = vld [vmem:[%s339 + $0x187] sm:$0xff]
      %v1613 = vld [vmem:[%s339 + $0x18f] sm:$0xff]
      %v1614 = vld [vmem:[%s339 + $0x1a7] sm:$0xff]
      %v1615 = vld [vmem:[%s339 + $0x1af] sm:$0xff]
      %v1616 = vld [vmem:[%s339 + $0x1c7] sm:$0xff]
      %v1617 = vld [vmem:[%s339 + $0x1cf] sm:$0xff]
      %v1618 = vld [vmem:[%s339 + $0x1e7] sm:$0xff]
      %v1619 = vld [vmem:[%s339 + $0x1ef] sm:$0xff]
      %v1620 = vrot.slane %v482, 4
      %v1622 = vsel %vm329, %v1588, 0
      %v1625 = vsel %vm329, %v1589, 0
      %v1628 = vsel %vm329, %v1590, 0
      %v1631 = vsel %vm329, %v1591, 0
      %v1634 = vsel %vm329, %v1592, 0
      %v1637 = vsel %vm329, %v1593, 0
      %v1640 = vsel %vm329, %v1594, 0
      %v1643 = vsel %vm329, %v1595, 0
      %v1646 = vsel %vm329, %v1596, 0
      %v1649 = vsel %vm329, %v1597, 0
      %v1652 = vsel %vm329, %v1598, 0
      %v1655 = vsel %vm329, %v1599, 0
      %v1658 = vsel %vm329, %v1600, 0
      %v1661 = vsel %vm329, %v1601, 0
      %v1664 = vsel %vm329, %v1602, 0
      %v1667 = vsel %vm329, %v1603, 0
      %v1670 = vsel %vm329, %v1604, 0
      %v1673 = vsel %vm329, %v1605, 0
      %v1676 = vsel %vm329, %v1606, 0
      %v1679 = vsel %vm329, %v1607, 0
      %v1682 = vsel %vm329, %v1608, 0
      %v1685 = vsel %vm329, %v1609, 0
      %v1688 = vsel %vm329, %v1610, 0
      %v1691 = vsel %vm329, %v1611, 0
      %v1694 = vsel %vm329, %v1612, 0
      %v1697 = vsel %vm329, %v1613, 0
      %v1700 = vsel %vm329, %v1614, 0
      %v1703 = vsel %vm329, %v1615, 0
      %v1706 = vsel %vm329, %v1616, 0
      %v1709 = vsel %vm329, %v1617, 0
      %v1712 = vsel %vm329, %v1618, 0
      %v1715 = vsel %vm329, %v1619, 0
      %v1717 = vsel %vm649, %v1620, 0
      %1719 = vmatprep.subr.mxu0 0.0
      %1720 = vmatpush1.msra.mxu0 0.0
      %1721 = vmatprep.subr.mxu0 0.0
      %1722 = vmatpush1.msra.mxu0 0.0
      %1723 = vmatprep.subr.mxu0 0.0
      %1724 = vmatpush1.msra.mxu0 0.0
      %1725 = vmatprep.subr.mxu0 0.0
      %1726 = vmatpush1.msra.mxu0 0.0
      %1727 = vmatprep.subr.mxu0 0.0
      %1728 = vmatpush1.msra.mxu0 0.0
      %1729 = vmatprep.subr.mxu0 0.0
      %1730 = vmatpush1.msra.mxu0 0.0
      %1731 = vmatprep.subr.mxu0 0.0
      %1732 = vmatpush1.msra.mxu0 0.0
      %1733 = vmatprep.subr.mxu0 0.0
      %1734 = vmatpush1.msra.mxu0 0.0
      %1735 = vmatprep.subr.mxu0 0.0
      %1736 = vmatpush1.msra.mxu0 0.0
      %1737 = vmatprep.subr.mxu0 0.0
      %1738 = vmatpush1.msra.mxu0 0.0
      %1739 = vmatprep.subr.mxu0 0.0
      %1740 = vmatpush1.msra.mxu0 0.0
      %1741 = vmatprep.subr.mxu0 0.0
      %1742 = vmatpush1.msra.mxu0 0.0
      %1743 = vmatprep.subr.mxu0 0.0
      %1744 = vmatpush1.msra.mxu0 0.0
      %1745 = vmatprep.subr.mxu0 0.0
      %1746 = vmatpush1.msra.mxu0 0.0
      %1747 = vmatprep.subr.mxu0 0.0
      %1748 = vmatpush1.msra.mxu0 0.0
      %1749 = vmatprep.subr.mxu0 0.0
      %1750 = vmatpush1.msra.mxu0 %v1717
      %1751 = vmatprep.subr.mxu0 0.0
      %1752 = vmatpush2.msra.mxu0 0.0
      %1753 = vmatprep.subr.mxu0 0.0
      %1754 = vmatpush2.msra.mxu0 0.0
      %1755 = vmatprep.subr.mxu0 0.0
      %1756 = vmatpush2.msra.mxu0 0.0
      %1757 = vmatprep.subr.mxu0 0.0
      %1758 = vmatpush2.msra.mxu0 0.0
      %1759 = vmatprep.subr.mxu0 0.0
      %1760 = vmatpush2.msra.mxu0 0.0
      %1761 = vmatprep.subr.mxu0 0.0
      %1762 = vmatpush2.msra.mxu0 0.0
      %1763 = vmatprep.subr.mxu0 0.0
      %1764 = vmatpush2.msra.mxu0 0.0
      %1765 = vmatprep.subr.mxu0 0.0
      %1766 = vmatpush2.msra.mxu0 0.0
      %1767 = vmatprep.subr.mxu0 0.0
      %1768 = vmatpush2.msra.mxu0 0.0
      %1769 = vmatprep.subr.mxu0 0.0
      %1770 = vmatpush2.msra.mxu0 0.0
      %1771 = vmatprep.subr.mxu0 0.0
      %1772 = vmatpush2.msra.mxu0 0.0
      %1773 = vmatprep.subr.mxu0 0.0
      %1774 = vmatpush2.msra.mxu0 0.0
      %1775 = vmatprep.subr.mxu0 0.0
      %1776 = vmatpush2.msra.mxu0 0.0
      %1777 = vmatprep.subr.mxu0 0.0
      %1778 = vmatpush2.msra.mxu0 0.0
      %1779 = vmatprep.subr.mxu0 0.0
      %1780 = vmatpush2.msra.mxu0 0.0
      %1781 = vmatprep.subr.mxu0 0.0
      %1782 = vmatpush2.msra.mxu0 0.0
      %1783 = vmatprep.mubr.f32.mxu0 0.0
      %1784 = vmatmul.mubr.f32.gmra.mxu0 %v1622
      %v1785 = vpop.f32.mrf.mxu0
      %v1786 = vadd.f32 0.0, %v1785
      %v1787 = vpop.f32.mrf.mxu0
      %1788 = vmatprep.mubr.f32.mxu0 0.0
      %1789 = vmatmul.mubr.f32.gmra.mxu0 %v1625
      %v1790 = vpop.f32.mrf.mxu0
      %v1791 = vadd.f32 0.0, %v1790
      %v1792 = vpop.f32.mrf.mxu0
      %1793 = vmatprep.mubr.f32.mxu0 0.0
      %1794 = vmatmul.mubr.f32.gmra.mxu0 %v1628
      %v1795 = vpop.f32.mrf.mxu0
      %v1796 = vadd.f32 0.0, %v1795
      %v1797 = vpop.f32.mrf.mxu0
      %1798 = vmatprep.mubr.f32.mxu0 0.0
      %1799 = vmatmul.mubr.f32.gmra.mxu0 %v1631
      %v1800 = vpop.f32.mrf.mxu0
      %v1801 = vadd.f32 0.0, %v1800
      %v1802 = vpop.f32.mrf.mxu0
      %1803 = vmatprep.mubr.f32.mxu0 0.0
      %1804 = vmatmul.mubr.f32.gmra.mxu0 %v1634
      %v1805 = vpop.f32.mrf.mxu0
      %v1806 = vadd.f32 0.0, %v1805
      %v1807 = vpop.f32.mrf.mxu0
      %1808 = vmatprep.mubr.f32.mxu0 0.0
      %1809 = vmatmul.mubr.f32.gmra.mxu0 %v1637
      %v1810 = vpop.f32.mrf.mxu0
      %v1811 = vadd.f32 0.0, %v1810
      %v1812 = vpop.f32.mrf.mxu0
      %1813 = vmatprep.mubr.f32.mxu0 0.0
      %1814 = vmatmul.mubr.f32.gmra.mxu0 %v1640
      %v1815 = vpop.f32.mrf.mxu0
      %v1816 = vadd.f32 0.0, %v1815
      %v1817 = vpop.f32.mrf.mxu0
      %1818 = vmatprep.mubr.f32.mxu0 0.0
      %1819 = vmatmul.mubr.f32.gmra.mxu0 %v1643
      %v1820 = vpop.f32.mrf.mxu0
      %v1821 = vadd.f32 0.0, %v1820
      %v1822 = vpop.f32.mrf.mxu0
      %1823 = vmatprep.mubr.f32.mxu0 0.0
      %1824 = vmatmul.mubr.f32.gmra.mxu0 %v1646
      %v1825 = vpop.f32.mrf.mxu0
      %v1826 = vadd.f32 0.0, %v1825
      %v1827 = vpop.f32.mrf.mxu0
      %1828 = vmatprep.mubr.f32.mxu0 0.0
      %1829 = vmatmul.mubr.f32.gmra.mxu0 %v1649
      %v1830 = vpop.f32.mrf.mxu0
      %v1831 = vadd.f32 0.0, %v1830
      %v1832 = vpop.f32.mrf.mxu0
      %1833 = vmatprep.mubr.f32.mxu0 0.0
      %1834 = vmatmul.mubr.f32.gmra.mxu0 %v1652
      %v1835 = vpop.f32.mrf.mxu0
      %v1836 = vadd.f32 0.0, %v1835
      %v1837 = vpop.f32.mrf.mxu0
      %1838 = vmatprep.mubr.f32.mxu0 0.0
      %1839 = vmatmul.mubr.f32.gmra.mxu0 %v1655
      %v1840 = vpop.f32.mrf.mxu0
      %v1841 = vadd.f32 0.0, %v1840
      %v1842 = vpop.f32.mrf.mxu0
      %1843 = vmatprep.mubr.f32.mxu0 0.0
      %1844 = vmatmul.mubr.f32.gmra.mxu0 %v1658
      %v1845 = vpop.f32.mrf.mxu0
      %v1846 = vadd.f32 0.0, %v1845
      %v1847 = vpop.f32.mrf.mxu0
      %1848 = vmatprep.mubr.f32.mxu0 0.0
      %1849 = vmatmul.mubr.f32.gmra.mxu0 %v1661
      %v1850 = vpop.f32.mrf.mxu0
      %v1851 = vadd.f32 0.0, %v1850
      %v1852 = vpop.f32.mrf.mxu0
      %1853 = vmatprep.mubr.f32.mxu0 0.0
      %1854 = vmatmul.mubr.f32.gmra.mxu0 %v1664
      %v1855 = vpop.f32.mrf.mxu0
      %v1856 = vadd.f32 0.0, %v1855
      %v1857 = vpop.f32.mrf.mxu0
      %1858 = vmatprep.mubr.f32.mxu0 0.0
      %1859 = vmatmul.mubr.f32.gmra.mxu0 %v1667
      %v1860 = vpop.f32.mrf.mxu0
      %v1861 = vadd.f32 0.0, %v1860
      %v1862 = vpop.f32.mrf.mxu0
      %1863 = vmatprep.mubr.f32.mxu0 0.0
      %1864 = vmatmul.mubr.f32.gmra.mxu0 %v1670
      %v1865 = vpop.f32.mrf.mxu0
      %v1866 = vadd.f32 0.0, %v1865
      %v1867 = vpop.f32.mrf.mxu0
      %1868 = vmatprep.mubr.f32.mxu0 0.0
      %1869 = vmatmul.mubr.f32.gmra.mxu0 %v1673
      %v1870 = vpop.f32.mrf.mxu0
      %v1871 = vadd.f32 0.0, %v1870
      %v1872 = vpop.f32.mrf.mxu0
      %1873 = vmatprep.mubr.f32.mxu0 0.0
      %1874 = vmatmul.mubr.f32.gmra.mxu0 %v1676
      %v1875 = vpop.f32.mrf.mxu0
      %v1876 = vadd.f32 0.0, %v1875
      %v1877 = vpop.f32.mrf.mxu0
      %1878 = vmatprep.mubr.f32.mxu0 0.0
      %1879 = vmatmul.mubr.f32.gmra.mxu0 %v1679
      %v1880 = vpop.f32.mrf.mxu0
      %v1881 = vadd.f32 0.0, %v1880
      %v1882 = vpop.f32.mrf.mxu0
      %1883 = vmatprep.mubr.f32.mxu0 0.0
      %1884 = vmatmul.mubr.f32.gmra.mxu0 %v1682
      %v1885 = vpop.f32.mrf.mxu0
      %v1886 = vadd.f32 0.0, %v1885
      %v1887 = vpop.f32.mrf.mxu0
      %1888 = vmatprep.mubr.f32.mxu0 0.0
      %1889 = vmatmul.mubr.f32.gmra.mxu0 %v1685
      %v1890 = vpop.f32.mrf.mxu0
      %v1891 = vadd.f32 0.0, %v1890
      %v1892 = vpop.f32.mrf.mxu0
      %1893 = vmatprep.mubr.f32.mxu0 0.0
      %1894 = vmatmul.mubr.f32.gmra.mxu0 %v1688
      %v1895 = vpop.f32.mrf.mxu0
      %v1896 = vadd.f32 0.0, %v1895
      %v1897 = vpop.f32.mrf.mxu0
      %1898 = vmatprep.mubr.f32.mxu0 0.0
      %1899 = vmatmul.mubr.f32.gmra.mxu0 %v1691
      %v1900 = vpop.f32.mrf.mxu0
      %v1901 = vadd.f32 0.0, %v1900
      %v1902 = vpop.f32.mrf.mxu0
      %1903 = vmatprep.mubr.f32.mxu0 0.0
      %1904 = vmatmul.mubr.f32.gmra.mxu0 %v1694
      %v1905 = vpop.f32.mrf.mxu0
      %v1906 = vadd.f32 0.0, %v1905
      %v1907 = vpop.f32.mrf.mxu0
      %1908 = vmatprep.mubr.f32.mxu0 0.0
      %1909 = vmatmul.mubr.f32.gmra.mxu0 %v1697
      %v1910 = vpop.f32.mrf.mxu0
      %v1911 = vadd.f32 0.0, %v1910
      %v1912 = vpop.f32.mrf.mxu0
      %1913 = vmatprep.mubr.f32.mxu0 0.0
      %1914 = vmatmul.mubr.f32.gmra.mxu0 %v1700
      %v1915 = vpop.f32.mrf.mxu0
      %v1916 = vadd.f32 0.0, %v1915
      %v1917 = vpop.f32.mrf.mxu0
      %1918 = vmatprep.mubr.f32.mxu0 0.0
      %1919 = vmatmul.mubr.f32.gmra.mxu0 %v1703
      %v1920 = vpop.f32.mrf.mxu0
      %v1921 = vadd.f32 0.0, %v1920
      %v1922 = vpop.f32.mrf.mxu0
      %1923 = vmatprep.mubr.f32.mxu0 0.0
      %1924 = vmatmul.mubr.f32.gmra.mxu0 %v1706
      %v1925 = vpop.f32.mrf.mxu0
      %v1926 = vadd.f32 0.0, %v1925
      %v1927 = vpop.f32.mrf.mxu0
      %1928 = vmatprep.mubr.f32.mxu0 0.0
      %1929 = vmatmul.mubr.f32.gmra.mxu0 %v1709
      %v1930 = vpop.f32.mrf.mxu0
      %v1931 = vadd.f32 0.0, %v1930
      %v1932 = vpop.f32.mrf.mxu0
      %1933 = vmatprep.mubr.f32.mxu0 0.0
      %1934 = vmatmul.mubr.f32.gmra.mxu0 %v1712
      %v1935 = vpop.f32.mrf.mxu0
      %v1936 = vadd.f32 0.0, %v1935
      %v1937 = vpop.f32.mrf.mxu0
      %1938 = vmatprep.mubr.f32.mxu0 0.0
      %1939 = vmatmul.mubr.f32.gmra.mxu0 %v1715
      %v1940 = vpop.f32.mrf.mxu0
      %v1941 = vadd.f32 0.0, %v1940
      %v1942 = vpop.f32.mrf.mxu0
      %1943 = vdwg.mxu0
      %v1944 = vadd.f32 %v1556, %v1786
      %v1945 = vadd.f32 %v1557, %v1791
      %v1946 = vadd.f32 %v1558, %v1796
      %v1947 = vadd.f32 %v1559, %v1801
      %v1948 = vadd.f32 %v1560, %v1806
      %v1949 = vadd.f32 %v1561, %v1811
      %v1950 = vadd.f32 %v1562, %v1816
      %v1951 = vadd.f32 %v1563, %v1821
      %v1952 = vadd.f32 %v1564, %v1826
      %v1953 = vadd.f32 %v1565, %v1831
      %v1954 = vadd.f32 %v1566, %v1836
      %v1955 = vadd.f32 %v1567, %v1841
      %v1956 = vadd.f32 %v1568, %v1846
      %v1957 = vadd.f32 %v1569, %v1851
      %v1958 = vadd.f32 %v1570, %v1856
      %v1959 = vadd.f32 %v1571, %v1861
      %v1960 = vadd.f32 %v1572, %v1866
      %v1961 = vadd.f32 %v1573, %v1871
      %v1962 = vadd.f32 %v1574, %v1876
      %v1963 = vadd.f32 %v1575, %v1881
      %v1964 = vadd.f32 %v1576, %v1886
      %v1965 = vadd.f32 %v1577, %v1891
      %v1966 = vadd.f32 %v1578, %v1896
      %v1967 = vadd.f32 %v1579, %v1901
      %v1968 = vadd.f32 %v1580, %v1906
      %v1969 = vadd.f32 %v1581, %v1911
      %v1970 = vadd.f32 %v1582, %v1916
      %v1971 = vadd.f32 %v1583, %v1921
      %v1972 = vadd.f32 %v1584, %v1926
      %v1973 = vadd.f32 %v1585, %v1931
      %v1974 = vadd.f32 %v1586, %v1936
      %v1975 = vadd.f32 %v1587, %v1941
      %v1976 = vld [vmem:[%s339 + $0x8] sm:$0xff]
      %v1977 = vld [vmem:[%s339 + $0x10] sm:$0xff]
      %v1978 = vld [vmem:[%s339 + $0x28] sm:$0xff]
      %v1979 = vld [vmem:[%s339 + $0x30] sm:$0xff]
      %v1980 = vld [vmem:[%s339 + $0x48] sm:$0xff]
      %v1981 = vld [vmem:[%s339 + $0x50] sm:$0xff]
      %v1982 = vld [vmem:[%s339 + $0x68] sm:$0xff]
      %v1983 = vld [vmem:[%s339 + $0x70] sm:$0xff]
      %v1984 = vld [vmem:[%s339 + $0x88] sm:$0xff]
      %v1985 = vld [vmem:[%s339 + $0x90] sm:$0xff]
      %v1986 = vld [vmem:[%s339 + $0xa8] sm:$0xff]
      %v1987 = vld [vmem:[%s339 + $0xb0] sm:$0xff]
      %v1988 = vld [vmem:[%s339 + $0xc8] sm:$0xff]
      %v1989 = vld [vmem:[%s339 + $0xd0] sm:$0xff]
      %v1990 = vld [vmem:[%s339 + $0xe8] sm:$0xff]
      %v1991 = vld [vmem:[%s339 + $0xf0] sm:$0xff]
      %v1992 = vld [vmem:[%s339 + $0x108] sm:$0xff]
      %v1993 = vld [vmem:[%s339 + $0x110] sm:$0xff]
      %v1994 = vld [vmem:[%s339 + $0x128] sm:$0xff]
      %v1995 = vld [vmem:[%s339 + $0x130] sm:$0xff]
      %v1996 = vld [vmem:[%s339 + $0x148] sm:$0xff]
      %v1997 = vld [vmem:[%s339 + $0x150] sm:$0xff]
      %v1998 = vld [vmem:[%s339 + $0x168] sm:$0xff]
      %v1999 = vld [vmem:[%s339 + $0x170] sm:$0xff]
      %v2000 = vld [vmem:[%s339 + $0x188] sm:$0xff]
      %v2001 = vld [vmem:[%s339 + $0x190] sm:$0xff]
      %v2002 = vld [vmem:[%s339 + $0x1a8] sm:$0xff]
      %v2003 = vld [vmem:[%s339 + $0x1b0] sm:$0xff]
      %v2004 = vld [vmem:[%s339 + $0x1c8] sm:$0xff]
      %v2005 = vld [vmem:[%s339 + $0x1d0] sm:$0xff]
      %v2006 = vld [vmem:[%s339 + $0x1e8] sm:$0xff]
      %v2007 = vld [vmem:[%s339 + $0x1f0] sm:$0xff]
      %v2009 = vsel %vm329, %v1976, 0
      %v2012 = vsel %vm329, %v1977, 0
      %v2015 = vsel %vm329, %v1978, 0
      %v2018 = vsel %vm329, %v1979, 0
      %v2021 = vsel %vm329, %v1980, 0
      %v2024 = vsel %vm329, %v1981, 0
      %v2027 = vsel %vm329, %v1982, 0
      %v2030 = vsel %vm329, %v1983, 0
      %v2033 = vsel %vm329, %v1984, 0
      %v2036 = vsel %vm329, %v1985, 0
      %v2039 = vsel %vm329, %v1986, 0
      %v2042 = vsel %vm329, %v1987, 0
      %v2045 = vsel %vm329, %v1988, 0
      %v2048 = vsel %vm329, %v1989, 0
      %v2051 = vsel %vm329, %v1990, 0
      %v2054 = vsel %vm329, %v1991, 0
      %v2057 = vsel %vm329, %v1992, 0
      %v2060 = vsel %vm329, %v1993, 0
      %v2063 = vsel %vm329, %v1994, 0
      %v2066 = vsel %vm329, %v1995, 0
      %v2069 = vsel %vm329, %v1996, 0
      %v2072 = vsel %vm329, %v1997, 0
      %v2075 = vsel %vm329, %v1998, 0
      %v2078 = vsel %vm329, %v1999, 0
      %v2081 = vsel %vm329, %v2000, 0
      %v2084 = vsel %vm329, %v2001, 0
      %v2087 = vsel %vm329, %v2002, 0
      %v2090 = vsel %vm329, %v2003, 0
      %v2093 = vsel %vm329, %v2004, 0
      %v2096 = vsel %vm329, %v2005, 0
      %v2099 = vsel %vm329, %v2006, 0
      %v2102 = vsel %vm329, %v2007, 0
      %v2105 = vsel %vm649, %v483, 0
      %2107 = vmatprep.subr.mxu0 0.0
      %2108 = vmatpush1.msra.mxu0 0.0
      %2109 = vmatprep.subr.mxu0 0.0
      %2110 = vmatpush1.msra.mxu0 0.0
      %2111 = vmatprep.subr.mxu0 0.0
      %2112 = vmatpush1.msra.mxu0 0.0
      %2113 = vmatprep.subr.mxu0 0.0
      %2114 = vmatpush1.msra.mxu0 0.0
      %2115 = vmatprep.subr.mxu0 0.0
      %2116 = vmatpush1.msra.mxu0 0.0
      %2117 = vmatprep.subr.mxu0 0.0
      %2118 = vmatpush1.msra.mxu0 0.0
      %2119 = vmatprep.subr.mxu0 0.0
      %2120 = vmatpush1.msra.mxu0 0.0
      %2121 = vmatprep.subr.mxu0 0.0
      %2122 = vmatpush1.msra.mxu0 0.0
      %2123 = vmatprep.subr.mxu0 0.0
      %2124 = vmatpush1.msra.mxu0 0.0
      %2125 = vmatprep.subr.mxu0 0.0
      %2126 = vmatpush1.msra.mxu0 0.0
      %2127 = vmatprep.subr.mxu0 0.0
      %2128 = vmatpush1.msra.mxu0 0.0
      %2129 = vmatprep.subr.mxu0 0.0
      %2130 = vmatpush1.msra.mxu0 0.0
      %2131 = vmatprep.subr.mxu0 0.0
      %2132 = vmatpush1.msra.mxu0 0.0
      %2133 = vmatprep.subr.mxu0 0.0
      %2134 = vmatpush1.msra.mxu0 0.0
      %2135 = vmatprep.subr.mxu0 0.0
      %2136 = vmatpush1.msra.mxu0 0.0
      %2137 = vmatprep.subr.mxu0 0.0
      %2138 = vmatpush1.msra.mxu0 %v2105
      %2139 = vmatprep.subr.mxu0 0.0
      %2140 = vmatpush2.msra.mxu0 0.0
      %2141 = vmatprep.subr.mxu0 0.0
      %2142 = vmatpush2.msra.mxu0 0.0
      %2143 = vmatprep.subr.mxu0 0.0
      %2144 = vmatpush2.msra.mxu0 0.0
      %2145 = vmatprep.subr.mxu0 0.0
      %2146 = vmatpush2.msra.mxu0 0.0
      %2147 = vmatprep.subr.mxu0 0.0
      %2148 = vmatpush2.msra.mxu0 0.0
      %2149 = vmatprep.subr.mxu0 0.0
      %2150 = vmatpush2.msra.mxu0 0.0
      %2151 = vmatprep.subr.mxu0 0.0
      %2152 = vmatpush2.msra.mxu0 0.0
      %2153 = vmatprep.subr.mxu0 0.0
      %2154 = vmatpush2.msra.mxu0 0.0
      %2155 = vmatprep.subr.mxu0 0.0
      %2156 = vmatpush2.msra.mxu0 0.0
      %2157 = vmatprep.subr.mxu0 0.0
      %2158 = vmatpush2.msra.mxu0 0.0
      %2159 = vmatprep.subr.mxu0 0.0
      %2160 = vmatpush2.msra.mxu0 0.0
      %2161 = vmatprep.subr.mxu0 0.0
      %2162 = vmatpush2.msra.mxu0 0.0
      %2163 = vmatprep.subr.mxu0 0.0
      %2164 = vmatpush2.msra.mxu0 0.0
      %2165 = vmatprep.subr.mxu0 0.0
      %2166 = vmatpush2.msra.mxu0 0.0
      %2167 = vmatprep.subr.mxu0 0.0
      %2168 = vmatpush2.msra.mxu0 0.0
      %2169 = vmatprep.subr.mxu0 0.0
      %2170 = vmatpush2.msra.mxu0 0.0
      %2171 = vmatprep.mubr.f32.mxu0 0.0
      %2172 = vmatmul.mubr.f32.gmra.mxu0 %v2009
      %v2173 = vpop.f32.mrf.mxu0
      %v2174 = vadd.f32 0.0, %v2173
      %v2175 = vpop.f32.mrf.mxu0
      %2176 = vmatprep.mubr.f32.mxu0 0.0
      %2177 = vmatmul.mubr.f32.gmra.mxu0 %v2012
      %v2178 = vpop.f32.mrf.mxu0
      %v2179 = vadd.f32 0.0, %v2178
      %v2180 = vpop.f32.mrf.mxu0
      %2181 = vmatprep.mubr.f32.mxu0 0.0
      %2182 = vmatmul.mubr.f32.gmra.mxu0 %v2015
      %v2183 = vpop.f32.mrf.mxu0
      %v2184 = vadd.f32 0.0, %v2183
      %v2185 = vpop.f32.mrf.mxu0
      %2186 = vmatprep.mubr.f32.mxu0 0.0
      %2187 = vmatmul.mubr.f32.gmra.mxu0 %v2018
      %v2188 = vpop.f32.mrf.mxu0
      %v2189 = vadd.f32 0.0, %v2188
      %v2190 = vpop.f32.mrf.mxu0
      %2191 = vmatprep.mubr.f32.mxu0 0.0
      %2192 = vmatmul.mubr.f32.gmra.mxu0 %v2021
      %v2193 = vpop.f32.mrf.mxu0
      %v2194 = vadd.f32 0.0, %v2193
      %v2195 = vpop.f32.mrf.mxu0
      %2196 = vmatprep.mubr.f32.mxu0 0.0
      %2197 = vmatmul.mubr.f32.gmra.mxu0 %v2024
      %v2198 = vpop.f32.mrf.mxu0
      %v2199 = vadd.f32 0.0, %v2198
      %v2200 = vpop.f32.mrf.mxu0
      %2201 = vmatprep.mubr.f32.mxu0 0.0
      %2202 = vmatmul.mubr.f32.gmra.mxu0 %v2027
      %v2203 = vpop.f32.mrf.mxu0
      %v2204 = vadd.f32 0.0, %v2203
      %v2205 = vpop.f32.mrf.mxu0
      %2206 = vmatprep.mubr.f32.mxu0 0.0
      %2207 = vmatmul.mubr.f32.gmra.mxu0 %v2030
      %v2208 = vpop.f32.mrf.mxu0
      %v2209 = vadd.f32 0.0, %v2208
      %v2210 = vpop.f32.mrf.mxu0
      %2211 = vmatprep.mubr.f32.mxu0 0.0
      %2212 = vmatmul.mubr.f32.gmra.mxu0 %v2033
      %v2213 = vpop.f32.mrf.mxu0
      %v2214 = vadd.f32 0.0, %v2213
      %v2215 = vpop.f32.mrf.mxu0
      %2216 = vmatprep.mubr.f32.mxu0 0.0
      %2217 = vmatmul.mubr.f32.gmra.mxu0 %v2036
      %v2218 = vpop.f32.mrf.mxu0
      %v2219 = vadd.f32 0.0, %v2218
      %v2220 = vpop.f32.mrf.mxu0
      %2221 = vmatprep.mubr.f32.mxu0 0.0
      %2222 = vmatmul.mubr.f32.gmra.mxu0 %v2039
      %v2223 = vpop.f32.mrf.mxu0
      %v2224 = vadd.f32 0.0, %v2223
      %v2225 = vpop.f32.mrf.mxu0
      %2226 = vmatprep.mubr.f32.mxu0 0.0
      %2227 = vmatmul.mubr.f32.gmra.mxu0 %v2042
      %v2228 = vpop.f32.mrf.mxu0
      %v2229 = vadd.f32 0.0, %v2228
      %v2230 = vpop.f32.mrf.mxu0
      %2231 = vmatprep.mubr.f32.mxu0 0.0
      %2232 = vmatmul.mubr.f32.gmra.mxu0 %v2045
      %v2233 = vpop.f32.mrf.mxu0
      %v2234 = vadd.f32 0.0, %v2233
      %v2235 = vpop.f32.mrf.mxu0
      %2236 = vmatprep.mubr.f32.mxu0 0.0
      %2237 = vmatmul.mubr.f32.gmra.mxu0 %v2048
      %v2238 = vpop.f32.mrf.mxu0
      %v2239 = vadd.f32 0.0, %v2238
      %v2240 = vpop.f32.mrf.mxu0
      %2241 = vmatprep.mubr.f32.mxu0 0.0
      %2242 = vmatmul.mubr.f32.gmra.mxu0 %v2051
      %v2243 = vpop.f32.mrf.mxu0
      %v2244 = vadd.f32 0.0, %v2243
      %v2245 = vpop.f32.mrf.mxu0
      %2246 = vmatprep.mubr.f32.mxu0 0.0
      %2247 = vmatmul.mubr.f32.gmra.mxu0 %v2054
      %v2248 = vpop.f32.mrf.mxu0
      %v2249 = vadd.f32 0.0, %v2248
      %v2250 = vpop.f32.mrf.mxu0
      %2251 = vmatprep.mubr.f32.mxu0 0.0
      %2252 = vmatmul.mubr.f32.gmra.mxu0 %v2057
      %v2253 = vpop.f32.mrf.mxu0
      %v2254 = vadd.f32 0.0, %v2253
      %v2255 = vpop.f32.mrf.mxu0
      %2256 = vmatprep.mubr.f32.mxu0 0.0
      %2257 = vmatmul.mubr.f32.gmra.mxu0 %v2060
      %v2258 = vpop.f32.mrf.mxu0
      %v2259 = vadd.f32 0.0, %v2258
      %v2260 = vpop.f32.mrf.mxu0
      %2261 = vmatprep.mubr.f32.mxu0 0.0
      %2262 = vmatmul.mubr.f32.gmra.mxu0 %v2063
      %v2263 = vpop.f32.mrf.mxu0
      %v2264 = vadd.f32 0.0, %v2263
      %v2265 = vpop.f32.mrf.mxu0
      %2266 = vmatprep.mubr.f32.mxu0 0.0
      %2267 = vmatmul.mubr.f32.gmra.mxu0 %v2066
      %v2268 = vpop.f32.mrf.mxu0
      %v2269 = vadd.f32 0.0, %v2268
      %v2270 = vpop.f32.mrf.mxu0
      %2271 = vmatprep.mubr.f32.mxu0 0.0
      %2272 = vmatmul.mubr.f32.gmra.mxu0 %v2069
      %v2273 = vpop.f32.mrf.mxu0
      %v2274 = vadd.f32 0.0, %v2273
      %v2275 = vpop.f32.mrf.mxu0
      %2276 = vmatprep.mubr.f32.mxu0 0.0
      %2277 = vmatmul.mubr.f32.gmra.mxu0 %v2072
      %v2278 = vpop.f32.mrf.mxu0
      %v2279 = vadd.f32 0.0, %v2278
      %v2280 = vpop.f32.mrf.mxu0
      %2281 = vmatprep.mubr.f32.mxu0 0.0
      %2282 = vmatmul.mubr.f32.gmra.mxu0 %v2075
      %v2283 = vpop.f32.mrf.mxu0
      %v2284 = vadd.f32 0.0, %v2283
      %v2285 = vpop.f32.mrf.mxu0
      %2286 = vmatprep.mubr.f32.mxu0 0.0
      %2287 = vmatmul.mubr.f32.gmra.mxu0 %v2078
      %v2288 = vpop.f32.mrf.mxu0
      %v2289 = vadd.f32 0.0, %v2288
      %v2290 = vpop.f32.mrf.mxu0
      %2291 = vmatprep.mubr.f32.mxu0 0.0
      %2292 = vmatmul.mubr.f32.gmra.mxu0 %v2081
      %v2293 = vpop.f32.mrf.mxu0
      %v2294 = vadd.f32 0.0, %v2293
      %v2295 = vpop.f32.mrf.mxu0
      %2296 = vmatprep.mubr.f32.mxu0 0.0
      %2297 = vmatmul.mubr.f32.gmra.mxu0 %v2084
      %v2298 = vpop.f32.mrf.mxu0
      %v2299 = vadd.f32 0.0, %v2298
      %v2300 = vpop.f32.mrf.mxu0
      %2301 = vmatprep.mubr.f32.mxu0 0.0
      %2302 = vmatmul.mubr.f32.gmra.mxu0 %v2087
      %v2303 = vpop.f32.mrf.mxu0
      %v2304 = vadd.f32 0.0, %v2303
      %v2305 = vpop.f32.mrf.mxu0
      %2306 = vmatprep.mubr.f32.mxu0 0.0
      %2307 = vmatmul.mubr.f32.gmra.mxu0 %v2090
      %v2308 = vpop.f32.mrf.mxu0
      %v2309 = vadd.f32 0.0, %v2308
      %v2310 = vpop.f32.mrf.mxu0
      %2311 = vmatprep.mubr.f32.mxu0 0.0
      %2312 = vmatmul.mubr.f32.gmra.mxu0 %v2093
      %v2313 = vpop.f32.mrf.mxu0
      %v2314 = vadd.f32 0.0, %v2313
      %v2315 = vpop.f32.mrf.mxu0
      %2316 = vmatprep.mubr.f32.mxu0 0.0
      %2317 = vmatmul.mubr.f32.gmra.mxu0 %v2096
      %v2318 = vpop.f32.mrf.mxu0
      %v2319 = vadd.f32 0.0, %v2318
      %v2320 = vpop.f32.mrf.mxu0
      %2321 = vmatprep.mubr.f32.mxu0 0.0
      %2322 = vmatmul.mubr.f32.gmra.mxu0 %v2099
      %v2323 = vpop.f32.mrf.mxu0
      %v2324 = vadd.f32 0.0, %v2323
      %v2325 = vpop.f32.mrf.mxu0
      %2326 = vmatprep.mubr.f32.mxu0 0.0
      %2327 = vmatmul.mubr.f32.gmra.mxu0 %v2102
      %v2328 = vpop.f32.mrf.mxu0
      %v2329 = vadd.f32 0.0, %v2328
      %v2330 = vpop.f32.mrf.mxu0
      %2331 = vdwg.mxu0
      %v2332 = vadd.f32 %v1944, %v2174
      %v2333 = vadd.f32 %v1945, %v2179
      %v2334 = vadd.f32 %v1946, %v2184
      %v2335 = vadd.f32 %v1947, %v2189
      %v2336 = vadd.f32 %v1948, %v2194
      %v2337 = vadd.f32 %v1949, %v2199
      %v2338 = vadd.f32 %v1950, %v2204
      %v2339 = vadd.f32 %v1951, %v2209
      %v2340 = vadd.f32 %v1952, %v2214
      %v2341 = vadd.f32 %v1953, %v2219
      %v2342 = vadd.f32 %v1954, %v2224
      %v2343 = vadd.f32 %v1955, %v2229
      %v2344 = vadd.f32 %v1956, %v2234
      %v2345 = vadd.f32 %v1957, %v2239
      %v2346 = vadd.f32 %v1958, %v2244
      %v2347 = vadd.f32 %v1959, %v2249
      %v2348 = vadd.f32 %v1960, %v2254
      %v2349 = vadd.f32 %v1961, %v2259
      %v2350 = vadd.f32 %v1962, %v2264
      %v2351 = vadd.f32 %v1963, %v2269
      %v2352 = vadd.f32 %v1964, %v2274
      %v2353 = vadd.f32 %v1965, %v2279
      %v2354 = vadd.f32 %v1966, %v2284
      %v2355 = vadd.f32 %v1967, %v2289
      %v2356 = vadd.f32 %v1968, %v2294
      %v2357 = vadd.f32 %v1969, %v2299
      %v2358 = vadd.f32 %v1970, %v2304
      %v2359 = vadd.f32 %v1971, %v2309
      %v2360 = vadd.f32 %v1972, %v2314
      %v2361 = vadd.f32 %v1973, %v2319
      %v2362 = vadd.f32 %v1974, %v2324
      %v2363 = vadd.f32 %v1975, %v2329
      %v2364 = vld [vmem:[%s339 + $0x9] sm:$0xff]
      %v2365 = vld [vmem:[%s339 + $0x11] sm:$0xff]
      %v2366 = vld [vmem:[%s339 + $0x29] sm:$0xff]
      %v2367 = vld [vmem:[%s339 + $0x31] sm:$0xff]
      %v2368 = vld [vmem:[%s339 + $0x49] sm:$0xff]
      %v2369 = vld [vmem:[%s339 + $0x51] sm:$0xff]
      %v2370 = vld [vmem:[%s339 + $0x69] sm:$0xff]
      %v2371 = vld [vmem:[%s339 + $0x71] sm:$0xff]
      %v2372 = vld [vmem:[%s339 + $0x89] sm:$0xff]
      %v2373 = vld [vmem:[%s339 + $0x91] sm:$0xff]
      %v2374 = vld [vmem:[%s339 + $0xa9] sm:$0xff]
      %v2375 = vld [vmem:[%s339 + $0xb1] sm:$0xff]
      %v2376 = vld [vmem:[%s339 + $0xc9] sm:$0xff]
      %v2377 = vld [vmem:[%s339 + $0xd1] sm:$0xff]
      %v2378 = vld [vmem:[%s339 + $0xe9] sm:$0xff]
      %v2379 = vld [vmem:[%s339 + $0xf1] sm:$0xff]
      %v2380 = vld [vmem:[%s339 + $0x109] sm:$0xff]
      %v2381 = vld [vmem:[%s339 + $0x111] sm:$0xff]
      %v2382 = vld [vmem:[%s339 + $0x129] sm:$0xff]
      %v2383 = vld [vmem:[%s339 + $0x131] sm:$0xff]
      %v2384 = vld [vmem:[%s339 + $0x149] sm:$0xff]
      %v2385 = vld [vmem:[%s339 + $0x151] sm:$0xff]
      %v2386 = vld [vmem:[%s339 + $0x169] sm:$0xff]
      %v2387 = vld [vmem:[%s339 + $0x171] sm:$0xff]
      %v2388 = vld [vmem:[%s339 + $0x189] sm:$0xff]
      %v2389 = vld [vmem:[%s339 + $0x191] sm:$0xff]
      %v2390 = vld [vmem:[%s339 + $0x1a9] sm:$0xff]
      %v2391 = vld [vmem:[%s339 + $0x1b1] sm:$0xff]
      %v2392 = vld [vmem:[%s339 + $0x1c9] sm:$0xff]
      %v2393 = vld [vmem:[%s339 + $0x1d1] sm:$0xff]
      %v2394 = vld [vmem:[%s339 + $0x1e9] sm:$0xff]
      %v2395 = vld [vmem:[%s339 + $0x1f1] sm:$0xff]
      %v2396 = vrot.slane %v483, 4
      %v2398 = vsel %vm329, %v2364, 0
      %v2401 = vsel %vm329, %v2365, 0
      %v2404 = vsel %vm329, %v2366, 0
      %v2407 = vsel %vm329, %v2367, 0
      %v2410 = vsel %vm329, %v2368, 0
      %v2413 = vsel %vm329, %v2369, 0
      %v2416 = vsel %vm329, %v2370, 0
      %v2419 = vsel %vm329, %v2371, 0
      %v2422 = vsel %vm329, %v2372, 0
      %v2425 = vsel %vm329, %v2373, 0
      %v2428 = vsel %vm329, %v2374, 0
      %v2431 = vsel %vm329, %v2375, 0
      %v2434 = vsel %vm329, %v2376, 0
      %v2437 = vsel %vm329, %v2377, 0
      %v2440 = vsel %vm329, %v2378, 0
      %v2443 = vsel %vm329, %v2379, 0
      %v2446 = vsel %vm329, %v2380, 0
      %v2449 = vsel %vm329, %v2381, 0
      %v2452 = vsel %vm329, %v2382, 0
      %v2455 = vsel %vm329, %v2383, 0
      %v2458 = vsel %vm329, %v2384, 0
      %v2461 = vsel %vm329, %v2385, 0
      %v2464 = vsel %vm329, %v2386, 0
      %v2467 = vsel %vm329, %v2387, 0
      %v2470 = vsel %vm329, %v2388, 0
      %v2473 = vsel %vm329, %v2389, 0
      %v2476 = vsel %vm329, %v2390, 0
      %v2479 = vsel %vm329, %v2391, 0
      %v2482 = vsel %vm329, %v2392, 0
      %v2485 = vsel %vm329, %v2393, 0
      %v2488 = vsel %vm329, %v2394, 0
      %v2491 = vsel %vm329, %v2395, 0
      %v2493 = vsel %vm649, %v2396, 0
      %2495 = vmatprep.subr.mxu0 0.0
      %2496 = vmatpush1.msra.mxu0 0.0
      %2497 = vmatprep.subr.mxu0 0.0
      %2498 = vmatpush1.msra.mxu0 0.0
      %2499 = vmatprep.subr.mxu0 0.0
      %2500 = vmatpush1.msra.mxu0 0.0
      %2501 = vmatprep.subr.mxu0 0.0
      %2502 = vmatpush1.msra.mxu0 0.0
      %2503 = vmatprep.subr.mxu0 0.0
      %2504 = vmatpush1.msra.mxu0 0.0
      %2505 = vmatprep.subr.mxu0 0.0
      %2506 = vmatpush1.msra.mxu0 0.0
      %2507 = vmatprep.subr.mxu0 0.0
      %2508 = vmatpush1.msra.mxu0 0.0
      %2509 = vmatprep.subr.mxu0 0.0
      %2510 = vmatpush1.msra.mxu0 0.0
      %2511 = vmatprep.subr.mxu0 0.0
      %2512 = vmatpush1.msra.mxu0 0.0
      %2513 = vmatprep.subr.mxu0 0.0
      %2514 = vmatpush1.msra.mxu0 0.0
      %2515 = vmatprep.subr.mxu0 0.0
      %2516 = vmatpush1.msra.mxu0 0.0
      %2517 = vmatprep.subr.mxu0 0.0
      %2518 = vmatpush1.msra.mxu0 0.0
      %2519 = vmatprep.subr.mxu0 0.0
      %2520 = vmatpush1.msra.mxu0 0.0
      %2521 = vmatprep.subr.mxu0 0.0
      %2522 = vmatpush1.msra.mxu0 0.0
      %2523 = vmatprep.subr.mxu0 0.0
      %2524 = vmatpush1.msra.mxu0 0.0
      %2525 = vmatprep.subr.mxu0 0.0
      %2526 = vmatpush1.msra.mxu0 %v2493
      %2527 = vmatprep.subr.mxu0 0.0
      %2528 = vmatpush2.msra.mxu0 0.0
      %2529 = vmatprep.subr.mxu0 0.0
      %2530 = vmatpush2.msra.mxu0 0.0
      %2531 = vmatprep.subr.mxu0 0.0
      %2532 = vmatpush2.msra.mxu0 0.0
      %2533 = vmatprep.subr.mxu0 0.0
      %2534 = vmatpush2.msra.mxu0 0.0
      %2535 = vmatprep.subr.mxu0 0.0
      %2536 = vmatpush2.msra.mxu0 0.0
      %2537 = vmatprep.subr.mxu0 0.0
      %2538 = vmatpush2.msra.mxu0 0.0
      %2539 = vmatprep.subr.mxu0 0.0
      %2540 = vmatpush2.msra.mxu0 0.0
      %2541 = vmatprep.subr.mxu0 0.0
      %2542 = vmatpush2.msra.mxu0 0.0
      %2543 = vmatprep.subr.mxu0 0.0
      %2544 = vmatpush2.msra.mxu0 0.0
      %2545 = vmatprep.subr.mxu0 0.0
      %2546 = vmatpush2.msra.mxu0 0.0
      %2547 = vmatprep.subr.mxu0 0.0
      %2548 = vmatpush2.msra.mxu0 0.0
      %2549 = vmatprep.subr.mxu0 0.0
      %2550 = vmatpush2.msra.mxu0 0.0
      %2551 = vmatprep.subr.mxu0 0.0
      %2552 = vmatpush2.msra.mxu0 0.0
      %2553 = vmatprep.subr.mxu0 0.0
      %2554 = vmatpush2.msra.mxu0 0.0
      %2555 = vmatprep.subr.mxu0 0.0
      %2556 = vmatpush2.msra.mxu0 0.0
      %2557 = vmatprep.subr.mxu0 0.0
      %2558 = vmatpush2.msra.mxu0 0.0
      %2559 = vmatprep.mubr.f32.mxu0 0.0
      %2560 = vmatmul.mubr.f32.gmra.mxu0 %v2398
      %v2561 = vpop.f32.mrf.mxu0
      %v2562 = vadd.f32 0.0, %v2561
      %v2563 = vpop.f32.mrf.mxu0
      %2564 = vmatprep.mubr.f32.mxu0 0.0
      %2565 = vmatmul.mubr.f32.gmra.mxu0 %v2401
      %v2566 = vpop.f32.mrf.mxu0
      %v2567 = vadd.f32 0.0, %v2566
      %v2568 = vpop.f32.mrf.mxu0
      %2569 = vmatprep.mubr.f32.mxu0 0.0
      %2570 = vmatmul.mubr.f32.gmra.mxu0 %v2404
      %v2571 = vpop.f32.mrf.mxu0
      %v2572 = vadd.f32 0.0, %v2571
      %v2573 = vpop.f32.mrf.mxu0
      %2574 = vmatprep.mubr.f32.mxu0 0.0
      %2575 = vmatmul.mubr.f32.gmra.mxu0 %v2407
      %v2576 = vpop.f32.mrf.mxu0
      %v2577 = vadd.f32 0.0, %v2576
      %v2578 = vpop.f32.mrf.mxu0
      %2579 = vmatprep.mubr.f32.mxu0 0.0
      %2580 = vmatmul.mubr.f32.gmra.mxu0 %v2410
      %v2581 = vpop.f32.mrf.mxu0
      %v2582 = vadd.f32 0.0, %v2581
      %v2583 = vpop.f32.mrf.mxu0
      %2584 = vmatprep.mubr.f32.mxu0 0.0
      %2585 = vmatmul.mubr.f32.gmra.mxu0 %v2413
      %v2586 = vpop.f32.mrf.mxu0
      %v2587 = vadd.f32 0.0, %v2586
      %v2588 = vpop.f32.mrf.mxu0
      %2589 = vmatprep.mubr.f32.mxu0 0.0
      %2590 = vmatmul.mubr.f32.gmra.mxu0 %v2416
      %v2591 = vpop.f32.mrf.mxu0
      %v2592 = vadd.f32 0.0, %v2591
      %v2593 = vpop.f32.mrf.mxu0
      %2594 = vmatprep.mubr.f32.mxu0 0.0
      %2595 = vmatmul.mubr.f32.gmra.mxu0 %v2419
      %v2596 = vpop.f32.mrf.mxu0
      %v2597 = vadd.f32 0.0, %v2596
      %v2598 = vpop.f32.mrf.mxu0
      %2599 = vmatprep.mubr.f32.mxu0 0.0
      %2600 = vmatmul.mubr.f32.gmra.mxu0 %v2422
      %v2601 = vpop.f32.mrf.mxu0
      %v2602 = vadd.f32 0.0, %v2601
      %v2603 = vpop.f32.mrf.mxu0
      %2604 = vmatprep.mubr.f32.mxu0 0.0
      %2605 = vmatmul.mubr.f32.gmra.mxu0 %v2425
      %v2606 = vpop.f32.mrf.mxu0
      %v2607 = vadd.f32 0.0, %v2606
      %v2608 = vpop.f32.mrf.mxu0
      %2609 = vmatprep.mubr.f32.mxu0 0.0
      %2610 = vmatmul.mubr.f32.gmra.mxu0 %v2428
      %v2611 = vpop.f32.mrf.mxu0
      %v2612 = vadd.f32 0.0, %v2611
      %v2613 = vpop.f32.mrf.mxu0
      %2614 = vmatprep.mubr.f32.mxu0 0.0
      %2615 = vmatmul.mubr.f32.gmra.mxu0 %v2431
      %v2616 = vpop.f32.mrf.mxu0
      %v2617 = vadd.f32 0.0, %v2616
      %v2618 = vpop.f32.mrf.mxu0
      %2619 = vmatprep.mubr.f32.mxu0 0.0
      %2620 = vmatmul.mubr.f32.gmra.mxu0 %v2434
      %v2621 = vpop.f32.mrf.mxu0
      %v2622 = vadd.f32 0.0, %v2621
      %v2623 = vpop.f32.mrf.mxu0
      %2624 = vmatprep.mubr.f32.mxu0 0.0
      %2625 = vmatmul.mubr.f32.gmra.mxu0 %v2437
      %v2626 = vpop.f32.mrf.mxu0
      %v2627 = vadd.f32 0.0, %v2626
      %v2628 = vpop.f32.mrf.mxu0
      %2629 = vmatprep.mubr.f32.mxu0 0.0
      %2630 = vmatmul.mubr.f32.gmra.mxu0 %v2440
      %v2631 = vpop.f32.mrf.mxu0
      %v2632 = vadd.f32 0.0, %v2631
      %v2633 = vpop.f32.mrf.mxu0
      %2634 = vmatprep.mubr.f32.mxu0 0.0
      %2635 = vmatmul.mubr.f32.gmra.mxu0 %v2443
      %v2636 = vpop.f32.mrf.mxu0
      %v2637 = vadd.f32 0.0, %v2636
      %v2638 = vpop.f32.mrf.mxu0
      %2639 = vmatprep.mubr.f32.mxu0 0.0
      %2640 = vmatmul.mubr.f32.gmra.mxu0 %v2446
      %v2641 = vpop.f32.mrf.mxu0
      %v2642 = vadd.f32 0.0, %v2641
      %v2643 = vpop.f32.mrf.mxu0
      %2644 = vmatprep.mubr.f32.mxu0 0.0
      %2645 = vmatmul.mubr.f32.gmra.mxu0 %v2449
      %v2646 = vpop.f32.mrf.mxu0
      %v2647 = vadd.f32 0.0, %v2646
      %v2648 = vpop.f32.mrf.mxu0
      %2649 = vmatprep.mubr.f32.mxu0 0.0
      %2650 = vmatmul.mubr.f32.gmra.mxu0 %v2452
      %v2651 = vpop.f32.mrf.mxu0
      %v2652 = vadd.f32 0.0, %v2651
      %v2653 = vpop.f32.mrf.mxu0
      %2654 = vmatprep.mubr.f32.mxu0 0.0
      %2655 = vmatmul.mubr.f32.gmra.mxu0 %v2455
      %v2656 = vpop.f32.mrf.mxu0
      %v2657 = vadd.f32 0.0, %v2656
      %v2658 = vpop.f32.mrf.mxu0
      %2659 = vmatprep.mubr.f32.mxu0 0.0
      %2660 = vmatmul.mubr.f32.gmra.mxu0 %v2458
      %v2661 = vpop.f32.mrf.mxu0
      %v2662 = vadd.f32 0.0, %v2661
      %v2663 = vpop.f32.mrf.mxu0
      %2664 = vmatprep.mubr.f32.mxu0 0.0
      %2665 = vmatmul.mubr.f32.gmra.mxu0 %v2461
      %v2666 = vpop.f32.mrf.mxu0
      %v2667 = vadd.f32 0.0, %v2666
      %v2668 = vpop.f32.mrf.mxu0
      %2669 = vmatprep.mubr.f32.mxu0 0.0
      %2670 = vmatmul.mubr.f32.gmra.mxu0 %v2464
      %v2671 = vpop.f32.mrf.mxu0
      %v2672 = vadd.f32 0.0, %v2671
      %v2673 = vpop.f32.mrf.mxu0
      %2674 = vmatprep.mubr.f32.mxu0 0.0
      %2675 = vmatmul.mubr.f32.gmra.mxu0 %v2467
      %v2676 = vpop.f32.mrf.mxu0
      %v2677 = vadd.f32 0.0, %v2676
      %v2678 = vpop.f32.mrf.mxu0
      %2679 = vmatprep.mubr.f32.mxu0 0.0
      %2680 = vmatmul.mubr.f32.gmra.mxu0 %v2470
      %v2681 = vpop.f32.mrf.mxu0
      %v2682 = vadd.f32 0.0, %v2681
      %v2683 = vpop.f32.mrf.mxu0
      %2684 = vmatprep.mubr.f32.mxu0 0.0
      %2685 = vmatmul.mubr.f32.gmra.mxu0 %v2473
      %v2686 = vpop.f32.mrf.mxu0
      %v2687 = vadd.f32 0.0, %v2686
      %v2688 = vpop.f32.mrf.mxu0
      %2689 = vmatprep.mubr.f32.mxu0 0.0
      %2690 = vmatmul.mubr.f32.gmra.mxu0 %v2476
      %v2691 = vpop.f32.mrf.mxu0
      %v2692 = vadd.f32 0.0, %v2691
      %v2693 = vpop.f32.mrf.mxu0
      %2694 = vmatprep.mubr.f32.mxu0 0.0
      %2695 = vmatmul.mubr.f32.gmra.mxu0 %v2479
      %v2696 = vpop.f32.mrf.mxu0
      %v2697 = vadd.f32 0.0, %v2696
      %v2698 = vpop.f32.mrf.mxu0
      %2699 = vmatprep.mubr.f32.mxu0 0.0
      %2700 = vmatmul.mubr.f32.gmra.mxu0 %v2482
      %v2701 = vpop.f32.mrf.mxu0
      %v2702 = vadd.f32 0.0, %v2701
      %v2703 = vpop.f32.mrf.mxu0
      %2704 = vmatprep.mubr.f32.mxu0 0.0
      %2705 = vmatmul.mubr.f32.gmra.mxu0 %v2485
      %v2706 = vpop.f32.mrf.mxu0
      %v2707 = vadd.f32 0.0, %v2706
      %v2708 = vpop.f32.mrf.mxu0
      %2709 = vmatprep.mubr.f32.mxu0 0.0
      %2710 = vmatmul.mubr.f32.gmra.mxu0 %v2488
      %v2711 = vpop.f32.mrf.mxu0
      %v2712 = vadd.f32 0.0, %v2711
      %v2713 = vpop.f32.mrf.mxu0
      %2714 = vmatprep.mubr.f32.mxu0 0.0
      %2715 = vmatmul.mubr.f32.gmra.mxu0 %v2491
      %v2716 = vpop.f32.mrf.mxu0
      %v2717 = vadd.f32 0.0, %v2716
      %v2718 = vpop.f32.mrf.mxu0
      %2719 = vdwg.mxu0
      %v2720 = vadd.f32 %v2332, %v2562
      %v2721 = vadd.f32 %v2333, %v2567
      %v2722 = vadd.f32 %v2334, %v2572
      %v2723 = vadd.f32 %v2335, %v2577
      %v2724 = vadd.f32 %v2336, %v2582
      %v2725 = vadd.f32 %v2337, %v2587
      %v2726 = vadd.f32 %v2338, %v2592
      %v2727 = vadd.f32 %v2339, %v2597
      %v2728 = vadd.f32 %v2340, %v2602
      %v2729 = vadd.f32 %v2341, %v2607
      %v2730 = vadd.f32 %v2342, %v2612
      %v2731 = vadd.f32 %v2343, %v2617
      %v2732 = vadd.f32 %v2344, %v2622
      %v2733 = vadd.f32 %v2345, %v2627
      %v2734 = vadd.f32 %v2346, %v2632
      %v2735 = vadd.f32 %v2347, %v2637
      %v2736 = vadd.f32 %v2348, %v2642
      %v2737 = vadd.f32 %v2349, %v2647
      %v2738 = vadd.f32 %v2350, %v2652
      %v2739 = vadd.f32 %v2351, %v2657
      %v2740 = vadd.f32 %v2352, %v2662
      %v2741 = vadd.f32 %v2353, %v2667
      %v2742 = vadd.f32 %v2354, %v2672
      %v2743 = vadd.f32 %v2355, %v2677
      %v2744 = vadd.f32 %v2356, %v2682
      %v2745 = vadd.f32 %v2357, %v2687
      %v2746 = vadd.f32 %v2358, %v2692
      %v2747 = vadd.f32 %v2359, %v2697
      %v2748 = vadd.f32 %v2360, %v2702
      %v2749 = vadd.f32 %v2361, %v2707
      %v2750 = vadd.f32 %v2362, %v2712
      %v2751 = vadd.f32 %v2363, %v2717
      %s2752 = scalar_lea.vmem [#allocation2], 64
      %v2753 = vld [vmem:[%s2752 + $0x7] sm:$0xff]
      %v2754 = vld [vmem:[%s2752 + $0xf] sm:$0xff]
      %v2755 = vld [vmem:[%s2752 + $0x27] sm:$0xff]
      %v2756 = vld [vmem:[%s2752 + $0x2f] sm:$0xff]
      %v2757 = vld [vmem:[%s2752 + $0x47] sm:$0xff]
      %v2758 = vld [vmem:[%s2752 + $0x4f] sm:$0xff]
      %v2759 = vld [vmem:[%s2752 + $0x67] sm:$0xff]
      %v2760 = vld [vmem:[%s2752 + $0x6f] sm:$0xff]
      %v2761 = vld [vmem:[%s2752 + $0x87] sm:$0xff]
      %v2762 = vld [vmem:[%s2752 + $0x8f] sm:$0xff]
      %v2763 = vld [vmem:[%s2752 + $0xa7] sm:$0xff]
      %v2764 = vld [vmem:[%s2752 + $0xaf] sm:$0xff]
      %v2765 = vld [vmem:[%s2752 + $0xc7] sm:$0xff]
      %v2766 = vld [vmem:[%s2752 + $0xcf] sm:$0xff]
      %v2767 = vld [vmem:[%s2752 + $0xe7] sm:$0xff]
      %v2768 = vld [vmem:[%s2752 + $0xef] sm:$0xff]
      %v2769 = vld [vmem:[%s2752 + $0x107] sm:$0xff]
      %v2770 = vld [vmem:[%s2752 + $0x10f] sm:$0xff]
      %v2771 = vld [vmem:[%s2752 + $0x127] sm:$0xff]
      %v2772 = vld [vmem:[%s2752 + $0x12f] sm:$0xff]
      %v2773 = vld [vmem:[%s2752 + $0x147] sm:$0xff]
      %v2774 = vld [vmem:[%s2752 + $0x14f] sm:$0xff]
      %v2775 = vld [vmem:[%s2752 + $0x167] sm:$0xff]
      %v2776 = vld [vmem:[%s2752 + $0x16f] sm:$0xff]
      %v2777 = vld [vmem:[%s2752 + $0x187] sm:$0xff]
      %v2778 = vld [vmem:[%s2752 + $0x18f] sm:$0xff]
      %v2779 = vld [vmem:[%s2752 + $0x1a7] sm:$0xff]
      %v2780 = vld [vmem:[%s2752 + $0x1af] sm:$0xff]
      %v2781 = vld [vmem:[%s2752 + $0x1c7] sm:$0xff]
      %v2782 = vld [vmem:[%s2752 + $0x1cf] sm:$0xff]
      %v2783 = vld [vmem:[%s2752 + $0x1e7] sm:$0xff]
      %v2784 = vld [vmem:[%s2752 + $0x1ef] sm:$0xff]
      %v2786 = vsel %vm329, %v2753, 0
      %v2789 = vsel %vm329, %v2754, 0
      %v2792 = vsel %vm329, %v2755, 0
      %v2795 = vsel %vm329, %v2756, 0
      %v2798 = vsel %vm329, %v2757, 0
      %v2801 = vsel %vm329, %v2758, 0
      %v2804 = vsel %vm329, %v2759, 0
      %v2807 = vsel %vm329, %v2760, 0
      %v2810 = vsel %vm329, %v2761, 0
      %v2813 = vsel %vm329, %v2762, 0
      %v2816 = vsel %vm329, %v2763, 0
      %v2819 = vsel %vm329, %v2764, 0
      %v2822 = vsel %vm329, %v2765, 0
      %v2825 = vsel %vm329, %v2766, 0
      %v2828 = vsel %vm329, %v2767, 0
      %v2831 = vsel %vm329, %v2768, 0
      %v2834 = vsel %vm329, %v2769, 0
      %v2837 = vsel %vm329, %v2770, 0
      %v2840 = vsel %vm329, %v2771, 0
      %v2843 = vsel %vm329, %v2772, 0
      %v2846 = vsel %vm329, %v2773, 0
      %v2849 = vsel %vm329, %v2774, 0
      %v2852 = vsel %vm329, %v2775, 0
      %v2855 = vsel %vm329, %v2776, 0
      %v2858 = vsel %vm329, %v2777, 0
      %v2861 = vsel %vm329, %v2778, 0
      %v2864 = vsel %vm329, %v2779, 0
      %v2867 = vsel %vm329, %v2780, 0
      %v2870 = vsel %vm329, %v2781, 0
      %v2873 = vsel %vm329, %v2782, 0
      %v2876 = vsel %vm329, %v2783, 0
      %v2879 = vsel %vm329, %v2784, 0
      %v2882 = vsel %vm649, %v484, 0
      %2884 = vmatprep.subr.mxu0 0.0
      %2885 = vmatpush1.msra.mxu0 0.0
      %2886 = vmatprep.subr.mxu0 0.0
      %2887 = vmatpush1.msra.mxu0 0.0
      %2888 = vmatprep.subr.mxu0 0.0
      %2889 = vmatpush1.msra.mxu0 0.0
      %2890 = vmatprep.subr.mxu0 0.0
      %2891 = vmatpush1.msra.mxu0 0.0
      %2892 = vmatprep.subr.mxu0 0.0
      %2893 = vmatpush1.msra.mxu0 0.0
      %2894 = vmatprep.subr.mxu0 0.0
      %2895 = vmatpush1.msra.mxu0 0.0
      %2896 = vmatprep.subr.mxu0 0.0
      %2897 = vmatpush1.msra.mxu0 0.0
      %2898 = vmatprep.subr.mxu0 0.0
      %2899 = vmatpush1.msra.mxu0 0.0
      %2900 = vmatprep.subr.mxu0 0.0
      %2901 = vmatpush1.msra.mxu0 0.0
      %2902 = vmatprep.subr.mxu0 0.0
      %2903 = vmatpush1.msra.mxu0 0.0
      %2904 = vmatprep.subr.mxu0 0.0
      %2905 = vmatpush1.msra.mxu0 0.0
      %2906 = vmatprep.subr.mxu0 0.0
      %2907 = vmatpush1.msra.mxu0 0.0
      %2908 = vmatprep.subr.mxu0 0.0
      %2909 = vmatpush1.msra.mxu0 0.0
      %2910 = vmatprep.subr.mxu0 0.0
      %2911 = vmatpush1.msra.mxu0 0.0
      %2912 = vmatprep.subr.mxu0 0.0
      %2913 = vmatpush1.msra.mxu0 0.0
      %2914 = vmatprep.subr.mxu0 0.0
      %2915 = vmatpush1.msra.mxu0 %v2882
      %2916 = vmatprep.subr.mxu0 0.0
      %2917 = vmatpush2.msra.mxu0 0.0
      %2918 = vmatprep.subr.mxu0 0.0
      %2919 = vmatpush2.msra.mxu0 0.0
      %2920 = vmatprep.subr.mxu0 0.0
      %2921 = vmatpush2.msra.mxu0 0.0
      %2922 = vmatprep.subr.mxu0 0.0
      %2923 = vmatpush2.msra.mxu0 0.0
      %2924 = vmatprep.subr.mxu0 0.0
      %2925 = vmatpush2.msra.mxu0 0.0
      %2926 = vmatprep.subr.mxu0 0.0
      %2927 = vmatpush2.msra.mxu0 0.0
      %2928 = vmatprep.subr.mxu0 0.0
      %2929 = vmatpush2.msra.mxu0 0.0
      %2930 = vmatprep.subr.mxu0 0.0
      %2931 = vmatpush2.msra.mxu0 0.0
      %2932 = vmatprep.subr.mxu0 0.0
      %2933 = vmatpush2.msra.mxu0 0.0
      %2934 = vmatprep.subr.mxu0 0.0
      %2935 = vmatpush2.msra.mxu0 0.0
      %2936 = vmatprep.subr.mxu0 0.0
      %2937 = vmatpush2.msra.mxu0 0.0
      %2938 = vmatprep.subr.mxu0 0.0
      %2939 = vmatpush2.msra.mxu0 0.0
      %2940 = vmatprep.subr.mxu0 0.0
      %2941 = vmatpush2.msra.mxu0 0.0
      %2942 = vmatprep.subr.mxu0 0.0
      %2943 = vmatpush2.msra.mxu0 0.0
      %2944 = vmatprep.subr.mxu0 0.0
      %2945 = vmatpush2.msra.mxu0 0.0
      %2946 = vmatprep.subr.mxu0 0.0
      %2947 = vmatpush2.msra.mxu0 0.0
      %2948 = vmatprep.mubr.f32.mxu0 0.0
      %2949 = vmatmul.mubr.f32.gmra.mxu0 %v2786
      %v2950 = vpop.f32.mrf.mxu0
      %v2951 = vadd.f32 0.0, %v2950
      %v2952 = vpop.f32.mrf.mxu0
      %2953 = vmatprep.mubr.f32.mxu0 0.0
      %2954 = vmatmul.mubr.f32.gmra.mxu0 %v2789
      %v2955 = vpop.f32.mrf.mxu0
      %v2956 = vadd.f32 0.0, %v2955
      %v2957 = vpop.f32.mrf.mxu0
      %2958 = vmatprep.mubr.f32.mxu0 0.0
      %2959 = vmatmul.mubr.f32.gmra.mxu0 %v2792
      %v2960 = vpop.f32.mrf.mxu0
      %v2961 = vadd.f32 0.0, %v2960
      %v2962 = vpop.f32.mrf.mxu0
      %2963 = vmatprep.mubr.f32.mxu0 0.0
      %2964 = vmatmul.mubr.f32.gmra.mxu0 %v2795
      %v2965 = vpop.f32.mrf.mxu0
      %v2966 = vadd.f32 0.0, %v2965
      %v2967 = vpop.f32.mrf.mxu0
      %2968 = vmatprep.mubr.f32.mxu0 0.0
      %2969 = vmatmul.mubr.f32.gmra.mxu0 %v2798
      %v2970 = vpop.f32.mrf.mxu0
      %v2971 = vadd.f32 0.0, %v2970
      %v2972 = vpop.f32.mrf.mxu0
      %2973 = vmatprep.mubr.f32.mxu0 0.0
      %2974 = vmatmul.mubr.f32.gmra.mxu0 %v2801
      %v2975 = vpop.f32.mrf.mxu0
      %v2976 = vadd.f32 0.0, %v2975
      %v2977 = vpop.f32.mrf.mxu0
      %2978 = vmatprep.mubr.f32.mxu0 0.0
      %2979 = vmatmul.mubr.f32.gmra.mxu0 %v2804
      %v2980 = vpop.f32.mrf.mxu0
      %v2981 = vadd.f32 0.0, %v2980
      %v2982 = vpop.f32.mrf.mxu0
      %2983 = vmatprep.mubr.f32.mxu0 0.0
      %2984 = vmatmul.mubr.f32.gmra.mxu0 %v2807
      %v2985 = vpop.f32.mrf.mxu0
      %v2986 = vadd.f32 0.0, %v2985
      %v2987 = vpop.f32.mrf.mxu0
      %2988 = vmatprep.mubr.f32.mxu0 0.0
      %2989 = vmatmul.mubr.f32.gmra.mxu0 %v2810
      %v2990 = vpop.f32.mrf.mxu0
      %v2991 = vadd.f32 0.0, %v2990
      %v2992 = vpop.f32.mrf.mxu0
      %2993 = vmatprep.mubr.f32.mxu0 0.0
      %2994 = vmatmul.mubr.f32.gmra.mxu0 %v2813
      %v2995 = vpop.f32.mrf.mxu0
      %v2996 = vadd.f32 0.0, %v2995
      %v2997 = vpop.f32.mrf.mxu0
      %2998 = vmatprep.mubr.f32.mxu0 0.0
      %2999 = vmatmul.mubr.f32.gmra.mxu0 %v2816
      %v3000 = vpop.f32.mrf.mxu0
      %v3001 = vadd.f32 0.0, %v3000
      %v3002 = vpop.f32.mrf.mxu0
      %3003 = vmatprep.mubr.f32.mxu0 0.0
      %3004 = vmatmul.mubr.f32.gmra.mxu0 %v2819
      %v3005 = vpop.f32.mrf.mxu0
      %v3006 = vadd.f32 0.0, %v3005
      %v3007 = vpop.f32.mrf.mxu0
      %3008 = vmatprep.mubr.f32.mxu0 0.0
      %3009 = vmatmul.mubr.f32.gmra.mxu0 %v2822
      %v3010 = vpop.f32.mrf.mxu0
      %v3011 = vadd.f32 0.0, %v3010
      %v3012 = vpop.f32.mrf.mxu0
      %3013 = vmatprep.mubr.f32.mxu0 0.0
      %3014 = vmatmul.mubr.f32.gmra.mxu0 %v2825
      %v3015 = vpop.f32.mrf.mxu0
      %v3016 = vadd.f32 0.0, %v3015
      %v3017 = vpop.f32.mrf.mxu0
      %3018 = vmatprep.mubr.f32.mxu0 0.0
      %3019 = vmatmul.mubr.f32.gmra.mxu0 %v2828
      %v3020 = vpop.f32.mrf.mxu0
      %v3021 = vadd.f32 0.0, %v3020
      %v3022 = vpop.f32.mrf.mxu0
      %3023 = vmatprep.mubr.f32.mxu0 0.0
      %3024 = vmatmul.mubr.f32.gmra.mxu0 %v2831
      %v3025 = vpop.f32.mrf.mxu0
      %v3026 = vadd.f32 0.0, %v3025
      %v3027 = vpop.f32.mrf.mxu0
      %3028 = vmatprep.mubr.f32.mxu0 0.0
      %3029 = vmatmul.mubr.f32.gmra.mxu0 %v2834
      %v3030 = vpop.f32.mrf.mxu0
      %v3031 = vadd.f32 0.0, %v3030
      %v3032 = vpop.f32.mrf.mxu0
      %3033 = vmatprep.mubr.f32.mxu0 0.0
      %3034 = vmatmul.mubr.f32.gmra.mxu0 %v2837
      %v3035 = vpop.f32.mrf.mxu0
      %v3036 = vadd.f32 0.0, %v3035
      %v3037 = vpop.f32.mrf.mxu0
      %3038 = vmatprep.mubr.f32.mxu0 0.0
      %3039 = vmatmul.mubr.f32.gmra.mxu0 %v2840
      %v3040 = vpop.f32.mrf.mxu0
      %v3041 = vadd.f32 0.0, %v3040
      %v3042 = vpop.f32.mrf.mxu0
      %3043 = vmatprep.mubr.f32.mxu0 0.0
      %3044 = vmatmul.mubr.f32.gmra.mxu0 %v2843
      %v3045 = vpop.f32.mrf.mxu0
      %v3046 = vadd.f32 0.0, %v3045
      %v3047 = vpop.f32.mrf.mxu0
      %3048 = vmatprep.mubr.f32.mxu0 0.0
      %3049 = vmatmul.mubr.f32.gmra.mxu0 %v2846
      %v3050 = vpop.f32.mrf.mxu0
      %v3051 = vadd.f32 0.0, %v3050
      %v3052 = vpop.f32.mrf.mxu0
      %3053 = vmatprep.mubr.f32.mxu0 0.0
      %3054 = vmatmul.mubr.f32.gmra.mxu0 %v2849
      %v3055 = vpop.f32.mrf.mxu0
      %v3056 = vadd.f32 0.0, %v3055
      %v3057 = vpop.f32.mrf.mxu0
      %3058 = vmatprep.mubr.f32.mxu0 0.0
      %3059 = vmatmul.mubr.f32.gmra.mxu0 %v2852
      %v3060 = vpop.f32.mrf.mxu0
      %v3061 = vadd.f32 0.0, %v3060
      %v3062 = vpop.f32.mrf.mxu0
      %3063 = vmatprep.mubr.f32.mxu0 0.0
      %3064 = vmatmul.mubr.f32.gmra.mxu0 %v2855
      %v3065 = vpop.f32.mrf.mxu0
      %v3066 = vadd.f32 0.0, %v3065
      %v3067 = vpop.f32.mrf.mxu0
      %3068 = vmatprep.mubr.f32.mxu0 0.0
      %3069 = vmatmul.mubr.f32.gmra.mxu0 %v2858
      %v3070 = vpop.f32.mrf.mxu0
      %v3071 = vadd.f32 0.0, %v3070
      %v3072 = vpop.f32.mrf.mxu0
      %3073 = vmatprep.mubr.f32.mxu0 0.0
      %3074 = vmatmul.mubr.f32.gmra.mxu0 %v2861
      %v3075 = vpop.f32.mrf.mxu0
      %v3076 = vadd.f32 0.0, %v3075
      %v3077 = vpop.f32.mrf.mxu0
      %3078 = vmatprep.mubr.f32.mxu0 0.0
      %3079 = vmatmul.mubr.f32.gmra.mxu0 %v2864
      %v3080 = vpop.f32.mrf.mxu0
      %v3081 = vadd.f32 0.0, %v3080
      %v3082 = vpop.f32.mrf.mxu0
      %3083 = vmatprep.mubr.f32.mxu0 0.0
      %3084 = vmatmul.mubr.f32.gmra.mxu0 %v2867
      %v3085 = vpop.f32.mrf.mxu0
      %v3086 = vadd.f32 0.0, %v3085
      %v3087 = vpop.f32.mrf.mxu0
      %3088 = vmatprep.mubr.f32.mxu0 0.0
      %3089 = vmatmul.mubr.f32.gmra.mxu0 %v2870
      %v3090 = vpop.f32.mrf.mxu0
      %v3091 = vadd.f32 0.0, %v3090
      %v3092 = vpop.f32.mrf.mxu0
      %3093 = vmatprep.mubr.f32.mxu0 0.0
      %3094 = vmatmul.mubr.f32.gmra.mxu0 %v2873
      %v3095 = vpop.f32.mrf.mxu0
      %v3096 = vadd.f32 0.0, %v3095
      %v3097 = vpop.f32.mrf.mxu0
      %3098 = vmatprep.mubr.f32.mxu0 0.0
      %3099 = vmatmul.mubr.f32.gmra.mxu0 %v2876
      %v3100 = vpop.f32.mrf.mxu0
      %v3101 = vadd.f32 0.0, %v3100
      %v3102 = vpop.f32.mrf.mxu0
      %3103 = vmatprep.mubr.f32.mxu0 0.0
      %3104 = vmatmul.mubr.f32.gmra.mxu0 %v2879
      %v3105 = vpop.f32.mrf.mxu0
      %v3106 = vadd.f32 0.0, %v3105
      %v3107 = vpop.f32.mrf.mxu0
      %3108 = vdwg.mxu0
      %v3109 = vadd.f32 %v2720, %v2951
      %v3110 = vadd.f32 %v2721, %v2956
      %v3111 = vadd.f32 %v2722, %v2961
      %v3112 = vadd.f32 %v2723, %v2966
      %v3113 = vadd.f32 %v2724, %v2971
      %v3114 = vadd.f32 %v2725, %v2976
      %v3115 = vadd.f32 %v2726, %v2981
      %v3116 = vadd.f32 %v2727, %v2986
      %v3117 = vadd.f32 %v2728, %v2991
      %v3118 = vadd.f32 %v2729, %v2996
      %v3119 = vadd.f32 %v2730, %v3001
      %v3120 = vadd.f32 %v2731, %v3006
      %v3121 = vadd.f32 %v2732, %v3011
      %v3122 = vadd.f32 %v2733, %v3016
      %v3123 = vadd.f32 %v2734, %v3021
      %v3124 = vadd.f32 %v2735, %v3026
      %v3125 = vadd.f32 %v2736, %v3031
      %v3126 = vadd.f32 %v2737, %v3036
      %v3127 = vadd.f32 %v2738, %v3041
      %v3128 = vadd.f32 %v2739, %v3046
      %v3129 = vadd.f32 %v2740, %v3051
      %v3130 = vadd.f32 %v2741, %v3056
      %v3131 = vadd.f32 %v2742, %v3061
      %v3132 = vadd.f32 %v2743, %v3066
      %v3133 = vadd.f32 %v2744, %v3071
      %v3134 = vadd.f32 %v2745, %v3076
      %v3135 = vadd.f32 %v2746, %v3081
      %v3136 = vadd.f32 %v2747, %v3086
      %v3137 = vadd.f32 %v2748, %v3091
      %v3138 = vadd.f32 %v2749, %v3096
      %v3139 = vadd.f32 %v2750, %v3101
      %v3140 = vadd.f32 %v2751, %v3106
      %v3141 = vld [vmem:[%s2752 + $0x8] sm:$0xff]
      %v3142 = vld [vmem:[%s2752 + $0x10] sm:$0xff]
      %v3143 = vld [vmem:[%s2752 + $0x28] sm:$0xff]
      %v3144 = vld [vmem:[%s2752 + $0x30] sm:$0xff]
      %v3145 = vld [vmem:[%s2752 + $0x48] sm:$0xff]
      %v3146 = vld [vmem:[%s2752 + $0x50] sm:$0xff]
      %v3147 = vld [vmem:[%s2752 + $0x68] sm:$0xff]
      %v3148 = vld [vmem:[%s2752 + $0x70] sm:$0xff]
      %v3149 = vld [vmem:[%s2752 + $0x88] sm:$0xff]
      %v3150 = vld [vmem:[%s2752 + $0x90] sm:$0xff]
      %v3151 = vld [vmem:[%s2752 + $0xa8] sm:$0xff]
      %v3152 = vld [vmem:[%s2752 + $0xb0] sm:$0xff]
      %v3153 = vld [vmem:[%s2752 + $0xc8] sm:$0xff]
      %v3154 = vld [vmem:[%s2752 + $0xd0] sm:$0xff]
      %v3155 = vld [vmem:[%s2752 + $0xe8] sm:$0xff]
      %v3156 = vld [vmem:[%s2752 + $0xf0] sm:$0xff]
      %v3157 = vld [vmem:[%s2752 + $0x108] sm:$0xff]
      %v3158 = vld [vmem:[%s2752 + $0x110] sm:$0xff]
      %v3159 = vld [vmem:[%s2752 + $0x128] sm:$0xff]
      %v3160 = vld [vmem:[%s2752 + $0x130] sm:$0xff]
      %v3161 = vld [vmem:[%s2752 + $0x148] sm:$0xff]
      %v3162 = vld [vmem:[%s2752 + $0x150] sm:$0xff]
      %v3163 = vld [vmem:[%s2752 + $0x168] sm:$0xff]
      %v3164 = vld [vmem:[%s2752 + $0x170] sm:$0xff]
      %v3165 = vld [vmem:[%s2752 + $0x188] sm:$0xff]
      %v3166 = vld [vmem:[%s2752 + $0x190] sm:$0xff]
      %v3167 = vld [vmem:[%s2752 + $0x1a8] sm:$0xff]
      %v3168 = vld [vmem:[%s2752 + $0x1b0] sm:$0xff]
      %v3169 = vld [vmem:[%s2752 + $0x1c8] sm:$0xff]
      %v3170 = vld [vmem:[%s2752 + $0x1d0] sm:$0xff]
      %v3171 = vld [vmem:[%s2752 + $0x1e8] sm:$0xff]
      %v3172 = vld [vmem:[%s2752 + $0x1f0] sm:$0xff]
      %v3173 = vrot.slane %v484, 4
      %v3175 = vsel %vm329, %v3141, 0
      %v3178 = vsel %vm329, %v3142, 0
      %v3181 = vsel %vm329, %v3143, 0
      %v3184 = vsel %vm329, %v3144, 0
      %v3187 = vsel %vm329, %v3145, 0
      %v3190 = vsel %vm329, %v3146, 0
      %v3193 = vsel %vm329, %v3147, 0
      %v3196 = vsel %vm329, %v3148, 0
      %v3199 = vsel %vm329, %v3149, 0
      %v3202 = vsel %vm329, %v3150, 0
      %v3205 = vsel %vm329, %v3151, 0
      %v3208 = vsel %vm329, %v3152, 0
      %v3211 = vsel %vm329, %v3153, 0
      %v3214 = vsel %vm329, %v3154, 0
      %v3217 = vsel %vm329, %v3155, 0
      %v3220 = vsel %vm329, %v3156, 0
      %v3223 = vsel %vm329, %v3157, 0
      %v3226 = vsel %vm329, %v3158, 0
      %v3229 = vsel %vm329, %v3159, 0
      %v3232 = vsel %vm329, %v3160, 0
      %v3235 = vsel %vm329, %v3161, 0
      %v3238 = vsel %vm329, %v3162, 0
      %v3241 = vsel %vm329, %v3163, 0
      %v3244 = vsel %vm329, %v3164, 0
      %v3247 = vsel %vm329, %v3165, 0
      %v3250 = vsel %vm329, %v3166, 0
      %v3253 = vsel %vm329, %v3167, 0
      %v3256 = vsel %vm329, %v3168, 0
      %v3259 = vsel %vm329, %v3169, 0
      %v3262 = vsel %vm329, %v3170, 0
      %v3265 = vsel %vm329, %v3171, 0
      %v3268 = vsel %vm329, %v3172, 0
      %v3270 = vsel %vm649, %v3173, 0
      %3272 = vmatprep.subr.mxu0 0.0
      %3273 = vmatpush1.msra.mxu0 0.0
      %3274 = vmatprep.subr.mxu0 0.0
      %3275 = vmatpush1.msra.mxu0 0.0
      %3276 = vmatprep.subr.mxu0 0.0
      %3277 = vmatpush1.msra.mxu0 0.0
      %3278 = vmatprep.subr.mxu0 0.0
      %3279 = vmatpush1.msra.mxu0 0.0
      %3280 = vmatprep.subr.mxu0 0.0
      %3281 = vmatpush1.msra.mxu0 0.0
      %3282 = vmatprep.subr.mxu0 0.0
      %3283 = vmatpush1.msra.mxu0 0.0
      %3284 = vmatprep.subr.mxu0 0.0
      %3285 = vmatpush1.msra.mxu0 0.0
      %3286 = vmatprep.subr.mxu0 0.0
      %3287 = vmatpush1.msra.mxu0 0.0
      %3288 = vmatprep.subr.mxu0 0.0
      %3289 = vmatpush1.msra.mxu0 0.0
      %3290 = vmatprep.subr.mxu0 0.0
      %3291 = vmatpush1.msra.mxu0 0.0
      %3292 = vmatprep.subr.mxu0 0.0
      %3293 = vmatpush1.msra.mxu0 0.0
      %3294 = vmatprep.subr.mxu0 0.0
      %3295 = vmatpush1.msra.mxu0 0.0
      %3296 = vmatprep.subr.mxu0 0.0
      %3297 = vmatpush1.msra.mxu0 0.0
      %3298 = vmatprep.subr.mxu0 0.0
      %3299 = vmatpush1.msra.mxu0 0.0
      %3300 = vmatprep.subr.mxu0 0.0
      %3301 = vmatpush1.msra.mxu0 0.0
      %3302 = vmatprep.subr.mxu0 0.0
      %3303 = vmatpush1.msra.mxu0 %v3270
      %3304 = vmatprep.subr.mxu0 0.0
      %3305 = vmatpush2.msra.mxu0 0.0
      %3306 = vmatprep.subr.mxu0 0.0
      %3307 = vmatpush2.msra.mxu0 0.0
      %3308 = vmatprep.subr.mxu0 0.0
      %3309 = vmatpush2.msra.mxu0 0.0
      %3310 = vmatprep.subr.mxu0 0.0
      %3311 = vmatpush2.msra.mxu0 0.0
      %3312 = vmatprep.subr.mxu0 0.0
      %3313 = vmatpush2.msra.mxu0 0.0
      %3314 = vmatprep.subr.mxu0 0.0
      %3315 = vmatpush2.msra.mxu0 0.0
      %3316 = vmatprep.subr.mxu0 0.0
      %3317 = vmatpush2.msra.mxu0 0.0
      %3318 = vmatprep.subr.mxu0 0.0
      %3319 = vmatpush2.msra.mxu0 0.0
      %3320 = vmatprep.subr.mxu0 0.0
      %3321 = vmatpush2.msra.mxu0 0.0
      %3322 = vmatprep.subr.mxu0 0.0
      %3323 = vmatpush2.msra.mxu0 0.0
      %3324 = vmatprep.subr.mxu0 0.0
      %3325 = vmatpush2.msra.mxu0 0.0
      %3326 = vmatprep.subr.mxu0 0.0
      %3327 = vmatpush2.msra.mxu0 0.0
      %3328 = vmatprep.subr.mxu0 0.0
      %3329 = vmatpush2.msra.mxu0 0.0
      %3330 = vmatprep.subr.mxu0 0.0
      %3331 = vmatpush2.msra.mxu0 0.0
      %3332 = vmatprep.subr.mxu0 0.0
      %3333 = vmatpush2.msra.mxu0 0.0
      %3334 = vmatprep.subr.mxu0 0.0
      %3335 = vmatpush2.msra.mxu0 0.0
      %3336 = vmatprep.mubr.f32.mxu0 0.0
      %3337 = vmatmul.mubr.f32.gmra.mxu0 %v3175
      %v3338 = vpop.f32.mrf.mxu0
      %v3339 = vadd.f32 0.0, %v3338
      %v3340 = vpop.f32.mrf.mxu0
      %3341 = vmatprep.mubr.f32.mxu0 0.0
      %3342 = vmatmul.mubr.f32.gmra.mxu0 %v3178
      %v3343 = vpop.f32.mrf.mxu0
      %v3344 = vadd.f32 0.0, %v3343
      %v3345 = vpop.f32.mrf.mxu0
      %3346 = vmatprep.mubr.f32.mxu0 0.0
      %3347 = vmatmul.mubr.f32.gmra.mxu0 %v3181
      %v3348 = vpop.f32.mrf.mxu0
      %v3349 = vadd.f32 0.0, %v3348
      %v3350 = vpop.f32.mrf.mxu0
      %3351 = vmatprep.mubr.f32.mxu0 0.0
      %3352 = vmatmul.mubr.f32.gmra.mxu0 %v3184
      %v3353 = vpop.f32.mrf.mxu0
      %v3354 = vadd.f32 0.0, %v3353
      %v3355 = vpop.f32.mrf.mxu0
      %3356 = vmatprep.mubr.f32.mxu0 0.0
      %3357 = vmatmul.mubr.f32.gmra.mxu0 %v3187
      %v3358 = vpop.f32.mrf.mxu0
      %v3359 = vadd.f32 0.0, %v3358
      %v3360 = vpop.f32.mrf.mxu0
      %3361 = vmatprep.mubr.f32.mxu0 0.0
      %3362 = vmatmul.mubr.f32.gmra.mxu0 %v3190
      %v3363 = vpop.f32.mrf.mxu0
      %v3364 = vadd.f32 0.0, %v3363
      %v3365 = vpop.f32.mrf.mxu0
      %3366 = vmatprep.mubr.f32.mxu0 0.0
      %3367 = vmatmul.mubr.f32.gmra.mxu0 %v3193
      %v3368 = vpop.f32.mrf.mxu0
      %v3369 = vadd.f32 0.0, %v3368
      %v3370 = vpop.f32.mrf.mxu0
      %3371 = vmatprep.mubr.f32.mxu0 0.0
      %3372 = vmatmul.mubr.f32.gmra.mxu0 %v3196
      %v3373 = vpop.f32.mrf.mxu0
      %v3374 = vadd.f32 0.0, %v3373
      %v3375 = vpop.f32.mrf.mxu0
      %3376 = vmatprep.mubr.f32.mxu0 0.0
      %3377 = vmatmul.mubr.f32.gmra.mxu0 %v3199
      %v3378 = vpop.f32.mrf.mxu0
      %v3379 = vadd.f32 0.0, %v3378
      %v3380 = vpop.f32.mrf.mxu0
      %3381 = vmatprep.mubr.f32.mxu0 0.0
      %3382 = vmatmul.mubr.f32.gmra.mxu0 %v3202
      %v3383 = vpop.f32.mrf.mxu0
      %v3384 = vadd.f32 0.0, %v3383
      %v3385 = vpop.f32.mrf.mxu0
      %3386 = vmatprep.mubr.f32.mxu0 0.0
      %3387 = vmatmul.mubr.f32.gmra.mxu0 %v3205
      %v3388 = vpop.f32.mrf.mxu0
      %v3389 = vadd.f32 0.0, %v3388
      %v3390 = vpop.f32.mrf.mxu0
      %3391 = vmatprep.mubr.f32.mxu0 0.0
      %3392 = vmatmul.mubr.f32.gmra.mxu0 %v3208
      %v3393 = vpop.f32.mrf.mxu0
      %v3394 = vadd.f32 0.0, %v3393
      %v3395 = vpop.f32.mrf.mxu0
      %3396 = vmatprep.mubr.f32.mxu0 0.0
      %3397 = vmatmul.mubr.f32.gmra.mxu0 %v3211
      %v3398 = vpop.f32.mrf.mxu0
      %v3399 = vadd.f32 0.0, %v3398
      %v3400 = vpop.f32.mrf.mxu0
      %3401 = vmatprep.mubr.f32.mxu0 0.0
      %3402 = vmatmul.mubr.f32.gmra.mxu0 %v3214
      %v3403 = vpop.f32.mrf.mxu0
      %v3404 = vadd.f32 0.0, %v3403
      %v3405 = vpop.f32.mrf.mxu0
      %3406 = vmatprep.mubr.f32.mxu0 0.0
      %3407 = vmatmul.mubr.f32.gmra.mxu0 %v3217
      %v3408 = vpop.f32.mrf.mxu0
      %v3409 = vadd.f32 0.0, %v3408
      %v3410 = vpop.f32.mrf.mxu0
      %3411 = vmatprep.mubr.f32.mxu0 0.0
      %3412 = vmatmul.mubr.f32.gmra.mxu0 %v3220
      %v3413 = vpop.f32.mrf.mxu0
      %v3414 = vadd.f32 0.0, %v3413
      %v3415 = vpop.f32.mrf.mxu0
      %3416 = vmatprep.mubr.f32.mxu0 0.0
      %3417 = vmatmul.mubr.f32.gmra.mxu0 %v3223
      %v3418 = vpop.f32.mrf.mxu0
      %v3419 = vadd.f32 0.0, %v3418
      %v3420 = vpop.f32.mrf.mxu0
      %3421 = vmatprep.mubr.f32.mxu0 0.0
      %3422 = vmatmul.mubr.f32.gmra.mxu0 %v3226
      %v3423 = vpop.f32.mrf.mxu0
      %v3424 = vadd.f32 0.0, %v3423
      %v3425 = vpop.f32.mrf.mxu0
      %3426 = vmatprep.mubr.f32.mxu0 0.0
      %3427 = vmatmul.mubr.f32.gmra.mxu0 %v3229
      %v3428 = vpop.f32.mrf.mxu0
      %v3429 = vadd.f32 0.0, %v3428
      %v3430 = vpop.f32.mrf.mxu0
      %3431 = vmatprep.mubr.f32.mxu0 0.0
      %3432 = vmatmul.mubr.f32.gmra.mxu0 %v3232
      %v3433 = vpop.f32.mrf.mxu0
      %v3434 = vadd.f32 0.0, %v3433
      %v3435 = vpop.f32.mrf.mxu0
      %3436 = vmatprep.mubr.f32.mxu0 0.0
      %3437 = vmatmul.mubr.f32.gmra.mxu0 %v3235
      %v3438 = vpop.f32.mrf.mxu0
      %v3439 = vadd.f32 0.0, %v3438
      %v3440 = vpop.f32.mrf.mxu0
      %3441 = vmatprep.mubr.f32.mxu0 0.0
      %3442 = vmatmul.mubr.f32.gmra.mxu0 %v3238
      %v3443 = vpop.f32.mrf.mxu0
      %v3444 = vadd.f32 0.0, %v3443
      %v3445 = vpop.f32.mrf.mxu0
      %3446 = vmatprep.mubr.f32.mxu0 0.0
      %3447 = vmatmul.mubr.f32.gmra.mxu0 %v3241
      %v3448 = vpop.f32.mrf.mxu0
      %v3449 = vadd.f32 0.0, %v3448
      %v3450 = vpop.f32.mrf.mxu0
      %3451 = vmatprep.mubr.f32.mxu0 0.0
      %3452 = vmatmul.mubr.f32.gmra.mxu0 %v3244
      %v3453 = vpop.f32.mrf.mxu0
      %v3454 = vadd.f32 0.0, %v3453
      %v3455 = vpop.f32.mrf.mxu0
      %3456 = vmatprep.mubr.f32.mxu0 0.0
      %3457 = vmatmul.mubr.f32.gmra.mxu0 %v3247
      %v3458 = vpop.f32.mrf.mxu0
      %v3459 = vadd.f32 0.0, %v3458
      %v3460 = vpop.f32.mrf.mxu0
      %3461 = vmatprep.mubr.f32.mxu0 0.0
      %3462 = vmatmul.mubr.f32.gmra.mxu0 %v3250
      %v3463 = vpop.f32.mrf.mxu0
      %v3464 = vadd.f32 0.0, %v3463
      %v3465 = vpop.f32.mrf.mxu0
      %3466 = vmatprep.mubr.f32.mxu0 0.0
      %3467 = vmatmul.mubr.f32.gmra.mxu0 %v3253
      %v3468 = vpop.f32.mrf.mxu0
      %v3469 = vadd.f32 0.0, %v3468
      %v3470 = vpop.f32.mrf.mxu0
      %3471 = vmatprep.mubr.f32.mxu0 0.0
      %3472 = vmatmul.mubr.f32.gmra.mxu0 %v3256
      %v3473 = vpop.f32.mrf.mxu0
      %v3474 = vadd.f32 0.0, %v3473
      %v3475 = vpop.f32.mrf.mxu0
      %3476 = vmatprep.mubr.f32.mxu0 0.0
      %3477 = vmatmul.mubr.f32.gmra.mxu0 %v3259
      %v3478 = vpop.f32.mrf.mxu0
      %v3479 = vadd.f32 0.0, %v3478
      %v3480 = vpop.f32.mrf.mxu0
      %3481 = vmatprep.mubr.f32.mxu0 0.0
      %3482 = vmatmul.mubr.f32.gmra.mxu0 %v3262
      %v3483 = vpop.f32.mrf.mxu0
      %v3484 = vadd.f32 0.0, %v3483
      %v3485 = vpop.f32.mrf.mxu0
      %3486 = vmatprep.mubr.f32.mxu0 0.0
      %3487 = vmatmul.mubr.f32.gmra.mxu0 %v3265
      %v3488 = vpop.f32.mrf.mxu0
      %v3489 = vadd.f32 0.0, %v3488
      %v3490 = vpop.f32.mrf.mxu0
      %3491 = vmatprep.mubr.f32.mxu0 0.0
      %3492 = vmatmul.mubr.f32.gmra.mxu0 %v3268
      %v3493 = vpop.f32.mrf.mxu0
      %v3494 = vadd.f32 0.0, %v3493
      %v3495 = vpop.f32.mrf.mxu0
      %3496 = vdwg.mxu0
      %v3497 = vadd.f32 %v3109, %v3339
      %v3498 = vadd.f32 %v3110, %v3344
      %v3499 = vadd.f32 %v3111, %v3349
      %v3500 = vadd.f32 %v3112, %v3354
      %v3501 = vadd.f32 %v3113, %v3359
      %v3502 = vadd.f32 %v3114, %v3364
      %v3503 = vadd.f32 %v3115, %v3369
      %v3504 = vadd.f32 %v3116, %v3374
      %v3505 = vadd.f32 %v3117, %v3379
      %v3506 = vadd.f32 %v3118, %v3384
      %v3507 = vadd.f32 %v3119, %v3389
      %v3508 = vadd.f32 %v3120, %v3394
      %v3509 = vadd.f32 %v3121, %v3399
      %v3510 = vadd.f32 %v3122, %v3404
      %v3511 = vadd.f32 %v3123, %v3409
      %v3512 = vadd.f32 %v3124, %v3414
      %v3513 = vadd.f32 %v3125, %v3419
      %v3514 = vadd.f32 %v3126, %v3424
      %v3515 = vadd.f32 %v3127, %v3429
      %v3516 = vadd.f32 %v3128, %v3434
      %v3517 = vadd.f32 %v3129, %v3439
      %v3518 = vadd.f32 %v3130, %v3444
      %v3519 = vadd.f32 %v3131, %v3449
      %v3520 = vadd.f32 %v3132, %v3454
      %v3521 = vadd.f32 %v3133, %v3459
      %v3522 = vadd.f32 %v3134, %v3464
      %v3523 = vadd.f32 %v3135, %v3469
      %v3524 = vadd.f32 %v3136, %v3474
      %v3525 = vadd.f32 %v3137, %v3479
      %v3526 = vadd.f32 %v3138, %v3484
      %v3527 = vadd.f32 %v3139, %v3489
      %v3528 = vadd.f32 %v3140, %v3494
      %v3529 = vld [vmem:[%s2752 + $0x9] sm:$0xff]
      %v3530 = vld [vmem:[%s2752 + $0x11] sm:$0xff]
      %v3531 = vld [vmem:[%s2752 + $0x29] sm:$0xff]
      %v3532 = vld [vmem:[%s2752 + $0x31] sm:$0xff]
      %v3533 = vld [vmem:[%s2752 + $0x49] sm:$0xff]
      %v3534 = vld [vmem:[%s2752 + $0x51] sm:$0xff]
      %v3535 = vld [vmem:[%s2752 + $0x69] sm:$0xff]
      %v3536 = vld [vmem:[%s2752 + $0x71] sm:$0xff]
      %v3537 = vld [vmem:[%s2752 + $0x89] sm:$0xff]
      %v3538 = vld [vmem:[%s2752 + $0x91] sm:$0xff]
      %v3539 = vld [vmem:[%s2752 + $0xa9] sm:$0xff]
      %v3540 = vld [vmem:[%s2752 + $0xb1] sm:$0xff]
      %v3541 = vld [vmem:[%s2752 + $0xc9] sm:$0xff]
      %v3542 = vld [vmem:[%s2752 + $0xd1] sm:$0xff]
      %v3543 = vld [vmem:[%s2752 + $0xe9] sm:$0xff]
      %v3544 = vld [vmem:[%s2752 + $0xf1] sm:$0xff]
      %v3545 = vld [vmem:[%s2752 + $0x109] sm:$0xff]
      %v3546 = vld [vmem:[%s2752 + $0x111] sm:$0xff]
      %v3547 = vld [vmem:[%s2752 + $0x129] sm:$0xff]
      %v3548 = vld [vmem:[%s2752 + $0x131] sm:$0xff]
      %v3549 = vld [vmem:[%s2752 + $0x149] sm:$0xff]
      %v3550 = vld [vmem:[%s2752 + $0x151] sm:$0xff]
      %v3551 = vld [vmem:[%s2752 + $0x169] sm:$0xff]
      %v3552 = vld [vmem:[%s2752 + $0x171] sm:$0xff]
      %v3553 = vld [vmem:[%s2752 + $0x189] sm:$0xff]
      %v3554 = vld [vmem:[%s2752 + $0x191] sm:$0xff]
      %v3555 = vld [vmem:[%s2752 + $0x1a9] sm:$0xff]
      %v3556 = vld [vmem:[%s2752 + $0x1b1] sm:$0xff]
      %v3557 = vld [vmem:[%s2752 + $0x1c9] sm:$0xff]
      %v3558 = vld [vmem:[%s2752 + $0x1d1] sm:$0xff]
      %v3559 = vld [vmem:[%s2752 + $0x1e9] sm:$0xff]
      %v3560 = vld [vmem:[%s2752 + $0x1f1] sm:$0xff]
      %v3562 = vsel %vm329, %v3529, 0
      %v3565 = vsel %vm329, %v3530, 0
      %v3568 = vsel %vm329, %v3531, 0
      %v3571 = vsel %vm329, %v3532, 0
      %v3574 = vsel %vm329, %v3533, 0
      %v3577 = vsel %vm329, %v3534, 0
      %v3580 = vsel %vm329, %v3535, 0
      %v3583 = vsel %vm329, %v3536, 0
      %v3586 = vsel %vm329, %v3537, 0
      %v3589 = vsel %vm329, %v3538, 0
      %v3592 = vsel %vm329, %v3539, 0
      %v3595 = vsel %vm329, %v3540, 0
      %v3598 = vsel %vm329, %v3541, 0
      %v3601 = vsel %vm329, %v3542, 0
      %v3604 = vsel %vm329, %v3543, 0
      %v3607 = vsel %vm329, %v3544, 0
      %v3610 = vsel %vm329, %v3545, 0
      %v3613 = vsel %vm329, %v3546, 0
      %v3616 = vsel %vm329, %v3547, 0
      %v3619 = vsel %vm329, %v3548, 0
      %v3622 = vsel %vm329, %v3549, 0
      %v3625 = vsel %vm329, %v3550, 0
      %v3628 = vsel %vm329, %v3551, 0
      %v3631 = vsel %vm329, %v3552, 0
      %v3634 = vsel %vm329, %v3553, 0
      %v3637 = vsel %vm329, %v3554, 0
      %v3640 = vsel %vm329, %v3555, 0
      %v3643 = vsel %vm329, %v3556, 0
      %v3646 = vsel %vm329, %v3557, 0
      %v3649 = vsel %vm329, %v3558, 0
      %v3652 = vsel %vm329, %v3559, 0
      %v3655 = vsel %vm329, %v3560, 0
      %v3658 = vsel %vm649, %v485, 0
      %3660 = vmatprep.subr.mxu0 0.0
      %3661 = vmatpush1.msra.mxu0 0.0
      %3662 = vmatprep.subr.mxu0 0.0
      %3663 = vmatpush1.msra.mxu0 0.0
      %3664 = vmatprep.subr.mxu0 0.0
      %3665 = vmatpush1.msra.mxu0 0.0
      %3666 = vmatprep.subr.mxu0 0.0
      %3667 = vmatpush1.msra.mxu0 0.0
      %3668 = vmatprep.subr.mxu0 0.0
      %3669 = vmatpush1.msra.mxu0 0.0
      %3670 = vmatprep.subr.mxu0 0.0
      %3671 = vmatpush1.msra.mxu0 0.0
      %3672 = vmatprep.subr.mxu0 0.0
      %3673 = vmatpush1.msra.mxu0 0.0
      %3674 = vmatprep.subr.mxu0 0.0
      %3675 = vmatpush1.msra.mxu0 0.0
      %3676 = vmatprep.subr.mxu0 0.0
      %3677 = vmatpush1.msra.mxu0 0.0
      %3678 = vmatprep.subr.mxu0 0.0
      %3679 = vmatpush1.msra.mxu0 0.0
      %3680 = vmatprep.subr.mxu0 0.0
      %3681 = vmatpush1.msra.mxu0 0.0
      %3682 = vmatprep.subr.mxu0 0.0
      %3683 = vmatpush1.msra.mxu0 0.0
      %3684 = vmatprep.subr.mxu0 0.0
      %3685 = vmatpush1.msra.mxu0 0.0
      %3686 = vmatprep.subr.mxu0 0.0
      %3687 = vmatpush1.msra.mxu0 0.0
      %3688 = vmatprep.subr.mxu0 0.0
      %3689 = vmatpush1.msra.mxu0 0.0
      %3690 = vmatprep.subr.mxu0 0.0
      %3691 = vmatpush1.msra.mxu0 %v3658
      %3692 = vmatprep.subr.mxu0 0.0
      %3693 = vmatpush2.msra.mxu0 0.0
      %3694 = vmatprep.subr.mxu0 0.0
      %3695 = vmatpush2.msra.mxu0 0.0
      %3696 = vmatprep.subr.mxu0 0.0
      %3697 = vmatpush2.msra.mxu0 0.0
      %3698 = vmatprep.subr.mxu0 0.0
      %3699 = vmatpush2.msra.mxu0 0.0
      %3700 = vmatprep.subr.mxu0 0.0
      %3701 = vmatpush2.msra.mxu0 0.0
      %3702 = vmatprep.subr.mxu0 0.0
      %3703 = vmatpush2.msra.mxu0 0.0
      %3704 = vmatprep.subr.mxu0 0.0
      %3705 = vmatpush2.msra.mxu0 0.0
      %3706 = vmatprep.subr.mxu0 0.0
      %3707 = vmatpush2.msra.mxu0 0.0
      %3708 = vmatprep.subr.mxu0 0.0
      %3709 = vmatpush2.msra.mxu0 0.0
      %3710 = vmatprep.subr.mxu0 0.0
      %3711 = vmatpush2.msra.mxu0 0.0
      %3712 = vmatprep.subr.mxu0 0.0
      %3713 = vmatpush2.msra.mxu0 0.0
      %3714 = vmatprep.subr.mxu0 0.0
      %3715 = vmatpush2.msra.mxu0 0.0
      %3716 = vmatprep.subr.mxu0 0.0
      %3717 = vmatpush2.msra.mxu0 0.0
      %3718 = vmatprep.subr.mxu0 0.0
      %3719 = vmatpush2.msra.mxu0 0.0
      %3720 = vmatprep.subr.mxu0 0.0
      %3721 = vmatpush2.msra.mxu0 0.0
      %3722 = vmatprep.subr.mxu0 0.0
      %3723 = vmatpush2.msra.mxu0 0.0
      %3724 = vmatprep.mubr.f32.mxu0 0.0
      %3725 = vmatmul.mubr.f32.gmra.mxu0 %v3562
      %v3726 = vpop.f32.mrf.mxu0
      %v3727 = vadd.f32 0.0, %v3726
      %v3728 = vpop.f32.mrf.mxu0
      %3729 = vmatprep.mubr.f32.mxu0 0.0
      %3730 = vmatmul.mubr.f32.gmra.mxu0 %v3565
      %v3731 = vpop.f32.mrf.mxu0
      %v3732 = vadd.f32 0.0, %v3731
      %v3733 = vpop.f32.mrf.mxu0
      %3734 = vmatprep.mubr.f32.mxu0 0.0
      %3735 = vmatmul.mubr.f32.gmra.mxu0 %v3568
      %v3736 = vpop.f32.mrf.mxu0
      %v3737 = vadd.f32 0.0, %v3736
      %v3738 = vpop.f32.mrf.mxu0
      %3739 = vmatprep.mubr.f32.mxu0 0.0
      %3740 = vmatmul.mubr.f32.gmra.mxu0 %v3571
      %v3741 = vpop.f32.mrf.mxu0
      %v3742 = vadd.f32 0.0, %v3741
      %v3743 = vpop.f32.mrf.mxu0
      %3744 = vmatprep.mubr.f32.mxu0 0.0
      %3745 = vmatmul.mubr.f32.gmra.mxu0 %v3574
      %v3746 = vpop.f32.mrf.mxu0
      %v3747 = vadd.f32 0.0, %v3746
      %v3748 = vpop.f32.mrf.mxu0
      %3749 = vmatprep.mubr.f32.mxu0 0.0
      %3750 = vmatmul.mubr.f32.gmra.mxu0 %v3577
      %v3751 = vpop.f32.mrf.mxu0
      %v3752 = vadd.f32 0.0, %v3751
      %v3753 = vpop.f32.mrf.mxu0
      %3754 = vmatprep.mubr.f32.mxu0 0.0
      %3755 = vmatmul.mubr.f32.gmra.mxu0 %v3580
      %v3756 = vpop.f32.mrf.mxu0
      %v3757 = vadd.f32 0.0, %v3756
      %v3758 = vpop.f32.mrf.mxu0
      %3759 = vmatprep.mubr.f32.mxu0 0.0
      %3760 = vmatmul.mubr.f32.gmra.mxu0 %v3583
      %v3761 = vpop.f32.mrf.mxu0
      %v3762 = vadd.f32 0.0, %v3761
      %v3763 = vpop.f32.mrf.mxu0
      %3764 = vmatprep.mubr.f32.mxu0 0.0
      %3765 = vmatmul.mubr.f32.gmra.mxu0 %v3586
      %v3766 = vpop.f32.mrf.mxu0
      %v3767 = vadd.f32 0.0, %v3766
      %v3768 = vpop.f32.mrf.mxu0
      %3769 = vmatprep.mubr.f32.mxu0 0.0
      %3770 = vmatmul.mubr.f32.gmra.mxu0 %v3589
      %v3771 = vpop.f32.mrf.mxu0
      %v3772 = vadd.f32 0.0, %v3771
      %v3773 = vpop.f32.mrf.mxu0
      %3774 = vmatprep.mubr.f32.mxu0 0.0
      %3775 = vmatmul.mubr.f32.gmra.mxu0 %v3592
      %v3776 = vpop.f32.mrf.mxu0
      %v3777 = vadd.f32 0.0, %v3776
      %v3778 = vpop.f32.mrf.mxu0
      %3779 = vmatprep.mubr.f32.mxu0 0.0
      %3780 = vmatmul.mubr.f32.gmra.mxu0 %v3595
      %v3781 = vpop.f32.mrf.mxu0
      %v3782 = vadd.f32 0.0, %v3781
      %v3783 = vpop.f32.mrf.mxu0
      %3784 = vmatprep.mubr.f32.mxu0 0.0
      %3785 = vmatmul.mubr.f32.gmra.mxu0 %v3598
      %v3786 = vpop.f32.mrf.mxu0
      %v3787 = vadd.f32 0.0, %v3786
      %v3788 = vpop.f32.mrf.mxu0
      %3789 = vmatprep.mubr.f32.mxu0 0.0
      %3790 = vmatmul.mubr.f32.gmra.mxu0 %v3601
      %v3791 = vpop.f32.mrf.mxu0
      %v3792 = vadd.f32 0.0, %v3791
      %v3793 = vpop.f32.mrf.mxu0
      %3794 = vmatprep.mubr.f32.mxu0 0.0
      %3795 = vmatmul.mubr.f32.gmra.mxu0 %v3604
      %v3796 = vpop.f32.mrf.mxu0
      %v3797 = vadd.f32 0.0, %v3796
      %v3798 = vpop.f32.mrf.mxu0
      %3799 = vmatprep.mubr.f32.mxu0 0.0
      %3800 = vmatmul.mubr.f32.gmra.mxu0 %v3607
      %v3801 = vpop.f32.mrf.mxu0
      %v3802 = vadd.f32 0.0, %v3801
      %v3803 = vpop.f32.mrf.mxu0
      %3804 = vmatprep.mubr.f32.mxu0 0.0
      %3805 = vmatmul.mubr.f32.gmra.mxu0 %v3610
      %v3806 = vpop.f32.mrf.mxu0
      %v3807 = vadd.f32 0.0, %v3806
      %v3808 = vpop.f32.mrf.mxu0
      %3809 = vmatprep.mubr.f32.mxu0 0.0
      %3810 = vmatmul.mubr.f32.gmra.mxu0 %v3613
      %v3811 = vpop.f32.mrf.mxu0
      %v3812 = vadd.f32 0.0, %v3811
      %v3813 = vpop.f32.mrf.mxu0
      %3814 = vmatprep.mubr.f32.mxu0 0.0
      %3815 = vmatmul.mubr.f32.gmra.mxu0 %v3616
      %v3816 = vpop.f32.mrf.mxu0
      %v3817 = vadd.f32 0.0, %v3816
      %v3818 = vpop.f32.mrf.mxu0
      %3819 = vmatprep.mubr.f32.mxu0 0.0
      %3820 = vmatmul.mubr.f32.gmra.mxu0 %v3619
      %v3821 = vpop.f32.mrf.mxu0
      %v3822 = vadd.f32 0.0, %v3821
      %v3823 = vpop.f32.mrf.mxu0
      %3824 = vmatprep.mubr.f32.mxu0 0.0
      %3825 = vmatmul.mubr.f32.gmra.mxu0 %v3622
      %v3826 = vpop.f32.mrf.mxu0
      %v3827 = vadd.f32 0.0, %v3826
      %v3828 = vpop.f32.mrf.mxu0
      %3829 = vmatprep.mubr.f32.mxu0 0.0
      %3830 = vmatmul.mubr.f32.gmra.mxu0 %v3625
      %v3831 = vpop.f32.mrf.mxu0
      %v3832 = vadd.f32 0.0, %v3831
      %v3833 = vpop.f32.mrf.mxu0
      %3834 = vmatprep.mubr.f32.mxu0 0.0
      %3835 = vmatmul.mubr.f32.gmra.mxu0 %v3628
      %v3836 = vpop.f32.mrf.mxu0
      %v3837 = vadd.f32 0.0, %v3836
      %v3838 = vpop.f32.mrf.mxu0
      %3839 = vmatprep.mubr.f32.mxu0 0.0
      %3840 = vmatmul.mubr.f32.gmra.mxu0 %v3631
      %v3841 = vpop.f32.mrf.mxu0
      %v3842 = vadd.f32 0.0, %v3841
      %v3843 = vpop.f32.mrf.mxu0
      %3844 = vmatprep.mubr.f32.mxu0 0.0
      %3845 = vmatmul.mubr.f32.gmra.mxu0 %v3634
      %v3846 = vpop.f32.mrf.mxu0
      %v3847 = vadd.f32 0.0, %v3846
      %v3848 = vpop.f32.mrf.mxu0
      %3849 = vmatprep.mubr.f32.mxu0 0.0
      %3850 = vmatmul.mubr.f32.gmra.mxu0 %v3637
      %v3851 = vpop.f32.mrf.mxu0
      %v3852 = vadd.f32 0.0, %v3851
      %v3853 = vpop.f32.mrf.mxu0
      %3854 = vmatprep.mubr.f32.mxu0 0.0
      %3855 = vmatmul.mubr.f32.gmra.mxu0 %v3640
      %v3856 = vpop.f32.mrf.mxu0
      %v3857 = vadd.f32 0.0, %v3856
      %v3858 = vpop.f32.mrf.mxu0
      %3859 = vmatprep.mubr.f32.mxu0 0.0
      %3860 = vmatmul.mubr.f32.gmra.mxu0 %v3643
      %v3861 = vpop.f32.mrf.mxu0
      %v3862 = vadd.f32 0.0, %v3861
      %v3863 = vpop.f32.mrf.mxu0
      %3864 = vmatprep.mubr.f32.mxu0 0.0
      %3865 = vmatmul.mubr.f32.gmra.mxu0 %v3646
      %v3866 = vpop.f32.mrf.mxu0
      %v3867 = vadd.f32 0.0, %v3866
      %v3868 = vpop.f32.mrf.mxu0
      %3869 = vmatprep.mubr.f32.mxu0 0.0
      %3870 = vmatmul.mubr.f32.gmra.mxu0 %v3649
      %v3871 = vpop.f32.mrf.mxu0
      %v3872 = vadd.f32 0.0, %v3871
      %v3873 = vpop.f32.mrf.mxu0
      %3874 = vmatprep.mubr.f32.mxu0 0.0
      %3875 = vmatmul.mubr.f32.gmra.mxu0 %v3652
      %v3876 = vpop.f32.mrf.mxu0
      %v3877 = vadd.f32 0.0, %v3876
      %v3878 = vpop.f32.mrf.mxu0
      %3879 = vmatprep.mubr.f32.mxu0 0.0
      %3880 = vmatmul.mubr.f32.gmra.mxu0 %v3655
      %v3881 = vpop.f32.mrf.mxu0
      %v3882 = vadd.f32 0.0, %v3881
      %v3883 = vpop.f32.mrf.mxu0
      %3884 = vdwg.mxu0
      %v3885 = vadd.f32 %v3497, %v3727
      %v3886 = vadd.f32 %v3498, %v3732
      %v3887 = vadd.f32 %v3499, %v3737
      %v3888 = vadd.f32 %v3500, %v3742
      %v3889 = vadd.f32 %v3501, %v3747
      %v3890 = vadd.f32 %v3502, %v3752
      %v3891 = vadd.f32 %v3503, %v3757
      %v3892 = vadd.f32 %v3504, %v3762
      %v3893 = vadd.f32 %v3505, %v3767
      %v3894 = vadd.f32 %v3506, %v3772
      %v3895 = vadd.f32 %v3507, %v3777
      %v3896 = vadd.f32 %v3508, %v3782
      %v3897 = vadd.f32 %v3509, %v3787
      %v3898 = vadd.f32 %v3510, %v3792
      %v3899 = vadd.f32 %v3511, %v3797
      %v3900 = vadd.f32 %v3512, %v3802
      %v3901 = vadd.f32 %v3513, %v3807
      %v3902 = vadd.f32 %v3514, %v3812
      %v3903 = vadd.f32 %v3515, %v3817
      %v3904 = vadd.f32 %v3516, %v3822
      %v3905 = vadd.f32 %v3517, %v3827
      %v3906 = vadd.f32 %v3518, %v3832
      %v3907 = vadd.f32 %v3519, %v3837
      %v3908 = vadd.f32 %v3520, %v3842
      %v3909 = vadd.f32 %v3521, %v3847
      %v3910 = vadd.f32 %v3522, %v3852
      %v3911 = vadd.f32 %v3523, %v3857
      %v3912 = vadd.f32 %v3524, %v3862
      %v3913 = vadd.f32 %v3525, %v3867
      %v3914 = vadd.f32 %v3526, %v3872
      %v3915 = vadd.f32 %v3527, %v3877
      %v3916 = vadd.f32 %v3528, %v3882
      %v3918 = vlaneseq
      %v3919 = vshrl.u32 %v3918, 7
      %v3920 = vsub.s32 0, %v3919
      %v3921 = vrot.slane %v486, %v3920
      %v3923 = vadd.f32 %v3885, %v3921
      %v3924 = vadd.f32 %v3886, %v3921
      %v3925 = vadd.f32 %v3887, %v3921
      %v3926 = vadd.f32 %v3888, %v3921
      %v3927 = vadd.f32 %v3889, %v3921
      %v3928 = vadd.f32 %v3890, %v3921
      %v3929 = vadd.f32 %v3891, %v3921
      %v3930 = vadd.f32 %v3892, %v3921
      %v3931 = vadd.f32 %v3893, %v3921
      %v3932 = vadd.f32 %v3894, %v3921
      %v3933 = vadd.f32 %v3895, %v3921
      %v3934 = vadd.f32 %v3896, %v3921
      %v3935 = vadd.f32 %v3897, %v3921
      %v3936 = vadd.f32 %v3898, %v3921
      %v3937 = vadd.f32 %v3899, %v3921
      %v3938 = vadd.f32 %v3900, %v3921
      %v3939 = vadd.f32 %v3901, %v3921
      %v3940 = vadd.f32 %v3902, %v3921
      %v3941 = vadd.f32 %v3903, %v3921
      %v3942 = vadd.f32 %v3904, %v3921
      %v3943 = vadd.f32 %v3905, %v3921
      %v3944 = vadd.f32 %v3906, %v3921
      %v3945 = vadd.f32 %v3907, %v3921
      %v3946 = vadd.f32 %v3908, %v3921
      %v3947 = vadd.f32 %v3909, %v3921
      %v3948 = vadd.f32 %v3910, %v3921
      %v3949 = vadd.f32 %v3911, %v3921
      %v3950 = vadd.f32 %v3912, %v3921
      %v3951 = vadd.f32 %v3913, %v3921
      %v3952 = vadd.f32 %v3914, %v3921
      %v3953 = vadd.f32 %v3915, %v3921
      %v3954 = vadd.f32 %v3916, %v3921
      %v3955 = vmax.f32 %v3923, 0.0
      %v3956 = vmax.f32 %v3924, 0.0
      %v3957 = vmax.f32 %v3925, 0.0
      %v3958 = vmax.f32 %v3926, 0.0
      %v3959 = vmax.f32 %v3927, 0.0
      %v3960 = vmax.f32 %v3928, 0.0
      %v3961 = vmax.f32 %v3929, 0.0
      %v3962 = vmax.f32 %v3930, 0.0
      %v3963 = vmax.f32 %v3931, 0.0
      %v3964 = vmax.f32 %v3932, 0.0
      %v3965 = vmax.f32 %v3933, 0.0
      %v3966 = vmax.f32 %v3934, 0.0
      %v3967 = vmax.f32 %v3935, 0.0
      %v3968 = vmax.f32 %v3936, 0.0
      %v3969 = vmax.f32 %v3937, 0.0
      %v3970 = vmax.f32 %v3938, 0.0
      %v3971 = vmax.f32 %v3939, 0.0
      %v3972 = vmax.f32 %v3940, 0.0
      %v3973 = vmax.f32 %v3941, 0.0
      %v3974 = vmax.f32 %v3942, 0.0
      %v3975 = vmax.f32 %v3943, 0.0
      %v3976 = vmax.f32 %v3944, 0.0
      %v3977 = vmax.f32 %v3945, 0.0
      %v3978 = vmax.f32 %v3946, 0.0
      %v3979 = vmax.f32 %v3947, 0.0
      %v3980 = vmax.f32 %v3948, 0.0
      %v3981 = vmax.f32 %v3949, 0.0
      %v3982 = vmax.f32 %v3950, 0.0
      %v3983 = vmax.f32 %v3951, 0.0
      %v3984 = vmax.f32 %v3952, 0.0
      %v3985 = vmax.f32 %v3953, 0.0
      %v3986 = vmax.f32 %v3954, 0.0
      %3987 = vst.msk [vmem:[%s383 + $0x8] sm:$0xff] %vm373, %v3955
      %3988 = vst.msk [vmem:[%s383 + $0x10] sm:$0xff] %vm373, %v3956
      %3989 = vst.msk [vmem:[%s383 + $0x28] sm:$0xff] %vm373, %v3957
      %3990 = vst.msk [vmem:[%s383 + $0x30] sm:$0xff] %vm373, %v3958
      %3991 = vst.msk [vmem:[%s383 + $0x48] sm:$0xff] %vm373, %v3959
      %3992 = vst.msk [vmem:[%s383 + $0x50] sm:$0xff] %vm373, %v3960
      %3993 = vst.msk [vmem:[%s383 + $0x68] sm:$0xff] %vm373, %v3961
      %3994 = vst.msk [vmem:[%s383 + $0x70] sm:$0xff] %vm373, %v3962
      %3995 = vst.msk [vmem:[%s383 + $0x88] sm:$0xff] %vm373, %v3963
      %3996 = vst.msk [vmem:[%s383 + $0x90] sm:$0xff] %vm373, %v3964
      %3997 = vst.msk [vmem:[%s383 + $0xa8] sm:$0xff] %vm373, %v3965
      %3998 = vst.msk [vmem:[%s383 + $0xb0] sm:$0xff] %vm373, %v3966
      %3999 = vst.msk [vmem:[%s383 + $0xc8] sm:$0xff] %vm373, %v3967
      %4000 = vst.msk [vmem:[%s383 + $0xd0] sm:$0xff] %vm373, %v3968
      %4001 = vst.msk [vmem:[%s383 + $0xe8] sm:$0xff] %vm373, %v3969
      %4002 = vst.msk [vmem:[%s383 + $0xf0] sm:$0xff] %vm373, %v3970
      %4003 = vst.msk [vmem:[%s383 + $0x108] sm:$0xff] %vm373, %v3971
      %4004 = vst.msk [vmem:[%s383 + $0x110] sm:$0xff] %vm373, %v3972
      %4005 = vst.msk [vmem:[%s383 + $0x128] sm:$0xff] %vm373, %v3973
      %4006 = vst.msk [vmem:[%s383 + $0x130] sm:$0xff] %vm373, %v3974
      %4007 = vst.msk [vmem:[%s383 + $0x148] sm:$0xff] %vm373, %v3975
      %4008 = vst.msk [vmem:[%s383 + $0x150] sm:$0xff] %vm373, %v3976
      %4009 = vst.msk [vmem:[%s383 + $0x168] sm:$0xff] %vm373, %v3977
      %4010 = vst.msk [vmem:[%s383 + $0x170] sm:$0xff] %vm373, %v3978
      %4011 = vst.msk [vmem:[%s383 + $0x188] sm:$0xff] %vm373, %v3979
      %4012 = vst.msk [vmem:[%s383 + $0x190] sm:$0xff] %vm373, %v3980
      %4013 = vst.msk [vmem:[%s383 + $0x1a8] sm:$0xff] %vm373, %v3981
      %4014 = vst.msk [vmem:[%s383 + $0x1b0] sm:$0xff] %vm373, %v3982
      %4015 = vst.msk [vmem:[%s383 + $0x1c8] sm:$0xff] %vm373, %v3983
      %4016 = vst.msk [vmem:[%s383 + $0x1d0] sm:$0xff] %vm373, %v3984
      %4017 = vst.msk [vmem:[%s383 + $0x1e8] sm:$0xff] %vm373, %v3985
      %4018 = vst.msk [vmem:[%s383 + $0x1f0] sm:$0xff] %vm373, %v3986
      %v4019 = vld [vmem:[%s3] sm:$0xff]
      %v4020 = vld [vmem:[%s3 + $0x8] sm:$0xff]
      %v4021 = vld [vmem:[%s3 + $0x10] sm:$0xff]
      %v4022 = vld [vmem:[%s3 + $0x18] sm:$0xff]
      %v4023 = vld [vmem:[%s3 + $0x20] sm:$0xff]
      %v4024 = vld [vmem:[%s3 + $0x28] sm:$0xff]
      %v4025 = vld [vmem:[%s3 + $0x30] sm:$0xff]
      %v4026 = vld [vmem:[%s3 + $0x38] sm:$0xff]
      %v4027 = vld [vmem:[%s3 + $0x40] sm:$0xff]
      %v4028 = vld [vmem:[%s3 + $0x48] sm:$0xff]
      %v4029 = vld [vmem:[%s3 + $0x50] sm:$0xff]
      %v4030 = vld [vmem:[%s3 + $0x58] sm:$0xff]
      %v4031 = vld [vmem:[%s3 + $0x60] sm:$0xff]
      %v4032 = vld [vmem:[%s3 + $0x68] sm:$0xff]
      %v4033 = vld [vmem:[%s3 + $0x70] sm:$0xff]
      %v4034 = vld [vmem:[%s3 + $0x78] sm:$0xff]
      %v4035 = vld [vmem:[%s3 + $0x80] sm:$0xff]
      %v4036 = vld [vmem:[%s3 + $0x88] sm:$0xff]
      %v4037 = vld [vmem:[%s3 + $0x90] sm:$0xff]
      %v4038 = vld [vmem:[%s3 + $0x98] sm:$0xff]
      %v4039 = vld [vmem:[%s3 + $0xa0] sm:$0xff]
      %v4040 = vld [vmem:[%s3 + $0xa8] sm:$0xff]
      %v4041 = vld [vmem:[%s3 + $0xb0] sm:$0xff]
      %v4042 = vld [vmem:[%s3 + $0xb8] sm:$0xff]
      %v4043 = vld [vmem:[%s3 + $0xc0] sm:$0xff]
      %v4044 = vld [vmem:[%s3 + $0xc8] sm:$0xff]
      %v4045 = vld [vmem:[%s3 + $0xd0] sm:$0xff]
      %v4046 = vld [vmem:[%s3 + $0xd8] sm:$0xff]
      %v4047 = vld [vmem:[%s3 + $0xe0] sm:$0xff]
      %v4048 = vld [vmem:[%s3 + $0xe8] sm:$0xff]
      %v4049 = vld [vmem:[%s3 + $0xf0] sm:$0xff]
      %v4050 = vld [vmem:[%s3 + $0xf8] sm:$0xff]
      %v4051 = vld [vmem:[%s3 + $0x100] sm:$0xff]
      %v4052 = vld [vmem:[%s3 + $0x108] sm:$0xff]
      %v4053 = vld [vmem:[%s3 + $0x110] sm:$0xff]
      %v4054 = vld [vmem:[%s3 + $0x118] sm:$0xff]
      %v4055 = vld [vmem:[%s4] sm:$0x1]
      %v4056 = vld [vmem:[#allocation3 + $0x7] sm:$0xff]
      %v4057 = vld [vmem:[#allocation3 + $0xf] sm:$0xff]
      %v4058 = vld [vmem:[#allocation3 + $0x27] sm:$0xff]
      %v4059 = vld [vmem:[#allocation3 + $0x2f] sm:$0xff]
      %v4060 = vld [vmem:[#allocation3 + $0x47] sm:$0xff]
      %v4061 = vld [vmem:[#allocation3 + $0x4f] sm:$0xff]
      %v4062 = vld [vmem:[#allocation3 + $0x67] sm:$0xff]
      %v4063 = vld [vmem:[#allocation3 + $0x6f] sm:$0xff]
      %v4064 = vld [vmem:[#allocation3 + $0x87] sm:$0xff]
      %v4065 = vld [vmem:[#allocation3 + $0x8f] sm:$0xff]
      %v4066 = vld [vmem:[#allocation3 + $0xa7] sm:$0xff]
      %v4067 = vld [vmem:[#allocation3 + $0xaf] sm:$0xff]
      %v4068 = vld [vmem:[#allocation3 + $0xc7] sm:$0xff]
      %v4069 = vld [vmem:[#allocation3 + $0xcf] sm:$0xff]
      %v4070 = vld [vmem:[#allocation3 + $0xe7] sm:$0xff]
      %v4071 = vld [vmem:[#allocation3 + $0xef] sm:$0xff]
      %v4072 = vld [vmem:[#allocation3 + $0x107] sm:$0xff]
      %v4073 = vld [vmem:[#allocation3 + $0x10f] sm:$0xff]
      %v4074 = vld [vmem:[#allocation3 + $0x127] sm:$0xff]
      %v4075 = vld [vmem:[#allocation3 + $0x12f] sm:$0xff]
      %v4076 = vld [vmem:[#allocation3 + $0x147] sm:$0xff]
      %v4077 = vld [vmem:[#allocation3 + $0x14f] sm:$0xff]
      %v4078 = vld [vmem:[#allocation3 + $0x167] sm:$0xff]
      %v4079 = vld [vmem:[#allocation3 + $0x16f] sm:$0xff]
      %v4080 = vld [vmem:[#allocation3 + $0x187] sm:$0xff]
      %v4081 = vld [vmem:[#allocation3 + $0x18f] sm:$0xff]
      %v4082 = vld [vmem:[#allocation3 + $0x1a7] sm:$0xff]
      %v4083 = vld [vmem:[#allocation3 + $0x1af] sm:$0xff]
      %v4084 = vld [vmem:[#allocation3 + $0x1c7] sm:$0xff]
      %v4085 = vld [vmem:[#allocation3 + $0x1cf] sm:$0xff]
      %v4086 = vld [vmem:[#allocation3 + $0x1e7] sm:$0xff]
      %v4087 = vld [vmem:[#allocation3 + $0x1ef] sm:$0xff]
      %v4088 = vld [vmem:[#allocation3 + $0x8] sm:$0xff]
      %v4089 = vld [vmem:[#allocation3 + $0x10] sm:$0xff]
      %v4090 = vld [vmem:[#allocation3 + $0x28] sm:$0xff]
      %v4091 = vld [vmem:[#allocation3 + $0x30] sm:$0xff]
      %v4092 = vld [vmem:[#allocation3 + $0x48] sm:$0xff]
      %v4093 = vld [vmem:[#allocation3 + $0x50] sm:$0xff]
      %v4094 = vld [vmem:[#allocation3 + $0x68] sm:$0xff]
      %v4095 = vld [vmem:[#allocation3 + $0x70] sm:$0xff]
      %v4096 = vld [vmem:[#allocation3 + $0x88] sm:$0xff]
      %v4097 = vld [vmem:[#allocation3 + $0x90] sm:$0xff]
      %v4098 = vld [vmem:[#allocation3 + $0xa8] sm:$0xff]
      %v4099 = vld [vmem:[#allocation3 + $0xb0] sm:$0xff]
      %v4100 = vld [vmem:[#allocation3 + $0xc8] sm:$0xff]
      %v4101 = vld [vmem:[#allocation3 + $0xd0] sm:$0xff]
      %v4102 = vld [vmem:[#allocation3 + $0xe8] sm:$0xff]
      %v4103 = vld [vmem:[#allocation3 + $0xf0] sm:$0xff]
      %v4104 = vld [vmem:[#allocation3 + $0x108] sm:$0xff]
      %v4105 = vld [vmem:[#allocation3 + $0x110] sm:$0xff]
      %v4106 = vld [vmem:[#allocation3 + $0x128] sm:$0xff]
      %v4107 = vld [vmem:[#allocation3 + $0x130] sm:$0xff]
      %v4108 = vld [vmem:[#allocation3 + $0x148] sm:$0xff]
      %v4109 = vld [vmem:[#allocation3 + $0x150] sm:$0xff]
      %v4110 = vld [vmem:[#allocation3 + $0x168] sm:$0xff]
      %v4111 = vld [vmem:[#allocation3 + $0x170] sm:$0xff]
      %v4112 = vld [vmem:[#allocation3 + $0x188] sm:$0xff]
      %v4113 = vld [vmem:[#allocation3 + $0x190] sm:$0xff]
      %v4114 = vld [vmem:[#allocation3 + $0x1a8] sm:$0xff]
      %v4115 = vld [vmem:[#allocation3 + $0x1b0] sm:$0xff]
      %v4116 = vld [vmem:[#allocation3 + $0x1c8] sm:$0xff]
      %v4117 = vld [vmem:[#allocation3 + $0x1d0] sm:$0xff]
      %v4118 = vld [vmem:[#allocation3 + $0x1e8] sm:$0xff]
      %v4119 = vld [vmem:[#allocation3 + $0x1f0] sm:$0xff]
      %v4121 = vsel %vm373, %v4088, 0
      %v4124 = vsel %vm373, %v4089, 0
      %v4127 = vsel %vm373, %v4090, 0
      %v4130 = vsel %vm373, %v4091, 0
      %v4133 = vsel %vm373, %v4092, 0
      %v4136 = vsel %vm373, %v4093, 0
      %v4139 = vsel %vm373, %v4094, 0
      %v4142 = vsel %vm373, %v4095, 0
      %v4145 = vsel %vm373, %v4096, 0
      %v4148 = vsel %vm373, %v4097, 0
      %v4151 = vsel %vm373, %v4098, 0
      %v4154 = vsel %vm373, %v4099, 0
      %v4157 = vsel %vm373, %v4100, 0
      %v4160 = vsel %vm373, %v4101, 0
      %v4163 = vsel %vm373, %v4102, 0
      %v4166 = vsel %vm373, %v4103, 0
      %v4169 = vsel %vm373, %v4104, 0
      %v4172 = vsel %vm373, %v4105, 0
      %v4175 = vsel %vm373, %v4106, 0
      %v4178 = vsel %vm373, %v4107, 0
      %v4181 = vsel %vm373, %v4108, 0
      %v4184 = vsel %vm373, %v4109, 0
      %v4187 = vsel %vm373, %v4110, 0
      %v4190 = vsel %vm373, %v4111, 0
      %v4193 = vsel %vm373, %v4112, 0
      %v4196 = vsel %vm373, %v4113, 0
      %v4199 = vsel %vm373, %v4114, 0
      %v4202 = vsel %vm373, %v4115, 0
      %v4205 = vsel %vm373, %v4116, 0
      %v4208 = vsel %vm373, %v4117, 0
      %v4211 = vsel %vm373, %v4118, 0
      %v4214 = vsel %vm373, %v4119, 0
      %4216 = vmatprep.subr.mxu0 0.0
      %4217 = vmatpush1.msra.mxu0 0.0
      %4218 = vmatprep.subr.mxu0 0.0
      %4219 = vmatpush1.msra.mxu0 0.0
      %4220 = vmatprep.subr.mxu0 0.0
      %4221 = vmatpush1.msra.mxu0 0.0
      %4222 = vmatprep.subr.mxu0 0.0
      %4223 = vmatpush1.msra.mxu0 0.0
      %4224 = vmatprep.subr.mxu0 0.0
      %4225 = vmatpush1.msra.mxu0 0.0
      %4226 = vmatprep.subr.mxu0 0.0
      %4227 = vmatpush1.msra.mxu0 0.0
      %4228 = vmatprep.subr.mxu0 0.0
      %4229 = vmatpush1.msra.mxu0 0.0
      %4230 = vmatprep.subr.mxu0 0.0
      %4231 = vmatpush1.msra.mxu0 0.0
      %4232 = vmatprep.subr.mxu0 0.0
      %4233 = vmatpush1.msra.mxu0 0.0
      %4234 = vmatprep.subr.mxu0 0.0
      %4235 = vmatpush1.msra.mxu0 0.0
      %4236 = vmatprep.subr.mxu0 0.0
      %4237 = vmatpush1.msra.mxu0 0.0
      %4238 = vmatprep.subr.mxu0 0.0
      %4239 = vmatpush1.msra.mxu0 0.0
      %4240 = vmatprep.subr.mxu0 0.0
      %4241 = vmatpush1.msra.mxu0 %v4026
      %4242 = vmatprep.subr.mxu0 0.0
      %4243 = vmatpush1.msra.mxu0 %v4025
      %4244 = vmatprep.subr.mxu0 0.0
      %4245 = vmatpush1.msra.mxu0 %v4024
      %4246 = vmatprep.subr.mxu0 0.0
      %4247 = vmatpush1.msra.mxu0 %v4023
      %4248 = vmatprep.subr.mxu0 0.0
      %4249 = vmatpush2.msra.mxu0 0.0
      %4250 = vmatprep.subr.mxu0 0.0
      %4251 = vmatpush2.msra.mxu0 0.0
      %4252 = vmatprep.subr.mxu0 0.0
      %4253 = vmatpush2.msra.mxu0 0.0
      %4254 = vmatprep.subr.mxu0 0.0
      %4255 = vmatpush2.msra.mxu0 0.0
      %4256 = vmatprep.subr.mxu0 0.0
      %4257 = vmatpush2.msra.mxu0 0.0
      %4258 = vmatprep.subr.mxu0 0.0
      %4259 = vmatpush2.msra.mxu0 0.0
      %4260 = vmatprep.subr.mxu0 0.0
      %4261 = vmatpush2.msra.mxu0 0.0
      %4262 = vmatprep.subr.mxu0 0.0
      %4263 = vmatpush2.msra.mxu0 0.0
      %4264 = vmatprep.subr.mxu0 0.0
      %4265 = vmatpush2.msra.mxu0 0.0
      %4266 = vmatprep.subr.mxu0 0.0
      %4267 = vmatpush2.msra.mxu0 0.0
      %4268 = vmatprep.subr.mxu0 0.0
      %4269 = vmatpush2.msra.mxu0 0.0
      %4270 = vmatprep.subr.mxu0 0.0
      %4271 = vmatpush2.msra.mxu0 0.0
      %4272 = vmatprep.subr.mxu0 0.0
      %4273 = vmatpush2.msra.mxu0 0.0
      %4274 = vmatprep.subr.mxu0 0.0
      %4275 = vmatpush2.msra.mxu0 0.0
      %4276 = vmatprep.subr.mxu0 0.0
      %4277 = vmatpush2.msra.mxu0 0.0
      %4278 = vmatprep.subr.mxu0 0.0
      %4279 = vmatpush2.msra.mxu0 0.0
      %4280 = vmatprep.mubr.f32.mxu0 0.0
      %4281 = vmatmul.mubr.f32.gmra.mxu0 %v4121
      %v4282 = vpop.f32.mrf.mxu0
      %v4283 = vadd.f32 0.0, %v4282
      %v4284 = vpop.f32.mrf.mxu0
      %4285 = vmatprep.mubr.f32.mxu0 0.0
      %4286 = vmatmul.mubr.f32.gmra.mxu0 %v4124
      %v4287 = vpop.f32.mrf.mxu0
      %v4288 = vadd.f32 0.0, %v4287
      %v4289 = vpop.f32.mrf.mxu0
      %4290 = vmatprep.mubr.f32.mxu0 0.0
      %4291 = vmatmul.mubr.f32.gmra.mxu0 %v4127
      %v4292 = vpop.f32.mrf.mxu0
      %v4293 = vadd.f32 0.0, %v4292
      %v4294 = vpop.f32.mrf.mxu0
      %4295 = vmatprep.mubr.f32.mxu0 0.0
      %4296 = vmatmul.mubr.f32.gmra.mxu0 %v4130
      %v4297 = vpop.f32.mrf.mxu0
      %v4298 = vadd.f32 0.0, %v4297
      %v4299 = vpop.f32.mrf.mxu0
      %4300 = vmatprep.mubr.f32.mxu0 0.0
      %4301 = vmatmul.mubr.f32.gmra.mxu0 %v4133
      %v4302 = vpop.f32.mrf.mxu0
      %v4303 = vadd.f32 0.0, %v4302
      %v4304 = vpop.f32.mrf.mxu0
      %4305 = vmatprep.mubr.f32.mxu0 0.0
      %4306 = vmatmul.mubr.f32.gmra.mxu0 %v4136
      %v4307 = vpop.f32.mrf.mxu0
      %v4308 = vadd.f32 0.0, %v4307
      %v4309 = vpop.f32.mrf.mxu0
      %4310 = vmatprep.mubr.f32.mxu0 0.0
      %4311 = vmatmul.mubr.f32.gmra.mxu0 %v4139
      %v4312 = vpop.f32.mrf.mxu0
      %v4313 = vadd.f32 0.0, %v4312
      %v4314 = vpop.f32.mrf.mxu0
      %4315 = vmatprep.mubr.f32.mxu0 0.0
      %4316 = vmatmul.mubr.f32.gmra.mxu0 %v4142
      %v4317 = vpop.f32.mrf.mxu0
      %v4318 = vadd.f32 0.0, %v4317
      %v4319 = vpop.f32.mrf.mxu0
      %4320 = vmatprep.mubr.f32.mxu0 0.0
      %4321 = vmatmul.mubr.f32.gmra.mxu0 %v4145
      %v4322 = vpop.f32.mrf.mxu0
      %v4323 = vadd.f32 0.0, %v4322
      %v4324 = vpop.f32.mrf.mxu0
      %4325 = vmatprep.mubr.f32.mxu0 0.0
      %4326 = vmatmul.mubr.f32.gmra.mxu0 %v4148
      %v4327 = vpop.f32.mrf.mxu0
      %v4328 = vadd.f32 0.0, %v4327
      %v4329 = vpop.f32.mrf.mxu0
      %4330 = vmatprep.mubr.f32.mxu0 0.0
      %4331 = vmatmul.mubr.f32.gmra.mxu0 %v4151
      %v4332 = vpop.f32.mrf.mxu0
      %v4333 = vadd.f32 0.0, %v4332
      %v4334 = vpop.f32.mrf.mxu0
      %4335 = vmatprep.mubr.f32.mxu0 0.0
      %4336 = vmatmul.mubr.f32.gmra.mxu0 %v4154
      %v4337 = vpop.f32.mrf.mxu0
      %v4338 = vadd.f32 0.0, %v4337
      %v4339 = vpop.f32.mrf.mxu0
      %4340 = vmatprep.mubr.f32.mxu0 0.0
      %4341 = vmatmul.mubr.f32.gmra.mxu0 %v4157
      %v4342 = vpop.f32.mrf.mxu0
      %v4343 = vadd.f32 0.0, %v4342
      %v4344 = vpop.f32.mrf.mxu0
      %4345 = vmatprep.mubr.f32.mxu0 0.0
      %4346 = vmatmul.mubr.f32.gmra.mxu0 %v4160
      %v4347 = vpop.f32.mrf.mxu0
      %v4348 = vadd.f32 0.0, %v4347
      %v4349 = vpop.f32.mrf.mxu0
      %4350 = vmatprep.mubr.f32.mxu0 0.0
      %4351 = vmatmul.mubr.f32.gmra.mxu0 %v4163
      %v4352 = vpop.f32.mrf.mxu0
      %v4353 = vadd.f32 0.0, %v4352
      %v4354 = vpop.f32.mrf.mxu0
      %4355 = vmatprep.mubr.f32.mxu0 0.0
      %4356 = vmatmul.mubr.f32.gmra.mxu0 %v4166
      %v4357 = vpop.f32.mrf.mxu0
      %v4358 = vadd.f32 0.0, %v4357
      %v4359 = vpop.f32.mrf.mxu0
      %4360 = vmatprep.mubr.f32.mxu0 0.0
      %4361 = vmatmul.mubr.f32.gmra.mxu0 %v4169
      %v4362 = vpop.f32.mrf.mxu0
      %v4363 = vadd.f32 0.0, %v4362
      %v4364 = vpop.f32.mrf.mxu0
      %4365 = vmatprep.mubr.f32.mxu0 0.0
      %4366 = vmatmul.mubr.f32.gmra.mxu0 %v4172
      %v4367 = vpop.f32.mrf.mxu0
      %v4368 = vadd.f32 0.0, %v4367
      %v4369 = vpop.f32.mrf.mxu0
      %4370 = vmatprep.mubr.f32.mxu0 0.0
      %4371 = vmatmul.mubr.f32.gmra.mxu0 %v4175
      %v4372 = vpop.f32.mrf.mxu0
      %v4373 = vadd.f32 0.0, %v4372
      %v4374 = vpop.f32.mrf.mxu0
      %4375 = vmatprep.mubr.f32.mxu0 0.0
      %4376 = vmatmul.mubr.f32.gmra.mxu0 %v4178
      %v4377 = vpop.f32.mrf.mxu0
      %v4378 = vadd.f32 0.0, %v4377
      %v4379 = vpop.f32.mrf.mxu0
      %4380 = vmatprep.mubr.f32.mxu0 0.0
      %4381 = vmatmul.mubr.f32.gmra.mxu0 %v4181
      %v4382 = vpop.f32.mrf.mxu0
      %v4383 = vadd.f32 0.0, %v4382
      %v4384 = vpop.f32.mrf.mxu0
      %4385 = vmatprep.mubr.f32.mxu0 0.0
      %4386 = vmatmul.mubr.f32.gmra.mxu0 %v4184
      %v4387 = vpop.f32.mrf.mxu0
      %v4388 = vadd.f32 0.0, %v4387
      %v4389 = vpop.f32.mrf.mxu0
      %4390 = vmatprep.mubr.f32.mxu0 0.0
      %4391 = vmatmul.mubr.f32.gmra.mxu0 %v4187
      %v4392 = vpop.f32.mrf.mxu0
      %v4393 = vadd.f32 0.0, %v4392
      %v4394 = vpop.f32.mrf.mxu0
      %4395 = vmatprep.mubr.f32.mxu0 0.0
      %4396 = vmatmul.mubr.f32.gmra.mxu0 %v4190
      %v4397 = vpop.f32.mrf.mxu0
      %v4398 = vadd.f32 0.0, %v4397
      %v4399 = vpop.f32.mrf.mxu0
      %4400 = vmatprep.mubr.f32.mxu0 0.0
      %4401 = vmatmul.mubr.f32.gmra.mxu0 %v4193
      %v4402 = vpop.f32.mrf.mxu0
      %v4403 = vadd.f32 0.0, %v4402
      %v4404 = vpop.f32.mrf.mxu0
      %4405 = vmatprep.mubr.f32.mxu0 0.0
      %4406 = vmatmul.mubr.f32.gmra.mxu0 %v4196
      %v4407 = vpop.f32.mrf.mxu0
      %v4408 = vadd.f32 0.0, %v4407
      %v4409 = vpop.f32.mrf.mxu0
      %4410 = vmatprep.mubr.f32.mxu0 0.0
      %4411 = vmatmul.mubr.f32.gmra.mxu0 %v4199
      %v4412 = vpop.f32.mrf.mxu0
      %v4413 = vadd.f32 0.0, %v4412
      %v4414 = vpop.f32.mrf.mxu0
      %4415 = vmatprep.mubr.f32.mxu0 0.0
      %4416 = vmatmul.mubr.f32.gmra.mxu0 %v4202
      %v4417 = vpop.f32.mrf.mxu0
      %v4418 = vadd.f32 0.0, %v4417
      %v4419 = vpop.f32.mrf.mxu0
      %4420 = vmatprep.mubr.f32.mxu0 0.0
      %4421 = vmatmul.mubr.f32.gmra.mxu0 %v4205
      %v4422 = vpop.f32.mrf.mxu0
      %v4423 = vadd.f32 0.0, %v4422
      %v4424 = vpop.f32.mrf.mxu0
      %4425 = vmatprep.mubr.f32.mxu0 0.0
      %4426 = vmatmul.mubr.f32.gmra.mxu0 %v4208
      %v4427 = vpop.f32.mrf.mxu0
      %v4428 = vadd.f32 0.0, %v4427
      %v4429 = vpop.f32.mrf.mxu0
      %4430 = vmatprep.mubr.f32.mxu0 0.0
      %4431 = vmatmul.mubr.f32.gmra.mxu0 %v4211
      %v4432 = vpop.f32.mrf.mxu0
      %v4433 = vadd.f32 0.0, %v4432
      %v4434 = vpop.f32.mrf.mxu0
      %4435 = vmatprep.mubr.f32.mxu0 0.0
      %4436 = vmatmul.mubr.f32.gmra.mxu0 %v4214
      %v4437 = vpop.f32.mrf.mxu0
      %v4438 = vadd.f32 0.0, %v4437
      %v4439 = vpop.f32.mrf.mxu0
      %4440 = vdwg.mxu0
      %v4442 = vsel %vm373, %v4056, 0
      %v4445 = vsel %vm373, %v4057, 0
      %v4448 = vsel %vm373, %v4058, 0
      %v4451 = vsel %vm373, %v4059, 0
      %v4454 = vsel %vm373, %v4060, 0
      %v4457 = vsel %vm373, %v4061, 0
      %v4460 = vsel %vm373, %v4062, 0
      %v4463 = vsel %vm373, %v4063, 0
      %v4466 = vsel %vm373, %v4064, 0
      %v4469 = vsel %vm373, %v4065, 0
      %v4472 = vsel %vm373, %v4066, 0
      %v4475 = vsel %vm373, %v4067, 0
      %v4478 = vsel %vm373, %v4068, 0
      %v4481 = vsel %vm373, %v4069, 0
      %v4484 = vsel %vm373, %v4070, 0
      %v4487 = vsel %vm373, %v4071, 0
      %v4490 = vsel %vm373, %v4072, 0
      %v4493 = vsel %vm373, %v4073, 0
      %v4496 = vsel %vm373, %v4074, 0
      %v4499 = vsel %vm373, %v4075, 0
      %v4502 = vsel %vm373, %v4076, 0
      %v4505 = vsel %vm373, %v4077, 0
      %v4508 = vsel %vm373, %v4078, 0
      %v4511 = vsel %vm373, %v4079, 0
      %v4514 = vsel %vm373, %v4080, 0
      %v4517 = vsel %vm373, %v4081, 0
      %v4520 = vsel %vm373, %v4082, 0
      %v4523 = vsel %vm373, %v4083, 0
      %v4526 = vsel %vm373, %v4084, 0
      %v4529 = vsel %vm373, %v4085, 0
      %v4532 = vsel %vm373, %v4086, 0
      %v4535 = vsel %vm373, %v4087, 0
      %4537 = vmatprep.subr.mxu0 0.0
      %4538 = vmatpush1.msra.mxu0 0.0
      %4539 = vmatprep.subr.mxu0 0.0
      %4540 = vmatpush1.msra.mxu0 0.0
      %4541 = vmatprep.subr.mxu0 0.0
      %4542 = vmatpush1.msra.mxu0 0.0
      %4543 = vmatprep.subr.mxu0 0.0
      %4544 = vmatpush1.msra.mxu0 0.0
      %4545 = vmatprep.subr.mxu0 0.0
      %4546 = vmatpush1.msra.mxu0 0.0
      %4547 = vmatprep.subr.mxu0 0.0
      %4548 = vmatpush1.msra.mxu0 0.0
      %4549 = vmatprep.subr.mxu0 0.0
      %4550 = vmatpush1.msra.mxu0 0.0
      %4551 = vmatprep.subr.mxu0 0.0
      %4552 = vmatpush1.msra.mxu0 0.0
      %4553 = vmatprep.subr.mxu0 0.0
      %4554 = vmatpush1.msra.mxu0 0.0
      %4555 = vmatprep.subr.mxu0 0.0
      %4556 = vmatpush1.msra.mxu0 0.0
      %4557 = vmatprep.subr.mxu0 0.0
      %4558 = vmatpush1.msra.mxu0 0.0
      %4559 = vmatprep.subr.mxu0 0.0
      %4560 = vmatpush1.msra.mxu0 0.0
      %4561 = vmatprep.subr.mxu0 0.0
      %4562 = vmatpush1.msra.mxu0 %v4022
      %4563 = vmatprep.subr.mxu0 0.0
      %4564 = vmatpush1.msra.mxu0 %v4021
      %4565 = vmatprep.subr.mxu0 0.0
      %4566 = vmatpush1.msra.mxu0 %v4020
      %4567 = vmatprep.subr.mxu0 0.0
      %4568 = vmatpush1.msra.mxu0 %v4019
      %4569 = vmatprep.subr.mxu0 0.0
      %4570 = vmatpush2.msra.mxu0 0.0
      %4571 = vmatprep.subr.mxu0 0.0
      %4572 = vmatpush2.msra.mxu0 0.0
      %4573 = vmatprep.subr.mxu0 0.0
      %4574 = vmatpush2.msra.mxu0 0.0
      %4575 = vmatprep.subr.mxu0 0.0
      %4576 = vmatpush2.msra.mxu0 0.0
      %4577 = vmatprep.subr.mxu0 0.0
      %4578 = vmatpush2.msra.mxu0 0.0
      %4579 = vmatprep.subr.mxu0 0.0
      %4580 = vmatpush2.msra.mxu0 0.0
      %4581 = vmatprep.subr.mxu0 0.0
      %4582 = vmatpush2.msra.mxu0 0.0
      %4583 = vmatprep.subr.mxu0 0.0
      %4584 = vmatpush2.msra.mxu0 0.0
      %4585 = vmatprep.subr.mxu0 0.0
      %4586 = vmatpush2.msra.mxu0 0.0
      %4587 = vmatprep.subr.mxu0 0.0
      %4588 = vmatpush2.msra.mxu0 0.0
      %4589 = vmatprep.subr.mxu0 0.0
      %4590 = vmatpush2.msra.mxu0 0.0
      %4591 = vmatprep.subr.mxu0 0.0
      %4592 = vmatpush2.msra.mxu0 0.0
      %4593 = vmatprep.subr.mxu0 0.0
      %4594 = vmatpush2.msra.mxu0 0.0
      %4595 = vmatprep.subr.mxu0 0.0
      %4596 = vmatpush2.msra.mxu0 0.0
      %4597 = vmatprep.subr.mxu0 0.0
      %4598 = vmatpush2.msra.mxu0 0.0
      %4599 = vmatprep.subr.mxu0 0.0
      %4600 = vmatpush2.msra.mxu0 0.0
      %4601 = vmatprep.mubr.f32.mxu0 0.0
      %4602 = vmatmul.mubr.f32.gmra.mxu0 %v4442
      %v4603 = vpop.f32.mrf.mxu0
      %v4604 = vadd.f32 %v4283, %v4603
      %v4605 = vpop.f32.mrf.mxu0
      %4606 = vmatprep.mubr.f32.mxu0 0.0
      %4607 = vmatmul.mubr.f32.gmra.mxu0 %v4445
      %v4608 = vpop.f32.mrf.mxu0
      %v4609 = vadd.f32 %v4288, %v4608
      %v4610 = vpop.f32.mrf.mxu0
      %4611 = vmatprep.mubr.f32.mxu0 0.0
      %4612 = vmatmul.mubr.f32.gmra.mxu0 %v4448
      %v4613 = vpop.f32.mrf.mxu0
      %v4614 = vadd.f32 %v4293, %v4613
      %v4615 = vpop.f32.mrf.mxu0
      %4616 = vmatprep.mubr.f32.mxu0 0.0
      %4617 = vmatmul.mubr.f32.gmra.mxu0 %v4451
      %v4618 = vpop.f32.mrf.mxu0
      %v4619 = vadd.f32 %v4298, %v4618
      %v4620 = vpop.f32.mrf.mxu0
      %4621 = vmatprep.mubr.f32.mxu0 0.0
      %4622 = vmatmul.mubr.f32.gmra.mxu0 %v4454
      %v4623 = vpop.f32.mrf.mxu0
      %v4624 = vadd.f32 %v4303, %v4623
      %v4625 = vpop.f32.mrf.mxu0
      %4626 = vmatprep.mubr.f32.mxu0 0.0
      %4627 = vmatmul.mubr.f32.gmra.mxu0 %v4457
      %v4628 = vpop.f32.mrf.mxu0
      %v4629 = vadd.f32 %v4308, %v4628
      %v4630 = vpop.f32.mrf.mxu0
      %4631 = vmatprep.mubr.f32.mxu0 0.0
      %4632 = vmatmul.mubr.f32.gmra.mxu0 %v4460
      %v4633 = vpop.f32.mrf.mxu0
      %v4634 = vadd.f32 %v4313, %v4633
      %v4635 = vpop.f32.mrf.mxu0
      %4636 = vmatprep.mubr.f32.mxu0 0.0
      %4637 = vmatmul.mubr.f32.gmra.mxu0 %v4463
      %v4638 = vpop.f32.mrf.mxu0
      %v4639 = vadd.f32 %v4318, %v4638
      %v4640 = vpop.f32.mrf.mxu0
      %4641 = vmatprep.mubr.f32.mxu0 0.0
      %4642 = vmatmul.mubr.f32.gmra.mxu0 %v4466
      %v4643 = vpop.f32.mrf.mxu0
      %v4644 = vadd.f32 %v4323, %v4643
      %v4645 = vpop.f32.mrf.mxu0
      %4646 = vmatprep.mubr.f32.mxu0 0.0
      %4647 = vmatmul.mubr.f32.gmra.mxu0 %v4469
      %v4648 = vpop.f32.mrf.mxu0
      %v4649 = vadd.f32 %v4328, %v4648
      %v4650 = vpop.f32.mrf.mxu0
      %4651 = vmatprep.mubr.f32.mxu0 0.0
      %4652 = vmatmul.mubr.f32.gmra.mxu0 %v4472
      %v4653 = vpop.f32.mrf.mxu0
      %v4654 = vadd.f32 %v4333, %v4653
      %v4655 = vpop.f32.mrf.mxu0
      %4656 = vmatprep.mubr.f32.mxu0 0.0
      %4657 = vmatmul.mubr.f32.gmra.mxu0 %v4475
      %v4658 = vpop.f32.mrf.mxu0
      %v4659 = vadd.f32 %v4338, %v4658
      %v4660 = vpop.f32.mrf.mxu0
      %4661 = vmatprep.mubr.f32.mxu0 0.0
      %4662 = vmatmul.mubr.f32.gmra.mxu0 %v4478
      %v4663 = vpop.f32.mrf.mxu0
      %v4664 = vadd.f32 %v4343, %v4663
      %v4665 = vpop.f32.mrf.mxu0
      %4666 = vmatprep.mubr.f32.mxu0 0.0
      %4667 = vmatmul.mubr.f32.gmra.mxu0 %v4481
      %v4668 = vpop.f32.mrf.mxu0
      %v4669 = vadd.f32 %v4348, %v4668
      %v4670 = vpop.f32.mrf.mxu0
      %4671 = vmatprep.mubr.f32.mxu0 0.0
      %4672 = vmatmul.mubr.f32.gmra.mxu0 %v4484
      %v4673 = vpop.f32.mrf.mxu0
      %v4674 = vadd.f32 %v4353, %v4673
      %v4675 = vpop.f32.mrf.mxu0
      %4676 = vmatprep.mubr.f32.mxu0 0.0
      %4677 = vmatmul.mubr.f32.gmra.mxu0 %v4487
      %v4678 = vpop.f32.mrf.mxu0
      %v4679 = vadd.f32 %v4358, %v4678
      %v4680 = vpop.f32.mrf.mxu0
      %4681 = vmatprep.mubr.f32.mxu0 0.0
      %4682 = vmatmul.mubr.f32.gmra.mxu0 %v4490
      %v4683 = vpop.f32.mrf.mxu0
      %v4684 = vadd.f32 %v4363, %v4683
      %v4685 = vpop.f32.mrf.mxu0
      %4686 = vmatprep.mubr.f32.mxu0 0.0
      %4687 = vmatmul.mubr.f32.gmra.mxu0 %v4493
      %v4688 = vpop.f32.mrf.mxu0
      %v4689 = vadd.f32 %v4368, %v4688
      %v4690 = vpop.f32.mrf.mxu0
      %4691 = vmatprep.mubr.f32.mxu0 0.0
      %4692 = vmatmul.mubr.f32.gmra.mxu0 %v4496
      %v4693 = vpop.f32.mrf.mxu0
      %v4694 = vadd.f32 %v4373, %v4693
      %v4695 = vpop.f32.mrf.mxu0
      %4696 = vmatprep.mubr.f32.mxu0 0.0
      %4697 = vmatmul.mubr.f32.gmra.mxu0 %v4499
      %v4698 = vpop.f32.mrf.mxu0
      %v4699 = vadd.f32 %v4378, %v4698
      %v4700 = vpop.f32.mrf.mxu0
      %4701 = vmatprep.mubr.f32.mxu0 0.0
      %4702 = vmatmul.mubr.f32.gmra.mxu0 %v4502
      %v4703 = vpop.f32.mrf.mxu0
      %v4704 = vadd.f32 %v4383, %v4703
      %v4705 = vpop.f32.mrf.mxu0
      %4706 = vmatprep.mubr.f32.mxu0 0.0
      %4707 = vmatmul.mubr.f32.gmra.mxu0 %v4505
      %v4708 = vpop.f32.mrf.mxu0
      %v4709 = vadd.f32 %v4388, %v4708
      %v4710 = vpop.f32.mrf.mxu0
      %4711 = vmatprep.mubr.f32.mxu0 0.0
      %4712 = vmatmul.mubr.f32.gmra.mxu0 %v4508
      %v4713 = vpop.f32.mrf.mxu0
      %v4714 = vadd.f32 %v4393, %v4713
      %v4715 = vpop.f32.mrf.mxu0
      %4716 = vmatprep.mubr.f32.mxu0 0.0
      %4717 = vmatmul.mubr.f32.gmra.mxu0 %v4511
      %v4718 = vpop.f32.mrf.mxu0
      %v4719 = vadd.f32 %v4398, %v4718
      %v4720 = vpop.f32.mrf.mxu0
      %4721 = vmatprep.mubr.f32.mxu0 0.0
      %4722 = vmatmul.mubr.f32.gmra.mxu0 %v4514
      %v4723 = vpop.f32.mrf.mxu0
      %v4724 = vadd.f32 %v4403, %v4723
      %v4725 = vpop.f32.mrf.mxu0
      %4726 = vmatprep.mubr.f32.mxu0 0.0
      %4727 = vmatmul.mubr.f32.gmra.mxu0 %v4517
      %v4728 = vpop.f32.mrf.mxu0
      %v4729 = vadd.f32 %v4408, %v4728
      %v4730 = vpop.f32.mrf.mxu0
      %4731 = vmatprep.mubr.f32.mxu0 0.0
      %4732 = vmatmul.mubr.f32.gmra.mxu0 %v4520
      %v4733 = vpop.f32.mrf.mxu0
      %v4734 = vadd.f32 %v4413, %v4733
      %v4735 = vpop.f32.mrf.mxu0
      %4736 = vmatprep.mubr.f32.mxu0 0.0
      %4737 = vmatmul.mubr.f32.gmra.mxu0 %v4523
      %v4738 = vpop.f32.mrf.mxu0
      %v4739 = vadd.f32 %v4418, %v4738
      %v4740 = vpop.f32.mrf.mxu0
      %4741 = vmatprep.mubr.f32.mxu0 0.0
      %4742 = vmatmul.mubr.f32.gmra.mxu0 %v4526
      %v4743 = vpop.f32.mrf.mxu0
      %v4744 = vadd.f32 %v4423, %v4743
      %v4745 = vpop.f32.mrf.mxu0
      %4746 = vmatprep.mubr.f32.mxu0 0.0
      %4747 = vmatmul.mubr.f32.gmra.mxu0 %v4529
      %v4748 = vpop.f32.mrf.mxu0
      %v4749 = vadd.f32 %v4428, %v4748
      %v4750 = vpop.f32.mrf.mxu0
      %4751 = vmatprep.mubr.f32.mxu0 0.0
      %4752 = vmatmul.mubr.f32.gmra.mxu0 %v4532
      %v4753 = vpop.f32.mrf.mxu0
      %v4754 = vadd.f32 %v4433, %v4753
      %v4755 = vpop.f32.mrf.mxu0
      %4756 = vmatprep.mubr.f32.mxu0 0.0
      %4757 = vmatmul.mubr.f32.gmra.mxu0 %v4535
      %v4758 = vpop.f32.mrf.mxu0
      %v4759 = vadd.f32 %v4438, %v4758
      %v4760 = vpop.f32.mrf.mxu0
      %4761 = vdwg.mxu0
      %v4762 = vld [vmem:[#allocation3 + $0x9] sm:$0xff]
      %v4763 = vld [vmem:[#allocation3 + $0x11] sm:$0xff]
      %v4764 = vld [vmem:[#allocation3 + $0x29] sm:$0xff]
      %v4765 = vld [vmem:[#allocation3 + $0x31] sm:$0xff]
      %v4766 = vld [vmem:[#allocation3 + $0x49] sm:$0xff]
      %v4767 = vld [vmem:[#allocation3 + $0x51] sm:$0xff]
      %v4768 = vld [vmem:[#allocation3 + $0x69] sm:$0xff]
      %v4769 = vld [vmem:[#allocation3 + $0x71] sm:$0xff]
      %v4770 = vld [vmem:[#allocation3 + $0x89] sm:$0xff]
      %v4771 = vld [vmem:[#allocation3 + $0x91] sm:$0xff]
      %v4772 = vld [vmem:[#allocation3 + $0xa9] sm:$0xff]
      %v4773 = vld [vmem:[#allocation3 + $0xb1] sm:$0xff]
      %v4774 = vld [vmem:[#allocation3 + $0xc9] sm:$0xff]
      %v4775 = vld [vmem:[#allocation3 + $0xd1] sm:$0xff]
      %v4776 = vld [vmem:[#allocation3 + $0xe9] sm:$0xff]
      %v4777 = vld [vmem:[#allocation3 + $0xf1] sm:$0xff]
      %v4778 = vld [vmem:[#allocation3 + $0x109] sm:$0xff]
      %v4779 = vld [vmem:[#allocation3 + $0x111] sm:$0xff]
      %v4780 = vld [vmem:[#allocation3 + $0x129] sm:$0xff]
      %v4781 = vld [vmem:[#allocation3 + $0x131] sm:$0xff]
      %v4782 = vld [vmem:[#allocation3 + $0x149] sm:$0xff]
      %v4783 = vld [vmem:[#allocation3 + $0x151] sm:$0xff]
      %v4784 = vld [vmem:[#allocation3 + $0x169] sm:$0xff]
      %v4785 = vld [vmem:[#allocation3 + $0x171] sm:$0xff]
      %v4786 = vld [vmem:[#allocation3 + $0x189] sm:$0xff]
      %v4787 = vld [vmem:[#allocation3 + $0x191] sm:$0xff]
      %v4788 = vld [vmem:[#allocation3 + $0x1a9] sm:$0xff]
      %v4789 = vld [vmem:[#allocation3 + $0x1b1] sm:$0xff]
      %v4790 = vld [vmem:[#allocation3 + $0x1c9] sm:$0xff]
      %v4791 = vld [vmem:[#allocation3 + $0x1d1] sm:$0xff]
      %v4792 = vld [vmem:[#allocation3 + $0x1e9] sm:$0xff]
      %v4793 = vld [vmem:[#allocation3 + $0x1f1] sm:$0xff]
      %v4795 = vsel %vm373, %v4762, 0
      %v4798 = vsel %vm373, %v4763, 0
      %v4801 = vsel %vm373, %v4764, 0
      %v4804 = vsel %vm373, %v4765, 0
      %v4807 = vsel %vm373, %v4766, 0
      %v4810 = vsel %vm373, %v4767, 0
      %v4813 = vsel %vm373, %v4768, 0
      %v4816 = vsel %vm373, %v4769, 0
      %v4819 = vsel %vm373, %v4770, 0
      %v4822 = vsel %vm373, %v4771, 0
      %v4825 = vsel %vm373, %v4772, 0
      %v4828 = vsel %vm373, %v4773, 0
      %v4831 = vsel %vm373, %v4774, 0
      %v4834 = vsel %vm373, %v4775, 0
      %v4837 = vsel %vm373, %v4776, 0
      %v4840 = vsel %vm373, %v4777, 0
      %v4843 = vsel %vm373, %v4778, 0
      %v4846 = vsel %vm373, %v4779, 0
      %v4849 = vsel %vm373, %v4780, 0
      %v4852 = vsel %vm373, %v4781, 0
      %v4855 = vsel %vm373, %v4782, 0
      %v4858 = vsel %vm373, %v4783, 0
      %v4861 = vsel %vm373, %v4784, 0
      %v4864 = vsel %vm373, %v4785, 0
      %v4867 = vsel %vm373, %v4786, 0
      %v4870 = vsel %vm373, %v4787, 0
      %v4873 = vsel %vm373, %v4788, 0
      %v4876 = vsel %vm373, %v4789, 0
      %v4879 = vsel %vm373, %v4790, 0
      %v4882 = vsel %vm373, %v4791, 0
      %v4885 = vsel %vm373, %v4792, 0
      %v4888 = vsel %vm373, %v4793, 0
      %4890 = vmatprep.subr.mxu0 0.0
      %4891 = vmatpush1.msra.mxu0 0.0
      %4892 = vmatprep.subr.mxu0 0.0
      %4893 = vmatpush1.msra.mxu0 0.0
      %4894 = vmatprep.subr.mxu0 0.0
      %4895 = vmatpush1.msra.mxu0 0.0
      %4896 = vmatprep.subr.mxu0 0.0
      %4897 = vmatpush1.msra.mxu0 0.0
      %4898 = vmatprep.subr.mxu0 0.0
      %4899 = vmatpush1.msra.mxu0 0.0
      %4900 = vmatprep.subr.mxu0 0.0
      %4901 = vmatpush1.msra.mxu0 0.0
      %4902 = vmatprep.subr.mxu0 0.0
      %4903 = vmatpush1.msra.mxu0 0.0
      %4904 = vmatprep.subr.mxu0 0.0
      %4905 = vmatpush1.msra.mxu0 0.0
      %4906 = vmatprep.subr.mxu0 0.0
      %4907 = vmatpush1.msra.mxu0 0.0
      %4908 = vmatprep.subr.mxu0 0.0
      %4909 = vmatpush1.msra.mxu0 0.0
      %4910 = vmatprep.subr.mxu0 0.0
      %4911 = vmatpush1.msra.mxu0 0.0
      %4912 = vmatprep.subr.mxu0 0.0
      %4913 = vmatpush1.msra.mxu0 0.0
      %4914 = vmatprep.subr.mxu0 0.0
      %4915 = vmatpush1.msra.mxu0 %v4030
      %4916 = vmatprep.subr.mxu0 0.0
      %4917 = vmatpush1.msra.mxu0 %v4029
      %4918 = vmatprep.subr.mxu0 0.0
      %4919 = vmatpush1.msra.mxu0 %v4028
      %4920 = vmatprep.subr.mxu0 0.0
      %4921 = vmatpush1.msra.mxu0 %v4027
      %4922 = vmatprep.subr.mxu0 0.0
      %4923 = vmatpush2.msra.mxu0 0.0
      %4924 = vmatprep.subr.mxu0 0.0
      %4925 = vmatpush2.msra.mxu0 0.0
      %4926 = vmatprep.subr.mxu0 0.0
      %4927 = vmatpush2.msra.mxu0 0.0
      %4928 = vmatprep.subr.mxu0 0.0
      %4929 = vmatpush2.msra.mxu0 0.0
      %4930 = vmatprep.subr.mxu0 0.0
      %4931 = vmatpush2.msra.mxu0 0.0
      %4932 = vmatprep.subr.mxu0 0.0
      %4933 = vmatpush2.msra.mxu0 0.0
      %4934 = vmatprep.subr.mxu0 0.0
      %4935 = vmatpush2.msra.mxu0 0.0
      %4936 = vmatprep.subr.mxu0 0.0
      %4937 = vmatpush2.msra.mxu0 0.0
      %4938 = vmatprep.subr.mxu0 0.0
      %4939 = vmatpush2.msra.mxu0 0.0
      %4940 = vmatprep.subr.mxu0 0.0
      %4941 = vmatpush2.msra.mxu0 0.0
      %4942 = vmatprep.subr.mxu0 0.0
      %4943 = vmatpush2.msra.mxu0 0.0
      %4944 = vmatprep.subr.mxu0 0.0
      %4945 = vmatpush2.msra.mxu0 0.0
      %4946 = vmatprep.subr.mxu0 0.0
      %4947 = vmatpush2.msra.mxu0 0.0
      %4948 = vmatprep.subr.mxu0 0.0
      %4949 = vmatpush2.msra.mxu0 0.0
      %4950 = vmatprep.subr.mxu0 0.0
      %4951 = vmatpush2.msra.mxu0 0.0
      %4952 = vmatprep.subr.mxu0 0.0
      %4953 = vmatpush2.msra.mxu0 0.0
      %4954 = vmatprep.mubr.f32.mxu0 0.0
      %4955 = vmatmul.mubr.f32.gmra.mxu0 %v4795
      %v4956 = vpop.f32.mrf.mxu0
      %v4957 = vadd.f32 0.0, %v4956
      %v4958 = vpop.f32.mrf.mxu0
      %4959 = vmatprep.mubr.f32.mxu0 0.0
      %4960 = vmatmul.mubr.f32.gmra.mxu0 %v4798
      %v4961 = vpop.f32.mrf.mxu0
      %v4962 = vadd.f32 0.0, %v4961
      %v4963 = vpop.f32.mrf.mxu0
      %4964 = vmatprep.mubr.f32.mxu0 0.0
      %4965 = vmatmul.mubr.f32.gmra.mxu0 %v4801
      %v4966 = vpop.f32.mrf.mxu0
      %v4967 = vadd.f32 0.0, %v4966
      %v4968 = vpop.f32.mrf.mxu0
      %4969 = vmatprep.mubr.f32.mxu0 0.0
      %4970 = vmatmul.mubr.f32.gmra.mxu0 %v4804
      %v4971 = vpop.f32.mrf.mxu0
      %v4972 = vadd.f32 0.0, %v4971
      %v4973 = vpop.f32.mrf.mxu0
      %4974 = vmatprep.mubr.f32.mxu0 0.0
      %4975 = vmatmul.mubr.f32.gmra.mxu0 %v4807
      %v4976 = vpop.f32.mrf.mxu0
      %v4977 = vadd.f32 0.0, %v4976
      %v4978 = vpop.f32.mrf.mxu0
      %4979 = vmatprep.mubr.f32.mxu0 0.0
      %4980 = vmatmul.mubr.f32.gmra.mxu0 %v4810
      %v4981 = vpop.f32.mrf.mxu0
      %v4982 = vadd.f32 0.0, %v4981
      %v4983 = vpop.f32.mrf.mxu0
      %4984 = vmatprep.mubr.f32.mxu0 0.0
      %4985 = vmatmul.mubr.f32.gmra.mxu0 %v4813
      %v4986 = vpop.f32.mrf.mxu0
      %v4987 = vadd.f32 0.0, %v4986
      %v4988 = vpop.f32.mrf.mxu0
      %4989 = vmatprep.mubr.f32.mxu0 0.0
      %4990 = vmatmul.mubr.f32.gmra.mxu0 %v4816
      %v4991 = vpop.f32.mrf.mxu0
      %v4992 = vadd.f32 0.0, %v4991
      %v4993 = vpop.f32.mrf.mxu0
      %4994 = vmatprep.mubr.f32.mxu0 0.0
      %4995 = vmatmul.mubr.f32.gmra.mxu0 %v4819
      %v4996 = vpop.f32.mrf.mxu0
      %v4997 = vadd.f32 0.0, %v4996
      %v4998 = vpop.f32.mrf.mxu0
      %4999 = vmatprep.mubr.f32.mxu0 0.0
      %5000 = vmatmul.mubr.f32.gmra.mxu0 %v4822
      %v5001 = vpop.f32.mrf.mxu0
      %v5002 = vadd.f32 0.0, %v5001
      %v5003 = vpop.f32.mrf.mxu0
      %5004 = vmatprep.mubr.f32.mxu0 0.0
      %5005 = vmatmul.mubr.f32.gmra.mxu0 %v4825
      %v5006 = vpop.f32.mrf.mxu0
      %v5007 = vadd.f32 0.0, %v5006
      %v5008 = vpop.f32.mrf.mxu0
      %5009 = vmatprep.mubr.f32.mxu0 0.0
      %5010 = vmatmul.mubr.f32.gmra.mxu0 %v4828
      %v5011 = vpop.f32.mrf.mxu0
      %v5012 = vadd.f32 0.0, %v5011
      %v5013 = vpop.f32.mrf.mxu0
      %5014 = vmatprep.mubr.f32.mxu0 0.0
      %5015 = vmatmul.mubr.f32.gmra.mxu0 %v4831
      %v5016 = vpop.f32.mrf.mxu0
      %v5017 = vadd.f32 0.0, %v5016
      %v5018 = vpop.f32.mrf.mxu0
      %5019 = vmatprep.mubr.f32.mxu0 0.0
      %5020 = vmatmul.mubr.f32.gmra.mxu0 %v4834
      %v5021 = vpop.f32.mrf.mxu0
      %v5022 = vadd.f32 0.0, %v5021
      %v5023 = vpop.f32.mrf.mxu0
      %5024 = vmatprep.mubr.f32.mxu0 0.0
      %5025 = vmatmul.mubr.f32.gmra.mxu0 %v4837
      %v5026 = vpop.f32.mrf.mxu0
      %v5027 = vadd.f32 0.0, %v5026
      %v5028 = vpop.f32.mrf.mxu0
      %5029 = vmatprep.mubr.f32.mxu0 0.0
      %5030 = vmatmul.mubr.f32.gmra.mxu0 %v4840
      %v5031 = vpop.f32.mrf.mxu0
      %v5032 = vadd.f32 0.0, %v5031
      %v5033 = vpop.f32.mrf.mxu0
      %5034 = vmatprep.mubr.f32.mxu0 0.0
      %5035 = vmatmul.mubr.f32.gmra.mxu0 %v4843
      %v5036 = vpop.f32.mrf.mxu0
      %v5037 = vadd.f32 0.0, %v5036
      %v5038 = vpop.f32.mrf.mxu0
      %5039 = vmatprep.mubr.f32.mxu0 0.0
      %5040 = vmatmul.mubr.f32.gmra.mxu0 %v4846
      %v5041 = vpop.f32.mrf.mxu0
      %v5042 = vadd.f32 0.0, %v5041
      %v5043 = vpop.f32.mrf.mxu0
      %5044 = vmatprep.mubr.f32.mxu0 0.0
      %5045 = vmatmul.mubr.f32.gmra.mxu0 %v4849
      %v5046 = vpop.f32.mrf.mxu0
      %v5047 = vadd.f32 0.0, %v5046
      %v5048 = vpop.f32.mrf.mxu0
      %5049 = vmatprep.mubr.f32.mxu0 0.0
      %5050 = vmatmul.mubr.f32.gmra.mxu0 %v4852
      %v5051 = vpop.f32.mrf.mxu0
      %v5052 = vadd.f32 0.0, %v5051
      %v5053 = vpop.f32.mrf.mxu0
      %5054 = vmatprep.mubr.f32.mxu0 0.0
      %5055 = vmatmul.mubr.f32.gmra.mxu0 %v4855
      %v5056 = vpop.f32.mrf.mxu0
      %v5057 = vadd.f32 0.0, %v5056
      %v5058 = vpop.f32.mrf.mxu0
      %5059 = vmatprep.mubr.f32.mxu0 0.0
      %5060 = vmatmul.mubr.f32.gmra.mxu0 %v4858
      %v5061 = vpop.f32.mrf.mxu0
      %v5062 = vadd.f32 0.0, %v5061
      %v5063 = vpop.f32.mrf.mxu0
      %5064 = vmatprep.mubr.f32.mxu0 0.0
      %5065 = vmatmul.mubr.f32.gmra.mxu0 %v4861
      %v5066 = vpop.f32.mrf.mxu0
      %v5067 = vadd.f32 0.0, %v5066
      %v5068 = vpop.f32.mrf.mxu0
      %5069 = vmatprep.mubr.f32.mxu0 0.0
      %5070 = vmatmul.mubr.f32.gmra.mxu0 %v4864
      %v5071 = vpop.f32.mrf.mxu0
      %v5072 = vadd.f32 0.0, %v5071
      %v5073 = vpop.f32.mrf.mxu0
      %5074 = vmatprep.mubr.f32.mxu0 0.0
      %5075 = vmatmul.mubr.f32.gmra.mxu0 %v4867
      %v5076 = vpop.f32.mrf.mxu0
      %v5077 = vadd.f32 0.0, %v5076
      %v5078 = vpop.f32.mrf.mxu0
      %5079 = vmatprep.mubr.f32.mxu0 0.0
      %5080 = vmatmul.mubr.f32.gmra.mxu0 %v4870
      %v5081 = vpop.f32.mrf.mxu0
      %v5082 = vadd.f32 0.0, %v5081
      %v5083 = vpop.f32.mrf.mxu0
      %5084 = vmatprep.mubr.f32.mxu0 0.0
      %5085 = vmatmul.mubr.f32.gmra.mxu0 %v4873
      %v5086 = vpop.f32.mrf.mxu0
      %v5087 = vadd.f32 0.0, %v5086
      %v5088 = vpop.f32.mrf.mxu0
      %5089 = vmatprep.mubr.f32.mxu0 0.0
      %5090 = vmatmul.mubr.f32.gmra.mxu0 %v4876
      %v5091 = vpop.f32.mrf.mxu0
      %v5092 = vadd.f32 0.0, %v5091
      %v5093 = vpop.f32.mrf.mxu0
      %5094 = vmatprep.mubr.f32.mxu0 0.0
      %5095 = vmatmul.mubr.f32.gmra.mxu0 %v4879
      %v5096 = vpop.f32.mrf.mxu0
      %v5097 = vadd.f32 0.0, %v5096
      %v5098 = vpop.f32.mrf.mxu0
      %5099 = vmatprep.mubr.f32.mxu0 0.0
      %5100 = vmatmul.mubr.f32.gmra.mxu0 %v4882
      %v5101 = vpop.f32.mrf.mxu0
      %v5102 = vadd.f32 0.0, %v5101
      %v5103 = vpop.f32.mrf.mxu0
      %5104 = vmatprep.mubr.f32.mxu0 0.0
      %5105 = vmatmul.mubr.f32.gmra.mxu0 %v4885
      %v5106 = vpop.f32.mrf.mxu0
      %v5107 = vadd.f32 0.0, %v5106
      %v5108 = vpop.f32.mrf.mxu0
      %5109 = vmatprep.mubr.f32.mxu0 0.0
      %5110 = vmatmul.mubr.f32.gmra.mxu0 %v4888
      %v5111 = vpop.f32.mrf.mxu0
      %v5112 = vadd.f32 0.0, %v5111
      %v5113 = vpop.f32.mrf.mxu0
      %5114 = vdwg.mxu0
      %v5115 = vadd.f32 %v4604, %v4957
      %v5116 = vadd.f32 %v4609, %v4962
      %v5117 = vadd.f32 %v4614, %v4967
      %v5118 = vadd.f32 %v4619, %v4972
      %v5119 = vadd.f32 %v4624, %v4977
      %v5120 = vadd.f32 %v4629, %v4982
      %v5121 = vadd.f32 %v4634, %v4987
      %v5122 = vadd.f32 %v4639, %v4992
      %v5123 = vadd.f32 %v4644, %v4997
      %v5124 = vadd.f32 %v4649, %v5002
      %v5125 = vadd.f32 %v4654, %v5007
      %v5126 = vadd.f32 %v4659, %v5012
      %v5127 = vadd.f32 %v4664, %v5017
      %v5128 = vadd.f32 %v4669, %v5022
      %v5129 = vadd.f32 %v4674, %v5027
      %v5130 = vadd.f32 %v4679, %v5032
      %v5131 = vadd.f32 %v4684, %v5037
      %v5132 = vadd.f32 %v4689, %v5042
      %v5133 = vadd.f32 %v4694, %v5047
      %v5134 = vadd.f32 %v4699, %v5052
      %v5135 = vadd.f32 %v4704, %v5057
      %v5136 = vadd.f32 %v4709, %v5062
      %v5137 = vadd.f32 %v4714, %v5067
      %v5138 = vadd.f32 %v4719, %v5072
      %v5139 = vadd.f32 %v4724, %v5077
      %v5140 = vadd.f32 %v4729, %v5082
      %v5141 = vadd.f32 %v4734, %v5087
      %v5142 = vadd.f32 %v4739, %v5092
      %v5143 = vadd.f32 %v4744, %v5097
      %v5144 = vadd.f32 %v4749, %v5102
      %v5145 = vadd.f32 %v4754, %v5107
      %v5146 = vadd.f32 %v4759, %v5112
      %v5147 = vld [vmem:[%s383 + $0x7] sm:$0xff]
      %v5148 = vld [vmem:[%s383 + $0xf] sm:$0xff]
      %v5149 = vld [vmem:[%s383 + $0x27] sm:$0xff]
      %v5150 = vld [vmem:[%s383 + $0x2f] sm:$0xff]
      %v5151 = vld [vmem:[%s383 + $0x47] sm:$0xff]
      %v5152 = vld [vmem:[%s383 + $0x4f] sm:$0xff]
      %v5153 = vld [vmem:[%s383 + $0x67] sm:$0xff]
      %v5154 = vld [vmem:[%s383 + $0x6f] sm:$0xff]
      %v5155 = vld [vmem:[%s383 + $0x87] sm:$0xff]
      %v5156 = vld [vmem:[%s383 + $0x8f] sm:$0xff]
      %v5157 = vld [vmem:[%s383 + $0xa7] sm:$0xff]
      %v5158 = vld [vmem:[%s383 + $0xaf] sm:$0xff]
      %v5159 = vld [vmem:[%s383 + $0xc7] sm:$0xff]
      %v5160 = vld [vmem:[%s383 + $0xcf] sm:$0xff]
      %v5161 = vld [vmem:[%s383 + $0xe7] sm:$0xff]
      %v5162 = vld [vmem:[%s383 + $0xef] sm:$0xff]
      %v5163 = vld [vmem:[%s383 + $0x107] sm:$0xff]
      %v5164 = vld [vmem:[%s383 + $0x10f] sm:$0xff]
      %v5165 = vld [vmem:[%s383 + $0x127] sm:$0xff]
      %v5166 = vld [vmem:[%s383 + $0x12f] sm:$0xff]
      %v5167 = vld [vmem:[%s383 + $0x147] sm:$0xff]
      %v5168 = vld [vmem:[%s383 + $0x14f] sm:$0xff]
      %v5169 = vld [vmem:[%s383 + $0x167] sm:$0xff]
      %v5170 = vld [vmem:[%s383 + $0x16f] sm:$0xff]
      %v5171 = vld [vmem:[%s383 + $0x187] sm:$0xff]
      %v5172 = vld [vmem:[%s383 + $0x18f] sm:$0xff]
      %v5173 = vld [vmem:[%s383 + $0x1a7] sm:$0xff]
      %v5174 = vld [vmem:[%s383 + $0x1af] sm:$0xff]
      %v5175 = vld [vmem:[%s383 + $0x1c7] sm:$0xff]
      %v5176 = vld [vmem:[%s383 + $0x1cf] sm:$0xff]
      %v5177 = vld [vmem:[%s383 + $0x1e7] sm:$0xff]
      %v5178 = vld [vmem:[%s383 + $0x1ef] sm:$0xff]
      %v5180 = vsel %vm373, %v5147, 0
      %v5183 = vsel %vm373, %v5148, 0
      %v5186 = vsel %vm373, %v5149, 0
      %v5189 = vsel %vm373, %v5150, 0
      %v5192 = vsel %vm373, %v5151, 0
      %v5195 = vsel %vm373, %v5152, 0
      %v5198 = vsel %vm373, %v5153, 0
      %v5201 = vsel %vm373, %v5154, 0
      %v5204 = vsel %vm373, %v5155, 0
      %v5207 = vsel %vm373, %v5156, 0
      %v5210 = vsel %vm373, %v5157, 0
      %v5213 = vsel %vm373, %v5158, 0
      %v5216 = vsel %vm373, %v5159, 0
      %v5219 = vsel %vm373, %v5160, 0
      %v5222 = vsel %vm373, %v5161, 0
      %v5225 = vsel %vm373, %v5162, 0
      %v5228 = vsel %vm373, %v5163, 0
      %v5231 = vsel %vm373, %v5164, 0
      %v5234 = vsel %vm373, %v5165, 0
      %v5237 = vsel %vm373, %v5166, 0
      %v5240 = vsel %vm373, %v5167, 0
      %v5243 = vsel %vm373, %v5168, 0
      %v5246 = vsel %vm373, %v5169, 0
      %v5249 = vsel %vm373, %v5170, 0
      %v5252 = vsel %vm373, %v5171, 0
      %v5255 = vsel %vm373, %v5172, 0
      %v5258 = vsel %vm373, %v5173, 0
      %v5261 = vsel %vm373, %v5174, 0
      %v5264 = vsel %vm373, %v5175, 0
      %v5267 = vsel %vm373, %v5176, 0
      %v5270 = vsel %vm373, %v5177, 0
      %v5273 = vsel %vm373, %v5178, 0
      %5275 = vmatprep.subr.mxu0 0.0
      %5276 = vmatpush1.msra.mxu0 0.0
      %5277 = vmatprep.subr.mxu0 0.0
      %5278 = vmatpush1.msra.mxu0 0.0
      %5279 = vmatprep.subr.mxu0 0.0
      %5280 = vmatpush1.msra.mxu0 0.0
      %5281 = vmatprep.subr.mxu0 0.0
      %5282 = vmatpush1.msra.mxu0 0.0
      %5283 = vmatprep.subr.mxu0 0.0
      %5284 = vmatpush1.msra.mxu0 0.0
      %5285 = vmatprep.subr.mxu0 0.0
      %5286 = vmatpush1.msra.mxu0 0.0
      %5287 = vmatprep.subr.mxu0 0.0
      %5288 = vmatpush1.msra.mxu0 0.0
      %5289 = vmatprep.subr.mxu0 0.0
      %5290 = vmatpush1.msra.mxu0 0.0
      %5291 = vmatprep.subr.mxu0 0.0
      %5292 = vmatpush1.msra.mxu0 0.0
      %5293 = vmatprep.subr.mxu0 0.0
      %5294 = vmatpush1.msra.mxu0 0.0
      %5295 = vmatprep.subr.mxu0 0.0
      %5296 = vmatpush1.msra.mxu0 0.0
      %5297 = vmatprep.subr.mxu0 0.0
      %5298 = vmatpush1.msra.mxu0 0.0
      %5299 = vmatprep.subr.mxu0 0.0
      %5300 = vmatpush1.msra.mxu0 %v4034
      %5301 = vmatprep.subr.mxu0 0.0
      %5302 = vmatpush1.msra.mxu0 %v4033
      %5303 = vmatprep.subr.mxu0 0.0
      %5304 = vmatpush1.msra.mxu0 %v4032
      %5305 = vmatprep.subr.mxu0 0.0
      %5306 = vmatpush1.msra.mxu0 %v4031
      %5307 = vmatprep.subr.mxu0 0.0
      %5308 = vmatpush2.msra.mxu0 0.0
      %5309 = vmatprep.subr.mxu0 0.0
      %5310 = vmatpush2.msra.mxu0 0.0
      %5311 = vmatprep.subr.mxu0 0.0
      %5312 = vmatpush2.msra.mxu0 0.0
      %5313 = vmatprep.subr.mxu0 0.0
      %5314 = vmatpush2.msra.mxu0 0.0
      %5315 = vmatprep.subr.mxu0 0.0
      %5316 = vmatpush2.msra.mxu0 0.0
      %5317 = vmatprep.subr.mxu0 0.0
      %5318 = vmatpush2.msra.mxu0 0.0
      %5319 = vmatprep.subr.mxu0 0.0
      %5320 = vmatpush2.msra.mxu0 0.0
      %5321 = vmatprep.subr.mxu0 0.0
      %5322 = vmatpush2.msra.mxu0 0.0
      %5323 = vmatprep.subr.mxu0 0.0
      %5324 = vmatpush2.msra.mxu0 0.0
      %5325 = vmatprep.subr.mxu0 0.0
      %5326 = vmatpush2.msra.mxu0 0.0
      %5327 = vmatprep.subr.mxu0 0.0
      %5328 = vmatpush2.msra.mxu0 0.0
      %5329 = vmatprep.subr.mxu0 0.0
      %5330 = vmatpush2.msra.mxu0 0.0
      %5331 = vmatprep.subr.mxu0 0.0
      %5332 = vmatpush2.msra.mxu0 0.0
      %5333 = vmatprep.subr.mxu0 0.0
      %5334 = vmatpush2.msra.mxu0 0.0
      %5335 = vmatprep.subr.mxu0 0.0
      %5336 = vmatpush2.msra.mxu0 0.0
      %5337 = vmatprep.subr.mxu0 0.0
      %5338 = vmatpush2.msra.mxu0 0.0
      %5339 = vmatprep.mubr.f32.mxu0 0.0
      %5340 = vmatmul.mubr.f32.gmra.mxu0 %v5180
      %v5341 = vpop.f32.mrf.mxu0
      %v5342 = vadd.f32 0.0, %v5341
      %v5343 = vpop.f32.mrf.mxu0
      %5344 = vmatprep.mubr.f32.mxu0 0.0
      %5345 = vmatmul.mubr.f32.gmra.mxu0 %v5183
      %v5346 = vpop.f32.mrf.mxu0
      %v5347 = vadd.f32 0.0, %v5346
      %v5348 = vpop.f32.mrf.mxu0
      %5349 = vmatprep.mubr.f32.mxu0 0.0
      %5350 = vmatmul.mubr.f32.gmra.mxu0 %v5186
      %v5351 = vpop.f32.mrf.mxu0
      %v5352 = vadd.f32 0.0, %v5351
      %v5353 = vpop.f32.mrf.mxu0
      %5354 = vmatprep.mubr.f32.mxu0 0.0
      %5355 = vmatmul.mubr.f32.gmra.mxu0 %v5189
      %v5356 = vpop.f32.mrf.mxu0
      %v5357 = vadd.f32 0.0, %v5356
      %v5358 = vpop.f32.mrf.mxu0
      %5359 = vmatprep.mubr.f32.mxu0 0.0
      %5360 = vmatmul.mubr.f32.gmra.mxu0 %v5192
      %v5361 = vpop.f32.mrf.mxu0
      %v5362 = vadd.f32 0.0, %v5361
      %v5363 = vpop.f32.mrf.mxu0
      %5364 = vmatprep.mubr.f32.mxu0 0.0
      %5365 = vmatmul.mubr.f32.gmra.mxu0 %v5195
      %v5366 = vpop.f32.mrf.mxu0
      %v5367 = vadd.f32 0.0, %v5366
      %v5368 = vpop.f32.mrf.mxu0
      %5369 = vmatprep.mubr.f32.mxu0 0.0
      %5370 = vmatmul.mubr.f32.gmra.mxu0 %v5198
      %v5371 = vpop.f32.mrf.mxu0
      %v5372 = vadd.f32 0.0, %v5371
      %v5373 = vpop.f32.mrf.mxu0
      %5374 = vmatprep.mubr.f32.mxu0 0.0
      %5375 = vmatmul.mubr.f32.gmra.mxu0 %v5201
      %v5376 = vpop.f32.mrf.mxu0
      %v5377 = vadd.f32 0.0, %v5376
      %v5378 = vpop.f32.mrf.mxu0
      %5379 = vmatprep.mubr.f32.mxu0 0.0
      %5380 = vmatmul.mubr.f32.gmra.mxu0 %v5204
      %v5381 = vpop.f32.mrf.mxu0
      %v5382 = vadd.f32 0.0, %v5381
      %v5383 = vpop.f32.mrf.mxu0
      %5384 = vmatprep.mubr.f32.mxu0 0.0
      %5385 = vmatmul.mubr.f32.gmra.mxu0 %v5207
      %v5386 = vpop.f32.mrf.mxu0
      %v5387 = vadd.f32 0.0, %v5386
      %v5388 = vpop.f32.mrf.mxu0
      %5389 = vmatprep.mubr.f32.mxu0 0.0
      %5390 = vmatmul.mubr.f32.gmra.mxu0 %v5210
      %v5391 = vpop.f32.mrf.mxu0
      %v5392 = vadd.f32 0.0, %v5391
      %v5393 = vpop.f32.mrf.mxu0
      %5394 = vmatprep.mubr.f32.mxu0 0.0
      %5395 = vmatmul.mubr.f32.gmra.mxu0 %v5213
      %v5396 = vpop.f32.mrf.mxu0
      %v5397 = vadd.f32 0.0, %v5396
      %v5398 = vpop.f32.mrf.mxu0
      %5399 = vmatprep.mubr.f32.mxu0 0.0
      %5400 = vmatmul.mubr.f32.gmra.mxu0 %v5216
      %v5401 = vpop.f32.mrf.mxu0
      %v5402 = vadd.f32 0.0, %v5401
      %v5403 = vpop.f32.mrf.mxu0
      %5404 = vmatprep.mubr.f32.mxu0 0.0
      %5405 = vmatmul.mubr.f32.gmra.mxu0 %v5219
      %v5406 = vpop.f32.mrf.mxu0
      %v5407 = vadd.f32 0.0, %v5406
      %v5408 = vpop.f32.mrf.mxu0
      %5409 = vmatprep.mubr.f32.mxu0 0.0
      %5410 = vmatmul.mubr.f32.gmra.mxu0 %v5222
      %v5411 = vpop.f32.mrf.mxu0
      %v5412 = vadd.f32 0.0, %v5411
      %v5413 = vpop.f32.mrf.mxu0
      %5414 = vmatprep.mubr.f32.mxu0 0.0
      %5415 = vmatmul.mubr.f32.gmra.mxu0 %v5225
      %v5416 = vpop.f32.mrf.mxu0
      %v5417 = vadd.f32 0.0, %v5416
      %v5418 = vpop.f32.mrf.mxu0
      %5419 = vmatprep.mubr.f32.mxu0 0.0
      %5420 = vmatmul.mubr.f32.gmra.mxu0 %v5228
      %v5421 = vpop.f32.mrf.mxu0
      %v5422 = vadd.f32 0.0, %v5421
      %v5423 = vpop.f32.mrf.mxu0
      %5424 = vmatprep.mubr.f32.mxu0 0.0
      %5425 = vmatmul.mubr.f32.gmra.mxu0 %v5231
      %v5426 = vpop.f32.mrf.mxu0
      %v5427 = vadd.f32 0.0, %v5426
      %v5428 = vpop.f32.mrf.mxu0
      %5429 = vmatprep.mubr.f32.mxu0 0.0
      %5430 = vmatmul.mubr.f32.gmra.mxu0 %v5234
      %v5431 = vpop.f32.mrf.mxu0
      %v5432 = vadd.f32 0.0, %v5431
      %v5433 = vpop.f32.mrf.mxu0
      %5434 = vmatprep.mubr.f32.mxu0 0.0
      %5435 = vmatmul.mubr.f32.gmra.mxu0 %v5237
      %v5436 = vpop.f32.mrf.mxu0
      %v5437 = vadd.f32 0.0, %v5436
      %v5438 = vpop.f32.mrf.mxu0
      %5439 = vmatprep.mubr.f32.mxu0 0.0
      %5440 = vmatmul.mubr.f32.gmra.mxu0 %v5240
      %v5441 = vpop.f32.mrf.mxu0
      %v5442 = vadd.f32 0.0, %v5441
      %v5443 = vpop.f32.mrf.mxu0
      %5444 = vmatprep.mubr.f32.mxu0 0.0
      %5445 = vmatmul.mubr.f32.gmra.mxu0 %v5243
      %v5446 = vpop.f32.mrf.mxu0
      %v5447 = vadd.f32 0.0, %v5446
      %v5448 = vpop.f32.mrf.mxu0
      %5449 = vmatprep.mubr.f32.mxu0 0.0
      %5450 = vmatmul.mubr.f32.gmra.mxu0 %v5246
      %v5451 = vpop.f32.mrf.mxu0
      %v5452 = vadd.f32 0.0, %v5451
      %v5453 = vpop.f32.mrf.mxu0
      %5454 = vmatprep.mubr.f32.mxu0 0.0
      %5455 = vmatmul.mubr.f32.gmra.mxu0 %v5249
      %v5456 = vpop.f32.mrf.mxu0
      %v5457 = vadd.f32 0.0, %v5456
      %v5458 = vpop.f32.mrf.mxu0
      %5459 = vmatprep.mubr.f32.mxu0 0.0
      %5460 = vmatmul.mubr.f32.gmra.mxu0 %v5252
      %v5461 = vpop.f32.mrf.mxu0
      %v5462 = vadd.f32 0.0, %v5461
      %v5463 = vpop.f32.mrf.mxu0
      %5464 = vmatprep.mubr.f32.mxu0 0.0
      %5465 = vmatmul.mubr.f32.gmra.mxu0 %v5255
      %v5466 = vpop.f32.mrf.mxu0
      %v5467 = vadd.f32 0.0, %v5466
      %v5468 = vpop.f32.mrf.mxu0
      %5469 = vmatprep.mubr.f32.mxu0 0.0
      %5470 = vmatmul.mubr.f32.gmra.mxu0 %v5258
      %v5471 = vpop.f32.mrf.mxu0
      %v5472 = vadd.f32 0.0, %v5471
      %v5473 = vpop.f32.mrf.mxu0
      %5474 = vmatprep.mubr.f32.mxu0 0.0
      %5475 = vmatmul.mubr.f32.gmra.mxu0 %v5261
      %v5476 = vpop.f32.mrf.mxu0
      %v5477 = vadd.f32 0.0, %v5476
      %v5478 = vpop.f32.mrf.mxu0
      %5479 = vmatprep.mubr.f32.mxu0 0.0
      %5480 = vmatmul.mubr.f32.gmra.mxu0 %v5264
      %v5481 = vpop.f32.mrf.mxu0
      %v5482 = vadd.f32 0.0, %v5481
      %v5483 = vpop.f32.mrf.mxu0
      %5484 = vmatprep.mubr.f32.mxu0 0.0
      %5485 = vmatmul.mubr.f32.gmra.mxu0 %v5267
      %v5486 = vpop.f32.mrf.mxu0
      %v5487 = vadd.f32 0.0, %v5486
      %v5488 = vpop.f32.mrf.mxu0
      %5489 = vmatprep.mubr.f32.mxu0 0.0
      %5490 = vmatmul.mubr.f32.gmra.mxu0 %v5270
      %v5491 = vpop.f32.mrf.mxu0
      %v5492 = vadd.f32 0.0, %v5491
      %v5493 = vpop.f32.mrf.mxu0
      %5494 = vmatprep.mubr.f32.mxu0 0.0
      %5495 = vmatmul.mubr.f32.gmra.mxu0 %v5273
      %v5496 = vpop.f32.mrf.mxu0
      %v5497 = vadd.f32 0.0, %v5496
      %v5498 = vpop.f32.mrf.mxu0
      %5499 = vdwg.mxu0
      %v5500 = vadd.f32 %v5115, %v5342
      %v5501 = vadd.f32 %v5116, %v5347
      %v5502 = vadd.f32 %v5117, %v5352
      %v5503 = vadd.f32 %v5118, %v5357
      %v5504 = vadd.f32 %v5119, %v5362
      %v5505 = vadd.f32 %v5120, %v5367
      %v5506 = vadd.f32 %v5121, %v5372
      %v5507 = vadd.f32 %v5122, %v5377
      %v5508 = vadd.f32 %v5123, %v5382
      %v5509 = vadd.f32 %v5124, %v5387
      %v5510 = vadd.f32 %v5125, %v5392
      %v5511 = vadd.f32 %v5126, %v5397
      %v5512 = vadd.f32 %v5127, %v5402
      %v5513 = vadd.f32 %v5128, %v5407
      %v5514 = vadd.f32 %v5129, %v5412
      %v5515 = vadd.f32 %v5130, %v5417
      %v5516 = vadd.f32 %v5131, %v5422
      %v5517 = vadd.f32 %v5132, %v5427
      %v5518 = vadd.f32 %v5133, %v5432
      %v5519 = vadd.f32 %v5134, %v5437
      %v5520 = vadd.f32 %v5135, %v5442
      %v5521 = vadd.f32 %v5136, %v5447
      %v5522 = vadd.f32 %v5137, %v5452
      %v5523 = vadd.f32 %v5138, %v5457
      %v5524 = vadd.f32 %v5139, %v5462
      %v5525 = vadd.f32 %v5140, %v5467
      %v5526 = vadd.f32 %v5141, %v5472
      %v5527 = vadd.f32 %v5142, %v5477
      %v5528 = vadd.f32 %v5143, %v5482
      %v5529 = vadd.f32 %v5144, %v5487
      %v5530 = vadd.f32 %v5145, %v5492
      %v5531 = vadd.f32 %v5146, %v5497
      %v5532 = vld [vmem:[%s383 + $0x8] sm:$0xff]
      %v5533 = vld [vmem:[%s383 + $0x10] sm:$0xff]
      %v5534 = vld [vmem:[%s383 + $0x28] sm:$0xff]
      %v5535 = vld [vmem:[%s383 + $0x30] sm:$0xff]
      %v5536 = vld [vmem:[%s383 + $0x48] sm:$0xff]
      %v5537 = vld [vmem:[%s383 + $0x50] sm:$0xff]
      %v5538 = vld [vmem:[%s383 + $0x68] sm:$0xff]
      %v5539 = vld [vmem:[%s383 + $0x70] sm:$0xff]
      %v5540 = vld [vmem:[%s383 + $0x88] sm:$0xff]
      %v5541 = vld [vmem:[%s383 + $0x90] sm:$0xff]
      %v5542 = vld [vmem:[%s383 + $0xa8] sm:$0xff]
      %v5543 = vld [vmem:[%s383 + $0xb0] sm:$0xff]
      %v5544 = vld [vmem:[%s383 + $0xc8] sm:$0xff]
      %v5545 = vld [vmem:[%s383 + $0xd0] sm:$0xff]
      %v5546 = vld [vmem:[%s383 + $0xe8] sm:$0xff]
      %v5547 = vld [vmem:[%s383 + $0xf0] sm:$0xff]
      %v5548 = vld [vmem:[%s383 + $0x108] sm:$0xff]
      %v5549 = vld [vmem:[%s383 + $0x110] sm:$0xff]
      %v5550 = vld [vmem:[%s383 + $0x128] sm:$0xff]
      %v5551 = vld [vmem:[%s383 + $0x130] sm:$0xff]
      %v5552 = vld [vmem:[%s383 + $0x148] sm:$0xff]
      %v5553 = vld [vmem:[%s383 + $0x150] sm:$0xff]
      %v5554 = vld [vmem:[%s383 + $0x168] sm:$0xff]
      %v5555 = vld [vmem:[%s383 + $0x170] sm:$0xff]
      %v5556 = vld [vmem:[%s383 + $0x188] sm:$0xff]
      %v5557 = vld [vmem:[%s383 + $0x190] sm:$0xff]
      %v5558 = vld [vmem:[%s383 + $0x1a8] sm:$0xff]
      %v5559 = vld [vmem:[%s383 + $0x1b0] sm:$0xff]
      %v5560 = vld [vmem:[%s383 + $0x1c8] sm:$0xff]
      %v5561 = vld [vmem:[%s383 + $0x1d0] sm:$0xff]
      %v5562 = vld [vmem:[%s383 + $0x1e8] sm:$0xff]
      %v5563 = vld [vmem:[%s383 + $0x1f0] sm:$0xff]
      %v5565 = vsel %vm373, %v5532, 0
      %v5568 = vsel %vm373, %v5533, 0
      %v5571 = vsel %vm373, %v5534, 0
      %v5574 = vsel %vm373, %v5535, 0
      %v5577 = vsel %vm373, %v5536, 0
      %v5580 = vsel %vm373, %v5537, 0
      %v5583 = vsel %vm373, %v5538, 0
      %v5586 = vsel %vm373, %v5539, 0
      %v5589 = vsel %vm373, %v5540, 0
      %v5592 = vsel %vm373, %v5541, 0
      %v5595 = vsel %vm373, %v5542, 0
      %v5598 = vsel %vm373, %v5543, 0
      %v5601 = vsel %vm373, %v5544, 0
      %v5604 = vsel %vm373, %v5545, 0
      %v5607 = vsel %vm373, %v5546, 0
      %v5610 = vsel %vm373, %v5547, 0
      %v5613 = vsel %vm373, %v5548, 0
      %v5616 = vsel %vm373, %v5549, 0
      %v5619 = vsel %vm373, %v5550, 0
      %v5622 = vsel %vm373, %v5551, 0
      %v5625 = vsel %vm373, %v5552, 0
      %v5628 = vsel %vm373, %v5553, 0
      %v5631 = vsel %vm373, %v5554, 0
      %v5634 = vsel %vm373, %v5555, 0
      %v5637 = vsel %vm373, %v5556, 0
      %v5640 = vsel %vm373, %v5557, 0
      %v5643 = vsel %vm373, %v5558, 0
      %v5646 = vsel %vm373, %v5559, 0
      %v5649 = vsel %vm373, %v5560, 0
      %v5652 = vsel %vm373, %v5561, 0
      %v5655 = vsel %vm373, %v5562, 0
      %v5658 = vsel %vm373, %v5563, 0
      %5660 = vmatprep.subr.mxu0 0.0
      %5661 = vmatpush1.msra.mxu0 0.0
      %5662 = vmatprep.subr.mxu0 0.0
      %5663 = vmatpush1.msra.mxu0 0.0
      %5664 = vmatprep.subr.mxu0 0.0
      %5665 = vmatpush1.msra.mxu0 0.0
      %5666 = vmatprep.subr.mxu0 0.0
      %5667 = vmatpush1.msra.mxu0 0.0
      %5668 = vmatprep.subr.mxu0 0.0
      %5669 = vmatpush1.msra.mxu0 0.0
      %5670 = vmatprep.subr.mxu0 0.0
      %5671 = vmatpush1.msra.mxu0 0.0
      %5672 = vmatprep.subr.mxu0 0.0
      %5673 = vmatpush1.msra.mxu0 0.0
      %5674 = vmatprep.subr.mxu0 0.0
      %5675 = vmatpush1.msra.mxu0 0.0
      %5676 = vmatprep.subr.mxu0 0.0
      %5677 = vmatpush1.msra.mxu0 0.0
      %5678 = vmatprep.subr.mxu0 0.0
      %5679 = vmatpush1.msra.mxu0 0.0
      %5680 = vmatprep.subr.mxu0 0.0
      %5681 = vmatpush1.msra.mxu0 0.0
      %5682 = vmatprep.subr.mxu0 0.0
      %5683 = vmatpush1.msra.mxu0 0.0
      %5684 = vmatprep.subr.mxu0 0.0
      %5685 = vmatpush1.msra.mxu0 %v4038
      %5686 = vmatprep.subr.mxu0 0.0
      %5687 = vmatpush1.msra.mxu0 %v4037
      %5688 = vmatprep.subr.mxu0 0.0
      %5689 = vmatpush1.msra.mxu0 %v4036
      %5690 = vmatprep.subr.mxu0 0.0
      %5691 = vmatpush1.msra.mxu0 %v4035
      %5692 = vmatprep.subr.mxu0 0.0
      %5693 = vmatpush2.msra.mxu0 0.0
      %5694 = vmatprep.subr.mxu0 0.0
      %5695 = vmatpush2.msra.mxu0 0.0
      %5696 = vmatprep.subr.mxu0 0.0
      %5697 = vmatpush2.msra.mxu0 0.0
      %5698 = vmatprep.subr.mxu0 0.0
      %5699 = vmatpush2.msra.mxu0 0.0
      %5700 = vmatprep.subr.mxu0 0.0
      %5701 = vmatpush2.msra.mxu0 0.0
      %5702 = vmatprep.subr.mxu0 0.0
      %5703 = vmatpush2.msra.mxu0 0.0
      %5704 = vmatprep.subr.mxu0 0.0
      %5705 = vmatpush2.msra.mxu0 0.0
      %5706 = vmatprep.subr.mxu0 0.0
      %5707 = vmatpush2.msra.mxu0 0.0
      %5708 = vmatprep.subr.mxu0 0.0
      %5709 = vmatpush2.msra.mxu0 0.0
      %5710 = vmatprep.subr.mxu0 0.0
      %5711 = vmatpush2.msra.mxu0 0.0
      %5712 = vmatprep.subr.mxu0 0.0
      %5713 = vmatpush2.msra.mxu0 0.0
      %5714 = vmatprep.subr.mxu0 0.0
      %5715 = vmatpush2.msra.mxu0 0.0
      %5716 = vmatprep.subr.mxu0 0.0
      %5717 = vmatpush2.msra.mxu0 0.0
      %5718 = vmatprep.subr.mxu0 0.0
      %5719 = vmatpush2.msra.mxu0 0.0
      %5720 = vmatprep.subr.mxu0 0.0
      %5721 = vmatpush2.msra.mxu0 0.0
      %5722 = vmatprep.subr.mxu0 0.0
      %5723 = vmatpush2.msra.mxu0 0.0
      %5724 = vmatprep.mubr.f32.mxu0 0.0
      %5725 = vmatmul.mubr.f32.gmra.mxu0 %v5565
      %v5726 = vpop.f32.mrf.mxu0
      %v5727 = vadd.f32 0.0, %v5726
      %v5728 = vpop.f32.mrf.mxu0
      %5729 = vmatprep.mubr.f32.mxu0 0.0
      %5730 = vmatmul.mubr.f32.gmra.mxu0 %v5568
      %v5731 = vpop.f32.mrf.mxu0
      %v5732 = vadd.f32 0.0, %v5731
      %v5733 = vpop.f32.mrf.mxu0
      %5734 = vmatprep.mubr.f32.mxu0 0.0
      %5735 = vmatmul.mubr.f32.gmra.mxu0 %v5571
      %v5736 = vpop.f32.mrf.mxu0
      %v5737 = vadd.f32 0.0, %v5736
      %v5738 = vpop.f32.mrf.mxu0
      %5739 = vmatprep.mubr.f32.mxu0 0.0
      %5740 = vmatmul.mubr.f32.gmra.mxu0 %v5574
      %v5741 = vpop.f32.mrf.mxu0
      %v5742 = vadd.f32 0.0, %v5741
      %v5743 = vpop.f32.mrf.mxu0
      %5744 = vmatprep.mubr.f32.mxu0 0.0
      %5745 = vmatmul.mubr.f32.gmra.mxu0 %v5577
      %v5746 = vpop.f32.mrf.mxu0
      %v5747 = vadd.f32 0.0, %v5746
      %v5748 = vpop.f32.mrf.mxu0
      %5749 = vmatprep.mubr.f32.mxu0 0.0
      %5750 = vmatmul.mubr.f32.gmra.mxu0 %v5580
      %v5751 = vpop.f32.mrf.mxu0
      %v5752 = vadd.f32 0.0, %v5751
      %v5753 = vpop.f32.mrf.mxu0
      %5754 = vmatprep.mubr.f32.mxu0 0.0
      %5755 = vmatmul.mubr.f32.gmra.mxu0 %v5583
      %v5756 = vpop.f32.mrf.mxu0
      %v5757 = vadd.f32 0.0, %v5756
      %v5758 = vpop.f32.mrf.mxu0
      %5759 = vmatprep.mubr.f32.mxu0 0.0
      %5760 = vmatmul.mubr.f32.gmra.mxu0 %v5586
      %v5761 = vpop.f32.mrf.mxu0
      %v5762 = vadd.f32 0.0, %v5761
      %v5763 = vpop.f32.mrf.mxu0
      %5764 = vmatprep.mubr.f32.mxu0 0.0
      %5765 = vmatmul.mubr.f32.gmra.mxu0 %v5589
      %v5766 = vpop.f32.mrf.mxu0
      %v5767 = vadd.f32 0.0, %v5766
      %v5768 = vpop.f32.mrf.mxu0
      %5769 = vmatprep.mubr.f32.mxu0 0.0
      %5770 = vmatmul.mubr.f32.gmra.mxu0 %v5592
      %v5771 = vpop.f32.mrf.mxu0
      %v5772 = vadd.f32 0.0, %v5771
      %v5773 = vpop.f32.mrf.mxu0
      %5774 = vmatprep.mubr.f32.mxu0 0.0
      %5775 = vmatmul.mubr.f32.gmra.mxu0 %v5595
      %v5776 = vpop.f32.mrf.mxu0
      %v5777 = vadd.f32 0.0, %v5776
      %v5778 = vpop.f32.mrf.mxu0
      %5779 = vmatprep.mubr.f32.mxu0 0.0
      %5780 = vmatmul.mubr.f32.gmra.mxu0 %v5598
      %v5781 = vpop.f32.mrf.mxu0
      %v5782 = vadd.f32 0.0, %v5781
      %v5783 = vpop.f32.mrf.mxu0
      %5784 = vmatprep.mubr.f32.mxu0 0.0
      %5785 = vmatmul.mubr.f32.gmra.mxu0 %v5601
      %v5786 = vpop.f32.mrf.mxu0
      %v5787 = vadd.f32 0.0, %v5786
      %v5788 = vpop.f32.mrf.mxu0
      %5789 = vmatprep.mubr.f32.mxu0 0.0
      %5790 = vmatmul.mubr.f32.gmra.mxu0 %v5604
      %v5791 = vpop.f32.mrf.mxu0
      %v5792 = vadd.f32 0.0, %v5791
      %v5793 = vpop.f32.mrf.mxu0
      %5794 = vmatprep.mubr.f32.mxu0 0.0
      %5795 = vmatmul.mubr.f32.gmra.mxu0 %v5607
      %v5796 = vpop.f32.mrf.mxu0
      %v5797 = vadd.f32 0.0, %v5796
      %v5798 = vpop.f32.mrf.mxu0
      %5799 = vmatprep.mubr.f32.mxu0 0.0
      %5800 = vmatmul.mubr.f32.gmra.mxu0 %v5610
      %v5801 = vpop.f32.mrf.mxu0
      %v5802 = vadd.f32 0.0, %v5801
      %v5803 = vpop.f32.mrf.mxu0
      %5804 = vmatprep.mubr.f32.mxu0 0.0
      %5805 = vmatmul.mubr.f32.gmra.mxu0 %v5613
      %v5806 = vpop.f32.mrf.mxu0
      %v5807 = vadd.f32 0.0, %v5806
      %v5808 = vpop.f32.mrf.mxu0
      %5809 = vmatprep.mubr.f32.mxu0 0.0
      %5810 = vmatmul.mubr.f32.gmra.mxu0 %v5616
      %v5811 = vpop.f32.mrf.mxu0
      %v5812 = vadd.f32 0.0, %v5811
      %v5813 = vpop.f32.mrf.mxu0
      %5814 = vmatprep.mubr.f32.mxu0 0.0
      %5815 = vmatmul.mubr.f32.gmra.mxu0 %v5619
      %v5816 = vpop.f32.mrf.mxu0
      %v5817 = vadd.f32 0.0, %v5816
      %v5818 = vpop.f32.mrf.mxu0
      %5819 = vmatprep.mubr.f32.mxu0 0.0
      %5820 = vmatmul.mubr.f32.gmra.mxu0 %v5622
      %v5821 = vpop.f32.mrf.mxu0
      %v5822 = vadd.f32 0.0, %v5821
      %v5823 = vpop.f32.mrf.mxu0
      %5824 = vmatprep.mubr.f32.mxu0 0.0
      %5825 = vmatmul.mubr.f32.gmra.mxu0 %v5625
      %v5826 = vpop.f32.mrf.mxu0
      %v5827 = vadd.f32 0.0, %v5826
      %v5828 = vpop.f32.mrf.mxu0
      %5829 = vmatprep.mubr.f32.mxu0 0.0
      %5830 = vmatmul.mubr.f32.gmra.mxu0 %v5628
      %v5831 = vpop.f32.mrf.mxu0
      %v5832 = vadd.f32 0.0, %v5831
      %v5833 = vpop.f32.mrf.mxu0
      %5834 = vmatprep.mubr.f32.mxu0 0.0
      %5835 = vmatmul.mubr.f32.gmra.mxu0 %v5631
      %v5836 = vpop.f32.mrf.mxu0
      %v5837 = vadd.f32 0.0, %v5836
      %v5838 = vpop.f32.mrf.mxu0
      %5839 = vmatprep.mubr.f32.mxu0 0.0
      %5840 = vmatmul.mubr.f32.gmra.mxu0 %v5634
      %v5841 = vpop.f32.mrf.mxu0
      %v5842 = vadd.f32 0.0, %v5841
      %v5843 = vpop.f32.mrf.mxu0
      %5844 = vmatprep.mubr.f32.mxu0 0.0
      %5845 = vmatmul.mubr.f32.gmra.mxu0 %v5637
      %v5846 = vpop.f32.mrf.mxu0
      %v5847 = vadd.f32 0.0, %v5846
      %v5848 = vpop.f32.mrf.mxu0
      %5849 = vmatprep.mubr.f32.mxu0 0.0
      %5850 = vmatmul.mubr.f32.gmra.mxu0 %v5640
      %v5851 = vpop.f32.mrf.mxu0
      %v5852 = vadd.f32 0.0, %v5851
      %v5853 = vpop.f32.mrf.mxu0
      %5854 = vmatprep.mubr.f32.mxu0 0.0
      %5855 = vmatmul.mubr.f32.gmra.mxu0 %v5643
      %v5856 = vpop.f32.mrf.mxu0
      %v5857 = vadd.f32 0.0, %v5856
      %v5858 = vpop.f32.mrf.mxu0
      %5859 = vmatprep.mubr.f32.mxu0 0.0
      %5860 = vmatmul.mubr.f32.gmra.mxu0 %v5646
      %v5861 = vpop.f32.mrf.mxu0
      %v5862 = vadd.f32 0.0, %v5861
      %v5863 = vpop.f32.mrf.mxu0
      %5864 = vmatprep.mubr.f32.mxu0 0.0
      %5865 = vmatmul.mubr.f32.gmra.mxu0 %v5649
      %v5866 = vpop.f32.mrf.mxu0
      %v5867 = vadd.f32 0.0, %v5866
      %v5868 = vpop.f32.mrf.mxu0
      %5869 = vmatprep.mubr.f32.mxu0 0.0
      %5870 = vmatmul.mubr.f32.gmra.mxu0 %v5652
      %v5871 = vpop.f32.mrf.mxu0
      %v5872 = vadd.f32 0.0, %v5871
      %v5873 = vpop.f32.mrf.mxu0
      %5874 = vmatprep.mubr.f32.mxu0 0.0
      %5875 = vmatmul.mubr.f32.gmra.mxu0 %v5655
      %v5876 = vpop.f32.mrf.mxu0
      %v5877 = vadd.f32 0.0, %v5876
      %v5878 = vpop.f32.mrf.mxu0
      %5879 = vmatprep.mubr.f32.mxu0 0.0
      %5880 = vmatmul.mubr.f32.gmra.mxu0 %v5658
      %v5881 = vpop.f32.mrf.mxu0
      %v5882 = vadd.f32 0.0, %v5881
      %v5883 = vpop.f32.mrf.mxu0
      %5884 = vdwg.mxu0
      %v5885 = vadd.f32 %v5500, %v5727
      %v5886 = vadd.f32 %v5501, %v5732
      %v5887 = vadd.f32 %v5502, %v5737
      %v5888 = vadd.f32 %v5503, %v5742
      %v5889 = vadd.f32 %v5504, %v5747
      %v5890 = vadd.f32 %v5505, %v5752
      %v5891 = vadd.f32 %v5506, %v5757
      %v5892 = vadd.f32 %v5507, %v5762
      %v5893 = vadd.f32 %v5508, %v5767
      %v5894 = vadd.f32 %v5509, %v5772
      %v5895 = vadd.f32 %v5510, %v5777
      %v5896 = vadd.f32 %v5511, %v5782
      %v5897 = vadd.f32 %v5512, %v5787
      %v5898 = vadd.f32 %v5513, %v5792
      %v5899 = vadd.f32 %v5514, %v5797
      %v5900 = vadd.f32 %v5515, %v5802
      %v5901 = vadd.f32 %v5516, %v5807
      %v5902 = vadd.f32 %v5517, %v5812
      %v5903 = vadd.f32 %v5518, %v5817
      %v5904 = vadd.f32 %v5519, %v5822
      %v5905 = vadd.f32 %v5520, %v5827
      %v5906 = vadd.f32 %v5521, %v5832
      %v5907 = vadd.f32 %v5522, %v5837
      %v5908 = vadd.f32 %v5523, %v5842
      %v5909 = vadd.f32 %v5524, %v5847
      %v5910 = vadd.f32 %v5525, %v5852
      %v5911 = vadd.f32 %v5526, %v5857
      %v5912 = vadd.f32 %v5527, %v5862
      %v5913 = vadd.f32 %v5528, %v5867
      %v5914 = vadd.f32 %v5529, %v5872
      %v5915 = vadd.f32 %v5530, %v5877
      %v5916 = vadd.f32 %v5531, %v5882
      %v5917 = vld [vmem:[%s383 + $0x9] sm:$0xff]
      %v5918 = vld [vmem:[%s383 + $0x11] sm:$0xff]
      %v5919 = vld [vmem:[%s383 + $0x29] sm:$0xff]
      %v5920 = vld [vmem:[%s383 + $0x31] sm:$0xff]
      %v5921 = vld [vmem:[%s383 + $0x49] sm:$0xff]
      %v5922 = vld [vmem:[%s383 + $0x51] sm:$0xff]
      %v5923 = vld [vmem:[%s383 + $0x69] sm:$0xff]
      %v5924 = vld [vmem:[%s383 + $0x71] sm:$0xff]
      %v5925 = vld [vmem:[%s383 + $0x89] sm:$0xff]
      %v5926 = vld [vmem:[%s383 + $0x91] sm:$0xff]
      %v5927 = vld [vmem:[%s383 + $0xa9] sm:$0xff]
      %v5928 = vld [vmem:[%s383 + $0xb1] sm:$0xff]
      %v5929 = vld [vmem:[%s383 + $0xc9] sm:$0xff]
      %v5930 = vld [vmem:[%s383 + $0xd1] sm:$0xff]
      %v5931 = vld [vmem:[%s383 + $0xe9] sm:$0xff]
      %v5932 = vld [vmem:[%s383 + $0xf1] sm:$0xff]
      %v5933 = vld [vmem:[%s383 + $0x109] sm:$0xff]
      %v5934 = vld [vmem:[%s383 + $0x111] sm:$0xff]
      %v5935 = vld [vmem:[%s383 + $0x129] sm:$0xff]
      %v5936 = vld [vmem:[%s383 + $0x131] sm:$0xff]
      %v5937 = vld [vmem:[%s383 + $0x149] sm:$0xff]
      %v5938 = vld [vmem:[%s383 + $0x151] sm:$0xff]
      %v5939 = vld [vmem:[%s383 + $0x169] sm:$0xff]
      %v5940 = vld [vmem:[%s383 + $0x171] sm:$0xff]
      %v5941 = vld [vmem:[%s383 + $0x189] sm:$0xff]
      %v5942 = vld [vmem:[%s383 + $0x191] sm:$0xff]
      %v5943 = vld [vmem:[%s383 + $0x1a9] sm:$0xff]
      %v5944 = vld [vmem:[%s383 + $0x1b1] sm:$0xff]
      %v5945 = vld [vmem:[%s383 + $0x1c9] sm:$0xff]
      %v5946 = vld [vmem:[%s383 + $0x1d1] sm:$0xff]
      %v5947 = vld [vmem:[%s383 + $0x1e9] sm:$0xff]
      %v5948 = vld [vmem:[%s383 + $0x1f1] sm:$0xff]
      %v5950 = vsel %vm373, %v5917, 0
      %v5953 = vsel %vm373, %v5918, 0
      %v5956 = vsel %vm373, %v5919, 0
      %v5959 = vsel %vm373, %v5920, 0
      %v5962 = vsel %vm373, %v5921, 0
      %v5965 = vsel %vm373, %v5922, 0
      %v5968 = vsel %vm373, %v5923, 0
      %v5971 = vsel %vm373, %v5924, 0
      %v5974 = vsel %vm373, %v5925, 0
      %v5977 = vsel %vm373, %v5926, 0
      %v5980 = vsel %vm373, %v5927, 0
      %v5983 = vsel %vm373, %v5928, 0
      %v5986 = vsel %vm373, %v5929, 0
      %v5989 = vsel %vm373, %v5930, 0
      %v5992 = vsel %vm373, %v5931, 0
      %v5995 = vsel %vm373, %v5932, 0
      %v5998 = vsel %vm373, %v5933, 0
      %v6001 = vsel %vm373, %v5934, 0
      %v6004 = vsel %vm373, %v5935, 0
      %v6007 = vsel %vm373, %v5936, 0
      %v6010 = vsel %vm373, %v5937, 0
      %v6013 = vsel %vm373, %v5938, 0
      %v6016 = vsel %vm373, %v5939, 0
      %v6019 = vsel %vm373, %v5940, 0
      %v6022 = vsel %vm373, %v5941, 0
      %v6025 = vsel %vm373, %v5942, 0
      %v6028 = vsel %vm373, %v5943, 0
      %v6031 = vsel %vm373, %v5944, 0
      %v6034 = vsel %vm373, %v5945, 0
      %v6037 = vsel %vm373, %v5946, 0
      %v6040 = vsel %vm373, %v5947, 0
      %v6043 = vsel %vm373, %v5948, 0
      %6045 = vmatprep.subr.mxu0 0.0
      %6046 = vmatpush1.msra.mxu0 0.0
      %6047 = vmatprep.subr.mxu0 0.0
      %6048 = vmatpush1.msra.mxu0 0.0
      %6049 = vmatprep.subr.mxu0 0.0
      %6050 = vmatpush1.msra.mxu0 0.0
      %6051 = vmatprep.subr.mxu0 0.0
      %6052 = vmatpush1.msra.mxu0 0.0
      %6053 = vmatprep.subr.mxu0 0.0
      %6054 = vmatpush1.msra.mxu0 0.0
      %6055 = vmatprep.subr.mxu0 0.0
      %6056 = vmatpush1.msra.mxu0 0.0
      %6057 = vmatprep.subr.mxu0 0.0
      %6058 = vmatpush1.msra.mxu0 0.0
      %6059 = vmatprep.subr.mxu0 0.0
      %6060 = vmatpush1.msra.mxu0 0.0
      %6061 = vmatprep.subr.mxu0 0.0
      %6062 = vmatpush1.msra.mxu0 0.0
      %6063 = vmatprep.subr.mxu0 0.0
      %6064 = vmatpush1.msra.mxu0 0.0
      %6065 = vmatprep.subr.mxu0 0.0
      %6066 = vmatpush1.msra.mxu0 0.0
      %6067 = vmatprep.subr.mxu0 0.0
      %6068 = vmatpush1.msra.mxu0 0.0
      %6069 = vmatprep.subr.mxu0 0.0
      %6070 = vmatpush1.msra.mxu0 %v4042
      %6071 = vmatprep.subr.mxu0 0.0
      %6072 = vmatpush1.msra.mxu0 %v4041
      %6073 = vmatprep.subr.mxu0 0.0
      %6074 = vmatpush1.msra.mxu0 %v4040
      %6075 = vmatprep.subr.mxu0 0.0
      %6076 = vmatpush1.msra.mxu0 %v4039
      %6077 = vmatprep.subr.mxu0 0.0
      %6078 = vmatpush2.msra.mxu0 0.0
      %6079 = vmatprep.subr.mxu0 0.0
      %6080 = vmatpush2.msra.mxu0 0.0
      %6081 = vmatprep.subr.mxu0 0.0
      %6082 = vmatpush2.msra.mxu0 0.0
      %6083 = vmatprep.subr.mxu0 0.0
      %6084 = vmatpush2.msra.mxu0 0.0
      %6085 = vmatprep.subr.mxu0 0.0
      %6086 = vmatpush2.msra.mxu0 0.0
      %6087 = vmatprep.subr.mxu0 0.0
      %6088 = vmatpush2.msra.mxu0 0.0
      %6089 = vmatprep.subr.mxu0 0.0
      %6090 = vmatpush2.msra.mxu0 0.0
      %6091 = vmatprep.subr.mxu0 0.0
      %6092 = vmatpush2.msra.mxu0 0.0
      %6093 = vmatprep.subr.mxu0 0.0
      %6094 = vmatpush2.msra.mxu0 0.0
      %6095 = vmatprep.subr.mxu0 0.0
      %6096 = vmatpush2.msra.mxu0 0.0
      %6097 = vmatprep.subr.mxu0 0.0
      %6098 = vmatpush2.msra.mxu0 0.0
      %6099 = vmatprep.subr.mxu0 0.0
      %6100 = vmatpush2.msra.mxu0 0.0
      %6101 = vmatprep.subr.mxu0 0.0
      %6102 = vmatpush2.msra.mxu0 0.0
      %6103 = vmatprep.subr.mxu0 0.0
      %6104 = vmatpush2.msra.mxu0 0.0
      %6105 = vmatprep.subr.mxu0 0.0
      %6106 = vmatpush2.msra.mxu0 0.0
      %6107 = vmatprep.subr.mxu0 0.0
      %6108 = vmatpush2.msra.mxu0 0.0
      %6109 = vmatprep.mubr.f32.mxu0 0.0
      %6110 = vmatmul.mubr.f32.gmra.mxu0 %v5950
      %v6111 = vpop.f32.mrf.mxu0
      %v6112 = vadd.f32 0.0, %v6111
      %v6113 = vpop.f32.mrf.mxu0
      %6114 = vmatprep.mubr.f32.mxu0 0.0
      %6115 = vmatmul.mubr.f32.gmra.mxu0 %v5953
      %v6116 = vpop.f32.mrf.mxu0
      %v6117 = vadd.f32 0.0, %v6116
      %v6118 = vpop.f32.mrf.mxu0
      %6119 = vmatprep.mubr.f32.mxu0 0.0
      %6120 = vmatmul.mubr.f32.gmra.mxu0 %v5956
      %v6121 = vpop.f32.mrf.mxu0
      %v6122 = vadd.f32 0.0, %v6121
      %v6123 = vpop.f32.mrf.mxu0
      %6124 = vmatprep.mubr.f32.mxu0 0.0
      %6125 = vmatmul.mubr.f32.gmra.mxu0 %v5959
      %v6126 = vpop.f32.mrf.mxu0
      %v6127 = vadd.f32 0.0, %v6126
      %v6128 = vpop.f32.mrf.mxu0
      %6129 = vmatprep.mubr.f32.mxu0 0.0
      %6130 = vmatmul.mubr.f32.gmra.mxu0 %v5962
      %v6131 = vpop.f32.mrf.mxu0
      %v6132 = vadd.f32 0.0, %v6131
      %v6133 = vpop.f32.mrf.mxu0
      %6134 = vmatprep.mubr.f32.mxu0 0.0
      %6135 = vmatmul.mubr.f32.gmra.mxu0 %v5965
      %v6136 = vpop.f32.mrf.mxu0
      %v6137 = vadd.f32 0.0, %v6136
      %v6138 = vpop.f32.mrf.mxu0
      %6139 = vmatprep.mubr.f32.mxu0 0.0
      %6140 = vmatmul.mubr.f32.gmra.mxu0 %v5968
      %v6141 = vpop.f32.mrf.mxu0
      %v6142 = vadd.f32 0.0, %v6141
      %v6143 = vpop.f32.mrf.mxu0
      %6144 = vmatprep.mubr.f32.mxu0 0.0
      %6145 = vmatmul.mubr.f32.gmra.mxu0 %v5971
      %v6146 = vpop.f32.mrf.mxu0
      %v6147 = vadd.f32 0.0, %v6146
      %v6148 = vpop.f32.mrf.mxu0
      %6149 = vmatprep.mubr.f32.mxu0 0.0
      %6150 = vmatmul.mubr.f32.gmra.mxu0 %v5974
      %v6151 = vpop.f32.mrf.mxu0
      %v6152 = vadd.f32 0.0, %v6151
      %v6153 = vpop.f32.mrf.mxu0
      %6154 = vmatprep.mubr.f32.mxu0 0.0
      %6155 = vmatmul.mubr.f32.gmra.mxu0 %v5977
      %v6156 = vpop.f32.mrf.mxu0
      %v6157 = vadd.f32 0.0, %v6156
      %v6158 = vpop.f32.mrf.mxu0
      %6159 = vmatprep.mubr.f32.mxu0 0.0
      %6160 = vmatmul.mubr.f32.gmra.mxu0 %v5980
      %v6161 = vpop.f32.mrf.mxu0
      %v6162 = vadd.f32 0.0, %v6161
      %v6163 = vpop.f32.mrf.mxu0
      %6164 = vmatprep.mubr.f32.mxu0 0.0
      %6165 = vmatmul.mubr.f32.gmra.mxu0 %v5983
      %v6166 = vpop.f32.mrf.mxu0
      %v6167 = vadd.f32 0.0, %v6166
      %v6168 = vpop.f32.mrf.mxu0
      %6169 = vmatprep.mubr.f32.mxu0 0.0
      %6170 = vmatmul.mubr.f32.gmra.mxu0 %v5986
      %v6171 = vpop.f32.mrf.mxu0
      %v6172 = vadd.f32 0.0, %v6171
      %v6173 = vpop.f32.mrf.mxu0
      %6174 = vmatprep.mubr.f32.mxu0 0.0
      %6175 = vmatmul.mubr.f32.gmra.mxu0 %v5989
      %v6176 = vpop.f32.mrf.mxu0
      %v6177 = vadd.f32 0.0, %v6176
      %v6178 = vpop.f32.mrf.mxu0
      %6179 = vmatprep.mubr.f32.mxu0 0.0
      %6180 = vmatmul.mubr.f32.gmra.mxu0 %v5992
      %v6181 = vpop.f32.mrf.mxu0
      %v6182 = vadd.f32 0.0, %v6181
      %v6183 = vpop.f32.mrf.mxu0
      %6184 = vmatprep.mubr.f32.mxu0 0.0
      %6185 = vmatmul.mubr.f32.gmra.mxu0 %v5995
      %v6186 = vpop.f32.mrf.mxu0
      %v6187 = vadd.f32 0.0, %v6186
      %v6188 = vpop.f32.mrf.mxu0
      %6189 = vmatprep.mubr.f32.mxu0 0.0
      %6190 = vmatmul.mubr.f32.gmra.mxu0 %v5998
      %v6191 = vpop.f32.mrf.mxu0
      %v6192 = vadd.f32 0.0, %v6191
      %v6193 = vpop.f32.mrf.mxu0
      %6194 = vmatprep.mubr.f32.mxu0 0.0
      %6195 = vmatmul.mubr.f32.gmra.mxu0 %v6001
      %v6196 = vpop.f32.mrf.mxu0
      %v6197 = vadd.f32 0.0, %v6196
      %v6198 = vpop.f32.mrf.mxu0
      %6199 = vmatprep.mubr.f32.mxu0 0.0
      %6200 = vmatmul.mubr.f32.gmra.mxu0 %v6004
      %v6201 = vpop.f32.mrf.mxu0
      %v6202 = vadd.f32 0.0, %v6201
      %v6203 = vpop.f32.mrf.mxu0
      %6204 = vmatprep.mubr.f32.mxu0 0.0
      %6205 = vmatmul.mubr.f32.gmra.mxu0 %v6007
      %v6206 = vpop.f32.mrf.mxu0
      %v6207 = vadd.f32 0.0, %v6206
      %v6208 = vpop.f32.mrf.mxu0
      %6209 = vmatprep.mubr.f32.mxu0 0.0
      %6210 = vmatmul.mubr.f32.gmra.mxu0 %v6010
      %v6211 = vpop.f32.mrf.mxu0
      %v6212 = vadd.f32 0.0, %v6211
      %v6213 = vpop.f32.mrf.mxu0
      %6214 = vmatprep.mubr.f32.mxu0 0.0
      %6215 = vmatmul.mubr.f32.gmra.mxu0 %v6013
      %v6216 = vpop.f32.mrf.mxu0
      %v6217 = vadd.f32 0.0, %v6216
      %v6218 = vpop.f32.mrf.mxu0
      %6219 = vmatprep.mubr.f32.mxu0 0.0
      %6220 = vmatmul.mubr.f32.gmra.mxu0 %v6016
      %v6221 = vpop.f32.mrf.mxu0
      %v6222 = vadd.f32 0.0, %v6221
      %v6223 = vpop.f32.mrf.mxu0
      %6224 = vmatprep.mubr.f32.mxu0 0.0
      %6225 = vmatmul.mubr.f32.gmra.mxu0 %v6019
      %v6226 = vpop.f32.mrf.mxu0
      %v6227 = vadd.f32 0.0, %v6226
      %v6228 = vpop.f32.mrf.mxu0
      %6229 = vmatprep.mubr.f32.mxu0 0.0
      %6230 = vmatmul.mubr.f32.gmra.mxu0 %v6022
      %v6231 = vpop.f32.mrf.mxu0
      %v6232 = vadd.f32 0.0, %v6231
      %v6233 = vpop.f32.mrf.mxu0
      %6234 = vmatprep.mubr.f32.mxu0 0.0
      %6235 = vmatmul.mubr.f32.gmra.mxu0 %v6025
      %v6236 = vpop.f32.mrf.mxu0
      %v6237 = vadd.f32 0.0, %v6236
      %v6238 = vpop.f32.mrf.mxu0
      %6239 = vmatprep.mubr.f32.mxu0 0.0
      %6240 = vmatmul.mubr.f32.gmra.mxu0 %v6028
      %v6241 = vpop.f32.mrf.mxu0
      %v6242 = vadd.f32 0.0, %v6241
      %v6243 = vpop.f32.mrf.mxu0
      %6244 = vmatprep.mubr.f32.mxu0 0.0
      %6245 = vmatmul.mubr.f32.gmra.mxu0 %v6031
      %v6246 = vpop.f32.mrf.mxu0
      %v6247 = vadd.f32 0.0, %v6246
      %v6248 = vpop.f32.mrf.mxu0
      %6249 = vmatprep.mubr.f32.mxu0 0.0
      %6250 = vmatmul.mubr.f32.gmra.mxu0 %v6034
      %v6251 = vpop.f32.mrf.mxu0
      %v6252 = vadd.f32 0.0, %v6251
      %v6253 = vpop.f32.mrf.mxu0
      %6254 = vmatprep.mubr.f32.mxu0 0.0
      %6255 = vmatmul.mubr.f32.gmra.mxu0 %v6037
      %v6256 = vpop.f32.mrf.mxu0
      %v6257 = vadd.f32 0.0, %v6256
      %v6258 = vpop.f32.mrf.mxu0
      %6259 = vmatprep.mubr.f32.mxu0 0.0
      %6260 = vmatmul.mubr.f32.gmra.mxu0 %v6040
      %v6261 = vpop.f32.mrf.mxu0
      %v6262 = vadd.f32 0.0, %v6261
      %v6263 = vpop.f32.mrf.mxu0
      %6264 = vmatprep.mubr.f32.mxu0 0.0
      %6265 = vmatmul.mubr.f32.gmra.mxu0 %v6043
      %v6266 = vpop.f32.mrf.mxu0
      %v6267 = vadd.f32 0.0, %v6266
      %v6268 = vpop.f32.mrf.mxu0
      %6269 = vdwg.mxu0
      %v6270 = vadd.f32 %v5885, %v6112
      %v6271 = vadd.f32 %v5886, %v6117
      %v6272 = vadd.f32 %v5887, %v6122
      %v6273 = vadd.f32 %v5888, %v6127
      %v6274 = vadd.f32 %v5889, %v6132
      %v6275 = vadd.f32 %v5890, %v6137
      %v6276 = vadd.f32 %v5891, %v6142
      %v6277 = vadd.f32 %v5892, %v6147
      %v6278 = vadd.f32 %v5893, %v6152
      %v6279 = vadd.f32 %v5894, %v6157
      %v6280 = vadd.f32 %v5895, %v6162
      %v6281 = vadd.f32 %v5896, %v6167
      %v6282 = vadd.f32 %v5897, %v6172
      %v6283 = vadd.f32 %v5898, %v6177
      %v6284 = vadd.f32 %v5899, %v6182
      %v6285 = vadd.f32 %v5900, %v6187
      %v6286 = vadd.f32 %v5901, %v6192
      %v6287 = vadd.f32 %v5902, %v6197
      %v6288 = vadd.f32 %v5903, %v6202
      %v6289 = vadd.f32 %v5904, %v6207
      %v6290 = vadd.f32 %v5905, %v6212
      %v6291 = vadd.f32 %v5906, %v6217
      %v6292 = vadd.f32 %v5907, %v6222
      %v6293 = vadd.f32 %v5908, %v6227
      %v6294 = vadd.f32 %v5909, %v6232
      %v6295 = vadd.f32 %v5910, %v6237
      %v6296 = vadd.f32 %v5911, %v6242
      %v6297 = vadd.f32 %v5912, %v6247
      %v6298 = vadd.f32 %v5913, %v6252
      %v6299 = vadd.f32 %v5914, %v6257
      %v6300 = vadd.f32 %v5915, %v6262
      %v6301 = vadd.f32 %v5916, %v6267
      %s6302 = scalar_lea.vmem [#allocation3], 64
      %v6303 = vld [vmem:[%s6302 + $0x7] sm:$0xff]
      %v6304 = vld [vmem:[%s6302 + $0xf] sm:$0xff]
      %v6305 = vld [vmem:[%s6302 + $0x27] sm:$0xff]
      %v6306 = vld [vmem:[%s6302 + $0x2f] sm:$0xff]
      %v6307 = vld [vmem:[%s6302 + $0x47] sm:$0xff]
      %v6308 = vld [vmem:[%s6302 + $0x4f] sm:$0xff]
      %v6309 = vld [vmem:[%s6302 + $0x67] sm:$0xff]
      %v6310 = vld [vmem:[%s6302 + $0x6f] sm:$0xff]
      %v6311 = vld [vmem:[%s6302 + $0x87] sm:$0xff]
      %v6312 = vld [vmem:[%s6302 + $0x8f] sm:$0xff]
      %v6313 = vld [vmem:[%s6302 + $0xa7] sm:$0xff]
      %v6314 = vld [vmem:[%s6302 + $0xaf] sm:$0xff]
      %v6315 = vld [vmem:[%s6302 + $0xc7] sm:$0xff]
      %v6316 = vld [vmem:[%s6302 + $0xcf] sm:$0xff]
      %v6317 = vld [vmem:[%s6302 + $0xe7] sm:$0xff]
      %v6318 = vld [vmem:[%s6302 + $0xef] sm:$0xff]
      %v6319 = vld [vmem:[%s6302 + $0x107] sm:$0xff]
      %v6320 = vld [vmem:[%s6302 + $0x10f] sm:$0xff]
      %v6321 = vld [vmem:[%s6302 + $0x127] sm:$0xff]
      %v6322 = vld [vmem:[%s6302 + $0x12f] sm:$0xff]
      %v6323 = vld [vmem:[%s6302 + $0x147] sm:$0xff]
      %v6324 = vld [vmem:[%s6302 + $0x14f] sm:$0xff]
      %v6325 = vld [vmem:[%s6302 + $0x167] sm:$0xff]
      %v6326 = vld [vmem:[%s6302 + $0x16f] sm:$0xff]
      %v6327 = vld [vmem:[%s6302 + $0x187] sm:$0xff]
      %v6328 = vld [vmem:[%s6302 + $0x18f] sm:$0xff]
      %v6329 = vld [vmem:[%s6302 + $0x1a7] sm:$0xff]
      %v6330 = vld [vmem:[%s6302 + $0x1af] sm:$0xff]
      %v6331 = vld [vmem:[%s6302 + $0x1c7] sm:$0xff]
      %v6332 = vld [vmem:[%s6302 + $0x1cf] sm:$0xff]
      %v6333 = vld [vmem:[%s6302 + $0x1e7] sm:$0xff]
      %v6334 = vld [vmem:[%s6302 + $0x1ef] sm:$0xff]
      %v6336 = vsel %vm373, %v6303, 0
      %v6339 = vsel %vm373, %v6304, 0
      %v6342 = vsel %vm373, %v6305, 0
      %v6345 = vsel %vm373, %v6306, 0
      %v6348 = vsel %vm373, %v6307, 0
      %v6351 = vsel %vm373, %v6308, 0
      %v6354 = vsel %vm373, %v6309, 0
      %v6357 = vsel %vm373, %v6310, 0
      %v6360 = vsel %vm373, %v6311, 0
      %v6363 = vsel %vm373, %v6312, 0
      %v6366 = vsel %vm373, %v6313, 0
      %v6369 = vsel %vm373, %v6314, 0
      %v6372 = vsel %vm373, %v6315, 0
      %v6375 = vsel %vm373, %v6316, 0
      %v6378 = vsel %vm373, %v6317, 0
      %v6381 = vsel %vm373, %v6318, 0
      %v6384 = vsel %vm373, %v6319, 0
      %v6387 = vsel %vm373, %v6320, 0
      %v6390 = vsel %vm373, %v6321, 0
      %v6393 = vsel %vm373, %v6322, 0
      %v6396 = vsel %vm373, %v6323, 0
      %v6399 = vsel %vm373, %v6324, 0
      %v6402 = vsel %vm373, %v6325, 0
      %v6405 = vsel %vm373, %v6326, 0
      %v6408 = vsel %vm373, %v6327, 0
      %v6411 = vsel %vm373, %v6328, 0
      %v6414 = vsel %vm373, %v6329, 0
      %v6417 = vsel %vm373, %v6330, 0
      %v6420 = vsel %vm373, %v6331, 0
      %v6423 = vsel %vm373, %v6332, 0
      %v6426 = vsel %vm373, %v6333, 0
      %v6429 = vsel %vm373, %v6334, 0
      %6431 = vmatprep.subr.mxu0 0.0
      %6432 = vmatpush1.msra.mxu0 0.0
      %6433 = vmatprep.subr.mxu0 0.0
      %6434 = vmatpush1.msra.mxu0 0.0
      %6435 = vmatprep.subr.mxu0 0.0
      %6436 = vmatpush1.msra.mxu0 0.0
      %6437 = vmatprep.subr.mxu0 0.0
      %6438 = vmatpush1.msra.mxu0 0.0
      %6439 = vmatprep.subr.mxu0 0.0
      %6440 = vmatpush1.msra.mxu0 0.0
      %6441 = vmatprep.subr.mxu0 0.0
      %6442 = vmatpush1.msra.mxu0 0.0
      %6443 = vmatprep.subr.mxu0 0.0
      %6444 = vmatpush1.msra.mxu0 0.0
      %6445 = vmatprep.subr.mxu0 0.0
      %6446 = vmatpush1.msra.mxu0 0.0
      %6447 = vmatprep.subr.mxu0 0.0
      %6448 = vmatpush1.msra.mxu0 0.0
      %6449 = vmatprep.subr.mxu0 0.0
      %6450 = vmatpush1.msra.mxu0 0.0
      %6451 = vmatprep.subr.mxu0 0.0
      %6452 = vmatpush1.msra.mxu0 0.0
      %6453 = vmatprep.subr.mxu0 0.0
      %6454 = vmatpush1.msra.mxu0 0.0
      %6455 = vmatprep.subr.mxu0 0.0
      %6456 = vmatpush1.msra.mxu0 %v4046
      %6457 = vmatprep.subr.mxu0 0.0
      %6458 = vmatpush1.msra.mxu0 %v4045
      %6459 = vmatprep.subr.mxu0 0.0
      %6460 = vmatpush1.msra.mxu0 %v4044
      %6461 = vmatprep.subr.mxu0 0.0
      %6462 = vmatpush1.msra.mxu0 %v4043
      %6463 = vmatprep.subr.mxu0 0.0
      %6464 = vmatpush2.msra.mxu0 0.0
      %6465 = vmatprep.subr.mxu0 0.0
      %6466 = vmatpush2.msra.mxu0 0.0
      %6467 = vmatprep.subr.mxu0 0.0
      %6468 = vmatpush2.msra.mxu0 0.0
      %6469 = vmatprep.subr.mxu0 0.0
      %6470 = vmatpush2.msra.mxu0 0.0
      %6471 = vmatprep.subr.mxu0 0.0
      %6472 = vmatpush2.msra.mxu0 0.0
      %6473 = vmatprep.subr.mxu0 0.0
      %6474 = vmatpush2.msra.mxu0 0.0
      %6475 = vmatprep.subr.mxu0 0.0
      %6476 = vmatpush2.msra.mxu0 0.0
      %6477 = vmatprep.subr.mxu0 0.0
      %6478 = vmatpush2.msra.mxu0 0.0
      %6479 = vmatprep.subr.mxu0 0.0
      %6480 = vmatpush2.msra.mxu0 0.0
      %6481 = vmatprep.subr.mxu0 0.0
      %6482 = vmatpush2.msra.mxu0 0.0
      %6483 = vmatprep.subr.mxu0 0.0
      %6484 = vmatpush2.msra.mxu0 0.0
      %6485 = vmatprep.subr.mxu0 0.0
      %6486 = vmatpush2.msra.mxu0 0.0
      %6487 = vmatprep.subr.mxu0 0.0
      %6488 = vmatpush2.msra.mxu0 0.0
      %6489 = vmatprep.subr.mxu0 0.0
      %6490 = vmatpush2.msra.mxu0 0.0
      %6491 = vmatprep.subr.mxu0 0.0
      %6492 = vmatpush2.msra.mxu0 0.0
      %6493 = vmatprep.subr.mxu0 0.0
      %6494 = vmatpush2.msra.mxu0 0.0
      %6495 = vmatprep.mubr.f32.mxu0 0.0
      %6496 = vmatmul.mubr.f32.gmra.mxu0 %v6336
      %v6497 = vpop.f32.mrf.mxu0
      %v6498 = vadd.f32 0.0, %v6497
      %v6499 = vpop.f32.mrf.mxu0
      %6500 = vmatprep.mubr.f32.mxu0 0.0
      %6501 = vmatmul.mubr.f32.gmra.mxu0 %v6339
      %v6502 = vpop.f32.mrf.mxu0
      %v6503 = vadd.f32 0.0, %v6502
      %v6504 = vpop.f32.mrf.mxu0
      %6505 = vmatprep.mubr.f32.mxu0 0.0
      %6506 = vmatmul.mubr.f32.gmra.mxu0 %v6342
      %v6507 = vpop.f32.mrf.mxu0
      %v6508 = vadd.f32 0.0, %v6507
      %v6509 = vpop.f32.mrf.mxu0
      %6510 = vmatprep.mubr.f32.mxu0 0.0
      %6511 = vmatmul.mubr.f32.gmra.mxu0 %v6345
      %v6512 = vpop.f32.mrf.mxu0
      %v6513 = vadd.f32 0.0, %v6512
      %v6514 = vpop.f32.mrf.mxu0
      %6515 = vmatprep.mubr.f32.mxu0 0.0
      %6516 = vmatmul.mubr.f32.gmra.mxu0 %v6348
      %v6517 = vpop.f32.mrf.mxu0
      %v6518 = vadd.f32 0.0, %v6517
      %v6519 = vpop.f32.mrf.mxu0
      %6520 = vmatprep.mubr.f32.mxu0 0.0
      %6521 = vmatmul.mubr.f32.gmra.mxu0 %v6351
      %v6522 = vpop.f32.mrf.mxu0
      %v6523 = vadd.f32 0.0, %v6522
      %v6524 = vpop.f32.mrf.mxu0
      %6525 = vmatprep.mubr.f32.mxu0 0.0
      %6526 = vmatmul.mubr.f32.gmra.mxu0 %v6354
      %v6527 = vpop.f32.mrf.mxu0
      %v6528 = vadd.f32 0.0, %v6527
      %v6529 = vpop.f32.mrf.mxu0
      %6530 = vmatprep.mubr.f32.mxu0 0.0
      %6531 = vmatmul.mubr.f32.gmra.mxu0 %v6357
      %v6532 = vpop.f32.mrf.mxu0
      %v6533 = vadd.f32 0.0, %v6532
      %v6534 = vpop.f32.mrf.mxu0
      %6535 = vmatprep.mubr.f32.mxu0 0.0
      %6536 = vmatmul.mubr.f32.gmra.mxu0 %v6360
      %v6537 = vpop.f32.mrf.mxu0
      %v6538 = vadd.f32 0.0, %v6537
      %v6539 = vpop.f32.mrf.mxu0
      %6540 = vmatprep.mubr.f32.mxu0 0.0
      %6541 = vmatmul.mubr.f32.gmra.mxu0 %v6363
      %v6542 = vpop.f32.mrf.mxu0
      %v6543 = vadd.f32 0.0, %v6542
      %v6544 = vpop.f32.mrf.mxu0
      %6545 = vmatprep.mubr.f32.mxu0 0.0
      %6546 = vmatmul.mubr.f32.gmra.mxu0 %v6366
      %v6547 = vpop.f32.mrf.mxu0
      %v6548 = vadd.f32 0.0, %v6547
      %v6549 = vpop.f32.mrf.mxu0
      %6550 = vmatprep.mubr.f32.mxu0 0.0
      %6551 = vmatmul.mubr.f32.gmra.mxu0 %v6369
      %v6552 = vpop.f32.mrf.mxu0
      %v6553 = vadd.f32 0.0, %v6552
      %v6554 = vpop.f32.mrf.mxu0
      %6555 = vmatprep.mubr.f32.mxu0 0.0
      %6556 = vmatmul.mubr.f32.gmra.mxu0 %v6372
      %v6557 = vpop.f32.mrf.mxu0
      %v6558 = vadd.f32 0.0, %v6557
      %v6559 = vpop.f32.mrf.mxu0
      %6560 = vmatprep.mubr.f32.mxu0 0.0
      %6561 = vmatmul.mubr.f32.gmra.mxu0 %v6375
      %v6562 = vpop.f32.mrf.mxu0
      %v6563 = vadd.f32 0.0, %v6562
      %v6564 = vpop.f32.mrf.mxu0
      %6565 = vmatprep.mubr.f32.mxu0 0.0
      %6566 = vmatmul.mubr.f32.gmra.mxu0 %v6378
      %v6567 = vpop.f32.mrf.mxu0
      %v6568 = vadd.f32 0.0, %v6567
      %v6569 = vpop.f32.mrf.mxu0
      %6570 = vmatprep.mubr.f32.mxu0 0.0
      %6571 = vmatmul.mubr.f32.gmra.mxu0 %v6381
      %v6572 = vpop.f32.mrf.mxu0
      %v6573 = vadd.f32 0.0, %v6572
      %v6574 = vpop.f32.mrf.mxu0
      %6575 = vmatprep.mubr.f32.mxu0 0.0
      %6576 = vmatmul.mubr.f32.gmra.mxu0 %v6384
      %v6577 = vpop.f32.mrf.mxu0
      %v6578 = vadd.f32 0.0, %v6577
      %v6579 = vpop.f32.mrf.mxu0
      %6580 = vmatprep.mubr.f32.mxu0 0.0
      %6581 = vmatmul.mubr.f32.gmra.mxu0 %v6387
      %v6582 = vpop.f32.mrf.mxu0
      %v6583 = vadd.f32 0.0, %v6582
      %v6584 = vpop.f32.mrf.mxu0
      %6585 = vmatprep.mubr.f32.mxu0 0.0
      %6586 = vmatmul.mubr.f32.gmra.mxu0 %v6390
      %v6587 = vpop.f32.mrf.mxu0
      %v6588 = vadd.f32 0.0, %v6587
      %v6589 = vpop.f32.mrf.mxu0
      %6590 = vmatprep.mubr.f32.mxu0 0.0
      %6591 = vmatmul.mubr.f32.gmra.mxu0 %v6393
      %v6592 = vpop.f32.mrf.mxu0
      %v6593 = vadd.f32 0.0, %v6592
      %v6594 = vpop.f32.mrf.mxu0
      %6595 = vmatprep.mubr.f32.mxu0 0.0
      %6596 = vmatmul.mubr.f32.gmra.mxu0 %v6396
      %v6597 = vpop.f32.mrf.mxu0
      %v6598 = vadd.f32 0.0, %v6597
      %v6599 = vpop.f32.mrf.mxu0
      %6600 = vmatprep.mubr.f32.mxu0 0.0
      %6601 = vmatmul.mubr.f32.gmra.mxu0 %v6399
      %v6602 = vpop.f32.mrf.mxu0
      %v6603 = vadd.f32 0.0, %v6602
      %v6604 = vpop.f32.mrf.mxu0
      %6605 = vmatprep.mubr.f32.mxu0 0.0
      %6606 = vmatmul.mubr.f32.gmra.mxu0 %v6402
      %v6607 = vpop.f32.mrf.mxu0
      %v6608 = vadd.f32 0.0, %v6607
      %v6609 = vpop.f32.mrf.mxu0
      %6610 = vmatprep.mubr.f32.mxu0 0.0
      %6611 = vmatmul.mubr.f32.gmra.mxu0 %v6405
      %v6612 = vpop.f32.mrf.mxu0
      %v6613 = vadd.f32 0.0, %v6612
      %v6614 = vpop.f32.mrf.mxu0
      %6615 = vmatprep.mubr.f32.mxu0 0.0
      %6616 = vmatmul.mubr.f32.gmra.mxu0 %v6408
      %v6617 = vpop.f32.mrf.mxu0
      %v6618 = vadd.f32 0.0, %v6617
      %v6619 = vpop.f32.mrf.mxu0
      %6620 = vmatprep.mubr.f32.mxu0 0.0
      %6621 = vmatmul.mubr.f32.gmra.mxu0 %v6411
      %v6622 = vpop.f32.mrf.mxu0
      %v6623 = vadd.f32 0.0, %v6622
      %v6624 = vpop.f32.mrf.mxu0
      %6625 = vmatprep.mubr.f32.mxu0 0.0
      %6626 = vmatmul.mubr.f32.gmra.mxu0 %v6414
      %v6627 = vpop.f32.mrf.mxu0
      %v6628 = vadd.f32 0.0, %v6627
      %v6629 = vpop.f32.mrf.mxu0
      %6630 = vmatprep.mubr.f32.mxu0 0.0
      %6631 = vmatmul.mubr.f32.gmra.mxu0 %v6417
      %v6632 = vpop.f32.mrf.mxu0
      %v6633 = vadd.f32 0.0, %v6632
      %v6634 = vpop.f32.mrf.mxu0
      %6635 = vmatprep.mubr.f32.mxu0 0.0
      %6636 = vmatmul.mubr.f32.gmra.mxu0 %v6420
      %v6637 = vpop.f32.mrf.mxu0
      %v6638 = vadd.f32 0.0, %v6637
      %v6639 = vpop.f32.mrf.mxu0
      %6640 = vmatprep.mubr.f32.mxu0 0.0
      %6641 = vmatmul.mubr.f32.gmra.mxu0 %v6423
      %v6642 = vpop.f32.mrf.mxu0
      %v6643 = vadd.f32 0.0, %v6642
      %v6644 = vpop.f32.mrf.mxu0
      %6645 = vmatprep.mubr.f32.mxu0 0.0
      %6646 = vmatmul.mubr.f32.gmra.mxu0 %v6426
      %v6647 = vpop.f32.mrf.mxu0
      %v6648 = vadd.f32 0.0, %v6647
      %v6649 = vpop.f32.mrf.mxu0
      %6650 = vmatprep.mubr.f32.mxu0 0.0
      %6651 = vmatmul.mubr.f32.gmra.mxu0 %v6429
      %v6652 = vpop.f32.mrf.mxu0
      %v6653 = vadd.f32 0.0, %v6652
      %v6654 = vpop.f32.mrf.mxu0
      %6655 = vdwg.mxu0
      %v6656 = vadd.f32 %v6270, %v6498
      %v6657 = vadd.f32 %v6271, %v6503
      %v6658 = vadd.f32 %v6272, %v6508
      %v6659 = vadd.f32 %v6273, %v6513
      %v6660 = vadd.f32 %v6274, %v6518
      %v6661 = vadd.f32 %v6275, %v6523
      %v6662 = vadd.f32 %v6276, %v6528
      %v6663 = vadd.f32 %v6277, %v6533
      %v6664 = vadd.f32 %v6278, %v6538
      %v6665 = vadd.f32 %v6279, %v6543
      %v6666 = vadd.f32 %v6280, %v6548
      %v6667 = vadd.f32 %v6281, %v6553
      %v6668 = vadd.f32 %v6282, %v6558
      %v6669 = vadd.f32 %v6283, %v6563
      %v6670 = vadd.f32 %v6284, %v6568
      %v6671 = vadd.f32 %v6285, %v6573
      %v6672 = vadd.f32 %v6286, %v6578
      %v6673 = vadd.f32 %v6287, %v6583
      %v6674 = vadd.f32 %v6288, %v6588
      %v6675 = vadd.f32 %v6289, %v6593
      %v6676 = vadd.f32 %v6290, %v6598
      %v6677 = vadd.f32 %v6291, %v6603
      %v6678 = vadd.f32 %v6292, %v6608
      %v6679 = vadd.f32 %v6293, %v6613
      %v6680 = vadd.f32 %v6294, %v6618
      %v6681 = vadd.f32 %v6295, %v6623
      %v6682 = vadd.f32 %v6296, %v6628
      %v6683 = vadd.f32 %v6297, %v6633
      %v6684 = vadd.f32 %v6298, %v6638
      %v6685 = vadd.f32 %v6299, %v6643
      %v6686 = vadd.f32 %v6300, %v6648
      %v6687 = vadd.f32 %v6301, %v6653
      %v6688 = vld [vmem:[%s6302 + $0x8] sm:$0xff]
      %v6689 = vld [vmem:[%s6302 + $0x10] sm:$0xff]
      %v6690 = vld [vmem:[%s6302 + $0x28] sm:$0xff]
      %v6691 = vld [vmem:[%s6302 + $0x30] sm:$0xff]
      %v6692 = vld [vmem:[%s6302 + $0x48] sm:$0xff]
      %v6693 = vld [vmem:[%s6302 + $0x50] sm:$0xff]
      %v6694 = vld [vmem:[%s6302 + $0x68] sm:$0xff]
      %v6695 = vld [vmem:[%s6302 + $0x70] sm:$0xff]
      %v6696 = vld [vmem:[%s6302 + $0x88] sm:$0xff]
      %v6697 = vld [vmem:[%s6302 + $0x90] sm:$0xff]
      %v6698 = vld [vmem:[%s6302 + $0xa8] sm:$0xff]
      %v6699 = vld [vmem:[%s6302 + $0xb0] sm:$0xff]
      %v6700 = vld [vmem:[%s6302 + $0xc8] sm:$0xff]
      %v6701 = vld [vmem:[%s6302 + $0xd0] sm:$0xff]
      %v6702 = vld [vmem:[%s6302 + $0xe8] sm:$0xff]
      %v6703 = vld [vmem:[%s6302 + $0xf0] sm:$0xff]
      %v6704 = vld [vmem:[%s6302 + $0x108] sm:$0xff]
      %v6705 = vld [vmem:[%s6302 + $0x110] sm:$0xff]
      %v6706 = vld [vmem:[%s6302 + $0x128] sm:$0xff]
      %v6707 = vld [vmem:[%s6302 + $0x130] sm:$0xff]
      %v6708 = vld [vmem:[%s6302 + $0x148] sm:$0xff]
      %v6709 = vld [vmem:[%s6302 + $0x150] sm:$0xff]
      %v6710 = vld [vmem:[%s6302 + $0x168] sm:$0xff]
      %v6711 = vld [vmem:[%s6302 + $0x170] sm:$0xff]
      %v6712 = vld [vmem:[%s6302 + $0x188] sm:$0xff]
      %v6713 = vld [vmem:[%s6302 + $0x190] sm:$0xff]
      %v6714 = vld [vmem:[%s6302 + $0x1a8] sm:$0xff]
      %v6715 = vld [vmem:[%s6302 + $0x1b0] sm:$0xff]
      %v6716 = vld [vmem:[%s6302 + $0x1c8] sm:$0xff]
      %v6717 = vld [vmem:[%s6302 + $0x1d0] sm:$0xff]
      %v6718 = vld [vmem:[%s6302 + $0x1e8] sm:$0xff]
      %v6719 = vld [vmem:[%s6302 + $0x1f0] sm:$0xff]
      %v6721 = vsel %vm373, %v6688, 0
      %v6724 = vsel %vm373, %v6689, 0
      %v6727 = vsel %vm373, %v6690, 0
      %v6730 = vsel %vm373, %v6691, 0
      %v6733 = vsel %vm373, %v6692, 0
      %v6736 = vsel %vm373, %v6693, 0
      %v6739 = vsel %vm373, %v6694, 0
      %v6742 = vsel %vm373, %v6695, 0
      %v6745 = vsel %vm373, %v6696, 0
      %v6748 = vsel %vm373, %v6697, 0
      %v6751 = vsel %vm373, %v6698, 0
      %v6754 = vsel %vm373, %v6699, 0
      %v6757 = vsel %vm373, %v6700, 0
      %v6760 = vsel %vm373, %v6701, 0
      %v6763 = vsel %vm373, %v6702, 0
      %v6766 = vsel %vm373, %v6703, 0
      %v6769 = vsel %vm373, %v6704, 0
      %v6772 = vsel %vm373, %v6705, 0
      %v6775 = vsel %vm373, %v6706, 0
      %v6778 = vsel %vm373, %v6707, 0
      %v6781 = vsel %vm373, %v6708, 0
      %v6784 = vsel %vm373, %v6709, 0
      %v6787 = vsel %vm373, %v6710, 0
      %v6790 = vsel %vm373, %v6711, 0
      %v6793 = vsel %vm373, %v6712, 0
      %v6796 = vsel %vm373, %v6713, 0
      %v6799 = vsel %vm373, %v6714, 0
      %v6802 = vsel %vm373, %v6715, 0
      %v6805 = vsel %vm373, %v6716, 0
      %v6808 = vsel %vm373, %v6717, 0
      %v6811 = vsel %vm373, %v6718, 0
      %v6814 = vsel %vm373, %v6719, 0
      %6816 = vmatprep.subr.mxu0 0.0
      %6817 = vmatpush1.msra.mxu0 0.0
      %6818 = vmatprep.subr.mxu0 0.0
      %6819 = vmatpush1.msra.mxu0 0.0
      %6820 = vmatprep.subr.mxu0 0.0
      %6821 = vmatpush1.msra.mxu0 0.0
      %6822 = vmatprep.subr.mxu0 0.0
      %6823 = vmatpush1.msra.mxu0 0.0
      %6824 = vmatprep.subr.mxu0 0.0
      %6825 = vmatpush1.msra.mxu0 0.0
      %6826 = vmatprep.subr.mxu0 0.0
      %6827 = vmatpush1.msra.mxu0 0.0
      %6828 = vmatprep.subr.mxu0 0.0
      %6829 = vmatpush1.msra.mxu0 0.0
      %6830 = vmatprep.subr.mxu0 0.0
      %6831 = vmatpush1.msra.mxu0 0.0
      %6832 = vmatprep.subr.mxu0 0.0
      %6833 = vmatpush1.msra.mxu0 0.0
      %6834 = vmatprep.subr.mxu0 0.0
      %6835 = vmatpush1.msra.mxu0 0.0
      %6836 = vmatprep.subr.mxu0 0.0
      %6837 = vmatpush1.msra.mxu0 0.0
      %6838 = vmatprep.subr.mxu0 0.0
      %6839 = vmatpush1.msra.mxu0 0.0
      %6840 = vmatprep.subr.mxu0 0.0
      %6841 = vmatpush1.msra.mxu0 %v4050
      %6842 = vmatprep.subr.mxu0 0.0
      %6843 = vmatpush1.msra.mxu0 %v4049
      %6844 = vmatprep.subr.mxu0 0.0
      %6845 = vmatpush1.msra.mxu0 %v4048
      %6846 = vmatprep.subr.mxu0 0.0
      %6847 = vmatpush1.msra.mxu0 %v4047
      %6848 = vmatprep.subr.mxu0 0.0
      %6849 = vmatpush2.msra.mxu0 0.0
      %6850 = vmatprep.subr.mxu0 0.0
      %6851 = vmatpush2.msra.mxu0 0.0
      %6852 = vmatprep.subr.mxu0 0.0
      %6853 = vmatpush2.msra.mxu0 0.0
      %6854 = vmatprep.subr.mxu0 0.0
      %6855 = vmatpush2.msra.mxu0 0.0
      %6856 = vmatprep.subr.mxu0 0.0
      %6857 = vmatpush2.msra.mxu0 0.0
      %6858 = vmatprep.subr.mxu0 0.0
      %6859 = vmatpush2.msra.mxu0 0.0
      %6860 = vmatprep.subr.mxu0 0.0
      %6861 = vmatpush2.msra.mxu0 0.0
      %6862 = vmatprep.subr.mxu0 0.0
      %6863 = vmatpush2.msra.mxu0 0.0
      %6864 = vmatprep.subr.mxu0 0.0
      %6865 = vmatpush2.msra.mxu0 0.0
      %6866 = vmatprep.subr.mxu0 0.0
      %6867 = vmatpush2.msra.mxu0 0.0
      %6868 = vmatprep.subr.mxu0 0.0
      %6869 = vmatpush2.msra.mxu0 0.0
      %6870 = vmatprep.subr.mxu0 0.0
      %6871 = vmatpush2.msra.mxu0 0.0
      %6872 = vmatprep.subr.mxu0 0.0
      %6873 = vmatpush2.msra.mxu0 0.0
      %6874 = vmatprep.subr.mxu0 0.0
      %6875 = vmatpush2.msra.mxu0 0.0
      %6876 = vmatprep.subr.mxu0 0.0
      %6877 = vmatpush2.msra.mxu0 0.0
      %6878 = vmatprep.subr.mxu0 0.0
      %6879 = vmatpush2.msra.mxu0 0.0
      %6880 = vmatprep.mubr.f32.mxu0 0.0
      %6881 = vmatmul.mubr.f32.gmra.mxu0 %v6721
      %v6882 = vpop.f32.mrf.mxu0
      %v6883 = vadd.f32 0.0, %v6882
      %v6884 = vpop.f32.mrf.mxu0
      %6885 = vmatprep.mubr.f32.mxu0 0.0
      %6886 = vmatmul.mubr.f32.gmra.mxu0 %v6724
      %v6887 = vpop.f32.mrf.mxu0
      %v6888 = vadd.f32 0.0, %v6887
      %v6889 = vpop.f32.mrf.mxu0
      %6890 = vmatprep.mubr.f32.mxu0 0.0
      %6891 = vmatmul.mubr.f32.gmra.mxu0 %v6727
      %v6892 = vpop.f32.mrf.mxu0
      %v6893 = vadd.f32 0.0, %v6892
      %v6894 = vpop.f32.mrf.mxu0
      %6895 = vmatprep.mubr.f32.mxu0 0.0
      %6896 = vmatmul.mubr.f32.gmra.mxu0 %v6730
      %v6897 = vpop.f32.mrf.mxu0
      %v6898 = vadd.f32 0.0, %v6897
      %v6899 = vpop.f32.mrf.mxu0
      %6900 = vmatprep.mubr.f32.mxu0 0.0
      %6901 = vmatmul.mubr.f32.gmra.mxu0 %v6733
      %v6902 = vpop.f32.mrf.mxu0
      %v6903 = vadd.f32 0.0, %v6902
      %v6904 = vpop.f32.mrf.mxu0
      %6905 = vmatprep.mubr.f32.mxu0 0.0
      %6906 = vmatmul.mubr.f32.gmra.mxu0 %v6736
      %v6907 = vpop.f32.mrf.mxu0
      %v6908 = vadd.f32 0.0, %v6907
      %v6909 = vpop.f32.mrf.mxu0
      %6910 = vmatprep.mubr.f32.mxu0 0.0
      %6911 = vmatmul.mubr.f32.gmra.mxu0 %v6739
      %v6912 = vpop.f32.mrf.mxu0
      %v6913 = vadd.f32 0.0, %v6912
      %v6914 = vpop.f32.mrf.mxu0
      %6915 = vmatprep.mubr.f32.mxu0 0.0
      %6916 = vmatmul.mubr.f32.gmra.mxu0 %v6742
      %v6917 = vpop.f32.mrf.mxu0
      %v6918 = vadd.f32 0.0, %v6917
      %v6919 = vpop.f32.mrf.mxu0
      %6920 = vmatprep.mubr.f32.mxu0 0.0
      %6921 = vmatmul.mubr.f32.gmra.mxu0 %v6745
      %v6922 = vpop.f32.mrf.mxu0
      %v6923 = vadd.f32 0.0, %v6922
      %v6924 = vpop.f32.mrf.mxu0
      %6925 = vmatprep.mubr.f32.mxu0 0.0
      %6926 = vmatmul.mubr.f32.gmra.mxu0 %v6748
      %v6927 = vpop.f32.mrf.mxu0
      %v6928 = vadd.f32 0.0, %v6927
      %v6929 = vpop.f32.mrf.mxu0
      %6930 = vmatprep.mubr.f32.mxu0 0.0
      %6931 = vmatmul.mubr.f32.gmra.mxu0 %v6751
      %v6932 = vpop.f32.mrf.mxu0
      %v6933 = vadd.f32 0.0, %v6932
      %v6934 = vpop.f32.mrf.mxu0
      %6935 = vmatprep.mubr.f32.mxu0 0.0
      %6936 = vmatmul.mubr.f32.gmra.mxu0 %v6754
      %v6937 = vpop.f32.mrf.mxu0
      %v6938 = vadd.f32 0.0, %v6937
      %v6939 = vpop.f32.mrf.mxu0
      %6940 = vmatprep.mubr.f32.mxu0 0.0
      %6941 = vmatmul.mubr.f32.gmra.mxu0 %v6757
      %v6942 = vpop.f32.mrf.mxu0
      %v6943 = vadd.f32 0.0, %v6942
      %v6944 = vpop.f32.mrf.mxu0
      %6945 = vmatprep.mubr.f32.mxu0 0.0
      %6946 = vmatmul.mubr.f32.gmra.mxu0 %v6760
      %v6947 = vpop.f32.mrf.mxu0
      %v6948 = vadd.f32 0.0, %v6947
      %v6949 = vpop.f32.mrf.mxu0
      %6950 = vmatprep.mubr.f32.mxu0 0.0
      %6951 = vmatmul.mubr.f32.gmra.mxu0 %v6763
      %v6952 = vpop.f32.mrf.mxu0
      %v6953 = vadd.f32 0.0, %v6952
      %v6954 = vpop.f32.mrf.mxu0
      %6955 = vmatprep.mubr.f32.mxu0 0.0
      %6956 = vmatmul.mubr.f32.gmra.mxu0 %v6766
      %v6957 = vpop.f32.mrf.mxu0
      %v6958 = vadd.f32 0.0, %v6957
      %v6959 = vpop.f32.mrf.mxu0
      %6960 = vmatprep.mubr.f32.mxu0 0.0
      %6961 = vmatmul.mubr.f32.gmra.mxu0 %v6769
      %v6962 = vpop.f32.mrf.mxu0
      %v6963 = vadd.f32 0.0, %v6962
      %v6964 = vpop.f32.mrf.mxu0
      %6965 = vmatprep.mubr.f32.mxu0 0.0
      %6966 = vmatmul.mubr.f32.gmra.mxu0 %v6772
      %v6967 = vpop.f32.mrf.mxu0
      %v6968 = vadd.f32 0.0, %v6967
      %v6969 = vpop.f32.mrf.mxu0
      %6970 = vmatprep.mubr.f32.mxu0 0.0
      %6971 = vmatmul.mubr.f32.gmra.mxu0 %v6775
      %v6972 = vpop.f32.mrf.mxu0
      %v6973 = vadd.f32 0.0, %v6972
      %v6974 = vpop.f32.mrf.mxu0
      %6975 = vmatprep.mubr.f32.mxu0 0.0
      %6976 = vmatmul.mubr.f32.gmra.mxu0 %v6778
      %v6977 = vpop.f32.mrf.mxu0
      %v6978 = vadd.f32 0.0, %v6977
      %v6979 = vpop.f32.mrf.mxu0
      %6980 = vmatprep.mubr.f32.mxu0 0.0
      %6981 = vmatmul.mubr.f32.gmra.mxu0 %v6781
      %v6982 = vpop.f32.mrf.mxu0
      %v6983 = vadd.f32 0.0, %v6982
      %v6984 = vpop.f32.mrf.mxu0
      %6985 = vmatprep.mubr.f32.mxu0 0.0
      %6986 = vmatmul.mubr.f32.gmra.mxu0 %v6784
      %v6987 = vpop.f32.mrf.mxu0
      %v6988 = vadd.f32 0.0, %v6987
      %v6989 = vpop.f32.mrf.mxu0
      %6990 = vmatprep.mubr.f32.mxu0 0.0
      %6991 = vmatmul.mubr.f32.gmra.mxu0 %v6787
      %v6992 = vpop.f32.mrf.mxu0
      %v6993 = vadd.f32 0.0, %v6992
      %v6994 = vpop.f32.mrf.mxu0
      %6995 = vmatprep.mubr.f32.mxu0 0.0
      %6996 = vmatmul.mubr.f32.gmra.mxu0 %v6790
      %v6997 = vpop.f32.mrf.mxu0
      %v6998 = vadd.f32 0.0, %v6997
      %v6999 = vpop.f32.mrf.mxu0
      %7000 = vmatprep.mubr.f32.mxu0 0.0
      %7001 = vmatmul.mubr.f32.gmra.mxu0 %v6793
      %v7002 = vpop.f32.mrf.mxu0
      %v7003 = vadd.f32 0.0, %v7002
      %v7004 = vpop.f32.mrf.mxu0
      %7005 = vmatprep.mubr.f32.mxu0 0.0
      %7006 = vmatmul.mubr.f32.gmra.mxu0 %v6796
      %v7007 = vpop.f32.mrf.mxu0
      %v7008 = vadd.f32 0.0, %v7007
      %v7009 = vpop.f32.mrf.mxu0
      %7010 = vmatprep.mubr.f32.mxu0 0.0
      %7011 = vmatmul.mubr.f32.gmra.mxu0 %v6799
      %v7012 = vpop.f32.mrf.mxu0
      %v7013 = vadd.f32 0.0, %v7012
      %v7014 = vpop.f32.mrf.mxu0
      %7015 = vmatprep.mubr.f32.mxu0 0.0
      %7016 = vmatmul.mubr.f32.gmra.mxu0 %v6802
      %v7017 = vpop.f32.mrf.mxu0
      %v7018 = vadd.f32 0.0, %v7017
      %v7019 = vpop.f32.mrf.mxu0
      %7020 = vmatprep.mubr.f32.mxu0 0.0
      %7021 = vmatmul.mubr.f32.gmra.mxu0 %v6805
      %v7022 = vpop.f32.mrf.mxu0
      %v7023 = vadd.f32 0.0, %v7022
      %v7024 = vpop.f32.mrf.mxu0
      %7025 = vmatprep.mubr.f32.mxu0 0.0
      %7026 = vmatmul.mubr.f32.gmra.mxu0 %v6808
      %v7027 = vpop.f32.mrf.mxu0
      %v7028 = vadd.f32 0.0, %v7027
      %v7029 = vpop.f32.mrf.mxu0
      %7030 = vmatprep.mubr.f32.mxu0 0.0
      %7031 = vmatmul.mubr.f32.gmra.mxu0 %v6811
      %v7032 = vpop.f32.mrf.mxu0
      %v7033 = vadd.f32 0.0, %v7032
      %v7034 = vpop.f32.mrf.mxu0
      %7035 = vmatprep.mubr.f32.mxu0 0.0
      %7036 = vmatmul.mubr.f32.gmra.mxu0 %v6814
      %v7037 = vpop.f32.mrf.mxu0
      %v7038 = vadd.f32 0.0, %v7037
      %v7039 = vpop.f32.mrf.mxu0
      %7040 = vdwg.mxu0
      %v7041 = vadd.f32 %v6656, %v6883
      %v7042 = vadd.f32 %v6657, %v6888
      %v7043 = vadd.f32 %v6658, %v6893
      %v7044 = vadd.f32 %v6659, %v6898
      %v7045 = vadd.f32 %v6660, %v6903
      %v7046 = vadd.f32 %v6661, %v6908
      %v7047 = vadd.f32 %v6662, %v6913
      %v7048 = vadd.f32 %v6663, %v6918
      %v7049 = vadd.f32 %v6664, %v6923
      %v7050 = vadd.f32 %v6665, %v6928
      %v7051 = vadd.f32 %v6666, %v6933
      %v7052 = vadd.f32 %v6667, %v6938
      %v7053 = vadd.f32 %v6668, %v6943
      %v7054 = vadd.f32 %v6669, %v6948
      %v7055 = vadd.f32 %v6670, %v6953
      %v7056 = vadd.f32 %v6671, %v6958
      %v7057 = vadd.f32 %v6672, %v6963
      %v7058 = vadd.f32 %v6673, %v6968
      %v7059 = vadd.f32 %v6674, %v6973
      %v7060 = vadd.f32 %v6675, %v6978
      %v7061 = vadd.f32 %v6676, %v6983
      %v7062 = vadd.f32 %v6677, %v6988
      %v7063 = vadd.f32 %v6678, %v6993
      %v7064 = vadd.f32 %v6679, %v6998
      %v7065 = vadd.f32 %v6680, %v7003
      %v7066 = vadd.f32 %v6681, %v7008
      %v7067 = vadd.f32 %v6682, %v7013
      %v7068 = vadd.f32 %v6683, %v7018
      %v7069 = vadd.f32 %v6684, %v7023
      %v7070 = vadd.f32 %v6685, %v7028
      %v7071 = vadd.f32 %v6686, %v7033
      %v7072 = vadd.f32 %v6687, %v7038
      %v7073 = vld [vmem:[%s6302 + $0x9] sm:$0xff]
      %v7074 = vld [vmem:[%s6302 + $0x11] sm:$0xff]
      %v7075 = vld [vmem:[%s6302 + $0x29] sm:$0xff]
      %v7076 = vld [vmem:[%s6302 + $0x31] sm:$0xff]
      %v7077 = vld [vmem:[%s6302 + $0x49] sm:$0xff]
      %v7078 = vld [vmem:[%s6302 + $0x51] sm:$0xff]
      %v7079 = vld [vmem:[%s6302 + $0x69] sm:$0xff]
      %v7080 = vld [vmem:[%s6302 + $0x71] sm:$0xff]
      %v7081 = vld [vmem:[%s6302 + $0x89] sm:$0xff]
      %v7082 = vld [vmem:[%s6302 + $0x91] sm:$0xff]
      %v7083 = vld [vmem:[%s6302 + $0xa9] sm:$0xff]
      %v7084 = vld [vmem:[%s6302 + $0xb1] sm:$0xff]
      %v7085 = vld [vmem:[%s6302 + $0xc9] sm:$0xff]
      %v7086 = vld [vmem:[%s6302 + $0xd1] sm:$0xff]
      %v7087 = vld [vmem:[%s6302 + $0xe9] sm:$0xff]
      %v7088 = vld [vmem:[%s6302 + $0xf1] sm:$0xff]
      %v7089 = vld [vmem:[%s6302 + $0x109] sm:$0xff]
      %v7090 = vld [vmem:[%s6302 + $0x111] sm:$0xff]
      %v7091 = vld [vmem:[%s6302 + $0x129] sm:$0xff]
      %v7092 = vld [vmem:[%s6302 + $0x131] sm:$0xff]
      %v7093 = vld [vmem:[%s6302 + $0x149] sm:$0xff]
      %v7094 = vld [vmem:[%s6302 + $0x151] sm:$0xff]
      %v7095 = vld [vmem:[%s6302 + $0x169] sm:$0xff]
      %v7096 = vld [vmem:[%s6302 + $0x171] sm:$0xff]
      %v7097 = vld [vmem:[%s6302 + $0x189] sm:$0xff]
      %v7098 = vld [vmem:[%s6302 + $0x191] sm:$0xff]
      %v7099 = vld [vmem:[%s6302 + $0x1a9] sm:$0xff]
      %v7100 = vld [vmem:[%s6302 + $0x1b1] sm:$0xff]
      %v7101 = vld [vmem:[%s6302 + $0x1c9] sm:$0xff]
      %v7102 = vld [vmem:[%s6302 + $0x1d1] sm:$0xff]
      %v7103 = vld [vmem:[%s6302 + $0x1e9] sm:$0xff]
      %v7104 = vld [vmem:[%s6302 + $0x1f1] sm:$0xff]
      %v7106 = vsel %vm373, %v7073, 0
      %v7109 = vsel %vm373, %v7074, 0
      %v7112 = vsel %vm373, %v7075, 0
      %v7115 = vsel %vm373, %v7076, 0
      %v7118 = vsel %vm373, %v7077, 0
      %v7121 = vsel %vm373, %v7078, 0
      %v7124 = vsel %vm373, %v7079, 0
      %v7127 = vsel %vm373, %v7080, 0
      %v7130 = vsel %vm373, %v7081, 0
      %v7133 = vsel %vm373, %v7082, 0
      %v7136 = vsel %vm373, %v7083, 0
      %v7139 = vsel %vm373, %v7084, 0
      %v7142 = vsel %vm373, %v7085, 0
      %v7145 = vsel %vm373, %v7086, 0
      %v7148 = vsel %vm373, %v7087, 0
      %v7151 = vsel %vm373, %v7088, 0
      %v7154 = vsel %vm373, %v7089, 0
      %v7157 = vsel %vm373, %v7090, 0
      %v7160 = vsel %vm373, %v7091, 0
      %v7163 = vsel %vm373, %v7092, 0
      %v7166 = vsel %vm373, %v7093, 0
      %v7169 = vsel %vm373, %v7094, 0
      %v7172 = vsel %vm373, %v7095, 0
      %v7175 = vsel %vm373, %v7096, 0
      %v7178 = vsel %vm373, %v7097, 0
      %v7181 = vsel %vm373, %v7098, 0
      %v7184 = vsel %vm373, %v7099, 0
      %v7187 = vsel %vm373, %v7100, 0
      %v7190 = vsel %vm373, %v7101, 0
      %v7193 = vsel %vm373, %v7102, 0
      %v7196 = vsel %vm373, %v7103, 0
      %v7199 = vsel %vm373, %v7104, 0
      %7201 = vmatprep.subr.mxu0 0.0
      %7202 = vmatpush1.msra.mxu0 0.0
      %7203 = vmatprep.subr.mxu0 0.0
      %7204 = vmatpush1.msra.mxu0 0.0
      %7205 = vmatprep.subr.mxu0 0.0
      %7206 = vmatpush1.msra.mxu0 0.0
      %7207 = vmatprep.subr.mxu0 0.0
      %7208 = vmatpush1.msra.mxu0 0.0
      %7209 = vmatprep.subr.mxu0 0.0
      %7210 = vmatpush1.msra.mxu0 0.0
      %7211 = vmatprep.subr.mxu0 0.0
      %7212 = vmatpush1.msra.mxu0 0.0
      %7213 = vmatprep.subr.mxu0 0.0
      %7214 = vmatpush1.msra.mxu0 0.0
      %7215 = vmatprep.subr.mxu0 0.0
      %7216 = vmatpush1.msra.mxu0 0.0
      %7217 = vmatprep.subr.mxu0 0.0
      %7218 = vmatpush1.msra.mxu0 0.0
      %7219 = vmatprep.subr.mxu0 0.0
      %7220 = vmatpush1.msra.mxu0 0.0
      %7221 = vmatprep.subr.mxu0 0.0
      %7222 = vmatpush1.msra.mxu0 0.0
      %7223 = vmatprep.subr.mxu0 0.0
      %7224 = vmatpush1.msra.mxu0 0.0
      %7225 = vmatprep.subr.mxu0 0.0
      %7226 = vmatpush1.msra.mxu0 %v4054
      %7227 = vmatprep.subr.mxu0 0.0
      %7228 = vmatpush1.msra.mxu0 %v4053
      %7229 = vmatprep.subr.mxu0 0.0
      %7230 = vmatpush1.msra.mxu0 %v4052
      %7231 = vmatprep.subr.mxu0 0.0
      %7232 = vmatpush1.msra.mxu0 %v4051
      %7233 = vmatprep.subr.mxu0 0.0
      %7234 = vmatpush2.msra.mxu0 0.0
      %7235 = vmatprep.subr.mxu0 0.0
      %7236 = vmatpush2.msra.mxu0 0.0
      %7237 = vmatprep.subr.mxu0 0.0
      %7238 = vmatpush2.msra.mxu0 0.0
      %7239 = vmatprep.subr.mxu0 0.0
      %7240 = vmatpush2.msra.mxu0 0.0
      %7241 = vmatprep.subr.mxu0 0.0
      %7242 = vmatpush2.msra.mxu0 0.0
      %7243 = vmatprep.subr.mxu0 0.0
      %7244 = vmatpush2.msra.mxu0 0.0
      %7245 = vmatprep.subr.mxu0 0.0
      %7246 = vmatpush2.msra.mxu0 0.0
      %7247 = vmatprep.subr.mxu0 0.0
      %7248 = vmatpush2.msra.mxu0 0.0
      %7249 = vmatprep.subr.mxu0 0.0
      %7250 = vmatpush2.msra.mxu0 0.0
      %7251 = vmatprep.subr.mxu0 0.0
      %7252 = vmatpush2.msra.mxu0 0.0
      %7253 = vmatprep.subr.mxu0 0.0
      %7254 = vmatpush2.msra.mxu0 0.0
      %7255 = vmatprep.subr.mxu0 0.0
      %7256 = vmatpush2.msra.mxu0 0.0
      %7257 = vmatprep.subr.mxu0 0.0
      %7258 = vmatpush2.msra.mxu0 0.0
      %7259 = vmatprep.subr.mxu0 0.0
      %7260 = vmatpush2.msra.mxu0 0.0
      %7261 = vmatprep.subr.mxu0 0.0
      %7262 = vmatpush2.msra.mxu0 0.0
      %7263 = vmatprep.subr.mxu0 0.0
      %7264 = vmatpush2.msra.mxu0 0.0
      %7265 = vmatprep.mubr.f32.mxu0 0.0
      %7266 = vmatmul.mubr.f32.gmra.mxu0 %v7106
      %v7267 = vpop.f32.mrf.mxu0
      %v7268 = vadd.f32 0.0, %v7267
      %v7269 = vpop.f32.mrf.mxu0
      %7270 = vmatprep.mubr.f32.mxu0 0.0
      %7271 = vmatmul.mubr.f32.gmra.mxu0 %v7109
      %v7272 = vpop.f32.mrf.mxu0
      %v7273 = vadd.f32 0.0, %v7272
      %v7274 = vpop.f32.mrf.mxu0
      %7275 = vmatprep.mubr.f32.mxu0 0.0
      %7276 = vmatmul.mubr.f32.gmra.mxu0 %v7112
      %v7277 = vpop.f32.mrf.mxu0
      %v7278 = vadd.f32 0.0, %v7277
      %v7279 = vpop.f32.mrf.mxu0
      %7280 = vmatprep.mubr.f32.mxu0 0.0
      %7281 = vmatmul.mubr.f32.gmra.mxu0 %v7115
      %v7282 = vpop.f32.mrf.mxu0
      %v7283 = vadd.f32 0.0, %v7282
      %v7284 = vpop.f32.mrf.mxu0
      %7285 = vmatprep.mubr.f32.mxu0 0.0
      %7286 = vmatmul.mubr.f32.gmra.mxu0 %v7118
      %v7287 = vpop.f32.mrf.mxu0
      %v7288 = vadd.f32 0.0, %v7287
      %v7289 = vpop.f32.mrf.mxu0
      %7290 = vmatprep.mubr.f32.mxu0 0.0
      %7291 = vmatmul.mubr.f32.gmra.mxu0 %v7121
      %v7292 = vpop.f32.mrf.mxu0
      %v7293 = vadd.f32 0.0, %v7292
      %v7294 = vpop.f32.mrf.mxu0
      %7295 = vmatprep.mubr.f32.mxu0 0.0
      %7296 = vmatmul.mubr.f32.gmra.mxu0 %v7124
      %v7297 = vpop.f32.mrf.mxu0
      %v7298 = vadd.f32 0.0, %v7297
      %v7299 = vpop.f32.mrf.mxu0
      %7300 = vmatprep.mubr.f32.mxu0 0.0
      %7301 = vmatmul.mubr.f32.gmra.mxu0 %v7127
      %v7302 = vpop.f32.mrf.mxu0
      %v7303 = vadd.f32 0.0, %v7302
      %v7304 = vpop.f32.mrf.mxu0
      %7305 = vmatprep.mubr.f32.mxu0 0.0
      %7306 = vmatmul.mubr.f32.gmra.mxu0 %v7130
      %v7307 = vpop.f32.mrf.mxu0
      %v7308 = vadd.f32 0.0, %v7307
      %v7309 = vpop.f32.mrf.mxu0
      %7310 = vmatprep.mubr.f32.mxu0 0.0
      %7311 = vmatmul.mubr.f32.gmra.mxu0 %v7133
      %v7312 = vpop.f32.mrf.mxu0
      %v7313 = vadd.f32 0.0, %v7312
      %v7314 = vpop.f32.mrf.mxu0
      %7315 = vmatprep.mubr.f32.mxu0 0.0
      %7316 = vmatmul.mubr.f32.gmra.mxu0 %v7136
      %v7317 = vpop.f32.mrf.mxu0
      %v7318 = vadd.f32 0.0, %v7317
      %v7319 = vpop.f32.mrf.mxu0
      %7320 = vmatprep.mubr.f32.mxu0 0.0
      %7321 = vmatmul.mubr.f32.gmra.mxu0 %v7139
      %v7322 = vpop.f32.mrf.mxu0
      %v7323 = vadd.f32 0.0, %v7322
      %v7324 = vpop.f32.mrf.mxu0
      %7325 = vmatprep.mubr.f32.mxu0 0.0
      %7326 = vmatmul.mubr.f32.gmra.mxu0 %v7142
      %v7327 = vpop.f32.mrf.mxu0
      %v7328 = vadd.f32 0.0, %v7327
      %v7329 = vpop.f32.mrf.mxu0
      %7330 = vmatprep.mubr.f32.mxu0 0.0
      %7331 = vmatmul.mubr.f32.gmra.mxu0 %v7145
      %v7332 = vpop.f32.mrf.mxu0
      %v7333 = vadd.f32 0.0, %v7332
      %v7334 = vpop.f32.mrf.mxu0
      %7335 = vmatprep.mubr.f32.mxu0 0.0
      %7336 = vmatmul.mubr.f32.gmra.mxu0 %v7148
      %v7337 = vpop.f32.mrf.mxu0
      %v7338 = vadd.f32 0.0, %v7337
      %v7339 = vpop.f32.mrf.mxu0
      %7340 = vmatprep.mubr.f32.mxu0 0.0
      %7341 = vmatmul.mubr.f32.gmra.mxu0 %v7151
      %v7342 = vpop.f32.mrf.mxu0
      %v7343 = vadd.f32 0.0, %v7342
      %v7344 = vpop.f32.mrf.mxu0
      %7345 = vmatprep.mubr.f32.mxu0 0.0
      %7346 = vmatmul.mubr.f32.gmra.mxu0 %v7154
      %v7347 = vpop.f32.mrf.mxu0
      %v7348 = vadd.f32 0.0, %v7347
      %v7349 = vpop.f32.mrf.mxu0
      %7350 = vmatprep.mubr.f32.mxu0 0.0
      %7351 = vmatmul.mubr.f32.gmra.mxu0 %v7157
      %v7352 = vpop.f32.mrf.mxu0
      %v7353 = vadd.f32 0.0, %v7352
      %v7354 = vpop.f32.mrf.mxu0
      %7355 = vmatprep.mubr.f32.mxu0 0.0
      %7356 = vmatmul.mubr.f32.gmra.mxu0 %v7160
      %v7357 = vpop.f32.mrf.mxu0
      %v7358 = vadd.f32 0.0, %v7357
      %v7359 = vpop.f32.mrf.mxu0
      %7360 = vmatprep.mubr.f32.mxu0 0.0
      %7361 = vmatmul.mubr.f32.gmra.mxu0 %v7163
      %v7362 = vpop.f32.mrf.mxu0
      %v7363 = vadd.f32 0.0, %v7362
      %v7364 = vpop.f32.mrf.mxu0
      %7365 = vmatprep.mubr.f32.mxu0 0.0
      %7366 = vmatmul.mubr.f32.gmra.mxu0 %v7166
      %v7367 = vpop.f32.mrf.mxu0
      %v7368 = vadd.f32 0.0, %v7367
      %v7369 = vpop.f32.mrf.mxu0
      %7370 = vmatprep.mubr.f32.mxu0 0.0
      %7371 = vmatmul.mubr.f32.gmra.mxu0 %v7169
      %v7372 = vpop.f32.mrf.mxu0
      %v7373 = vadd.f32 0.0, %v7372
      %v7374 = vpop.f32.mrf.mxu0
      %7375 = vmatprep.mubr.f32.mxu0 0.0
      %7376 = vmatmul.mubr.f32.gmra.mxu0 %v7172
      %v7377 = vpop.f32.mrf.mxu0
      %v7378 = vadd.f32 0.0, %v7377
      %v7379 = vpop.f32.mrf.mxu0
      %7380 = vmatprep.mubr.f32.mxu0 0.0
      %7381 = vmatmul.mubr.f32.gmra.mxu0 %v7175
      %v7382 = vpop.f32.mrf.mxu0
      %v7383 = vadd.f32 0.0, %v7382
      %v7384 = vpop.f32.mrf.mxu0
      %7385 = vmatprep.mubr.f32.mxu0 0.0
      %7386 = vmatmul.mubr.f32.gmra.mxu0 %v7178
      %v7387 = vpop.f32.mrf.mxu0
      %v7388 = vadd.f32 0.0, %v7387
      %v7389 = vpop.f32.mrf.mxu0
      %7390 = vmatprep.mubr.f32.mxu0 0.0
      %7391 = vmatmul.mubr.f32.gmra.mxu0 %v7181
      %v7392 = vpop.f32.mrf.mxu0
      %v7393 = vadd.f32 0.0, %v7392
      %v7394 = vpop.f32.mrf.mxu0
      %7395 = vmatprep.mubr.f32.mxu0 0.0
      %7396 = vmatmul.mubr.f32.gmra.mxu0 %v7184
      %v7397 = vpop.f32.mrf.mxu0
      %v7398 = vadd.f32 0.0, %v7397
      %v7399 = vpop.f32.mrf.mxu0
      %7400 = vmatprep.mubr.f32.mxu0 0.0
      %7401 = vmatmul.mubr.f32.gmra.mxu0 %v7187
      %v7402 = vpop.f32.mrf.mxu0
      %v7403 = vadd.f32 0.0, %v7402
      %v7404 = vpop.f32.mrf.mxu0
      %7405 = vmatprep.mubr.f32.mxu0 0.0
      %7406 = vmatmul.mubr.f32.gmra.mxu0 %v7190
      %v7407 = vpop.f32.mrf.mxu0
      %v7408 = vadd.f32 0.0, %v7407
      %v7409 = vpop.f32.mrf.mxu0
      %7410 = vmatprep.mubr.f32.mxu0 0.0
      %7411 = vmatmul.mubr.f32.gmra.mxu0 %v7193
      %v7412 = vpop.f32.mrf.mxu0
      %v7413 = vadd.f32 0.0, %v7412
      %v7414 = vpop.f32.mrf.mxu0
      %7415 = vmatprep.mubr.f32.mxu0 0.0
      %7416 = vmatmul.mubr.f32.gmra.mxu0 %v7196
      %v7417 = vpop.f32.mrf.mxu0
      %v7418 = vadd.f32 0.0, %v7417
      %v7419 = vpop.f32.mrf.mxu0
      %7420 = vmatprep.mubr.f32.mxu0 0.0
      %7421 = vmatmul.mubr.f32.gmra.mxu0 %v7199
      %v7422 = vpop.f32.mrf.mxu0
      %v7423 = vadd.f32 0.0, %v7422
      %v7424 = vpop.f32.mrf.mxu0
      %7425 = vdwg.mxu0
      %v7426 = vadd.f32 %v7041, %v7268
      %v7427 = vadd.f32 %v7042, %v7273
      %v7428 = vadd.f32 %v7043, %v7278
      %v7429 = vadd.f32 %v7044, %v7283
      %v7430 = vadd.f32 %v7045, %v7288
      %v7431 = vadd.f32 %v7046, %v7293
      %v7432 = vadd.f32 %v7047, %v7298
      %v7433 = vadd.f32 %v7048, %v7303
      %v7434 = vadd.f32 %v7049, %v7308
      %v7435 = vadd.f32 %v7050, %v7313
      %v7436 = vadd.f32 %v7051, %v7318
      %v7437 = vadd.f32 %v7052, %v7323
      %v7438 = vadd.f32 %v7053, %v7328
      %v7439 = vadd.f32 %v7054, %v7333
      %v7440 = vadd.f32 %v7055, %v7338
      %v7441 = vadd.f32 %v7056, %v7343
      %v7442 = vadd.f32 %v7057, %v7348
      %v7443 = vadd.f32 %v7058, %v7353
      %v7444 = vadd.f32 %v7059, %v7358
      %v7445 = vadd.f32 %v7060, %v7363
      %v7446 = vadd.f32 %v7061, %v7368
      %v7447 = vadd.f32 %v7062, %v7373
      %v7448 = vadd.f32 %v7063, %v7378
      %v7449 = vadd.f32 %v7064, %v7383
      %v7450 = vadd.f32 %v7065, %v7388
      %v7451 = vadd.f32 %v7066, %v7393
      %v7452 = vadd.f32 %v7067, %v7398
      %v7453 = vadd.f32 %v7068, %v7403
      %v7454 = vadd.f32 %v7069, %v7408
      %v7455 = vadd.f32 %v7070, %v7413
      %v7456 = vadd.f32 %v7071, %v7418
      %v7457 = vadd.f32 %v7072, %v7423
      %v7459 = vlaneseq
      %v7460 = vshrl.u32 %v7459, 7
      %v7461 = vsub.s32 0, %v7460
      %v7462 = vrot.slane %v4055, %v7461
      %v7464 = vadd.f32 %v7426, %v7462
      %v7465 = vadd.f32 %v7427, %v7462
      %v7466 = vadd.f32 %v7428, %v7462
      %v7467 = vadd.f32 %v7429, %v7462
      %v7468 = vadd.f32 %v7430, %v7462
      %v7469 = vadd.f32 %v7431, %v7462
      %v7470 = vadd.f32 %v7432, %v7462
      %v7471 = vadd.f32 %v7433, %v7462
      %v7472 = vadd.f32 %v7434, %v7462
      %v7473 = vadd.f32 %v7435, %v7462
      %v7474 = vadd.f32 %v7436, %v7462
      %v7475 = vadd.f32 %v7437, %v7462
      %v7476 = vadd.f32 %v7438, %v7462
      %v7477 = vadd.f32 %v7439, %v7462
      %v7478 = vadd.f32 %v7440, %v7462
      %v7479 = vadd.f32 %v7441, %v7462
      %v7480 = vadd.f32 %v7442, %v7462
      %v7481 = vadd.f32 %v7443, %v7462
      %v7482 = vadd.f32 %v7444, %v7462
      %v7483 = vadd.f32 %v7445, %v7462
      %v7484 = vadd.f32 %v7446, %v7462
      %v7485 = vadd.f32 %v7447, %v7462
      %v7486 = vadd.f32 %v7448, %v7462
      %v7487 = vadd.f32 %v7449, %v7462
      %v7488 = vadd.f32 %v7450, %v7462
      %v7489 = vadd.f32 %v7451, %v7462
      %v7490 = vadd.f32 %v7452, %v7462
      %v7491 = vadd.f32 %v7453, %v7462
      %v7492 = vadd.f32 %v7454, %v7462
      %v7493 = vadd.f32 %v7455, %v7462
      %v7494 = vadd.f32 %v7456, %v7462
      %v7495 = vadd.f32 %v7457, %v7462
      %v7496 = vmax.f32 %v7464, 0.0
      %v7497 = vmax.f32 %v7465, 0.0
      %v7498 = vmax.f32 %v7466, 0.0
      %v7499 = vmax.f32 %v7467, 0.0
      %v7500 = vmax.f32 %v7468, 0.0
      %v7501 = vmax.f32 %v7469, 0.0
      %v7502 = vmax.f32 %v7470, 0.0
      %v7503 = vmax.f32 %v7471, 0.0
      %v7504 = vmax.f32 %v7472, 0.0
      %v7505 = vmax.f32 %v7473, 0.0
      %v7506 = vmax.f32 %v7474, 0.0
      %v7507 = vmax.f32 %v7475, 0.0
      %v7508 = vmax.f32 %v7476, 0.0
      %v7509 = vmax.f32 %v7477, 0.0
      %v7510 = vmax.f32 %v7478, 0.0
      %v7511 = vmax.f32 %v7479, 0.0
      %v7512 = vmax.f32 %v7480, 0.0
      %v7513 = vmax.f32 %v7481, 0.0
      %v7514 = vmax.f32 %v7482, 0.0
      %v7515 = vmax.f32 %v7483, 0.0
      %v7516 = vmax.f32 %v7484, 0.0
      %v7517 = vmax.f32 %v7485, 0.0
      %v7518 = vmax.f32 %v7486, 0.0
      %v7519 = vmax.f32 %v7487, 0.0
      %v7520 = vmax.f32 %v7488, 0.0
      %v7521 = vmax.f32 %v7489, 0.0
      %v7522 = vmax.f32 %v7490, 0.0
      %v7523 = vmax.f32 %v7491, 0.0
      %v7524 = vmax.f32 %v7492, 0.0
      %v7525 = vmax.f32 %v7493, 0.0
      %v7526 = vmax.f32 %v7494, 0.0
      %v7527 = vmax.f32 %v7495, 0.0
      %7528 = vst.msk [vmem:[%s383 + $0x8] sm:$0xff] %vm373, %v7496
      %7529 = vst.msk [vmem:[%s383 + $0x10] sm:$0xff] %vm373, %v7497
      %7530 = vst.msk [vmem:[%s383 + $0x28] sm:$0xff] %vm373, %v7498
      %7531 = vst.msk [vmem:[%s383 + $0x30] sm:$0xff] %vm373, %v7499
      %7532 = vst.msk [vmem:[%s383 + $0x48] sm:$0xff] %vm373, %v7500
      %7533 = vst.msk [vmem:[%s383 + $0x50] sm:$0xff] %vm373, %v7501
      %7534 = vst.msk [vmem:[%s383 + $0x68] sm:$0xff] %vm373, %v7502
      %7535 = vst.msk [vmem:[%s383 + $0x70] sm:$0xff] %vm373, %v7503
      %7536 = vst.msk [vmem:[%s383 + $0x88] sm:$0xff] %vm373, %v7504
      %7537 = vst.msk [vmem:[%s383 + $0x90] sm:$0xff] %vm373, %v7505
      %7538 = vst.msk [vmem:[%s383 + $0xa8] sm:$0xff] %vm373, %v7506
      %7539 = vst.msk [vmem:[%s383 + $0xb0] sm:$0xff] %vm373, %v7507
      %7540 = vst.msk [vmem:[%s383 + $0xc8] sm:$0xff] %vm373, %v7508
      %7541 = vst.msk [vmem:[%s383 + $0xd0] sm:$0xff] %vm373, %v7509
      %7542 = vst.msk [vmem:[%s383 + $0xe8] sm:$0xff] %vm373, %v7510
      %7543 = vst.msk [vmem:[%s383 + $0xf0] sm:$0xff] %vm373, %v7511
      %7544 = vst.msk [vmem:[%s383 + $0x108] sm:$0xff] %vm373, %v7512
      %7545 = vst.msk [vmem:[%s383 + $0x110] sm:$0xff] %vm373, %v7513
      %7546 = vst.msk [vmem:[%s383 + $0x128] sm:$0xff] %vm373, %v7514
      %7547 = vst.msk [vmem:[%s383 + $0x130] sm:$0xff] %vm373, %v7515
      %7548 = vst.msk [vmem:[%s383 + $0x148] sm:$0xff] %vm373, %v7516
      %7549 = vst.msk [vmem:[%s383 + $0x150] sm:$0xff] %vm373, %v7517
      %7550 = vst.msk [vmem:[%s383 + $0x168] sm:$0xff] %vm373, %v7518
      %7551 = vst.msk [vmem:[%s383 + $0x170] sm:$0xff] %vm373, %v7519
      %7552 = vst.msk [vmem:[%s383 + $0x188] sm:$0xff] %vm373, %v7520
      %7553 = vst.msk [vmem:[%s383 + $0x190] sm:$0xff] %vm373, %v7521
      %7554 = vst.msk [vmem:[%s383 + $0x1a8] sm:$0xff] %vm373, %v7522
      %7555 = vst.msk [vmem:[%s383 + $0x1b0] sm:$0xff] %vm373, %v7523
      %7556 = vst.msk [vmem:[%s383 + $0x1c8] sm:$0xff] %vm373, %v7524
      %7557 = vst.msk [vmem:[%s383 + $0x1d0] sm:$0xff] %vm373, %v7525
      %7558 = vst.msk [vmem:[%s383 + $0x1e8] sm:$0xff] %vm373, %v7526
      %7559 = vst.msk [vmem:[%s383 + $0x1f0] sm:$0xff] %vm373, %v7527
      %v7560 = vld [vmem:[%s5] sm:$0xff]
      %v7561 = vld [vmem:[%s5 + $0x8] sm:$0xff]
      %v7562 = vld [vmem:[%s5 + $0x10] sm:$0xff]
      %v7563 = vld [vmem:[%s5 + $0x18] sm:$0xff]
      %v7564 = vld [vmem:[%s5 + $0x20] sm:$0xff]
      %v7565 = vld [vmem:[%s5 + $0x28] sm:$0xff]
      %v7566 = vld [vmem:[%s5 + $0x30] sm:$0xff]
      %v7567 = vld [vmem:[%s5 + $0x38] sm:$0xff]
      %v7568 = vld [vmem:[%s5 + $0x40] sm:$0xff]
      %v7569 = vld [vmem:[%s5 + $0x48] sm:$0xff]
      %v7570 = vld [vmem:[%s5 + $0x50] sm:$0xff]
      %v7571 = vld [vmem:[%s5 + $0x58] sm:$0xff]
      %v7572 = vld [vmem:[%s5 + $0x60] sm:$0xff]
      %v7573 = vld [vmem:[%s5 + $0x68] sm:$0xff]
      %v7574 = vld [vmem:[%s5 + $0x70] sm:$0xff]
      %v7575 = vld [vmem:[%s5 + $0x78] sm:$0xff]
      %v7576 = vld [vmem:[%s5 + $0x80] sm:$0xff]
      %v7577 = vld [vmem:[%s5 + $0x88] sm:$0xff]
      %v7578 = vld [vmem:[%s5 + $0x90] sm:$0xff]
      %v7579 = vld [vmem:[%s5 + $0x98] sm:$0xff]
      %v7580 = vld [vmem:[%s5 + $0xa0] sm:$0xff]
      %v7581 = vld [vmem:[%s5 + $0xa8] sm:$0xff]
      %v7582 = vld [vmem:[%s5 + $0xb0] sm:$0xff]
      %v7583 = vld [vmem:[%s5 + $0xb8] sm:$0xff]
      %v7584 = vld [vmem:[%s5 + $0xc0] sm:$0xff]
      %v7585 = vld [vmem:[%s5 + $0xc8] sm:$0xff]
      %v7586 = vld [vmem:[%s5 + $0xd0] sm:$0xff]
      %v7587 = vld [vmem:[%s5 + $0xd8] sm:$0xff]
      %v7588 = vld [vmem:[%s5 + $0xe0] sm:$0xff]
      %v7589 = vld [vmem:[%s5 + $0xe8] sm:$0xff]
      %v7590 = vld [vmem:[%s5 + $0xf0] sm:$0xff]
      %v7591 = vld [vmem:[%s5 + $0xf8] sm:$0xff]
      %v7592 = vld [vmem:[%s5 + $0x100] sm:$0xff]
      %v7593 = vld [vmem:[%s5 + $0x108] sm:$0xff]
      %v7594 = vld [vmem:[%s5 + $0x110] sm:$0xff]
      %v7595 = vld [vmem:[%s5 + $0x118] sm:$0xff]
      %v7596 = vld [vmem:[%s6] sm:$0x1]
      %v7597 = vld [vmem:[#allocation3 + $0x7] sm:$0xff]
      %v7598 = vld [vmem:[#allocation3 + $0xf] sm:$0xff]
      %v7599 = vld [vmem:[#allocation3 + $0x27] sm:$0xff]
      %v7600 = vld [vmem:[#allocation3 + $0x2f] sm:$0xff]
      %v7601 = vld [vmem:[#allocation3 + $0x47] sm:$0xff]
      %v7602 = vld [vmem:[#allocation3 + $0x4f] sm:$0xff]
      %v7603 = vld [vmem:[#allocation3 + $0x67] sm:$0xff]
      %v7604 = vld [vmem:[#allocation3 + $0x6f] sm:$0xff]
      %v7605 = vld [vmem:[#allocation3 + $0x87] sm:$0xff]
      %v7606 = vld [vmem:[#allocation3 + $0x8f] sm:$0xff]
      %v7607 = vld [vmem:[#allocation3 + $0xa7] sm:$0xff]
      %v7608 = vld [vmem:[#allocation3 + $0xaf] sm:$0xff]
      %v7609 = vld [vmem:[#allocation3 + $0xc7] sm:$0xff]
      %v7610 = vld [vmem:[#allocation3 + $0xcf] sm:$0xff]
      %v7611 = vld [vmem:[#allocation3 + $0xe7] sm:$0xff]
      %v7612 = vld [vmem:[#allocation3 + $0xef] sm:$0xff]
      %v7613 = vld [vmem:[#allocation3 + $0x107] sm:$0xff]
      %v7614 = vld [vmem:[#allocation3 + $0x10f] sm:$0xff]
      %v7615 = vld [vmem:[#allocation3 + $0x127] sm:$0xff]
      %v7616 = vld [vmem:[#allocation3 + $0x12f] sm:$0xff]
      %v7617 = vld [vmem:[#allocation3 + $0x147] sm:$0xff]
      %v7618 = vld [vmem:[#allocation3 + $0x14f] sm:$0xff]
      %v7619 = vld [vmem:[#allocation3 + $0x167] sm:$0xff]
      %v7620 = vld [vmem:[#allocation3 + $0x16f] sm:$0xff]
      %v7621 = vld [vmem:[#allocation3 + $0x187] sm:$0xff]
      %v7622 = vld [vmem:[#allocation3 + $0x18f] sm:$0xff]
      %v7623 = vld [vmem:[#allocation3 + $0x1a7] sm:$0xff]
      %v7624 = vld [vmem:[#allocation3 + $0x1af] sm:$0xff]
      %v7625 = vld [vmem:[#allocation3 + $0x1c7] sm:$0xff]
      %v7626 = vld [vmem:[#allocation3 + $0x1cf] sm:$0xff]
      %v7627 = vld [vmem:[#allocation3 + $0x1e7] sm:$0xff]
      %v7628 = vld [vmem:[#allocation3 + $0x1ef] sm:$0xff]
      %v7629 = vld [vmem:[#allocation3 + $0x8] sm:$0xff]
      %v7630 = vld [vmem:[#allocation3 + $0x10] sm:$0xff]
      %v7631 = vld [vmem:[#allocation3 + $0x28] sm:$0xff]
      %v7632 = vld [vmem:[#allocation3 + $0x30] sm:$0xff]
      %v7633 = vld [vmem:[#allocation3 + $0x48] sm:$0xff]
      %v7634 = vld [vmem:[#allocation3 + $0x50] sm:$0xff]
      %v7635 = vld [vmem:[#allocation3 + $0x68] sm:$0xff]
      %v7636 = vld [vmem:[#allocation3 + $0x70] sm:$0xff]
      %v7637 = vld [vmem:[#allocation3 + $0x88] sm:$0xff]
      %v7638 = vld [vmem:[#allocation3 + $0x90] sm:$0xff]
      %v7639 = vld [vmem:[#allocation3 + $0xa8] sm:$0xff]
      %v7640 = vld [vmem:[#allocation3 + $0xb0] sm:$0xff]
      %v7641 = vld [vmem:[#allocation3 + $0xc8] sm:$0xff]
      %v7642 = vld [vmem:[#allocation3 + $0xd0] sm:$0xff]
      %v7643 = vld [vmem:[#allocation3 + $0xe8] sm:$0xff]
      %v7644 = vld [vmem:[#allocation3 + $0xf0] sm:$0xff]
      %v7645 = vld [vmem:[#allocation3 + $0x108] sm:$0xff]
      %v7646 = vld [vmem:[#allocation3 + $0x110] sm:$0xff]
      %v7647 = vld [vmem:[#allocation3 + $0x128] sm:$0xff]
      %v7648 = vld [vmem:[#allocation3 + $0x130] sm:$0xff]
      %v7649 = vld [vmem:[#allocation3 + $0x148] sm:$0xff]
      %v7650 = vld [vmem:[#allocation3 + $0x150] sm:$0xff]
      %v7651 = vld [vmem:[#allocation3 + $0x168] sm:$0xff]
      %v7652 = vld [vmem:[#allocation3 + $0x170] sm:$0xff]
      %v7653 = vld [vmem:[#allocation3 + $0x188] sm:$0xff]
      %v7654 = vld [vmem:[#allocation3 + $0x190] sm:$0xff]
      %v7655 = vld [vmem:[#allocation3 + $0x1a8] sm:$0xff]
      %v7656 = vld [vmem:[#allocation3 + $0x1b0] sm:$0xff]
      %v7657 = vld [vmem:[#allocation3 + $0x1c8] sm:$0xff]
      %v7658 = vld [vmem:[#allocation3 + $0x1d0] sm:$0xff]
      %v7659 = vld [vmem:[#allocation3 + $0x1e8] sm:$0xff]
      %v7660 = vld [vmem:[#allocation3 + $0x1f0] sm:$0xff]
      %v7662 = vsel %vm373, %v7629, 0
      %v7665 = vsel %vm373, %v7630, 0
      %v7668 = vsel %vm373, %v7631, 0
      %v7671 = vsel %vm373, %v7632, 0
      %v7674 = vsel %vm373, %v7633, 0
      %v7677 = vsel %vm373, %v7634, 0
      %v7680 = vsel %vm373, %v7635, 0
      %v7683 = vsel %vm373, %v7636, 0
      %v7686 = vsel %vm373, %v7637, 0
      %v7689 = vsel %vm373, %v7638, 0
      %v7692 = vsel %vm373, %v7639, 0
      %v7695 = vsel %vm373, %v7640, 0
      %v7698 = vsel %vm373, %v7641, 0
      %v7701 = vsel %vm373, %v7642, 0
      %v7704 = vsel %vm373, %v7643, 0
      %v7707 = vsel %vm373, %v7644, 0
      %v7710 = vsel %vm373, %v7645, 0
      %v7713 = vsel %vm373, %v7646, 0
      %v7716 = vsel %vm373, %v7647, 0
      %v7719 = vsel %vm373, %v7648, 0
      %v7722 = vsel %vm373, %v7649, 0
      %v7725 = vsel %vm373, %v7650, 0
      %v7728 = vsel %vm373, %v7651, 0
      %v7731 = vsel %vm373, %v7652, 0
      %v7734 = vsel %vm373, %v7653, 0
      %v7737 = vsel %vm373, %v7654, 0
      %v7740 = vsel %vm373, %v7655, 0
      %v7743 = vsel %vm373, %v7656, 0
      %v7746 = vsel %vm373, %v7657, 0
      %v7749 = vsel %vm373, %v7658, 0
      %v7752 = vsel %vm373, %v7659, 0
      %v7755 = vsel %vm373, %v7660, 0
      %7757 = vmatprep.subr.mxu0 0.0
      %7758 = vmatpush1.msra.mxu0 0.0
      %7759 = vmatprep.subr.mxu0 0.0
      %7760 = vmatpush1.msra.mxu0 0.0
      %7761 = vmatprep.subr.mxu0 0.0
      %7762 = vmatpush1.msra.mxu0 0.0
      %7763 = vmatprep.subr.mxu0 0.0
      %7764 = vmatpush1.msra.mxu0 0.0
      %7765 = vmatprep.subr.mxu0 0.0
      %7766 = vmatpush1.msra.mxu0 0.0
      %7767 = vmatprep.subr.mxu0 0.0
      %7768 = vmatpush1.msra.mxu0 0.0
      %7769 = vmatprep.subr.mxu0 0.0
      %7770 = vmatpush1.msra.mxu0 0.0
      %7771 = vmatprep.subr.mxu0 0.0
      %7772 = vmatpush1.msra.mxu0 0.0
      %7773 = vmatprep.subr.mxu0 0.0
      %7774 = vmatpush1.msra.mxu0 0.0
      %7775 = vmatprep.subr.mxu0 0.0
      %7776 = vmatpush1.msra.mxu0 0.0
      %7777 = vmatprep.subr.mxu0 0.0
      %7778 = vmatpush1.msra.mxu0 0.0
      %7779 = vmatprep.subr.mxu0 0.0
      %7780 = vmatpush1.msra.mxu0 0.0
      %7781 = vmatprep.subr.mxu0 0.0
      %7782 = vmatpush1.msra.mxu0 %v7567
      %7783 = vmatprep.subr.mxu0 0.0
      %7784 = vmatpush1.msra.mxu0 %v7566
      %7785 = vmatprep.subr.mxu0 0.0
      %7786 = vmatpush1.msra.mxu0 %v7565
      %7787 = vmatprep.subr.mxu0 0.0
      %7788 = vmatpush1.msra.mxu0 %v7564
      %7789 = vmatprep.subr.mxu0 0.0
      %7790 = vmatpush2.msra.mxu0 0.0
      %7791 = vmatprep.subr.mxu0 0.0
      %7792 = vmatpush2.msra.mxu0 0.0
      %7793 = vmatprep.subr.mxu0 0.0
      %7794 = vmatpush2.msra.mxu0 0.0
      %7795 = vmatprep.subr.mxu0 0.0
      %7796 = vmatpush2.msra.mxu0 0.0
      %7797 = vmatprep.subr.mxu0 0.0
      %7798 = vmatpush2.msra.mxu0 0.0
      %7799 = vmatprep.subr.mxu0 0.0
      %7800 = vmatpush2.msra.mxu0 0.0
      %7801 = vmatprep.subr.mxu0 0.0
      %7802 = vmatpush2.msra.mxu0 0.0
      %7803 = vmatprep.subr.mxu0 0.0
      %7804 = vmatpush2.msra.mxu0 0.0
      %7805 = vmatprep.subr.mxu0 0.0
      %7806 = vmatpush2.msra.mxu0 0.0
      %7807 = vmatprep.subr.mxu0 0.0
      %7808 = vmatpush2.msra.mxu0 0.0
      %7809 = vmatprep.subr.mxu0 0.0
      %7810 = vmatpush2.msra.mxu0 0.0
      %7811 = vmatprep.subr.mxu0 0.0
      %7812 = vmatpush2.msra.mxu0 0.0
      %7813 = vmatprep.subr.mxu0 0.0
      %7814 = vmatpush2.msra.mxu0 0.0
      %7815 = vmatprep.subr.mxu0 0.0
      %7816 = vmatpush2.msra.mxu0 0.0
      %7817 = vmatprep.subr.mxu0 0.0
      %7818 = vmatpush2.msra.mxu0 0.0
      %7819 = vmatprep.subr.mxu0 0.0
      %7820 = vmatpush2.msra.mxu0 0.0
      %7821 = vmatprep.mubr.f32.mxu0 0.0
      %7822 = vmatmul.mubr.f32.gmra.mxu0 %v7662
      %v7823 = vpop.f32.mrf.mxu0
      %v7824 = vadd.f32 0.0, %v7823
      %v7825 = vpop.f32.mrf.mxu0
      %7826 = vmatprep.mubr.f32.mxu0 0.0
      %7827 = vmatmul.mubr.f32.gmra.mxu0 %v7665
      %v7828 = vpop.f32.mrf.mxu0
      %v7829 = vadd.f32 0.0, %v7828
      %v7830 = vpop.f32.mrf.mxu0
      %7831 = vmatprep.mubr.f32.mxu0 0.0
      %7832 = vmatmul.mubr.f32.gmra.mxu0 %v7668
      %v7833 = vpop.f32.mrf.mxu0
      %v7834 = vadd.f32 0.0, %v7833
      %v7835 = vpop.f32.mrf.mxu0
      %7836 = vmatprep.mubr.f32.mxu0 0.0
      %7837 = vmatmul.mubr.f32.gmra.mxu0 %v7671
      %v7838 = vpop.f32.mrf.mxu0
      %v7839 = vadd.f32 0.0, %v7838
      %v7840 = vpop.f32.mrf.mxu0
      %7841 = vmatprep.mubr.f32.mxu0 0.0
      %7842 = vmatmul.mubr.f32.gmra.mxu0 %v7674
      %v7843 = vpop.f32.mrf.mxu0
      %v7844 = vadd.f32 0.0, %v7843
      %v7845 = vpop.f32.mrf.mxu0
      %7846 = vmatprep.mubr.f32.mxu0 0.0
      %7847 = vmatmul.mubr.f32.gmra.mxu0 %v7677
      %v7848 = vpop.f32.mrf.mxu0
      %v7849 = vadd.f32 0.0, %v7848
      %v7850 = vpop.f32.mrf.mxu0
      %7851 = vmatprep.mubr.f32.mxu0 0.0
      %7852 = vmatmul.mubr.f32.gmra.mxu0 %v7680
      %v7853 = vpop.f32.mrf.mxu0
      %v7854 = vadd.f32 0.0, %v7853
      %v7855 = vpop.f32.mrf.mxu0
      %7856 = vmatprep.mubr.f32.mxu0 0.0
      %7857 = vmatmul.mubr.f32.gmra.mxu0 %v7683
      %v7858 = vpop.f32.mrf.mxu0
      %v7859 = vadd.f32 0.0, %v7858
      %v7860 = vpop.f32.mrf.mxu0
      %7861 = vmatprep.mubr.f32.mxu0 0.0
      %7862 = vmatmul.mubr.f32.gmra.mxu0 %v7686
      %v7863 = vpop.f32.mrf.mxu0
      %v7864 = vadd.f32 0.0, %v7863
      %v7865 = vpop.f32.mrf.mxu0
      %7866 = vmatprep.mubr.f32.mxu0 0.0
      %7867 = vmatmul.mubr.f32.gmra.mxu0 %v7689
      %v7868 = vpop.f32.mrf.mxu0
      %v7869 = vadd.f32 0.0, %v7868
      %v7870 = vpop.f32.mrf.mxu0
      %7871 = vmatprep.mubr.f32.mxu0 0.0
      %7872 = vmatmul.mubr.f32.gmra.mxu0 %v7692
      %v7873 = vpop.f32.mrf.mxu0
      %v7874 = vadd.f32 0.0, %v7873
      %v7875 = vpop.f32.mrf.mxu0
      %7876 = vmatprep.mubr.f32.mxu0 0.0
      %7877 = vmatmul.mubr.f32.gmra.mxu0 %v7695
      %v7878 = vpop.f32.mrf.mxu0
      %v7879 = vadd.f32 0.0, %v7878
      %v7880 = vpop.f32.mrf.mxu0
      %7881 = vmatprep.mubr.f32.mxu0 0.0
      %7882 = vmatmul.mubr.f32.gmra.mxu0 %v7698
      %v7883 = vpop.f32.mrf.mxu0
      %v7884 = vadd.f32 0.0, %v7883
      %v7885 = vpop.f32.mrf.mxu0
      %7886 = vmatprep.mubr.f32.mxu0 0.0
      %7887 = vmatmul.mubr.f32.gmra.mxu0 %v7701
      %v7888 = vpop.f32.mrf.mxu0
      %v7889 = vadd.f32 0.0, %v7888
      %v7890 = vpop.f32.mrf.mxu0
      %7891 = vmatprep.mubr.f32.mxu0 0.0
      %7892 = vmatmul.mubr.f32.gmra.mxu0 %v7704
      %v7893 = vpop.f32.mrf.mxu0
      %v7894 = vadd.f32 0.0, %v7893
      %v7895 = vpop.f32.mrf.mxu0
      %7896 = vmatprep.mubr.f32.mxu0 0.0
      %7897 = vmatmul.mubr.f32.gmra.mxu0 %v7707
      %v7898 = vpop.f32.mrf.mxu0
      %v7899 = vadd.f32 0.0, %v7898
      %v7900 = vpop.f32.mrf.mxu0
      %7901 = vmatprep.mubr.f32.mxu0 0.0
      %7902 = vmatmul.mubr.f32.gmra.mxu0 %v7710
      %v7903 = vpop.f32.mrf.mxu0
      %v7904 = vadd.f32 0.0, %v7903
      %v7905 = vpop.f32.mrf.mxu0
      %7906 = vmatprep.mubr.f32.mxu0 0.0
      %7907 = vmatmul.mubr.f32.gmra.mxu0 %v7713
      %v7908 = vpop.f32.mrf.mxu0
      %v7909 = vadd.f32 0.0, %v7908
      %v7910 = vpop.f32.mrf.mxu0
      %7911 = vmatprep.mubr.f32.mxu0 0.0
      %7912 = vmatmul.mubr.f32.gmra.mxu0 %v7716
      %v7913 = vpop.f32.mrf.mxu0
      %v7914 = vadd.f32 0.0, %v7913
      %v7915 = vpop.f32.mrf.mxu0
      %7916 = vmatprep.mubr.f32.mxu0 0.0
      %7917 = vmatmul.mubr.f32.gmra.mxu0 %v7719
      %v7918 = vpop.f32.mrf.mxu0
      %v7919 = vadd.f32 0.0, %v7918
      %v7920 = vpop.f32.mrf.mxu0
      %7921 = vmatprep.mubr.f32.mxu0 0.0
      %7922 = vmatmul.mubr.f32.gmra.mxu0 %v7722
      %v7923 = vpop.f32.mrf.mxu0
      %v7924 = vadd.f32 0.0, %v7923
      %v7925 = vpop.f32.mrf.mxu0
      %7926 = vmatprep.mubr.f32.mxu0 0.0
      %7927 = vmatmul.mubr.f32.gmra.mxu0 %v7725
      %v7928 = vpop.f32.mrf.mxu0
      %v7929 = vadd.f32 0.0, %v7928
      %v7930 = vpop.f32.mrf.mxu0
      %7931 = vmatprep.mubr.f32.mxu0 0.0
      %7932 = vmatmul.mubr.f32.gmra.mxu0 %v7728
      %v7933 = vpop.f32.mrf.mxu0
      %v7934 = vadd.f32 0.0, %v7933
      %v7935 = vpop.f32.mrf.mxu0
      %7936 = vmatprep.mubr.f32.mxu0 0.0
      %7937 = vmatmul.mubr.f32.gmra.mxu0 %v7731
      %v7938 = vpop.f32.mrf.mxu0
      %v7939 = vadd.f32 0.0, %v7938
      %v7940 = vpop.f32.mrf.mxu0
      %7941 = vmatprep.mubr.f32.mxu0 0.0
      %7942 = vmatmul.mubr.f32.gmra.mxu0 %v7734
      %v7943 = vpop.f32.mrf.mxu0
      %v7944 = vadd.f32 0.0, %v7943
      %v7945 = vpop.f32.mrf.mxu0
      %7946 = vmatprep.mubr.f32.mxu0 0.0
      %7947 = vmatmul.mubr.f32.gmra.mxu0 %v7737
      %v7948 = vpop.f32.mrf.mxu0
      %v7949 = vadd.f32 0.0, %v7948
      %v7950 = vpop.f32.mrf.mxu0
      %7951 = vmatprep.mubr.f32.mxu0 0.0
      %7952 = vmatmul.mubr.f32.gmra.mxu0 %v7740
      %v7953 = vpop.f32.mrf.mxu0
      %v7954 = vadd.f32 0.0, %v7953
      %v7955 = vpop.f32.mrf.mxu0
      %7956 = vmatprep.mubr.f32.mxu0 0.0
      %7957 = vmatmul.mubr.f32.gmra.mxu0 %v7743
      %v7958 = vpop.f32.mrf.mxu0
      %v7959 = vadd.f32 0.0, %v7958
      %v7960 = vpop.f32.mrf.mxu0
      %7961 = vmatprep.mubr.f32.mxu0 0.0
      %7962 = vmatmul.mubr.f32.gmra.mxu0 %v7746
      %v7963 = vpop.f32.mrf.mxu0
      %v7964 = vadd.f32 0.0, %v7963
      %v7965 = vpop.f32.mrf.mxu0
      %7966 = vmatprep.mubr.f32.mxu0 0.0
      %7967 = vmatmul.mubr.f32.gmra.mxu0 %v7749
      %v7968 = vpop.f32.mrf.mxu0
      %v7969 = vadd.f32 0.0, %v7968
      %v7970 = vpop.f32.mrf.mxu0
      %7971 = vmatprep.mubr.f32.mxu0 0.0
      %7972 = vmatmul.mubr.f32.gmra.mxu0 %v7752
      %v7973 = vpop.f32.mrf.mxu0
      %v7974 = vadd.f32 0.0, %v7973
      %v7975 = vpop.f32.mrf.mxu0
      %7976 = vmatprep.mubr.f32.mxu0 0.0
      %7977 = vmatmul.mubr.f32.gmra.mxu0 %v7755
      %v7978 = vpop.f32.mrf.mxu0
      %v7979 = vadd.f32 0.0, %v7978
      %v7980 = vpop.f32.mrf.mxu0
      %7981 = vdwg.mxu0
      %v7983 = vsel %vm373, %v7597, 0
      %v7986 = vsel %vm373, %v7598, 0
      %v7989 = vsel %vm373, %v7599, 0
      %v7992 = vsel %vm373, %v7600, 0
      %v7995 = vsel %vm373, %v7601, 0
      %v7998 = vsel %vm373, %v7602, 0
      %v8001 = vsel %vm373, %v7603, 0
      %v8004 = vsel %vm373, %v7604, 0
      %v8007 = vsel %vm373, %v7605, 0
      %v8010 = vsel %vm373, %v7606, 0
      %v8013 = vsel %vm373, %v7607, 0
      %v8016 = vsel %vm373, %v7608, 0
      %v8019 = vsel %vm373, %v7609, 0
      %v8022 = vsel %vm373, %v7610, 0
      %v8025 = vsel %vm373, %v7611, 0
      %v8028 = vsel %vm373, %v7612, 0
      %v8031 = vsel %vm373, %v7613, 0
      %v8034 = vsel %vm373, %v7614, 0
      %v8037 = vsel %vm373, %v7615, 0
      %v8040 = vsel %vm373, %v7616, 0
      %v8043 = vsel %vm373, %v7617, 0
      %v8046 = vsel %vm373, %v7618, 0
      %v8049 = vsel %vm373, %v7619, 0
      %v8052 = vsel %vm373, %v7620, 0
      %v8055 = vsel %vm373, %v7621, 0
      %v8058 = vsel %vm373, %v7622, 0
      %v8061 = vsel %vm373, %v7623, 0
      %v8064 = vsel %vm373, %v7624, 0
      %v8067 = vsel %vm373, %v7625, 0
      %v8070 = vsel %vm373, %v7626, 0
      %v8073 = vsel %vm373, %v7627, 0
      %v8076 = vsel %vm373, %v7628, 0
      %8078 = vmatprep.subr.mxu0 0.0
      %8079 = vmatpush1.msra.mxu0 0.0
      %8080 = vmatprep.subr.mxu0 0.0
      %8081 = vmatpush1.msra.mxu0 0.0
      %8082 = vmatprep.subr.mxu0 0.0
      %8083 = vmatpush1.msra.mxu0 0.0
      %8084 = vmatprep.subr.mxu0 0.0
      %8085 = vmatpush1.msra.mxu0 0.0
      %8086 = vmatprep.subr.mxu0 0.0
      %8087 = vmatpush1.msra.mxu0 0.0
      %8088 = vmatprep.subr.mxu0 0.0
      %8089 = vmatpush1.msra.mxu0 0.0
      %8090 = vmatprep.subr.mxu0 0.0
      %8091 = vmatpush1.msra.mxu0 0.0
      %8092 = vmatprep.subr.mxu0 0.0
      %8093 = vmatpush1.msra.mxu0 0.0
      %8094 = vmatprep.subr.mxu0 0.0
      %8095 = vmatpush1.msra.mxu0 0.0
      %8096 = vmatprep.subr.mxu0 0.0
      %8097 = vmatpush1.msra.mxu0 0.0
      %8098 = vmatprep.subr.mxu0 0.0
      %8099 = vmatpush1.msra.mxu0 0.0
      %8100 = vmatprep.subr.mxu0 0.0
      %8101 = vmatpush1.msra.mxu0 0.0
      %8102 = vmatprep.subr.mxu0 0.0
      %8103 = vmatpush1.msra.mxu0 %v7563
      %8104 = vmatprep.subr.mxu0 0.0
      %8105 = vmatpush1.msra.mxu0 %v7562
      %8106 = vmatprep.subr.mxu0 0.0
      %8107 = vmatpush1.msra.mxu0 %v7561
      %8108 = vmatprep.subr.mxu0 0.0
      %8109 = vmatpush1.msra.mxu0 %v7560
      %8110 = vmatprep.subr.mxu0 0.0
      %8111 = vmatpush2.msra.mxu0 0.0
      %8112 = vmatprep.subr.mxu0 0.0
      %8113 = vmatpush2.msra.mxu0 0.0
      %8114 = vmatprep.subr.mxu0 0.0
      %8115 = vmatpush2.msra.mxu0 0.0
      %8116 = vmatprep.subr.mxu0 0.0
      %8117 = vmatpush2.msra.mxu0 0.0
      %8118 = vmatprep.subr.mxu0 0.0
      %8119 = vmatpush2.msra.mxu0 0.0
      %8120 = vmatprep.subr.mxu0 0.0
      %8121 = vmatpush2.msra.mxu0 0.0
      %8122 = vmatprep.subr.mxu0 0.0
      %8123 = vmatpush2.msra.mxu0 0.0
      %8124 = vmatprep.subr.mxu0 0.0
      %8125 = vmatpush2.msra.mxu0 0.0
      %8126 = vmatprep.subr.mxu0 0.0
      %8127 = vmatpush2.msra.mxu0 0.0
      %8128 = vmatprep.subr.mxu0 0.0
      %8129 = vmatpush2.msra.mxu0 0.0
      %8130 = vmatprep.subr.mxu0 0.0
      %8131 = vmatpush2.msra.mxu0 0.0
      %8132 = vmatprep.subr.mxu0 0.0
      %8133 = vmatpush2.msra.mxu0 0.0
      %8134 = vmatprep.subr.mxu0 0.0
      %8135 = vmatpush2.msra.mxu0 0.0
      %8136 = vmatprep.subr.mxu0 0.0
      %8137 = vmatpush2.msra.mxu0 0.0
      %8138 = vmatprep.subr.mxu0 0.0
      %8139 = vmatpush2.msra.mxu0 0.0
      %8140 = vmatprep.subr.mxu0 0.0
      %8141 = vmatpush2.msra.mxu0 0.0
      %8142 = vmatprep.mubr.f32.mxu0 0.0
      %8143 = vmatmul.mubr.f32.gmra.mxu0 %v7983
      %v8144 = vpop.f32.mrf.mxu0
      %v8145 = vadd.f32 %v7824, %v8144
      %v8146 = vpop.f32.mrf.mxu0
      %8147 = vmatprep.mubr.f32.mxu0 0.0
      %8148 = vmatmul.mubr.f32.gmra.mxu0 %v7986
      %v8149 = vpop.f32.mrf.mxu0
      %v8150 = vadd.f32 %v7829, %v8149
      %v8151 = vpop.f32.mrf.mxu0
      %8152 = vmatprep.mubr.f32.mxu0 0.0
      %8153 = vmatmul.mubr.f32.gmra.mxu0 %v7989
      %v8154 = vpop.f32.mrf.mxu0
      %v8155 = vadd.f32 %v7834, %v8154
      %v8156 = vpop.f32.mrf.mxu0
      %8157 = vmatprep.mubr.f32.mxu0 0.0
      %8158 = vmatmul.mubr.f32.gmra.mxu0 %v7992
      %v8159 = vpop.f32.mrf.mxu0
      %v8160 = vadd.f32 %v7839, %v8159
      %v8161 = vpop.f32.mrf.mxu0
      %8162 = vmatprep.mubr.f32.mxu0 0.0
      %8163 = vmatmul.mubr.f32.gmra.mxu0 %v7995
      %v8164 = vpop.f32.mrf.mxu0
      %v8165 = vadd.f32 %v7844, %v8164
      %v8166 = vpop.f32.mrf.mxu0
      %8167 = vmatprep.mubr.f32.mxu0 0.0
      %8168 = vmatmul.mubr.f32.gmra.mxu0 %v7998
      %v8169 = vpop.f32.mrf.mxu0
      %v8170 = vadd.f32 %v7849, %v8169
      %v8171 = vpop.f32.mrf.mxu0
      %8172 = vmatprep.mubr.f32.mxu0 0.0
      %8173 = vmatmul.mubr.f32.gmra.mxu0 %v8001
      %v8174 = vpop.f32.mrf.mxu0
      %v8175 = vadd.f32 %v7854, %v8174
      %v8176 = vpop.f32.mrf.mxu0
      %8177 = vmatprep.mubr.f32.mxu0 0.0
      %8178 = vmatmul.mubr.f32.gmra.mxu0 %v8004
      %v8179 = vpop.f32.mrf.mxu0
      %v8180 = vadd.f32 %v7859, %v8179
      %v8181 = vpop.f32.mrf.mxu0
      %8182 = vmatprep.mubr.f32.mxu0 0.0
      %8183 = vmatmul.mubr.f32.gmra.mxu0 %v8007
      %v8184 = vpop.f32.mrf.mxu0
      %v8185 = vadd.f32 %v7864, %v8184
      %v8186 = vpop.f32.mrf.mxu0
      %8187 = vmatprep.mubr.f32.mxu0 0.0
      %8188 = vmatmul.mubr.f32.gmra.mxu0 %v8010
      %v8189 = vpop.f32.mrf.mxu0
      %v8190 = vadd.f32 %v7869, %v8189
      %v8191 = vpop.f32.mrf.mxu0
      %8192 = vmatprep.mubr.f32.mxu0 0.0
      %8193 = vmatmul.mubr.f32.gmra.mxu0 %v8013
      %v8194 = vpop.f32.mrf.mxu0
      %v8195 = vadd.f32 %v7874, %v8194
      %v8196 = vpop.f32.mrf.mxu0
      %8197 = vmatprep.mubr.f32.mxu0 0.0
      %8198 = vmatmul.mubr.f32.gmra.mxu0 %v8016
      %v8199 = vpop.f32.mrf.mxu0
      %v8200 = vadd.f32 %v7879, %v8199
      %v8201 = vpop.f32.mrf.mxu0
      %8202 = vmatprep.mubr.f32.mxu0 0.0
      %8203 = vmatmul.mubr.f32.gmra.mxu0 %v8019
      %v8204 = vpop.f32.mrf.mxu0
      %v8205 = vadd.f32 %v7884, %v8204
      %v8206 = vpop.f32.mrf.mxu0
      %8207 = vmatprep.mubr.f32.mxu0 0.0
      %8208 = vmatmul.mubr.f32.gmra.mxu0 %v8022
      %v8209 = vpop.f32.mrf.mxu0
      %v8210 = vadd.f32 %v7889, %v8209
      %v8211 = vpop.f32.mrf.mxu0
      %8212 = vmatprep.mubr.f32.mxu0 0.0
      %8213 = vmatmul.mubr.f32.gmra.mxu0 %v8025
      %v8214 = vpop.f32.mrf.mxu0
      %v8215 = vadd.f32 %v7894, %v8214
      %v8216 = vpop.f32.mrf.mxu0
      %8217 = vmatprep.mubr.f32.mxu0 0.0
      %8218 = vmatmul.mubr.f32.gmra.mxu0 %v8028
      %v8219 = vpop.f32.mrf.mxu0
      %v8220 = vadd.f32 %v7899, %v8219
      %v8221 = vpop.f32.mrf.mxu0
      %8222 = vmatprep.mubr.f32.mxu0 0.0
      %8223 = vmatmul.mubr.f32.gmra.mxu0 %v8031
      %v8224 = vpop.f32.mrf.mxu0
      %v8225 = vadd.f32 %v7904, %v8224
      %v8226 = vpop.f32.mrf.mxu0
      %8227 = vmatprep.mubr.f32.mxu0 0.0
      %8228 = vmatmul.mubr.f32.gmra.mxu0 %v8034
      %v8229 = vpop.f32.mrf.mxu0
      %v8230 = vadd.f32 %v7909, %v8229
      %v8231 = vpop.f32.mrf.mxu0
      %8232 = vmatprep.mubr.f32.mxu0 0.0
      %8233 = vmatmul.mubr.f32.gmra.mxu0 %v8037
      %v8234 = vpop.f32.mrf.mxu0
      %v8235 = vadd.f32 %v7914, %v8234
      %v8236 = vpop.f32.mrf.mxu0
      %8237 = vmatprep.mubr.f32.mxu0 0.0
      %8238 = vmatmul.mubr.f32.gmra.mxu0 %v8040
      %v8239 = vpop.f32.mrf.mxu0
      %v8240 = vadd.f32 %v7919, %v8239
      %v8241 = vpop.f32.mrf.mxu0
      %8242 = vmatprep.mubr.f32.mxu0 0.0
      %8243 = vmatmul.mubr.f32.gmra.mxu0 %v8043
      %v8244 = vpop.f32.mrf.mxu0
      %v8245 = vadd.f32 %v7924, %v8244
      %v8246 = vpop.f32.mrf.mxu0
      %8247 = vmatprep.mubr.f32.mxu0 0.0
      %8248 = vmatmul.mubr.f32.gmra.mxu0 %v8046
      %v8249 = vpop.f32.mrf.mxu0
      %v8250 = vadd.f32 %v7929, %v8249
      %v8251 = vpop.f32.mrf.mxu0
      %8252 = vmatprep.mubr.f32.mxu0 0.0
      %8253 = vmatmul.mubr.f32.gmra.mxu0 %v8049
      %v8254 = vpop.f32.mrf.mxu0
      %v8255 = vadd.f32 %v7934, %v8254
      %v8256 = vpop.f32.mrf.mxu0
      %8257 = vmatprep.mubr.f32.mxu0 0.0
      %8258 = vmatmul.mubr.f32.gmra.mxu0 %v8052
      %v8259 = vpop.f32.mrf.mxu0
      %v8260 = vadd.f32 %v7939, %v8259
      %v8261 = vpop.f32.mrf.mxu0
      %8262 = vmatprep.mubr.f32.mxu0 0.0
      %8263 = vmatmul.mubr.f32.gmra.mxu0 %v8055
      %v8264 = vpop.f32.mrf.mxu0
      %v8265 = vadd.f32 %v7944, %v8264
      %v8266 = vpop.f32.mrf.mxu0
      %8267 = vmatprep.mubr.f32.mxu0 0.0
      %8268 = vmatmul.mubr.f32.gmra.mxu0 %v8058
      %v8269 = vpop.f32.mrf.mxu0
      %v8270 = vadd.f32 %v7949, %v8269
      %v8271 = vpop.f32.mrf.mxu0
      %8272 = vmatprep.mubr.f32.mxu0 0.0
      %8273 = vmatmul.mubr.f32.gmra.mxu0 %v8061
      %v8274 = vpop.f32.mrf.mxu0
      %v8275 = vadd.f32 %v7954, %v8274
      %v8276 = vpop.f32.mrf.mxu0
      %8277 = vmatprep.mubr.f32.mxu0 0.0
      %8278 = vmatmul.mubr.f32.gmra.mxu0 %v8064
      %v8279 = vpop.f32.mrf.mxu0
      %v8280 = vadd.f32 %v7959, %v8279
      %v8281 = vpop.f32.mrf.mxu0
      %8282 = vmatprep.mubr.f32.mxu0 0.0
      %8283 = vmatmul.mubr.f32.gmra.mxu0 %v8067
      %v8284 = vpop.f32.mrf.mxu0
      %v8285 = vadd.f32 %v7964, %v8284
      %v8286 = vpop.f32.mrf.mxu0
      %8287 = vmatprep.mubr.f32.mxu0 0.0
      %8288 = vmatmul.mubr.f32.gmra.mxu0 %v8070
      %v8289 = vpop.f32.mrf.mxu0
      %v8290 = vadd.f32 %v7969, %v8289
      %v8291 = vpop.f32.mrf.mxu0
      %8292 = vmatprep.mubr.f32.mxu0 0.0
      %8293 = vmatmul.mubr.f32.gmra.mxu0 %v8073
      %v8294 = vpop.f32.mrf.mxu0
      %v8295 = vadd.f32 %v7974, %v8294
      %v8296 = vpop.f32.mrf.mxu0
      %8297 = vmatprep.mubr.f32.mxu0 0.0
      %8298 = vmatmul.mubr.f32.gmra.mxu0 %v8076
      %v8299 = vpop.f32.mrf.mxu0
      %v8300 = vadd.f32 %v7979, %v8299
      %v8301 = vpop.f32.mrf.mxu0
      %8302 = vdwg.mxu0
      %v8303 = vld [vmem:[#allocation3 + $0x9] sm:$0xff]
      %v8304 = vld [vmem:[#allocation3 + $0x11] sm:$0xff]
      %v8305 = vld [vmem:[#allocation3 + $0x29] sm:$0xff]
      %v8306 = vld [vmem:[#allocation3 + $0x31] sm:$0xff]
      %v8307 = vld [vmem:[#allocation3 + $0x49] sm:$0xff]
      %v8308 = vld [vmem:[#allocation3 + $0x51] sm:$0xff]
      %v8309 = vld [vmem:[#allocation3 + $0x69] sm:$0xff]
      %v8310 = vld [vmem:[#allocation3 + $0x71] sm:$0xff]
      %v8311 = vld [vmem:[#allocation3 + $0x89] sm:$0xff]
      %v8312 = vld [vmem:[#allocation3 + $0x91] sm:$0xff]
      %v8313 = vld [vmem:[#allocation3 + $0xa9] sm:$0xff]
      %v8314 = vld [vmem:[#allocation3 + $0xb1] sm:$0xff]
      %v8315 = vld [vmem:[#allocation3 + $0xc9] sm:$0xff]
      %v8316 = vld [vmem:[#allocation3 + $0xd1] sm:$0xff]
      %v8317 = vld [vmem:[#allocation3 + $0xe9] sm:$0xff]
      %v8318 = vld [vmem:[#allocation3 + $0xf1] sm:$0xff]
      %v8319 = vld [vmem:[#allocation3 + $0x109] sm:$0xff]
      %v8320 = vld [vmem:[#allocation3 + $0x111] sm:$0xff]
      %v8321 = vld [vmem:[#allocation3 + $0x129] sm:$0xff]
      %v8322 = vld [vmem:[#allocation3 + $0x131] sm:$0xff]
      %v8323 = vld [vmem:[#allocation3 + $0x149] sm:$0xff]
      %v8324 = vld [vmem:[#allocation3 + $0x151] sm:$0xff]
      %v8325 = vld [vmem:[#allocation3 + $0x169] sm:$0xff]
      %v8326 = vld [vmem:[#allocation3 + $0x171] sm:$0xff]
      %v8327 = vld [vmem:[#allocation3 + $0x189] sm:$0xff]
      %v8328 = vld [vmem:[#allocation3 + $0x191] sm:$0xff]
      %v8329 = vld [vmem:[#allocation3 + $0x1a9] sm:$0xff]
      %v8330 = vld [vmem:[#allocation3 + $0x1b1] sm:$0xff]
      %v8331 = vld [vmem:[#allocation3 + $0x1c9] sm:$0xff]
      %v8332 = vld [vmem:[#allocation3 + $0x1d1] sm:$0xff]
      %v8333 = vld [vmem:[#allocation3 + $0x1e9] sm:$0xff]
      %v8334 = vld [vmem:[#allocation3 + $0x1f1] sm:$0xff]
      %v8336 = vsel %vm373, %v8303, 0
      %v8339 = vsel %vm373, %v8304, 0
      %v8342 = vsel %vm373, %v8305, 0
      %v8345 = vsel %vm373, %v8306, 0
      %v8348 = vsel %vm373, %v8307, 0
      %v8351 = vsel %vm373, %v8308, 0
      %v8354 = vsel %vm373, %v8309, 0
      %v8357 = vsel %vm373, %v8310, 0
      %v8360 = vsel %vm373, %v8311, 0
      %v8363 = vsel %vm373, %v8312, 0
      %v8366 = vsel %vm373, %v8313, 0
      %v8369 = vsel %vm373, %v8314, 0
      %v8372 = vsel %vm373, %v8315, 0
      %v8375 = vsel %vm373, %v8316, 0
      %v8378 = vsel %vm373, %v8317, 0
      %v8381 = vsel %vm373, %v8318, 0
      %v8384 = vsel %vm373, %v8319, 0
      %v8387 = vsel %vm373, %v8320, 0
      %v8390 = vsel %vm373, %v8321, 0
      %v8393 = vsel %vm373, %v8322, 0
      %v8396 = vsel %vm373, %v8323, 0
      %v8399 = vsel %vm373, %v8324, 0
      %v8402 = vsel %vm373, %v8325, 0
      %v8405 = vsel %vm373, %v8326, 0
      %v8408 = vsel %vm373, %v8327, 0
      %v8411 = vsel %vm373, %v8328, 0
      %v8414 = vsel %vm373, %v8329, 0
      %v8417 = vsel %vm373, %v8330, 0
      %v8420 = vsel %vm373, %v8331, 0
      %v8423 = vsel %vm373, %v8332, 0
      %v8426 = vsel %vm373, %v8333, 0
      %v8429 = vsel %vm373, %v8334, 0
      %8431 = vmatprep.subr.mxu0 0.0
      %8432 = vmatpush1.msra.mxu0 0.0
      %8433 = vmatprep.subr.mxu0 0.0
      %8434 = vmatpush1.msra.mxu0 0.0
      %8435 = vmatprep.subr.mxu0 0.0
      %8436 = vmatpush1.msra.mxu0 0.0
      %8437 = vmatprep.subr.mxu0 0.0
      %8438 = vmatpush1.msra.mxu0 0.0
      %8439 = vmatprep.subr.mxu0 0.0
      %8440 = vmatpush1.msra.mxu0 0.0
      %8441 = vmatprep.subr.mxu0 0.0
      %8442 = vmatpush1.msra.mxu0 0.0
      %8443 = vmatprep.subr.mxu0 0.0
      %8444 = vmatpush1.msra.mxu0 0.0
      %8445 = vmatprep.subr.mxu0 0.0
      %8446 = vmatpush1.msra.mxu0 0.0
      %8447 = vmatprep.subr.mxu0 0.0
      %8448 = vmatpush1.msra.mxu0 0.0
      %8449 = vmatprep.subr.mxu0 0.0
      %8450 = vmatpush1.msra.mxu0 0.0
      %8451 = vmatprep.subr.mxu0 0.0
      %8452 = vmatpush1.msra.mxu0 0.0
      %8453 = vmatprep.subr.mxu0 0.0
      %8454 = vmatpush1.msra.mxu0 0.0
      %8455 = vmatprep.subr.mxu0 0.0
      %8456 = vmatpush1.msra.mxu0 %v7571
      %8457 = vmatprep.subr.mxu0 0.0
      %8458 = vmatpush1.msra.mxu0 %v7570
      %8459 = vmatprep.subr.mxu0 0.0
      %8460 = vmatpush1.msra.mxu0 %v7569
      %8461 = vmatprep.subr.mxu0 0.0
      %8462 = vmatpush1.msra.mxu0 %v7568
      %8463 = vmatprep.subr.mxu0 0.0
      %8464 = vmatpush2.msra.mxu0 0.0
      %8465 = vmatprep.subr.mxu0 0.0
      %8466 = vmatpush2.msra.mxu0 0.0
      %8467 = vmatprep.subr.mxu0 0.0
      %8468 = vmatpush2.msra.mxu0 0.0
      %8469 = vmatprep.subr.mxu0 0.0
      %8470 = vmatpush2.msra.mxu0 0.0
      %8471 = vmatprep.subr.mxu0 0.0
      %8472 = vmatpush2.msra.mxu0 0.0
      %8473 = vmatprep.subr.mxu0 0.0
      %8474 = vmatpush2.msra.mxu0 0.0
      %8475 = vmatprep.subr.mxu0 0.0
      %8476 = vmatpush2.msra.mxu0 0.0
      %8477 = vmatprep.subr.mxu0 0.0
      %8478 = vmatpush2.msra.mxu0 0.0
      %8479 = vmatprep.subr.mxu0 0.0
      %8480 = vmatpush2.msra.mxu0 0.0
      %8481 = vmatprep.subr.mxu0 0.0
      %8482 = vmatpush2.msra.mxu0 0.0
      %8483 = vmatprep.subr.mxu0 0.0
      %8484 = vmatpush2.msra.mxu0 0.0
      %8485 = vmatprep.subr.mxu0 0.0
      %8486 = vmatpush2.msra.mxu0 0.0
      %8487 = vmatprep.subr.mxu0 0.0
      %8488 = vmatpush2.msra.mxu0 0.0
      %8489 = vmatprep.subr.mxu0 0.0
      %8490 = vmatpush2.msra.mxu0 0.0
      %8491 = vmatprep.subr.mxu0 0.0
      %8492 = vmatpush2.msra.mxu0 0.0
      %8493 = vmatprep.subr.mxu0 0.0
      %8494 = vmatpush2.msra.mxu0 0.0
      %8495 = vmatprep.mubr.f32.mxu0 0.0
      %8496 = vmatmul.mubr.f32.gmra.mxu0 %v8336
      %v8497 = vpop.f32.mrf.mxu0
      %v8498 = vadd.f32 0.0, %v8497
      %v8499 = vpop.f32.mrf.mxu0
      %8500 = vmatprep.mubr.f32.mxu0 0.0
      %8501 = vmatmul.mubr.f32.gmra.mxu0 %v8339
      %v8502 = vpop.f32.mrf.mxu0
      %v8503 = vadd.f32 0.0, %v8502
      %v8504 = vpop.f32.mrf.mxu0
      %8505 = vmatprep.mubr.f32.mxu0 0.0
      %8506 = vmatmul.mubr.f32.gmra.mxu0 %v8342
      %v8507 = vpop.f32.mrf.mxu0
      %v8508 = vadd.f32 0.0, %v8507
      %v8509 = vpop.f32.mrf.mxu0
      %8510 = vmatprep.mubr.f32.mxu0 0.0
      %8511 = vmatmul.mubr.f32.gmra.mxu0 %v8345
      %v8512 = vpop.f32.mrf.mxu0
      %v8513 = vadd.f32 0.0, %v8512
      %v8514 = vpop.f32.mrf.mxu0
      %8515 = vmatprep.mubr.f32.mxu0 0.0
      %8516 = vmatmul.mubr.f32.gmra.mxu0 %v8348
      %v8517 = vpop.f32.mrf.mxu0
      %v8518 = vadd.f32 0.0, %v8517
      %v8519 = vpop.f32.mrf.mxu0
      %8520 = vmatprep.mubr.f32.mxu0 0.0
      %8521 = vmatmul.mubr.f32.gmra.mxu0 %v8351
      %v8522 = vpop.f32.mrf.mxu0
      %v8523 = vadd.f32 0.0, %v8522
      %v8524 = vpop.f32.mrf.mxu0
      %8525 = vmatprep.mubr.f32.mxu0 0.0
      %8526 = vmatmul.mubr.f32.gmra.mxu0 %v8354
      %v8527 = vpop.f32.mrf.mxu0
      %v8528 = vadd.f32 0.0, %v8527
      %v8529 = vpop.f32.mrf.mxu0
      %8530 = vmatprep.mubr.f32.mxu0 0.0
      %8531 = vmatmul.mubr.f32.gmra.mxu0 %v8357
      %v8532 = vpop.f32.mrf.mxu0
      %v8533 = vadd.f32 0.0, %v8532
      %v8534 = vpop.f32.mrf.mxu0
      %8535 = vmatprep.mubr.f32.mxu0 0.0
      %8536 = vmatmul.mubr.f32.gmra.mxu0 %v8360
      %v8537 = vpop.f32.mrf.mxu0
      %v8538 = vadd.f32 0.0, %v8537
      %v8539 = vpop.f32.mrf.mxu0
      %8540 = vmatprep.mubr.f32.mxu0 0.0
      %8541 = vmatmul.mubr.f32.gmra.mxu0 %v8363
      %v8542 = vpop.f32.mrf.mxu0
      %v8543 = vadd.f32 0.0, %v8542
      %v8544 = vpop.f32.mrf.mxu0
      %8545 = vmatprep.mubr.f32.mxu0 0.0
      %8546 = vmatmul.mubr.f32.gmra.mxu0 %v8366
      %v8547 = vpop.f32.mrf.mxu0
      %v8548 = vadd.f32 0.0, %v8547
      %v8549 = vpop.f32.mrf.mxu0
      %8550 = vmatprep.mubr.f32.mxu0 0.0
      %8551 = vmatmul.mubr.f32.gmra.mxu0 %v8369
      %v8552 = vpop.f32.mrf.mxu0
      %v8553 = vadd.f32 0.0, %v8552
      %v8554 = vpop.f32.mrf.mxu0
      %8555 = vmatprep.mubr.f32.mxu0 0.0
      %8556 = vmatmul.mubr.f32.gmra.mxu0 %v8372
      %v8557 = vpop.f32.mrf.mxu0
      %v8558 = vadd.f32 0.0, %v8557
      %v8559 = vpop.f32.mrf.mxu0
      %8560 = vmatprep.mubr.f32.mxu0 0.0
      %8561 = vmatmul.mubr.f32.gmra.mxu0 %v8375
      %v8562 = vpop.f32.mrf.mxu0
      %v8563 = vadd.f32 0.0, %v8562
      %v8564 = vpop.f32.mrf.mxu0
      %8565 = vmatprep.mubr.f32.mxu0 0.0
      %8566 = vmatmul.mubr.f32.gmra.mxu0 %v8378
      %v8567 = vpop.f32.mrf.mxu0
      %v8568 = vadd.f32 0.0, %v8567
      %v8569 = vpop.f32.mrf.mxu0
      %8570 = vmatprep.mubr.f32.mxu0 0.0
      %8571 = vmatmul.mubr.f32.gmra.mxu0 %v8381
      %v8572 = vpop.f32.mrf.mxu0
      %v8573 = vadd.f32 0.0, %v8572
      %v8574 = vpop.f32.mrf.mxu0
      %8575 = vmatprep.mubr.f32.mxu0 0.0
      %8576 = vmatmul.mubr.f32.gmra.mxu0 %v8384
      %v8577 = vpop.f32.mrf.mxu0
      %v8578 = vadd.f32 0.0, %v8577
      %v8579 = vpop.f32.mrf.mxu0
      %8580 = vmatprep.mubr.f32.mxu0 0.0
      %8581 = vmatmul.mubr.f32.gmra.mxu0 %v8387
      %v8582 = vpop.f32.mrf.mxu0
      %v8583 = vadd.f32 0.0, %v8582
      %v8584 = vpop.f32.mrf.mxu0
      %8585 = vmatprep.mubr.f32.mxu0 0.0
      %8586 = vmatmul.mubr.f32.gmra.mxu0 %v8390
      %v8587 = vpop.f32.mrf.mxu0
      %v8588 = vadd.f32 0.0, %v8587
      %v8589 = vpop.f32.mrf.mxu0
      %8590 = vmatprep.mubr.f32.mxu0 0.0
      %8591 = vmatmul.mubr.f32.gmra.mxu0 %v8393
      %v8592 = vpop.f32.mrf.mxu0
      %v8593 = vadd.f32 0.0, %v8592
      %v8594 = vpop.f32.mrf.mxu0
      %8595 = vmatprep.mubr.f32.mxu0 0.0
      %8596 = vmatmul.mubr.f32.gmra.mxu0 %v8396
      %v8597 = vpop.f32.mrf.mxu0
      %v8598 = vadd.f32 0.0, %v8597
      %v8599 = vpop.f32.mrf.mxu0
      %8600 = vmatprep.mubr.f32.mxu0 0.0
      %8601 = vmatmul.mubr.f32.gmra.mxu0 %v8399
      %v8602 = vpop.f32.mrf.mxu0
      %v8603 = vadd.f32 0.0, %v8602
      %v8604 = vpop.f32.mrf.mxu0
      %8605 = vmatprep.mubr.f32.mxu0 0.0
      %8606 = vmatmul.mubr.f32.gmra.mxu0 %v8402
      %v8607 = vpop.f32.mrf.mxu0
      %v8608 = vadd.f32 0.0, %v8607
      %v8609 = vpop.f32.mrf.mxu0
      %8610 = vmatprep.mubr.f32.mxu0 0.0
      %8611 = vmatmul.mubr.f32.gmra.mxu0 %v8405
      %v8612 = vpop.f32.mrf.mxu0
      %v8613 = vadd.f32 0.0, %v8612
      %v8614 = vpop.f32.mrf.mxu0
      %8615 = vmatprep.mubr.f32.mxu0 0.0
      %8616 = vmatmul.mubr.f32.gmra.mxu0 %v8408
      %v8617 = vpop.f32.mrf.mxu0
      %v8618 = vadd.f32 0.0, %v8617
      %v8619 = vpop.f32.mrf.mxu0
      %8620 = vmatprep.mubr.f32.mxu0 0.0
      %8621 = vmatmul.mubr.f32.gmra.mxu0 %v8411
      %v8622 = vpop.f32.mrf.mxu0
      %v8623 = vadd.f32 0.0, %v8622
      %v8624 = vpop.f32.mrf.mxu0
      %8625 = vmatprep.mubr.f32.mxu0 0.0
      %8626 = vmatmul.mubr.f32.gmra.mxu0 %v8414
      %v8627 = vpop.f32.mrf.mxu0
      %v8628 = vadd.f32 0.0, %v8627
      %v8629 = vpop.f32.mrf.mxu0
      %8630 = vmatprep.mubr.f32.mxu0 0.0
      %8631 = vmatmul.mubr.f32.gmra.mxu0 %v8417
      %v8632 = vpop.f32.mrf.mxu0
      %v8633 = vadd.f32 0.0, %v8632
      %v8634 = vpop.f32.mrf.mxu0
      %8635 = vmatprep.mubr.f32.mxu0 0.0
      %8636 = vmatmul.mubr.f32.gmra.mxu0 %v8420
      %v8637 = vpop.f32.mrf.mxu0
      %v8638 = vadd.f32 0.0, %v8637
      %v8639 = vpop.f32.mrf.mxu0
      %8640 = vmatprep.mubr.f32.mxu0 0.0
      %8641 = vmatmul.mubr.f32.gmra.mxu0 %v8423
      %v8642 = vpop.f32.mrf.mxu0
      %v8643 = vadd.f32 0.0, %v8642
      %v8644 = vpop.f32.mrf.mxu0
      %8645 = vmatprep.mubr.f32.mxu0 0.0
      %8646 = vmatmul.mubr.f32.gmra.mxu0 %v8426
      %v8647 = vpop.f32.mrf.mxu0
      %v8648 = vadd.f32 0.0, %v8647
      %v8649 = vpop.f32.mrf.mxu0
      %8650 = vmatprep.mubr.f32.mxu0 0.0
      %8651 = vmatmul.mubr.f32.gmra.mxu0 %v8429
      %v8652 = vpop.f32.mrf.mxu0
      %v8653 = vadd.f32 0.0, %v8652
      %v8654 = vpop.f32.mrf.mxu0
      %8655 = vdwg.mxu0
      %v8656 = vadd.f32 %v8145, %v8498
      %v8657 = vadd.f32 %v8150, %v8503
      %v8658 = vadd.f32 %v8155, %v8508
      %v8659 = vadd.f32 %v8160, %v8513
      %v8660 = vadd.f32 %v8165, %v8518
      %v8661 = vadd.f32 %v8170, %v8523
      %v8662 = vadd.f32 %v8175, %v8528
      %v8663 = vadd.f32 %v8180, %v8533
      %v8664 = vadd.f32 %v8185, %v8538
      %v8665 = vadd.f32 %v8190, %v8543
      %v8666 = vadd.f32 %v8195, %v8548
      %v8667 = vadd.f32 %v8200, %v8553
      %v8668 = vadd.f32 %v8205, %v8558
      %v8669 = vadd.f32 %v8210, %v8563
      %v8670 = vadd.f32 %v8215, %v8568
      %v8671 = vadd.f32 %v8220, %v8573
      %v8672 = vadd.f32 %v8225, %v8578
      %v8673 = vadd.f32 %v8230, %v8583
      %v8674 = vadd.f32 %v8235, %v8588
      %v8675 = vadd.f32 %v8240, %v8593
      %v8676 = vadd.f32 %v8245, %v8598
      %v8677 = vadd.f32 %v8250, %v8603
      %v8678 = vadd.f32 %v8255, %v8608
      %v8679 = vadd.f32 %v8260, %v8613
      %v8680 = vadd.f32 %v8265, %v8618
      %v8681 = vadd.f32 %v8270, %v8623
      %v8682 = vadd.f32 %v8275, %v8628
      %v8683 = vadd.f32 %v8280, %v8633
      %v8684 = vadd.f32 %v8285, %v8638
      %v8685 = vadd.f32 %v8290, %v8643
      %v8686 = vadd.f32 %v8295, %v8648
      %v8687 = vadd.f32 %v8300, %v8653
      %v8688 = vld [vmem:[%s383 + $0x7] sm:$0xff]
      %v8689 = vld [vmem:[%s383 + $0xf] sm:$0xff]
      %v8690 = vld [vmem:[%s383 + $0x27] sm:$0xff]
      %v8691 = vld [vmem:[%s383 + $0x2f] sm:$0xff]
      %v8692 = vld [vmem:[%s383 + $0x47] sm:$0xff]
      %v8693 = vld [vmem:[%s383 + $0x4f] sm:$0xff]
      %v8694 = vld [vmem:[%s383 + $0x67] sm:$0xff]
      %v8695 = vld [vmem:[%s383 + $0x6f] sm:$0xff]
      %v8696 = vld [vmem:[%s383 + $0x87] sm:$0xff]
      %v8697 = vld [vmem:[%s383 + $0x8f] sm:$0xff]
      %v8698 = vld [vmem:[%s383 + $0xa7] sm:$0xff]
      %v8699 = vld [vmem:[%s383 + $0xaf] sm:$0xff]
      %v8700 = vld [vmem:[%s383 + $0xc7] sm:$0xff]
      %v8701 = vld [vmem:[%s383 + $0xcf] sm:$0xff]
      %v8702 = vld [vmem:[%s383 + $0xe7] sm:$0xff]
      %v8703 = vld [vmem:[%s383 + $0xef] sm:$0xff]
      %v8704 = vld [vmem:[%s383 + $0x107] sm:$0xff]
      %v8705 = vld [vmem:[%s383 + $0x10f] sm:$0xff]
      %v8706 = vld [vmem:[%s383 + $0x127] sm:$0xff]
      %v8707 = vld [vmem:[%s383 + $0x12f] sm:$0xff]
      %v8708 = vld [vmem:[%s383 + $0x147] sm:$0xff]
      %v8709 = vld [vmem:[%s383 + $0x14f] sm:$0xff]
      %v8710 = vld [vmem:[%s383 + $0x167] sm:$0xff]
      %v8711 = vld [vmem:[%s383 + $0x16f] sm:$0xff]
      %v8712 = vld [vmem:[%s383 + $0x187] sm:$0xff]
      %v8713 = vld [vmem:[%s383 + $0x18f] sm:$0xff]
      %v8714 = vld [vmem:[%s383 + $0x1a7] sm:$0xff]
      %v8715 = vld [vmem:[%s383 + $0x1af] sm:$0xff]
      %v8716 = vld [vmem:[%s383 + $0x1c7] sm:$0xff]
      %v8717 = vld [vmem:[%s383 + $0x1cf] sm:$0xff]
      %v8718 = vld [vmem:[%s383 + $0x1e7] sm:$0xff]
      %v8719 = vld [vmem:[%s383 + $0x1ef] sm:$0xff]
      %v8721 = vsel %vm373, %v8688, 0
      %v8724 = vsel %vm373, %v8689, 0
      %v8727 = vsel %vm373, %v8690, 0
      %v8730 = vsel %vm373, %v8691, 0
      %v8733 = vsel %vm373, %v8692, 0
      %v8736 = vsel %vm373, %v8693, 0
      %v8739 = vsel %vm373, %v8694, 0
      %v8742 = vsel %vm373, %v8695, 0
      %v8745 = vsel %vm373, %v8696, 0
      %v8748 = vsel %vm373, %v8697, 0
      %v8751 = vsel %vm373, %v8698, 0
      %v8754 = vsel %vm373, %v8699, 0
      %v8757 = vsel %vm373, %v8700, 0
      %v8760 = vsel %vm373, %v8701, 0
      %v8763 = vsel %vm373, %v8702, 0
      %v8766 = vsel %vm373, %v8703, 0
      %v8769 = vsel %vm373, %v8704, 0
      %v8772 = vsel %vm373, %v8705, 0
      %v8775 = vsel %vm373, %v8706, 0
      %v8778 = vsel %vm373, %v8707, 0
      %v8781 = vsel %vm373, %v8708, 0
      %v8784 = vsel %vm373, %v8709, 0
      %v8787 = vsel %vm373, %v8710, 0
      %v8790 = vsel %vm373, %v8711, 0
      %v8793 = vsel %vm373, %v8712, 0
      %v8796 = vsel %vm373, %v8713, 0
      %v8799 = vsel %vm373, %v8714, 0
      %v8802 = vsel %vm373, %v8715, 0
      %v8805 = vsel %vm373, %v8716, 0
      %v8808 = vsel %vm373, %v8717, 0
      %v8811 = vsel %vm373, %v8718, 0
      %v8814 = vsel %vm373, %v8719, 0
      %8816 = vmatprep.subr.mxu0 0.0
      %8817 = vmatpush1.msra.mxu0 0.0
      %8818 = vmatprep.subr.mxu0 0.0
      %8819 = vmatpush1.msra.mxu0 0.0
      %8820 = vmatprep.subr.mxu0 0.0
      %8821 = vmatpush1.msra.mxu0 0.0
      %8822 = vmatprep.subr.mxu0 0.0
      %8823 = vmatpush1.msra.mxu0 0.0
      %8824 = vmatprep.subr.mxu0 0.0
      %8825 = vmatpush1.msra.mxu0 0.0
      %8826 = vmatprep.subr.mxu0 0.0
      %8827 = vmatpush1.msra.mxu0 0.0
      %8828 = vmatprep.subr.mxu0 0.0
      %8829 = vmatpush1.msra.mxu0 0.0
      %8830 = vmatprep.subr.mxu0 0.0
      %8831 = vmatpush1.msra.mxu0 0.0
      %8832 = vmatprep.subr.mxu0 0.0
      %8833 = vmatpush1.msra.mxu0 0.0
      %8834 = vmatprep.subr.mxu0 0.0
      %8835 = vmatpush1.msra.mxu0 0.0
      %8836 = vmatprep.subr.mxu0 0.0
      %8837 = vmatpush1.msra.mxu0 0.0
      %8838 = vmatprep.subr.mxu0 0.0
      %8839 = vmatpush1.msra.mxu0 0.0
      %8840 = vmatprep.subr.mxu0 0.0
      %8841 = vmatpush1.msra.mxu0 %v7575
      %8842 = vmatprep.subr.mxu0 0.0
      %8843 = vmatpush1.msra.mxu0 %v7574
      %8844 = vmatprep.subr.mxu0 0.0
      %8845 = vmatpush1.msra.mxu0 %v7573
      %8846 = vmatprep.subr.mxu0 0.0
      %8847 = vmatpush1.msra.mxu0 %v7572
      %8848 = vmatprep.subr.mxu0 0.0
      %8849 = vmatpush2.msra.mxu0 0.0
      %8850 = vmatprep.subr.mxu0 0.0
      %8851 = vmatpush2.msra.mxu0 0.0
      %8852 = vmatprep.subr.mxu0 0.0
      %8853 = vmatpush2.msra.mxu0 0.0
      %8854 = vmatprep.subr.mxu0 0.0
      %8855 = vmatpush2.msra.mxu0 0.0
      %8856 = vmatprep.subr.mxu0 0.0
      %8857 = vmatpush2.msra.mxu0 0.0
      %8858 = vmatprep.subr.mxu0 0.0
      %8859 = vmatpush2.msra.mxu0 0.0
      %8860 = vmatprep.subr.mxu0 0.0
      %8861 = vmatpush2.msra.mxu0 0.0
      %8862 = vmatprep.subr.mxu0 0.0
      %8863 = vmatpush2.msra.mxu0 0.0
      %8864 = vmatprep.subr.mxu0 0.0
      %8865 = vmatpush2.msra.mxu0 0.0
      %8866 = vmatprep.subr.mxu0 0.0
      %8867 = vmatpush2.msra.mxu0 0.0
      %8868 = vmatprep.subr.mxu0 0.0
      %8869 = vmatpush2.msra.mxu0 0.0
      %8870 = vmatprep.subr.mxu0 0.0
      %8871 = vmatpush2.msra.mxu0 0.0
      %8872 = vmatprep.subr.mxu0 0.0
      %8873 = vmatpush2.msra.mxu0 0.0
      %8874 = vmatprep.subr.mxu0 0.0
      %8875 = vmatpush2.msra.mxu0 0.0
      %8876 = vmatprep.subr.mxu0 0.0
      %8877 = vmatpush2.msra.mxu0 0.0
      %8878 = vmatprep.subr.mxu0 0.0
      %8879 = vmatpush2.msra.mxu0 0.0
      %8880 = vmatprep.mubr.f32.mxu0 0.0
      %8881 = vmatmul.mubr.f32.gmra.mxu0 %v8721
      %v8882 = vpop.f32.mrf.mxu0
      %v8883 = vadd.f32 0.0, %v8882
      %v8884 = vpop.f32.mrf.mxu0
      %8885 = vmatprep.mubr.f32.mxu0 0.0
      %8886 = vmatmul.mubr.f32.gmra.mxu0 %v8724
      %v8887 = vpop.f32.mrf.mxu0
      %v8888 = vadd.f32 0.0, %v8887
      %v8889 = vpop.f32.mrf.mxu0
      %8890 = vmatprep.mubr.f32.mxu0 0.0
      %8891 = vmatmul.mubr.f32.gmra.mxu0 %v8727
      %v8892 = vpop.f32.mrf.mxu0
      %v8893 = vadd.f32 0.0, %v8892
      %v8894 = vpop.f32.mrf.mxu0
      %8895 = vmatprep.mubr.f32.mxu0 0.0
      %8896 = vmatmul.mubr.f32.gmra.mxu0 %v8730
      %v8897 = vpop.f32.mrf.mxu0
      %v8898 = vadd.f32 0.0, %v8897
      %v8899 = vpop.f32.mrf.mxu0
      %8900 = vmatprep.mubr.f32.mxu0 0.0
      %8901 = vmatmul.mubr.f32.gmra.mxu0 %v8733
      %v8902 = vpop.f32.mrf.mxu0
      %v8903 = vadd.f32 0.0, %v8902
      %v8904 = vpop.f32.mrf.mxu0
      %8905 = vmatprep.mubr.f32.mxu0 0.0
      %8906 = vmatmul.mubr.f32.gmra.mxu0 %v8736
      %v8907 = vpop.f32.mrf.mxu0
      %v8908 = vadd.f32 0.0, %v8907
      %v8909 = vpop.f32.mrf.mxu0
      %8910 = vmatprep.mubr.f32.mxu0 0.0
      %8911 = vmatmul.mubr.f32.gmra.mxu0 %v8739
      %v8912 = vpop.f32.mrf.mxu0
      %v8913 = vadd.f32 0.0, %v8912
      %v8914 = vpop.f32.mrf.mxu0
      %8915 = vmatprep.mubr.f32.mxu0 0.0
      %8916 = vmatmul.mubr.f32.gmra.mxu0 %v8742
      %v8917 = vpop.f32.mrf.mxu0
      %v8918 = vadd.f32 0.0, %v8917
      %v8919 = vpop.f32.mrf.mxu0
      %8920 = vmatprep.mubr.f32.mxu0 0.0
      %8921 = vmatmul.mubr.f32.gmra.mxu0 %v8745
      %v8922 = vpop.f32.mrf.mxu0
      %v8923 = vadd.f32 0.0, %v8922
      %v8924 = vpop.f32.mrf.mxu0
      %8925 = vmatprep.mubr.f32.mxu0 0.0
      %8926 = vmatmul.mubr.f32.gmra.mxu0 %v8748
      %v8927 = vpop.f32.mrf.mxu0
      %v8928 = vadd.f32 0.0, %v8927
      %v8929 = vpop.f32.mrf.mxu0
      %8930 = vmatprep.mubr.f32.mxu0 0.0
      %8931 = vmatmul.mubr.f32.gmra.mxu0 %v8751
      %v8932 = vpop.f32.mrf.mxu0
      %v8933 = vadd.f32 0.0, %v8932
      %v8934 = vpop.f32.mrf.mxu0
      %8935 = vmatprep.mubr.f32.mxu0 0.0
      %8936 = vmatmul.mubr.f32.gmra.mxu0 %v8754
      %v8937 = vpop.f32.mrf.mxu0
      %v8938 = vadd.f32 0.0, %v8937
      %v8939 = vpop.f32.mrf.mxu0
      %8940 = vmatprep.mubr.f32.mxu0 0.0
      %8941 = vmatmul.mubr.f32.gmra.mxu0 %v8757
      %v8942 = vpop.f32.mrf.mxu0
      %v8943 = vadd.f32 0.0, %v8942
      %v8944 = vpop.f32.mrf.mxu0
      %8945 = vmatprep.mubr.f32.mxu0 0.0
      %8946 = vmatmul.mubr.f32.gmra.mxu0 %v8760
      %v8947 = vpop.f32.mrf.mxu0
      %v8948 = vadd.f32 0.0, %v8947
      %v8949 = vpop.f32.mrf.mxu0
      %8950 = vmatprep.mubr.f32.mxu0 0.0
      %8951 = vmatmul.mubr.f32.gmra.mxu0 %v8763
      %v8952 = vpop.f32.mrf.mxu0
      %v8953 = vadd.f32 0.0, %v8952
      %v8954 = vpop.f32.mrf.mxu0
      %8955 = vmatprep.mubr.f32.mxu0 0.0
      %8956 = vmatmul.mubr.f32.gmra.mxu0 %v8766
      %v8957 = vpop.f32.mrf.mxu0
      %v8958 = vadd.f32 0.0, %v8957
      %v8959 = vpop.f32.mrf.mxu0
      %8960 = vmatprep.mubr.f32.mxu0 0.0
      %8961 = vmatmul.mubr.f32.gmra.mxu0 %v8769
      %v8962 = vpop.f32.mrf.mxu0
      %v8963 = vadd.f32 0.0, %v8962
      %v8964 = vpop.f32.mrf.mxu0
      %8965 = vmatprep.mubr.f32.mxu0 0.0
      %8966 = vmatmul.mubr.f32.gmra.mxu0 %v8772
      %v8967 = vpop.f32.mrf.mxu0
      %v8968 = vadd.f32 0.0, %v8967
      %v8969 = vpop.f32.mrf.mxu0
      %8970 = vmatprep.mubr.f32.mxu0 0.0
      %8971 = vmatmul.mubr.f32.gmra.mxu0 %v8775
      %v8972 = vpop.f32.mrf.mxu0
      %v8973 = vadd.f32 0.0, %v8972
      %v8974 = vpop.f32.mrf.mxu0
      %8975 = vmatprep.mubr.f32.mxu0 0.0
      %8976 = vmatmul.mubr.f32.gmra.mxu0 %v8778
      %v8977 = vpop.f32.mrf.mxu0
      %v8978 = vadd.f32 0.0, %v8977
      %v8979 = vpop.f32.mrf.mxu0
      %8980 = vmatprep.mubr.f32.mxu0 0.0
      %8981 = vmatmul.mubr.f32.gmra.mxu0 %v8781
      %v8982 = vpop.f32.mrf.mxu0
      %v8983 = vadd.f32 0.0, %v8982
      %v8984 = vpop.f32.mrf.mxu0
      %8985 = vmatprep.mubr.f32.mxu0 0.0
      %8986 = vmatmul.mubr.f32.gmra.mxu0 %v8784
      %v8987 = vpop.f32.mrf.mxu0
      %v8988 = vadd.f32 0.0, %v8987
      %v8989 = vpop.f32.mrf.mxu0
      %8990 = vmatprep.mubr.f32.mxu0 0.0
      %8991 = vmatmul.mubr.f32.gmra.mxu0 %v8787
      %v8992 = vpop.f32.mrf.mxu0
      %v8993 = vadd.f32 0.0, %v8992
      %v8994 = vpop.f32.mrf.mxu0
      %8995 = vmatprep.mubr.f32.mxu0 0.0
      %8996 = vmatmul.mubr.f32.gmra.mxu0 %v8790
      %v8997 = vpop.f32.mrf.mxu0
      %v8998 = vadd.f32 0.0, %v8997
      %v8999 = vpop.f32.mrf.mxu0
      %9000 = vmatprep.mubr.f32.mxu0 0.0
      %9001 = vmatmul.mubr.f32.gmra.mxu0 %v8793
      %v9002 = vpop.f32.mrf.mxu0
      %v9003 = vadd.f32 0.0, %v9002
      %v9004 = vpop.f32.mrf.mxu0
      %9005 = vmatprep.mubr.f32.mxu0 0.0
      %9006 = vmatmul.mubr.f32.gmra.mxu0 %v8796
      %v9007 = vpop.f32.mrf.mxu0
      %v9008 = vadd.f32 0.0, %v9007
      %v9009 = vpop.f32.mrf.mxu0
      %9010 = vmatprep.mubr.f32.mxu0 0.0
      %9011 = vmatmul.mubr.f32.gmra.mxu0 %v8799
      %v9012 = vpop.f32.mrf.mxu0
      %v9013 = vadd.f32 0.0, %v9012
      %v9014 = vpop.f32.mrf.mxu0
      %9015 = vmatprep.mubr.f32.mxu0 0.0
      %9016 = vmatmul.mubr.f32.gmra.mxu0 %v8802
      %v9017 = vpop.f32.mrf.mxu0
      %v9018 = vadd.f32 0.0, %v9017
      %v9019 = vpop.f32.mrf.mxu0
      %9020 = vmatprep.mubr.f32.mxu0 0.0
      %9021 = vmatmul.mubr.f32.gmra.mxu0 %v8805
      %v9022 = vpop.f32.mrf.mxu0
      %v9023 = vadd.f32 0.0, %v9022
      %v9024 = vpop.f32.mrf.mxu0
      %9025 = vmatprep.mubr.f32.mxu0 0.0
      %9026 = vmatmul.mubr.f32.gmra.mxu0 %v8808
      %v9027 = vpop.f32.mrf.mxu0
      %v9028 = vadd.f32 0.0, %v9027
      %v9029 = vpop.f32.mrf.mxu0
      %9030 = vmatprep.mubr.f32.mxu0 0.0
      %9031 = vmatmul.mubr.f32.gmra.mxu0 %v8811
      %v9032 = vpop.f32.mrf.mxu0
      %v9033 = vadd.f32 0.0, %v9032
      %v9034 = vpop.f32.mrf.mxu0
      %9035 = vmatprep.mubr.f32.mxu0 0.0
      %9036 = vmatmul.mubr.f32.gmra.mxu0 %v8814
      %v9037 = vpop.f32.mrf.mxu0
      %v9038 = vadd.f32 0.0, %v9037
      %v9039 = vpop.f32.mrf.mxu0
      %9040 = vdwg.mxu0
      %v9041 = vadd.f32 %v8656, %v8883
      %v9042 = vadd.f32 %v8657, %v8888
      %v9043 = vadd.f32 %v8658, %v8893
      %v9044 = vadd.f32 %v8659, %v8898
      %v9045 = vadd.f32 %v8660, %v8903
      %v9046 = vadd.f32 %v8661, %v8908
      %v9047 = vadd.f32 %v8662, %v8913
      %v9048 = vadd.f32 %v8663, %v8918
      %v9049 = vadd.f32 %v8664, %v8923
      %v9050 = vadd.f32 %v8665, %v8928
      %v9051 = vadd.f32 %v8666, %v8933
      %v9052 = vadd.f32 %v8667, %v8938
      %v9053 = vadd.f32 %v8668, %v8943
      %v9054 = vadd.f32 %v8669, %v8948
      %v9055 = vadd.f32 %v8670, %v8953
      %v9056 = vadd.f32 %v8671, %v8958
      %v9057 = vadd.f32 %v8672, %v8963
      %v9058 = vadd.f32 %v8673, %v8968
      %v9059 = vadd.f32 %v8674, %v8973
      %v9060 = vadd.f32 %v8675, %v8978
      %v9061 = vadd.f32 %v8676, %v8983
      %v9062 = vadd.f32 %v8677, %v8988
      %v9063 = vadd.f32 %v8678, %v8993
      %v9064 = vadd.f32 %v8679, %v8998
      %v9065 = vadd.f32 %v8680, %v9003
      %v9066 = vadd.f32 %v8681, %v9008
      %v9067 = vadd.f32 %v8682, %v9013
      %v9068 = vadd.f32 %v8683, %v9018
      %v9069 = vadd.f32 %v8684, %v9023
      %v9070 = vadd.f32 %v8685, %v9028
      %v9071 = vadd.f32 %v8686, %v9033
      %v9072 = vadd.f32 %v8687, %v9038
      %v9073 = vld [vmem:[%s383 + $0x8] sm:$0xff]
      %v9074 = vld [vmem:[%s383 + $0x10] sm:$0xff]
      %v9075 = vld [vmem:[%s383 + $0x28] sm:$0xff]
      %v9076 = vld [vmem:[%s383 + $0x30] sm:$0xff]
      %v9077 = vld [vmem:[%s383 + $0x48] sm:$0xff]
      %v9078 = vld [vmem:[%s383 + $0x50] sm:$0xff]
      %v9079 = vld [vmem:[%s383 + $0x68] sm:$0xff]
      %v9080 = vld [vmem:[%s383 + $0x70] sm:$0xff]
      %v9081 = vld [vmem:[%s383 + $0x88] sm:$0xff]
      %v9082 = vld [vmem:[%s383 + $0x90] sm:$0xff]
      %v9083 = vld [vmem:[%s383 + $0xa8] sm:$0xff]
      %v9084 = vld [vmem:[%s383 + $0xb0] sm:$0xff]
      %v9085 = vld [vmem:[%s383 + $0xc8] sm:$0xff]
      %v9086 = vld [vmem:[%s383 + $0xd0] sm:$0xff]
      %v9087 = vld [vmem:[%s383 + $0xe8] sm:$0xff]
      %v9088 = vld [vmem:[%s383 + $0xf0] sm:$0xff]
      %v9089 = vld [vmem:[%s383 + $0x108] sm:$0xff]
      %v9090 = vld [vmem:[%s383 + $0x110] sm:$0xff]
      %v9091 = vld [vmem:[%s383 + $0x128] sm:$0xff]
      %v9092 = vld [vmem:[%s383 + $0x130] sm:$0xff]
      %v9093 = vld [vmem:[%s383 + $0x148] sm:$0xff]
      %v9094 = vld [vmem:[%s383 + $0x150] sm:$0xff]
      %v9095 = vld [vmem:[%s383 + $0x168] sm:$0xff]
      %v9096 = vld [vmem:[%s383 + $0x170] sm:$0xff]
      %v9097 = vld [vmem:[%s383 + $0x188] sm:$0xff]
      %v9098 = vld [vmem:[%s383 + $0x190] sm:$0xff]
      %v9099 = vld [vmem:[%s383 + $0x1a8] sm:$0xff]
      %v9100 = vld [vmem:[%s383 + $0x1b0] sm:$0xff]
      %v9101 = vld [vmem:[%s383 + $0x1c8] sm:$0xff]
      %v9102 = vld [vmem:[%s383 + $0x1d0] sm:$0xff]
      %v9103 = vld [vmem:[%s383 + $0x1e8] sm:$0xff]
      %v9104 = vld [vmem:[%s383 + $0x1f0] sm:$0xff]
      %v9106 = vsel %vm373, %v9073, 0
      %v9109 = vsel %vm373, %v9074, 0
      %v9112 = vsel %vm373, %v9075, 0
      %v9115 = vsel %vm373, %v9076, 0
      %v9118 = vsel %vm373, %v9077, 0
      %v9121 = vsel %vm373, %v9078, 0
      %v9124 = vsel %vm373, %v9079, 0
      %v9127 = vsel %vm373, %v9080, 0
      %v9130 = vsel %vm373, %v9081, 0
      %v9133 = vsel %vm373, %v9082, 0
      %v9136 = vsel %vm373, %v9083, 0
      %v9139 = vsel %vm373, %v9084, 0
      %v9142 = vsel %vm373, %v9085, 0
      %v9145 = vsel %vm373, %v9086, 0
      %v9148 = vsel %vm373, %v9087, 0
      %v9151 = vsel %vm373, %v9088, 0
      %v9154 = vsel %vm373, %v9089, 0
      %v9157 = vsel %vm373, %v9090, 0
      %v9160 = vsel %vm373, %v9091, 0
      %v9163 = vsel %vm373, %v9092, 0
      %v9166 = vsel %vm373, %v9093, 0
      %v9169 = vsel %vm373, %v9094, 0
      %v9172 = vsel %vm373, %v9095, 0
      %v9175 = vsel %vm373, %v9096, 0
      %v9178 = vsel %vm373, %v9097, 0
      %v9181 = vsel %vm373, %v9098, 0
      %v9184 = vsel %vm373, %v9099, 0
      %v9187 = vsel %vm373, %v9100, 0
      %v9190 = vsel %vm373, %v9101, 0
      %v9193 = vsel %vm373, %v9102, 0
      %v9196 = vsel %vm373, %v9103, 0
      %v9199 = vsel %vm373, %v9104, 0
      %9201 = vmatprep.subr.mxu0 0.0
      %9202 = vmatpush1.msra.mxu0 0.0
      %9203 = vmatprep.subr.mxu0 0.0
      %9204 = vmatpush1.msra.mxu0 0.0
      %9205 = vmatprep.subr.mxu0 0.0
      %9206 = vmatpush1.msra.mxu0 0.0
      %9207 = vmatprep.subr.mxu0 0.0
      %9208 = vmatpush1.msra.mxu0 0.0
      %9209 = vmatprep.subr.mxu0 0.0
      %9210 = vmatpush1.msra.mxu0 0.0
      %9211 = vmatprep.subr.mxu0 0.0
      %9212 = vmatpush1.msra.mxu0 0.0
      %9213 = vmatprep.subr.mxu0 0.0
      %9214 = vmatpush1.msra.mxu0 0.0
      %9215 = vmatprep.subr.mxu0 0.0
      %9216 = vmatpush1.msra.mxu0 0.0
      %9217 = vmatprep.subr.mxu0 0.0
      %9218 = vmatpush1.msra.mxu0 0.0
      %9219 = vmatprep.subr.mxu0 0.0
      %9220 = vmatpush1.msra.mxu0 0.0
      %9221 = vmatprep.subr.mxu0 0.0
      %9222 = vmatpush1.msra.mxu0 0.0
      %9223 = vmatprep.subr.mxu0 0.0
      %9224 = vmatpush1.msra.mxu0 0.0
      %9225 = vmatprep.subr.mxu0 0.0
      %9226 = vmatpush1.msra.mxu0 %v7579
      %9227 = vmatprep.subr.mxu0 0.0
      %9228 = vmatpush1.msra.mxu0 %v7578
      %9229 = vmatprep.subr.mxu0 0.0
      %9230 = vmatpush1.msra.mxu0 %v7577
      %9231 = vmatprep.subr.mxu0 0.0
      %9232 = vmatpush1.msra.mxu0 %v7576
      %9233 = vmatprep.subr.mxu0 0.0
      %9234 = vmatpush2.msra.mxu0 0.0
      %9235 = vmatprep.subr.mxu0 0.0
      %9236 = vmatpush2.msra.mxu0 0.0
      %9237 = vmatprep.subr.mxu0 0.0
      %9238 = vmatpush2.msra.mxu0 0.0
      %9239 = vmatprep.subr.mxu0 0.0
      %9240 = vmatpush2.msra.mxu0 0.0
      %9241 = vmatprep.subr.mxu0 0.0
      %9242 = vmatpush2.msra.mxu0 0.0
      %9243 = vmatprep.subr.mxu0 0.0
      %9244 = vmatpush2.msra.mxu0 0.0
      %9245 = vmatprep.subr.mxu0 0.0
      %9246 = vmatpush2.msra.mxu0 0.0
      %9247 = vmatprep.subr.mxu0 0.0
      %9248 = vmatpush2.msra.mxu0 0.0
      %9249 = vmatprep.subr.mxu0 0.0
      %9250 = vmatpush2.msra.mxu0 0.0
      %9251 = vmatprep.subr.mxu0 0.0
      %9252 = vmatpush2.msra.mxu0 0.0
      %9253 = vmatprep.subr.mxu0 0.0
      %9254 = vmatpush2.msra.mxu0 0.0
      %9255 = vmatprep.subr.mxu0 0.0
      %9256 = vmatpush2.msra.mxu0 0.0
      %9257 = vmatprep.subr.mxu0 0.0
      %9258 = vmatpush2.msra.mxu0 0.0
      %9259 = vmatprep.subr.mxu0 0.0
      %9260 = vmatpush2.msra.mxu0 0.0
      %9261 = vmatprep.subr.mxu0 0.0
      %9262 = vmatpush2.msra.mxu0 0.0
      %9263 = vmatprep.subr.mxu0 0.0
      %9264 = vmatpush2.msra.mxu0 0.0
      %9265 = vmatprep.mubr.f32.mxu0 0.0
      %9266 = vmatmul.mubr.f32.gmra.mxu0 %v9106
      %v9267 = vpop.f32.mrf.mxu0
      %v9268 = vadd.f32 0.0, %v9267
      %v9269 = vpop.f32.mrf.mxu0
      %9270 = vmatprep.mubr.f32.mxu0 0.0
      %9271 = vmatmul.mubr.f32.gmra.mxu0 %v9109
      %v9272 = vpop.f32.mrf.mxu0
      %v9273 = vadd.f32 0.0, %v9272
      %v9274 = vpop.f32.mrf.mxu0
      %9275 = vmatprep.mubr.f32.mxu0 0.0
      %9276 = vmatmul.mubr.f32.gmra.mxu0 %v9112
      %v9277 = vpop.f32.mrf.mxu0
      %v9278 = vadd.f32 0.0, %v9277
      %v9279 = vpop.f32.mrf.mxu0
      %9280 = vmatprep.mubr.f32.mxu0 0.0
      %9281 = vmatmul.mubr.f32.gmra.mxu0 %v9115
      %v9282 = vpop.f32.mrf.mxu0
      %v9283 = vadd.f32 0.0, %v9282
      %v9284 = vpop.f32.mrf.mxu0
      %9285 = vmatprep.mubr.f32.mxu0 0.0
      %9286 = vmatmul.mubr.f32.gmra.mxu0 %v9118
      %v9287 = vpop.f32.mrf.mxu0
      %v9288 = vadd.f32 0.0, %v9287
      %v9289 = vpop.f32.mrf.mxu0
      %9290 = vmatprep.mubr.f32.mxu0 0.0
      %9291 = vmatmul.mubr.f32.gmra.mxu0 %v9121
      %v9292 = vpop.f32.mrf.mxu0
      %v9293 = vadd.f32 0.0, %v9292
      %v9294 = vpop.f32.mrf.mxu0
      %9295 = vmatprep.mubr.f32.mxu0 0.0
      %9296 = vmatmul.mubr.f32.gmra.mxu0 %v9124
      %v9297 = vpop.f32.mrf.mxu0
      %v9298 = vadd.f32 0.0, %v9297
      %v9299 = vpop.f32.mrf.mxu0
      %9300 = vmatprep.mubr.f32.mxu0 0.0
      %9301 = vmatmul.mubr.f32.gmra.mxu0 %v9127
      %v9302 = vpop.f32.mrf.mxu0
      %v9303 = vadd.f32 0.0, %v9302
      %v9304 = vpop.f32.mrf.mxu0
      %9305 = vmatprep.mubr.f32.mxu0 0.0
      %9306 = vmatmul.mubr.f32.gmra.mxu0 %v9130
      %v9307 = vpop.f32.mrf.mxu0
      %v9308 = vadd.f32 0.0, %v9307
      %v9309 = vpop.f32.mrf.mxu0
      %9310 = vmatprep.mubr.f32.mxu0 0.0
      %9311 = vmatmul.mubr.f32.gmra.mxu0 %v9133
      %v9312 = vpop.f32.mrf.mxu0
      %v9313 = vadd.f32 0.0, %v9312
      %v9314 = vpop.f32.mrf.mxu0
      %9315 = vmatprep.mubr.f32.mxu0 0.0
      %9316 = vmatmul.mubr.f32.gmra.mxu0 %v9136
      %v9317 = vpop.f32.mrf.mxu0
      %v9318 = vadd.f32 0.0, %v9317
      %v9319 = vpop.f32.mrf.mxu0
      %9320 = vmatprep.mubr.f32.mxu0 0.0
      %9321 = vmatmul.mubr.f32.gmra.mxu0 %v9139
      %v9322 = vpop.f32.mrf.mxu0
      %v9323 = vadd.f32 0.0, %v9322
      %v9324 = vpop.f32.mrf.mxu0
      %9325 = vmatprep.mubr.f32.mxu0 0.0
      %9326 = vmatmul.mubr.f32.gmra.mxu0 %v9142
      %v9327 = vpop.f32.mrf.mxu0
      %v9328 = vadd.f32 0.0, %v9327
      %v9329 = vpop.f32.mrf.mxu0
      %9330 = vmatprep.mubr.f32.mxu0 0.0
      %9331 = vmatmul.mubr.f32.gmra.mxu0 %v9145
      %v9332 = vpop.f32.mrf.mxu0
      %v9333 = vadd.f32 0.0, %v9332
      %v9334 = vpop.f32.mrf.mxu0
      %9335 = vmatprep.mubr.f32.mxu0 0.0
      %9336 = vmatmul.mubr.f32.gmra.mxu0 %v9148
      %v9337 = vpop.f32.mrf.mxu0
      %v9338 = vadd.f32 0.0, %v9337
      %v9339 = vpop.f32.mrf.mxu0
      %9340 = vmatprep.mubr.f32.mxu0 0.0
      %9341 = vmatmul.mubr.f32.gmra.mxu0 %v9151
      %v9342 = vpop.f32.mrf.mxu0
      %v9343 = vadd.f32 0.0, %v9342
      %v9344 = vpop.f32.mrf.mxu0
      %9345 = vmatprep.mubr.f32.mxu0 0.0
      %9346 = vmatmul.mubr.f32.gmra.mxu0 %v9154
      %v9347 = vpop.f32.mrf.mxu0
      %v9348 = vadd.f32 0.0, %v9347
      %v9349 = vpop.f32.mrf.mxu0
      %9350 = vmatprep.mubr.f32.mxu0 0.0
      %9351 = vmatmul.mubr.f32.gmra.mxu0 %v9157
      %v9352 = vpop.f32.mrf.mxu0
      %v9353 = vadd.f32 0.0, %v9352
      %v9354 = vpop.f32.mrf.mxu0
      %9355 = vmatprep.mubr.f32.mxu0 0.0
      %9356 = vmatmul.mubr.f32.gmra.mxu0 %v9160
      %v9357 = vpop.f32.mrf.mxu0
      %v9358 = vadd.f32 0.0, %v9357
      %v9359 = vpop.f32.mrf.mxu0
      %9360 = vmatprep.mubr.f32.mxu0 0.0
      %9361 = vmatmul.mubr.f32.gmra.mxu0 %v9163
      %v9362 = vpop.f32.mrf.mxu0
      %v9363 = vadd.f32 0.0, %v9362
      %v9364 = vpop.f32.mrf.mxu0
      %9365 = vmatprep.mubr.f32.mxu0 0.0
      %9366 = vmatmul.mubr.f32.gmra.mxu0 %v9166
      %v9367 = vpop.f32.mrf.mxu0
      %v9368 = vadd.f32 0.0, %v9367
      %v9369 = vpop.f32.mrf.mxu0
      %9370 = vmatprep.mubr.f32.mxu0 0.0
      %9371 = vmatmul.mubr.f32.gmra.mxu0 %v9169
      %v9372 = vpop.f32.mrf.mxu0
      %v9373 = vadd.f32 0.0, %v9372
      %v9374 = vpop.f32.mrf.mxu0
      %9375 = vmatprep.mubr.f32.mxu0 0.0
      %9376 = vmatmul.mubr.f32.gmra.mxu0 %v9172
      %v9377 = vpop.f32.mrf.mxu0
      %v9378 = vadd.f32 0.0, %v9377
      %v9379 = vpop.f32.mrf.mxu0
      %9380 = vmatprep.mubr.f32.mxu0 0.0
      %9381 = vmatmul.mubr.f32.gmra.mxu0 %v9175
      %v9382 = vpop.f32.mrf.mxu0
      %v9383 = vadd.f32 0.0, %v9382
      %v9384 = vpop.f32.mrf.mxu0
      %9385 = vmatprep.mubr.f32.mxu0 0.0
      %9386 = vmatmul.mubr.f32.gmra.mxu0 %v9178
      %v9387 = vpop.f32.mrf.mxu0
      %v9388 = vadd.f32 0.0, %v9387
      %v9389 = vpop.f32.mrf.mxu0
      %9390 = vmatprep.mubr.f32.mxu0 0.0
      %9391 = vmatmul.mubr.f32.gmra.mxu0 %v9181
      %v9392 = vpop.f32.mrf.mxu0
      %v9393 = vadd.f32 0.0, %v9392
      %v9394 = vpop.f32.mrf.mxu0
      %9395 = vmatprep.mubr.f32.mxu0 0.0
      %9396 = vmatmul.mubr.f32.gmra.mxu0 %v9184
      %v9397 = vpop.f32.mrf.mxu0
      %v9398 = vadd.f32 0.0, %v9397
      %v9399 = vpop.f32.mrf.mxu0
      %9400 = vmatprep.mubr.f32.mxu0 0.0
      %9401 = vmatmul.mubr.f32.gmra.mxu0 %v9187
      %v9402 = vpop.f32.mrf.mxu0
      %v9403 = vadd.f32 0.0, %v9402
      %v9404 = vpop.f32.mrf.mxu0
      %9405 = vmatprep.mubr.f32.mxu0 0.0
      %9406 = vmatmul.mubr.f32.gmra.mxu0 %v9190
      %v9407 = vpop.f32.mrf.mxu0
      %v9408 = vadd.f32 0.0, %v9407
      %v9409 = vpop.f32.mrf.mxu0
      %9410 = vmatprep.mubr.f32.mxu0 0.0
      %9411 = vmatmul.mubr.f32.gmra.mxu0 %v9193
      %v9412 = vpop.f32.mrf.mxu0
      %v9413 = vadd.f32 0.0, %v9412
      %v9414 = vpop.f32.mrf.mxu0
      %9415 = vmatprep.mubr.f32.mxu0 0.0
      %9416 = vmatmul.mubr.f32.gmra.mxu0 %v9196
      %v9417 = vpop.f32.mrf.mxu0
      %v9418 = vadd.f32 0.0, %v9417
      %v9419 = vpop.f32.mrf.mxu0
      %9420 = vmatprep.mubr.f32.mxu0 0.0
      %9421 = vmatmul.mubr.f32.gmra.mxu0 %v9199
      %v9422 = vpop.f32.mrf.mxu0
      %v9423 = vadd.f32 0.0, %v9422
      %v9424 = vpop.f32.mrf.mxu0
      %9425 = vdwg.mxu0
      %v9426 = vadd.f32 %v9041, %v9268
      %v9427 = vadd.f32 %v9042, %v9273
      %v9428 = vadd.f32 %v9043, %v9278
      %v9429 = vadd.f32 %v9044, %v9283
      %v9430 = vadd.f32 %v9045, %v9288
      %v9431 = vadd.f32 %v9046, %v9293
      %v9432 = vadd.f32 %v9047, %v9298
      %v9433 = vadd.f32 %v9048, %v9303
      %v9434 = vadd.f32 %v9049, %v9308
      %v9435 = vadd.f32 %v9050, %v9313
      %v9436 = vadd.f32 %v9051, %v9318
      %v9437 = vadd.f32 %v9052, %v9323
      %v9438 = vadd.f32 %v9053, %v9328
      %v9439 = vadd.f32 %v9054, %v9333
      %v9440 = vadd.f32 %v9055, %v9338
      %v9441 = vadd.f32 %v9056, %v9343
      %v9442 = vadd.f32 %v9057, %v9348
      %v9443 = vadd.f32 %v9058, %v9353
      %v9444 = vadd.f32 %v9059, %v9358
      %v9445 = vadd.f32 %v9060, %v9363
      %v9446 = vadd.f32 %v9061, %v9368
      %v9447 = vadd.f32 %v9062, %v9373
      %v9448 = vadd.f32 %v9063, %v9378
      %v9449 = vadd.f32 %v9064, %v9383
      %v9450 = vadd.f32 %v9065, %v9388
      %v9451 = vadd.f32 %v9066, %v9393
      %v9452 = vadd.f32 %v9067, %v9398
      %v9453 = vadd.f32 %v9068, %v9403
      %v9454 = vadd.f32 %v9069, %v9408
      %v9455 = vadd.f32 %v9070, %v9413
      %v9456 = vadd.f32 %v9071, %v9418
      %v9457 = vadd.f32 %v9072, %v9423
      %v9458 = vld [vmem:[%s383 + $0x9] sm:$0xff]
      %v9459 = vld [vmem:[%s383 + $0x11] sm:$0xff]
      %v9460 = vld [vmem:[%s383 + $0x29] sm:$0xff]
      %v9461 = vld [vmem:[%s383 + $0x31] sm:$0xff]
      %v9462 = vld [vmem:[%s383 + $0x49] sm:$0xff]
      %v9463 = vld [vmem:[%s383 + $0x51] sm:$0xff]
      %v9464 = vld [vmem:[%s383 + $0x69] sm:$0xff]
      %v9465 = vld [vmem:[%s383 + $0x71] sm:$0xff]
      %v9466 = vld [vmem:[%s383 + $0x89] sm:$0xff]
      %v9467 = vld [vmem:[%s383 + $0x91] sm:$0xff]
      %v9468 = vld [vmem:[%s383 + $0xa9] sm:$0xff]
      %v9469 = vld [vmem:[%s383 + $0xb1] sm:$0xff]
      %v9470 = vld [vmem:[%s383 + $0xc9] sm:$0xff]
      %v9471 = vld [vmem:[%s383 + $0xd1] sm:$0xff]
      %v9472 = vld [vmem:[%s383 + $0xe9] sm:$0xff]
      %v9473 = vld [vmem:[%s383 + $0xf1] sm:$0xff]
      %v9474 = vld [vmem:[%s383 + $0x109] sm:$0xff]
      %v9475 = vld [vmem:[%s383 + $0x111] sm:$0xff]
      %v9476 = vld [vmem:[%s383 + $0x129] sm:$0xff]
      %v9477 = vld [vmem:[%s383 + $0x131] sm:$0xff]
      %v9478 = vld [vmem:[%s383 + $0x149] sm:$0xff]
      %v9479 = vld [vmem:[%s383 + $0x151] sm:$0xff]
      %v9480 = vld [vmem:[%s383 + $0x169] sm:$0xff]
      %v9481 = vld [vmem:[%s383 + $0x171] sm:$0xff]
      %v9482 = vld [vmem:[%s383 + $0x189] sm:$0xff]
      %v9483 = vld [vmem:[%s383 + $0x191] sm:$0xff]
      %v9484 = vld [vmem:[%s383 + $0x1a9] sm:$0xff]
      %v9485 = vld [vmem:[%s383 + $0x1b1] sm:$0xff]
      %v9486 = vld [vmem:[%s383 + $0x1c9] sm:$0xff]
      %v9487 = vld [vmem:[%s383 + $0x1d1] sm:$0xff]
      %v9488 = vld [vmem:[%s383 + $0x1e9] sm:$0xff]
      %v9489 = vld [vmem:[%s383 + $0x1f1] sm:$0xff]
      %v9491 = vsel %vm373, %v9458, 0
      %v9494 = vsel %vm373, %v9459, 0
      %v9497 = vsel %vm373, %v9460, 0
      %v9500 = vsel %vm373, %v9461, 0
      %v9503 = vsel %vm373, %v9462, 0
      %v9506 = vsel %vm373, %v9463, 0
      %v9509 = vsel %vm373, %v9464, 0
      %v9512 = vsel %vm373, %v9465, 0
      %v9515 = vsel %vm373, %v9466, 0
      %v9518 = vsel %vm373, %v9467, 0
      %v9521 = vsel %vm373, %v9468, 0
      %v9524 = vsel %vm373, %v9469, 0
      %v9527 = vsel %vm373, %v9470, 0
      %v9530 = vsel %vm373, %v9471, 0
      %v9533 = vsel %vm373, %v9472, 0
      %v9536 = vsel %vm373, %v9473, 0
      %v9539 = vsel %vm373, %v9474, 0
      %v9542 = vsel %vm373, %v9475, 0
      %v9545 = vsel %vm373, %v9476, 0
      %v9548 = vsel %vm373, %v9477, 0
      %v9551 = vsel %vm373, %v9478, 0
      %v9554 = vsel %vm373, %v9479, 0
      %v9557 = vsel %vm373, %v9480, 0
      %v9560 = vsel %vm373, %v9481, 0
      %v9563 = vsel %vm373, %v9482, 0
      %v9566 = vsel %vm373, %v9483, 0
      %v9569 = vsel %vm373, %v9484, 0
      %v9572 = vsel %vm373, %v9485, 0
      %v9575 = vsel %vm373, %v9486, 0
      %v9578 = vsel %vm373, %v9487, 0
      %v9581 = vsel %vm373, %v9488, 0
      %v9584 = vsel %vm373, %v9489, 0
      %9586 = vmatprep.subr.mxu0 0.0
      %9587 = vmatpush1.msra.mxu0 0.0
      %9588 = vmatprep.subr.mxu0 0.0
      %9589 = vmatpush1.msra.mxu0 0.0
      %9590 = vmatprep.subr.mxu0 0.0
      %9591 = vmatpush1.msra.mxu0 0.0
      %9592 = vmatprep.subr.mxu0 0.0
      %9593 = vmatpush1.msra.mxu0 0.0
      %9594 = vmatprep.subr.mxu0 0.0
      %9595 = vmatpush1.msra.mxu0 0.0
      %9596 = vmatprep.subr.mxu0 0.0
      %9597 = vmatpush1.msra.mxu0 0.0
      %9598 = vmatprep.subr.mxu0 0.0
      %9599 = vmatpush1.msra.mxu0 0.0
      %9600 = vmatprep.subr.mxu0 0.0
      %9601 = vmatpush1.msra.mxu0 0.0
      %9602 = vmatprep.subr.mxu0 0.0
      %9603 = vmatpush1.msra.mxu0 0.0
      %9604 = vmatprep.subr.mxu0 0.0
      %9605 = vmatpush1.msra.mxu0 0.0
      %9606 = vmatprep.subr.mxu0 0.0
      %9607 = vmatpush1.msra.mxu0 0.0
      %9608 = vmatprep.subr.mxu0 0.0
      %9609 = vmatpush1.msra.mxu0 0.0
      %9610 = vmatprep.subr.mxu0 0.0
      %9611 = vmatpush1.msra.mxu0 %v7583
      %9612 = vmatprep.subr.mxu0 0.0
      %9613 = vmatpush1.msra.mxu0 %v7582
      %9614 = vmatprep.subr.mxu0 0.0
      %9615 = vmatpush1.msra.mxu0 %v7581
      %9616 = vmatprep.subr.mxu0 0.0
      %9617 = vmatpush1.msra.mxu0 %v7580
      %9618 = vmatprep.subr.mxu0 0.0
      %9619 = vmatpush2.msra.mxu0 0.0
      %9620 = vmatprep.subr.mxu0 0.0
      %9621 = vmatpush2.msra.mxu0 0.0
      %9622 = vmatprep.subr.mxu0 0.0
      %9623 = vmatpush2.msra.mxu0 0.0
      %9624 = vmatprep.subr.mxu0 0.0
      %9625 = vmatpush2.msra.mxu0 0.0
      %9626 = vmatprep.subr.mxu0 0.0
      %9627 = vmatpush2.msra.mxu0 0.0
      %9628 = vmatprep.subr.mxu0 0.0
      %9629 = vmatpush2.msra.mxu0 0.0
      %9630 = vmatprep.subr.mxu0 0.0
      %9631 = vmatpush2.msra.mxu0 0.0
      %9632 = vmatprep.subr.mxu0 0.0
      %9633 = vmatpush2.msra.mxu0 0.0
      %9634 = vmatprep.subr.mxu0 0.0
      %9635 = vmatpush2.msra.mxu0 0.0
      %9636 = vmatprep.subr.mxu0 0.0
      %9637 = vmatpush2.msra.mxu0 0.0
      %9638 = vmatprep.subr.mxu0 0.0
      %9639 = vmatpush2.msra.mxu0 0.0
      %9640 = vmatprep.subr.mxu0 0.0
      %9641 = vmatpush2.msra.mxu0 0.0
      %9642 = vmatprep.subr.mxu0 0.0
      %9643 = vmatpush2.msra.mxu0 0.0
      %9644 = vmatprep.subr.mxu0 0.0
      %9645 = vmatpush2.msra.mxu0 0.0
      %9646 = vmatprep.subr.mxu0 0.0
      %9647 = vmatpush2.msra.mxu0 0.0
      %9648 = vmatprep.subr.mxu0 0.0
      %9649 = vmatpush2.msra.mxu0 0.0
      %9650 = vmatprep.mubr.f32.mxu0 0.0
      %9651 = vmatmul.mubr.f32.gmra.mxu0 %v9491
      %v9652 = vpop.f32.mrf.mxu0
      %v9653 = vadd.f32 0.0, %v9652
      %v9654 = vpop.f32.mrf.mxu0
      %9655 = vmatprep.mubr.f32.mxu0 0.0
      %9656 = vmatmul.mubr.f32.gmra.mxu0 %v9494
      %v9657 = vpop.f32.mrf.mxu0
      %v9658 = vadd.f32 0.0, %v9657
      %v9659 = vpop.f32.mrf.mxu0
      %9660 = vmatprep.mubr.f32.mxu0 0.0
      %9661 = vmatmul.mubr.f32.gmra.mxu0 %v9497
      %v9662 = vpop.f32.mrf.mxu0
      %v9663 = vadd.f32 0.0, %v9662
      %v9664 = vpop.f32.mrf.mxu0
      %9665 = vmatprep.mubr.f32.mxu0 0.0
      %9666 = vmatmul.mubr.f32.gmra.mxu0 %v9500
      %v9667 = vpop.f32.mrf.mxu0
      %v9668 = vadd.f32 0.0, %v9667
      %v9669 = vpop.f32.mrf.mxu0
      %9670 = vmatprep.mubr.f32.mxu0 0.0
      %9671 = vmatmul.mubr.f32.gmra.mxu0 %v9503
      %v9672 = vpop.f32.mrf.mxu0
      %v9673 = vadd.f32 0.0, %v9672
      %v9674 = vpop.f32.mrf.mxu0
      %9675 = vmatprep.mubr.f32.mxu0 0.0
      %9676 = vmatmul.mubr.f32.gmra.mxu0 %v9506
      %v9677 = vpop.f32.mrf.mxu0
      %v9678 = vadd.f32 0.0, %v9677
      %v9679 = vpop.f32.mrf.mxu0
      %9680 = vmatprep.mubr.f32.mxu0 0.0
      %9681 = vmatmul.mubr.f32.gmra.mxu0 %v9509
      %v9682 = vpop.f32.mrf.mxu0
      %v9683 = vadd.f32 0.0, %v9682
      %v9684 = vpop.f32.mrf.mxu0
      %9685 = vmatprep.mubr.f32.mxu0 0.0
      %9686 = vmatmul.mubr.f32.gmra.mxu0 %v9512
      %v9687 = vpop.f32.mrf.mxu0
      %v9688 = vadd.f32 0.0, %v9687
      %v9689 = vpop.f32.mrf.mxu0
      %9690 = vmatprep.mubr.f32.mxu0 0.0
      %9691 = vmatmul.mubr.f32.gmra.mxu0 %v9515
      %v9692 = vpop.f32.mrf.mxu0
      %v9693 = vadd.f32 0.0, %v9692
      %v9694 = vpop.f32.mrf.mxu0
      %9695 = vmatprep.mubr.f32.mxu0 0.0
      %9696 = vmatmul.mubr.f32.gmra.mxu0 %v9518
      %v9697 = vpop.f32.mrf.mxu0
      %v9698 = vadd.f32 0.0, %v9697
      %v9699 = vpop.f32.mrf.mxu0
      %9700 = vmatprep.mubr.f32.mxu0 0.0
      %9701 = vmatmul.mubr.f32.gmra.mxu0 %v9521
      %v9702 = vpop.f32.mrf.mxu0
      %v9703 = vadd.f32 0.0, %v9702
      %v9704 = vpop.f32.mrf.mxu0
      %9705 = vmatprep.mubr.f32.mxu0 0.0
      %9706 = vmatmul.mubr.f32.gmra.mxu0 %v9524
      %v9707 = vpop.f32.mrf.mxu0
      %v9708 = vadd.f32 0.0, %v9707
      %v9709 = vpop.f32.mrf.mxu0
      %9710 = vmatprep.mubr.f32.mxu0 0.0
      %9711 = vmatmul.mubr.f32.gmra.mxu0 %v9527
      %v9712 = vpop.f32.mrf.mxu0
      %v9713 = vadd.f32 0.0, %v9712
      %v9714 = vpop.f32.mrf.mxu0
      %9715 = vmatprep.mubr.f32.mxu0 0.0
      %9716 = vmatmul.mubr.f32.gmra.mxu0 %v9530
      %v9717 = vpop.f32.mrf.mxu0
      %v9718 = vadd.f32 0.0, %v9717
      %v9719 = vpop.f32.mrf.mxu0
      %9720 = vmatprep.mubr.f32.mxu0 0.0
      %9721 = vmatmul.mubr.f32.gmra.mxu0 %v9533
      %v9722 = vpop.f32.mrf.mxu0
      %v9723 = vadd.f32 0.0, %v9722
      %v9724 = vpop.f32.mrf.mxu0
      %9725 = vmatprep.mubr.f32.mxu0 0.0
      %9726 = vmatmul.mubr.f32.gmra.mxu0 %v9536
      %v9727 = vpop.f32.mrf.mxu0
      %v9728 = vadd.f32 0.0, %v9727
      %v9729 = vpop.f32.mrf.mxu0
      %9730 = vmatprep.mubr.f32.mxu0 0.0
      %9731 = vmatmul.mubr.f32.gmra.mxu0 %v9539
      %v9732 = vpop.f32.mrf.mxu0
      %v9733 = vadd.f32 0.0, %v9732
      %v9734 = vpop.f32.mrf.mxu0
      %9735 = vmatprep.mubr.f32.mxu0 0.0
      %9736 = vmatmul.mubr.f32.gmra.mxu0 %v9542
      %v9737 = vpop.f32.mrf.mxu0
      %v9738 = vadd.f32 0.0, %v9737
      %v9739 = vpop.f32.mrf.mxu0
      %9740 = vmatprep.mubr.f32.mxu0 0.0
      %9741 = vmatmul.mubr.f32.gmra.mxu0 %v9545
      %v9742 = vpop.f32.mrf.mxu0
      %v9743 = vadd.f32 0.0, %v9742
      %v9744 = vpop.f32.mrf.mxu0
      %9745 = vmatprep.mubr.f32.mxu0 0.0
      %9746 = vmatmul.mubr.f32.gmra.mxu0 %v9548
      %v9747 = vpop.f32.mrf.mxu0
      %v9748 = vadd.f32 0.0, %v9747
      %v9749 = vpop.f32.mrf.mxu0
      %9750 = vmatprep.mubr.f32.mxu0 0.0
      %9751 = vmatmul.mubr.f32.gmra.mxu0 %v9551
      %v9752 = vpop.f32.mrf.mxu0
      %v9753 = vadd.f32 0.0, %v9752
      %v9754 = vpop.f32.mrf.mxu0
      %9755 = vmatprep.mubr.f32.mxu0 0.0
      %9756 = vmatmul.mubr.f32.gmra.mxu0 %v9554
      %v9757 = vpop.f32.mrf.mxu0
      %v9758 = vadd.f32 0.0, %v9757
      %v9759 = vpop.f32.mrf.mxu0
      %9760 = vmatprep.mubr.f32.mxu0 0.0
      %9761 = vmatmul.mubr.f32.gmra.mxu0 %v9557
      %v9762 = vpop.f32.mrf.mxu0
      %v9763 = vadd.f32 0.0, %v9762
      %v9764 = vpop.f32.mrf.mxu0
      %9765 = vmatprep.mubr.f32.mxu0 0.0
      %9766 = vmatmul.mubr.f32.gmra.mxu0 %v9560
      %v9767 = vpop.f32.mrf.mxu0
      %v9768 = vadd.f32 0.0, %v9767
      %v9769 = vpop.f32.mrf.mxu0
      %9770 = vmatprep.mubr.f32.mxu0 0.0
      %9771 = vmatmul.mubr.f32.gmra.mxu0 %v9563
      %v9772 = vpop.f32.mrf.mxu0
      %v9773 = vadd.f32 0.0, %v9772
      %v9774 = vpop.f32.mrf.mxu0
      %9775 = vmatprep.mubr.f32.mxu0 0.0
      %9776 = vmatmul.mubr.f32.gmra.mxu0 %v9566
      %v9777 = vpop.f32.mrf.mxu0
      %v9778 = vadd.f32 0.0, %v9777
      %v9779 = vpop.f32.mrf.mxu0
      %9780 = vmatprep.mubr.f32.mxu0 0.0
      %9781 = vmatmul.mubr.f32.gmra.mxu0 %v9569
      %v9782 = vpop.f32.mrf.mxu0
      %v9783 = vadd.f32 0.0, %v9782
      %v9784 = vpop.f32.mrf.mxu0
      %9785 = vmatprep.mubr.f32.mxu0 0.0
      %9786 = vmatmul.mubr.f32.gmra.mxu0 %v9572
      %v9787 = vpop.f32.mrf.mxu0
      %v9788 = vadd.f32 0.0, %v9787
      %v9789 = vpop.f32.mrf.mxu0
      %9790 = vmatprep.mubr.f32.mxu0 0.0
      %9791 = vmatmul.mubr.f32.gmra.mxu0 %v9575
      %v9792 = vpop.f32.mrf.mxu0
      %v9793 = vadd.f32 0.0, %v9792
      %v9794 = vpop.f32.mrf.mxu0
      %9795 = vmatprep.mubr.f32.mxu0 0.0
      %9796 = vmatmul.mubr.f32.gmra.mxu0 %v9578
      %v9797 = vpop.f32.mrf.mxu0
      %v9798 = vadd.f32 0.0, %v9797
      %v9799 = vpop.f32.mrf.mxu0
      %9800 = vmatprep.mubr.f32.mxu0 0.0
      %9801 = vmatmul.mubr.f32.gmra.mxu0 %v9581
      %v9802 = vpop.f32.mrf.mxu0
      %v9803 = vadd.f32 0.0, %v9802
      %v9804 = vpop.f32.mrf.mxu0
      %9805 = vmatprep.mubr.f32.mxu0 0.0
      %9806 = vmatmul.mubr.f32.gmra.mxu0 %v9584
      %v9807 = vpop.f32.mrf.mxu0
      %v9808 = vadd.f32 0.0, %v9807
      %v9809 = vpop.f32.mrf.mxu0
      %9810 = vdwg.mxu0
      %v9811 = vadd.f32 %v9426, %v9653
      %v9812 = vadd.f32 %v9427, %v9658
      %v9813 = vadd.f32 %v9428, %v9663
      %v9814 = vadd.f32 %v9429, %v9668
      %v9815 = vadd.f32 %v9430, %v9673
      %v9816 = vadd.f32 %v9431, %v9678
      %v9817 = vadd.f32 %v9432, %v9683
      %v9818 = vadd.f32 %v9433, %v9688
      %v9819 = vadd.f32 %v9434, %v9693
      %v9820 = vadd.f32 %v9435, %v9698
      %v9821 = vadd.f32 %v9436, %v9703
      %v9822 = vadd.f32 %v9437, %v9708
      %v9823 = vadd.f32 %v9438, %v9713
      %v9824 = vadd.f32 %v9439, %v9718
      %v9825 = vadd.f32 %v9440, %v9723
      %v9826 = vadd.f32 %v9441, %v9728
      %v9827 = vadd.f32 %v9442, %v9733
      %v9828 = vadd.f32 %v9443, %v9738
      %v9829 = vadd.f32 %v9444, %v9743
      %v9830 = vadd.f32 %v9445, %v9748
      %v9831 = vadd.f32 %v9446, %v9753
      %v9832 = vadd.f32 %v9447, %v9758
      %v9833 = vadd.f32 %v9448, %v9763
      %v9834 = vadd.f32 %v9449, %v9768
      %v9835 = vadd.f32 %v9450, %v9773
      %v9836 = vadd.f32 %v9451, %v9778
      %v9837 = vadd.f32 %v9452, %v9783
      %v9838 = vadd.f32 %v9453, %v9788
      %v9839 = vadd.f32 %v9454, %v9793
      %v9840 = vadd.f32 %v9455, %v9798
      %v9841 = vadd.f32 %v9456, %v9803
      %v9842 = vadd.f32 %v9457, %v9808
      %v9843 = vld [vmem:[%s6302 + $0x7] sm:$0xff]
      %v9844 = vld [vmem:[%s6302 + $0xf] sm:$0xff]
      %v9845 = vld [vmem:[%s6302 + $0x27] sm:$0xff]
      %v9846 = vld [vmem:[%s6302 + $0x2f] sm:$0xff]
      %v9847 = vld [vmem:[%s6302 + $0x47] sm:$0xff]
      %v9848 = vld [vmem:[%s6302 + $0x4f] sm:$0xff]
      %v9849 = vld [vmem:[%s6302 + $0x67] sm:$0xff]
      %v9850 = vld [vmem:[%s6302 + $0x6f] sm:$0xff]
      %v9851 = vld [vmem:[%s6302 + $0x87] sm:$0xff]
      %v9852 = vld [vmem:[%s6302 + $0x8f] sm:$0xff]
      %v9853 = vld [vmem:[%s6302 + $0xa7] sm:$0xff]
      %v9854 = vld [vmem:[%s6302 + $0xaf] sm:$0xff]
      %v9855 = vld [vmem:[%s6302 + $0xc7] sm:$0xff]
      %v9856 = vld [vmem:[%s6302 + $0xcf] sm:$0xff]
      %v9857 = vld [vmem:[%s6302 + $0xe7] sm:$0xff]
      %v9858 = vld [vmem:[%s6302 + $0xef] sm:$0xff]
      %v9859 = vld [vmem:[%s6302 + $0x107] sm:$0xff]
      %v9860 = vld [vmem:[%s6302 + $0x10f] sm:$0xff]
      %v9861 = vld [vmem:[%s6302 + $0x127] sm:$0xff]
      %v9862 = vld [vmem:[%s6302 + $0x12f] sm:$0xff]
      %v9863 = vld [vmem:[%s6302 + $0x147] sm:$0xff]
      %v9864 = vld [vmem:[%s6302 + $0x14f] sm:$0xff]
      %v9865 = vld [vmem:[%s6302 + $0x167] sm:$0xff]
      %v9866 = vld [vmem:[%s6302 + $0x16f] sm:$0xff]
      %v9867 = vld [vmem:[%s6302 + $0x187] sm:$0xff]
      %v9868 = vld [vmem:[%s6302 + $0x18f] sm:$0xff]
      %v9869 = vld [vmem:[%s6302 + $0x1a7] sm:$0xff]
      %v9870 = vld [vmem:[%s6302 + $0x1af] sm:$0xff]
      %v9871 = vld [vmem:[%s6302 + $0x1c7] sm:$0xff]
      %v9872 = vld [vmem:[%s6302 + $0x1cf] sm:$0xff]
      %v9873 = vld [vmem:[%s6302 + $0x1e7] sm:$0xff]
      %v9874 = vld [vmem:[%s6302 + $0x1ef] sm:$0xff]
      %v9876 = vsel %vm373, %v9843, 0
      %v9879 = vsel %vm373, %v9844, 0
      %v9882 = vsel %vm373, %v9845, 0
      %v9885 = vsel %vm373, %v9846, 0
      %v9888 = vsel %vm373, %v9847, 0
      %v9891 = vsel %vm373, %v9848, 0
      %v9894 = vsel %vm373, %v9849, 0
      %v9897 = vsel %vm373, %v9850, 0
      %v9900 = vsel %vm373, %v9851, 0
      %v9903 = vsel %vm373, %v9852, 0
      %v9906 = vsel %vm373, %v9853, 0
      %v9909 = vsel %vm373, %v9854, 0
      %v9912 = vsel %vm373, %v9855, 0
      %v9915 = vsel %vm373, %v9856, 0
      %v9918 = vsel %vm373, %v9857, 0
      %v9921 = vsel %vm373, %v9858, 0
      %v9924 = vsel %vm373, %v9859, 0
      %v9927 = vsel %vm373, %v9860, 0
      %v9930 = vsel %vm373, %v9861, 0
      %v9933 = vsel %vm373, %v9862, 0
      %v9936 = vsel %vm373, %v9863, 0
      %v9939 = vsel %vm373, %v9864, 0
      %v9942 = vsel %vm373, %v9865, 0
      %v9945 = vsel %vm373, %v9866, 0
      %v9948 = vsel %vm373, %v9867, 0
      %v9951 = vsel %vm373, %v9868, 0
      %v9954 = vsel %vm373, %v9869, 0
      %v9957 = vsel %vm373, %v9870, 0
      %v9960 = vsel %vm373, %v9871, 0
      %v9963 = vsel %vm373, %v9872, 0
      %v9966 = vsel %vm373, %v9873, 0
      %v9969 = vsel %vm373, %v9874, 0
      %9971 = vmatprep.subr.mxu0 0.0
      %9972 = vmatpush1.msra.mxu0 0.0
      %9973 = vmatprep.subr.mxu0 0.0
      %9974 = vmatpush1.msra.mxu0 0.0
      %9975 = vmatprep.subr.mxu0 0.0
      %9976 = vmatpush1.msra.mxu0 0.0
      %9977 = vmatprep.subr.mxu0 0.0
      %9978 = vmatpush1.msra.mxu0 0.0
      %9979 = vmatprep.subr.mxu0 0.0
      %9980 = vmatpush1.msra.mxu0 0.0
      %9981 = vmatprep.subr.mxu0 0.0
      %9982 = vmatpush1.msra.mxu0 0.0
      %9983 = vmatprep.subr.mxu0 0.0
      %9984 = vmatpush1.msra.mxu0 0.0
      %9985 = vmatprep.subr.mxu0 0.0
      %9986 = vmatpush1.msra.mxu0 0.0
      %9987 = vmatprep.subr.mxu0 0.0
      %9988 = vmatpush1.msra.mxu0 0.0
      %9989 = vmatprep.subr.mxu0 0.0
      %9990 = vmatpush1.msra.mxu0 0.0
      %9991 = vmatprep.subr.mxu0 0.0
      %9992 = vmatpush1.msra.mxu0 0.0
      %9993 = vmatprep.subr.mxu0 0.0
      %9994 = vmatpush1.msra.mxu0 0.0
      %9995 = vmatprep.subr.mxu0 0.0
      %9996 = vmatpush1.msra.mxu0 %v7587
      %9997 = vmatprep.subr.mxu0 0.0
      %9998 = vmatpush1.msra.mxu0 %v7586
      %9999 = vmatprep.subr.mxu0 0.0
      %10000 = vmatpush1.msra.mxu0 %v7585
      %10001 = vmatprep.subr.mxu0 0.0
      %10002 = vmatpush1.msra.mxu0 %v7584
      %10003 = vmatprep.subr.mxu0 0.0
      %10004 = vmatpush2.msra.mxu0 0.0
      %10005 = vmatprep.subr.mxu0 0.0
      %10006 = vmatpush2.msra.mxu0 0.0
      %10007 = vmatprep.subr.mxu0 0.0
      %10008 = vmatpush2.msra.mxu0 0.0
      %10009 = vmatprep.subr.mxu0 0.0
      %10010 = vmatpush2.msra.mxu0 0.0
      %10011 = vmatprep.subr.mxu0 0.0
      %10012 = vmatpush2.msra.mxu0 0.0
      %10013 = vmatprep.subr.mxu0 0.0
      %10014 = vmatpush2.msra.mxu0 0.0
      %10015 = vmatprep.subr.mxu0 0.0
      %10016 = vmatpush2.msra.mxu0 0.0
      %10017 = vmatprep.subr.mxu0 0.0
      %10018 = vmatpush2.msra.mxu0 0.0
      %10019 = vmatprep.subr.mxu0 0.0
      %10020 = vmatpush2.msra.mxu0 0.0
      %10021 = vmatprep.subr.mxu0 0.0
      %10022 = vmatpush2.msra.mxu0 0.0
      %10023 = vmatprep.subr.mxu0 0.0
      %10024 = vmatpush2.msra.mxu0 0.0
      %10025 = vmatprep.subr.mxu0 0.0
      %10026 = vmatpush2.msra.mxu0 0.0
      %10027 = vmatprep.subr.mxu0 0.0
      %10028 = vmatpush2.msra.mxu0 0.0
      %10029 = vmatprep.subr.mxu0 0.0
      %10030 = vmatpush2.msra.mxu0 0.0
      %10031 = vmatprep.subr.mxu0 0.0
      %10032 = vmatpush2.msra.mxu0 0.0
      %10033 = vmatprep.subr.mxu0 0.0
      %10034 = vmatpush2.msra.mxu0 0.0
      %10035 = vmatprep.mubr.f32.mxu0 0.0
      %10036 = vmatmul.mubr.f32.gmra.mxu0 %v9876
      %v10037 = vpop.f32.mrf.mxu0
      %v10038 = vadd.f32 0.0, %v10037
      %v10039 = vpop.f32.mrf.mxu0
      %10040 = vmatprep.mubr.f32.mxu0 0.0
      %10041 = vmatmul.mubr.f32.gmra.mxu0 %v9879
      %v10042 = vpop.f32.mrf.mxu0
      %v10043 = vadd.f32 0.0, %v10042
      %v10044 = vpop.f32.mrf.mxu0
      %10045 = vmatprep.mubr.f32.mxu0 0.0
      %10046 = vmatmul.mubr.f32.gmra.mxu0 %v9882
      %v10047 = vpop.f32.mrf.mxu0
      %v10048 = vadd.f32 0.0, %v10047
      %v10049 = vpop.f32.mrf.mxu0
      %10050 = vmatprep.mubr.f32.mxu0 0.0
      %10051 = vmatmul.mubr.f32.gmra.mxu0 %v9885
      %v10052 = vpop.f32.mrf.mxu0
      %v10053 = vadd.f32 0.0, %v10052
      %v10054 = vpop.f32.mrf.mxu0
      %10055 = vmatprep.mubr.f32.mxu0 0.0
      %10056 = vmatmul.mubr.f32.gmra.mxu0 %v9888
      %v10057 = vpop.f32.mrf.mxu0
      %v10058 = vadd.f32 0.0, %v10057
      %v10059 = vpop.f32.mrf.mxu0
      %10060 = vmatprep.mubr.f32.mxu0 0.0
      %10061 = vmatmul.mubr.f32.gmra.mxu0 %v9891
      %v10062 = vpop.f32.mrf.mxu0
      %v10063 = vadd.f32 0.0, %v10062
      %v10064 = vpop.f32.mrf.mxu0
      %10065 = vmatprep.mubr.f32.mxu0 0.0
      %10066 = vmatmul.mubr.f32.gmra.mxu0 %v9894
      %v10067 = vpop.f32.mrf.mxu0
      %v10068 = vadd.f32 0.0, %v10067
      %v10069 = vpop.f32.mrf.mxu0
      %10070 = vmatprep.mubr.f32.mxu0 0.0
      %10071 = vmatmul.mubr.f32.gmra.mxu0 %v9897
      %v10072 = vpop.f32.mrf.mxu0
      %v10073 = vadd.f32 0.0, %v10072
      %v10074 = vpop.f32.mrf.mxu0
      %10075 = vmatprep.mubr.f32.mxu0 0.0
      %10076 = vmatmul.mubr.f32.gmra.mxu0 %v9900
      %v10077 = vpop.f32.mrf.mxu0
      %v10078 = vadd.f32 0.0, %v10077
      %v10079 = vpop.f32.mrf.mxu0
      %10080 = vmatprep.mubr.f32.mxu0 0.0
      %10081 = vmatmul.mubr.f32.gmra.mxu0 %v9903
      %v10082 = vpop.f32.mrf.mxu0
      %v10083 = vadd.f32 0.0, %v10082
      %v10084 = vpop.f32.mrf.mxu0
      %10085 = vmatprep.mubr.f32.mxu0 0.0
      %10086 = vmatmul.mubr.f32.gmra.mxu0 %v9906
      %v10087 = vpop.f32.mrf.mxu0
      %v10088 = vadd.f32 0.0, %v10087
      %v10089 = vpop.f32.mrf.mxu0
      %10090 = vmatprep.mubr.f32.mxu0 0.0
      %10091 = vmatmul.mubr.f32.gmra.mxu0 %v9909
      %v10092 = vpop.f32.mrf.mxu0
      %v10093 = vadd.f32 0.0, %v10092
      %v10094 = vpop.f32.mrf.mxu0
      %10095 = vmatprep.mubr.f32.mxu0 0.0
      %10096 = vmatmul.mubr.f32.gmra.mxu0 %v9912
      %v10097 = vpop.f32.mrf.mxu0
      %v10098 = vadd.f32 0.0, %v10097
      %v10099 = vpop.f32.mrf.mxu0
      %10100 = vmatprep.mubr.f32.mxu0 0.0
      %10101 = vmatmul.mubr.f32.gmra.mxu0 %v9915
      %v10102 = vpop.f32.mrf.mxu0
      %v10103 = vadd.f32 0.0, %v10102
      %v10104 = vpop.f32.mrf.mxu0
      %10105 = vmatprep.mubr.f32.mxu0 0.0
      %10106 = vmatmul.mubr.f32.gmra.mxu0 %v9918
      %v10107 = vpop.f32.mrf.mxu0
      %v10108 = vadd.f32 0.0, %v10107
      %v10109 = vpop.f32.mrf.mxu0
      %10110 = vmatprep.mubr.f32.mxu0 0.0
      %10111 = vmatmul.mubr.f32.gmra.mxu0 %v9921
      %v10112 = vpop.f32.mrf.mxu0
      %v10113 = vadd.f32 0.0, %v10112
      %v10114 = vpop.f32.mrf.mxu0
      %10115 = vmatprep.mubr.f32.mxu0 0.0
      %10116 = vmatmul.mubr.f32.gmra.mxu0 %v9924
      %v10117 = vpop.f32.mrf.mxu0
      %v10118 = vadd.f32 0.0, %v10117
      %v10119 = vpop.f32.mrf.mxu0
      %10120 = vmatprep.mubr.f32.mxu0 0.0
      %10121 = vmatmul.mubr.f32.gmra.mxu0 %v9927
      %v10122 = vpop.f32.mrf.mxu0
      %v10123 = vadd.f32 0.0, %v10122
      %v10124 = vpop.f32.mrf.mxu0
      %10125 = vmatprep.mubr.f32.mxu0 0.0
      %10126 = vmatmul.mubr.f32.gmra.mxu0 %v9930
      %v10127 = vpop.f32.mrf.mxu0
      %v10128 = vadd.f32 0.0, %v10127
      %v10129 = vpop.f32.mrf.mxu0
      %10130 = vmatprep.mubr.f32.mxu0 0.0
      %10131 = vmatmul.mubr.f32.gmra.mxu0 %v9933
      %v10132 = vpop.f32.mrf.mxu0
      %v10133 = vadd.f32 0.0, %v10132
      %v10134 = vpop.f32.mrf.mxu0
      %10135 = vmatprep.mubr.f32.mxu0 0.0
      %10136 = vmatmul.mubr.f32.gmra.mxu0 %v9936
      %v10137 = vpop.f32.mrf.mxu0
      %v10138 = vadd.f32 0.0, %v10137
      %v10139 = vpop.f32.mrf.mxu0
      %10140 = vmatprep.mubr.f32.mxu0 0.0
      %10141 = vmatmul.mubr.f32.gmra.mxu0 %v9939
      %v10142 = vpop.f32.mrf.mxu0
      %v10143 = vadd.f32 0.0, %v10142
      %v10144 = vpop.f32.mrf.mxu0
      %10145 = vmatprep.mubr.f32.mxu0 0.0
      %10146 = vmatmul.mubr.f32.gmra.mxu0 %v9942
      %v10147 = vpop.f32.mrf.mxu0
      %v10148 = vadd.f32 0.0, %v10147
      %v10149 = vpop.f32.mrf.mxu0
      %10150 = vmatprep.mubr.f32.mxu0 0.0
      %10151 = vmatmul.mubr.f32.gmra.mxu0 %v9945
      %v10152 = vpop.f32.mrf.mxu0
      %v10153 = vadd.f32 0.0, %v10152
      %v10154 = vpop.f32.mrf.mxu0
      %10155 = vmatprep.mubr.f32.mxu0 0.0
      %10156 = vmatmul.mubr.f32.gmra.mxu0 %v9948
      %v10157 = vpop.f32.mrf.mxu0
      %v10158 = vadd.f32 0.0, %v10157
      %v10159 = vpop.f32.mrf.mxu0
      %10160 = vmatprep.mubr.f32.mxu0 0.0
      %10161 = vmatmul.mubr.f32.gmra.mxu0 %v9951
      %v10162 = vpop.f32.mrf.mxu0
      %v10163 = vadd.f32 0.0, %v10162
      %v10164 = vpop.f32.mrf.mxu0
      %10165 = vmatprep.mubr.f32.mxu0 0.0
      %10166 = vmatmul.mubr.f32.gmra.mxu0 %v9954
      %v10167 = vpop.f32.mrf.mxu0
      %v10168 = vadd.f32 0.0, %v10167
      %v10169 = vpop.f32.mrf.mxu0
      %10170 = vmatprep.mubr.f32.mxu0 0.0
      %10171 = vmatmul.mubr.f32.gmra.mxu0 %v9957
      %v10172 = vpop.f32.mrf.mxu0
      %v10173 = vadd.f32 0.0, %v10172
      %v10174 = vpop.f32.mrf.mxu0
      %10175 = vmatprep.mubr.f32.mxu0 0.0
      %10176 = vmatmul.mubr.f32.gmra.mxu0 %v9960
      %v10177 = vpop.f32.mrf.mxu0
      %v10178 = vadd.f32 0.0, %v10177
      %v10179 = vpop.f32.mrf.mxu0
      %10180 = vmatprep.mubr.f32.mxu0 0.0
      %10181 = vmatmul.mubr.f32.gmra.mxu0 %v9963
      %v10182 = vpop.f32.mrf.mxu0
      %v10183 = vadd.f32 0.0, %v10182
      %v10184 = vpop.f32.mrf.mxu0
      %10185 = vmatprep.mubr.f32.mxu0 0.0
      %10186 = vmatmul.mubr.f32.gmra.mxu0 %v9966
      %v10187 = vpop.f32.mrf.mxu0
      %v10188 = vadd.f32 0.0, %v10187
      %v10189 = vpop.f32.mrf.mxu0
      %10190 = vmatprep.mubr.f32.mxu0 0.0
      %10191 = vmatmul.mubr.f32.gmra.mxu0 %v9969
      %v10192 = vpop.f32.mrf.mxu0
      %v10193 = vadd.f32 0.0, %v10192
      %v10194 = vpop.f32.mrf.mxu0
      %10195 = vdwg.mxu0
      %v10196 = vadd.f32 %v9811, %v10038
      %v10197 = vadd.f32 %v9812, %v10043
      %v10198 = vadd.f32 %v9813, %v10048
      %v10199 = vadd.f32 %v9814, %v10053
      %v10200 = vadd.f32 %v9815, %v10058
      %v10201 = vadd.f32 %v9816, %v10063
      %v10202 = vadd.f32 %v9817, %v10068
      %v10203 = vadd.f32 %v9818, %v10073
      %v10204 = vadd.f32 %v9819, %v10078
      %v10205 = vadd.f32 %v9820, %v10083
      %v10206 = vadd.f32 %v9821, %v10088
      %v10207 = vadd.f32 %v9822, %v10093
      %v10208 = vadd.f32 %v9823, %v10098
      %v10209 = vadd.f32 %v9824, %v10103
      %v10210 = vadd.f32 %v9825, %v10108
      %v10211 = vadd.f32 %v9826, %v10113
      %v10212 = vadd.f32 %v9827, %v10118
      %v10213 = vadd.f32 %v9828, %v10123
      %v10214 = vadd.f32 %v9829, %v10128
      %v10215 = vadd.f32 %v9830, %v10133
      %v10216 = vadd.f32 %v9831, %v10138
      %v10217 = vadd.f32 %v9832, %v10143
      %v10218 = vadd.f32 %v9833, %v10148
      %v10219 = vadd.f32 %v9834, %v10153
      %v10220 = vadd.f32 %v9835, %v10158
      %v10221 = vadd.f32 %v9836, %v10163
      %v10222 = vadd.f32 %v9837, %v10168
      %v10223 = vadd.f32 %v9838, %v10173
      %v10224 = vadd.f32 %v9839, %v10178
      %v10225 = vadd.f32 %v9840, %v10183
      %v10226 = vadd.f32 %v9841, %v10188
      %v10227 = vadd.f32 %v9842, %v10193
      %v10228 = vld [vmem:[%s6302 + $0x8] sm:$0xff]
      %v10229 = vld [vmem:[%s6302 + $0x10] sm:$0xff]
      %v10230 = vld [vmem:[%s6302 + $0x28] sm:$0xff]
      %v10231 = vld [vmem:[%s6302 + $0x30] sm:$0xff]
      %v10232 = vld [vmem:[%s6302 + $0x48] sm:$0xff]
      %v10233 = vld [vmem:[%s6302 + $0x50] sm:$0xff]
      %v10234 = vld [vmem:[%s6302 + $0x68] sm:$0xff]
      %v10235 = vld [vmem:[%s6302 + $0x70] sm:$0xff]
      %v10236 = vld [vmem:[%s6302 + $0x88] sm:$0xff]
      %v10237 = vld [vmem:[%s6302 + $0x90] sm:$0xff]
      %v10238 = vld [vmem:[%s6302 + $0xa8] sm:$0xff]
      %v10239 = vld [vmem:[%s6302 + $0xb0] sm:$0xff]
      %v10240 = vld [vmem:[%s6302 + $0xc8] sm:$0xff]
      %v10241 = vld [vmem:[%s6302 + $0xd0] sm:$0xff]
      %v10242 = vld [vmem:[%s6302 + $0xe8] sm:$0xff]
      %v10243 = vld [vmem:[%s6302 + $0xf0] sm:$0xff]
      %v10244 = vld [vmem:[%s6302 + $0x108] sm:$0xff]
      %v10245 = vld [vmem:[%s6302 + $0x110] sm:$0xff]
      %v10246 = vld [vmem:[%s6302 + $0x128] sm:$0xff]
      %v10247 = vld [vmem:[%s6302 + $0x130] sm:$0xff]
      %v10248 = vld [vmem:[%s6302 + $0x148] sm:$0xff]
      %v10249 = vld [vmem:[%s6302 + $0x150] sm:$0xff]
      %v10250 = vld [vmem:[%s6302 + $0x168] sm:$0xff]
      %v10251 = vld [vmem:[%s6302 + $0x170] sm:$0xff]
      %v10252 = vld [vmem:[%s6302 + $0x188] sm:$0xff]
      %v10253 = vld [vmem:[%s6302 + $0x190] sm:$0xff]
      %v10254 = vld [vmem:[%s6302 + $0x1a8] sm:$0xff]
      %v10255 = vld [vmem:[%s6302 + $0x1b0] sm:$0xff]
      %v10256 = vld [vmem:[%s6302 + $0x1c8] sm:$0xff]
      %v10257 = vld [vmem:[%s6302 + $0x1d0] sm:$0xff]
      %v10258 = vld [vmem:[%s6302 + $0x1e8] sm:$0xff]
      %v10259 = vld [vmem:[%s6302 + $0x1f0] sm:$0xff]
      %v10261 = vsel %vm373, %v10228, 0
      %v10264 = vsel %vm373, %v10229, 0
      %v10267 = vsel %vm373, %v10230, 0
      %v10270 = vsel %vm373, %v10231, 0
      %v10273 = vsel %vm373, %v10232, 0
      %v10276 = vsel %vm373, %v10233, 0
      %v10279 = vsel %vm373, %v10234, 0
      %v10282 = vsel %vm373, %v10235, 0
      %v10285 = vsel %vm373, %v10236, 0
      %v10288 = vsel %vm373, %v10237, 0
      %v10291 = vsel %vm373, %v10238, 0
      %v10294 = vsel %vm373, %v10239, 0
      %v10297 = vsel %vm373, %v10240, 0
      %v10300 = vsel %vm373, %v10241, 0
      %v10303 = vsel %vm373, %v10242, 0
      %v10306 = vsel %vm373, %v10243, 0
      %v10309 = vsel %vm373, %v10244, 0
      %v10312 = vsel %vm373, %v10245, 0
      %v10315 = vsel %vm373, %v10246, 0
      %v10318 = vsel %vm373, %v10247, 0
      %v10321 = vsel %vm373, %v10248, 0
      %v10324 = vsel %vm373, %v10249, 0
      %v10327 = vsel %vm373, %v10250, 0
      %v10330 = vsel %vm373, %v10251, 0
      %v10333 = vsel %vm373, %v10252, 0
      %v10336 = vsel %vm373, %v10253, 0
      %v10339 = vsel %vm373, %v10254, 0
      %v10342 = vsel %vm373, %v10255, 0
      %v10345 = vsel %vm373, %v10256, 0
      %v10348 = vsel %vm373, %v10257, 0
      %v10351 = vsel %vm373, %v10258, 0
      %v10354 = vsel %vm373, %v10259, 0
      %10356 = vmatprep.subr.mxu0 0.0
      %10357 = vmatpush1.msra.mxu0 0.0
      %10358 = vmatprep.subr.mxu0 0.0
      %10359 = vmatpush1.msra.mxu0 0.0
      %10360 = vmatprep.subr.mxu0 0.0
      %10361 = vmatpush1.msra.mxu0 0.0
      %10362 = vmatprep.subr.mxu0 0.0
      %10363 = vmatpush1.msra.mxu0 0.0
      %10364 = vmatprep.subr.mxu0 0.0
      %10365 = vmatpush1.msra.mxu0 0.0
      %10366 = vmatprep.subr.mxu0 0.0
      %10367 = vmatpush1.msra.mxu0 0.0
      %10368 = vmatprep.subr.mxu0 0.0
      %10369 = vmatpush1.msra.mxu0 0.0
      %10370 = vmatprep.subr.mxu0 0.0
      %10371 = vmatpush1.msra.mxu0 0.0
      %10372 = vmatprep.subr.mxu0 0.0
      %10373 = vmatpush1.msra.mxu0 0.0
      %10374 = vmatprep.subr.mxu0 0.0
      %10375 = vmatpush1.msra.mxu0 0.0
      %10376 = vmatprep.subr.mxu0 0.0
      %10377 = vmatpush1.msra.mxu0 0.0
      %10378 = vmatprep.subr.mxu0 0.0
      %10379 = vmatpush1.msra.mxu0 0.0
      %10380 = vmatprep.subr.mxu0 0.0
      %10381 = vmatpush1.msra.mxu0 %v7591
      %10382 = vmatprep.subr.mxu0 0.0
      %10383 = vmatpush1.msra.mxu0 %v7590
      %10384 = vmatprep.subr.mxu0 0.0
      %10385 = vmatpush1.msra.mxu0 %v7589
      %10386 = vmatprep.subr.mxu0 0.0
      %10387 = vmatpush1.msra.mxu0 %v7588
      %10388 = vmatprep.subr.mxu0 0.0
      %10389 = vmatpush2.msra.mxu0 0.0
      %10390 = vmatprep.subr.mxu0 0.0
      %10391 = vmatpush2.msra.mxu0 0.0
      %10392 = vmatprep.subr.mxu0 0.0
      %10393 = vmatpush2.msra.mxu0 0.0
      %10394 = vmatprep.subr.mxu0 0.0
      %10395 = vmatpush2.msra.mxu0 0.0
      %10396 = vmatprep.subr.mxu0 0.0
      %10397 = vmatpush2.msra.mxu0 0.0
      %10398 = vmatprep.subr.mxu0 0.0
      %10399 = vmatpush2.msra.mxu0 0.0
      %10400 = vmatprep.subr.mxu0 0.0
      %10401 = vmatpush2.msra.mxu0 0.0
      %10402 = vmatprep.subr.mxu0 0.0
      %10403 = vmatpush2.msra.mxu0 0.0
      %10404 = vmatprep.subr.mxu0 0.0
      %10405 = vmatpush2.msra.mxu0 0.0
      %10406 = vmatprep.subr.mxu0 0.0
      %10407 = vmatpush2.msra.mxu0 0.0
      %10408 = vmatprep.subr.mxu0 0.0
      %10409 = vmatpush2.msra.mxu0 0.0
      %10410 = vmatprep.subr.mxu0 0.0
      %10411 = vmatpush2.msra.mxu0 0.0
      %10412 = vmatprep.subr.mxu0 0.0
      %10413 = vmatpush2.msra.mxu0 0.0
      %10414 = vmatprep.subr.mxu0 0.0
      %10415 = vmatpush2.msra.mxu0 0.0
      %10416 = vmatprep.subr.mxu0 0.0
      %10417 = vmatpush2.msra.mxu0 0.0
      %10418 = vmatprep.subr.mxu0 0.0
      %10419 = vmatpush2.msra.mxu0 0.0
      %10420 = vmatprep.mubr.f32.mxu0 0.0
      %10421 = vmatmul.mubr.f32.gmra.mxu0 %v10261
      %v10422 = vpop.f32.mrf.mxu0
      %v10423 = vadd.f32 0.0, %v10422
      %v10424 = vpop.f32.mrf.mxu0
      %10425 = vmatprep.mubr.f32.mxu0 0.0
      %10426 = vmatmul.mubr.f32.gmra.mxu0 %v10264
      %v10427 = vpop.f32.mrf.mxu0
      %v10428 = vadd.f32 0.0, %v10427
      %v10429 = vpop.f32.mrf.mxu0
      %10430 = vmatprep.mubr.f32.mxu0 0.0
      %10431 = vmatmul.mubr.f32.gmra.mxu0 %v10267
      %v10432 = vpop.f32.mrf.mxu0
      %v10433 = vadd.f32 0.0, %v10432
      %v10434 = vpop.f32.mrf.mxu0
      %10435 = vmatprep.mubr.f32.mxu0 0.0
      %10436 = vmatmul.mubr.f32.gmra.mxu0 %v10270
      %v10437 = vpop.f32.mrf.mxu0
      %v10438 = vadd.f32 0.0, %v10437
      %v10439 = vpop.f32.mrf.mxu0
      %10440 = vmatprep.mubr.f32.mxu0 0.0
      %10441 = vmatmul.mubr.f32.gmra.mxu0 %v10273
      %v10442 = vpop.f32.mrf.mxu0
      %v10443 = vadd.f32 0.0, %v10442
      %v10444 = vpop.f32.mrf.mxu0
      %10445 = vmatprep.mubr.f32.mxu0 0.0
      %10446 = vmatmul.mubr.f32.gmra.mxu0 %v10276
      %v10447 = vpop.f32.mrf.mxu0
      %v10448 = vadd.f32 0.0, %v10447
      %v10449 = vpop.f32.mrf.mxu0
      %10450 = vmatprep.mubr.f32.mxu0 0.0
      %10451 = vmatmul.mubr.f32.gmra.mxu0 %v10279
      %v10452 = vpop.f32.mrf.mxu0
      %v10453 = vadd.f32 0.0, %v10452
      %v10454 = vpop.f32.mrf.mxu0
      %10455 = vmatprep.mubr.f32.mxu0 0.0
      %10456 = vmatmul.mubr.f32.gmra.mxu0 %v10282
      %v10457 = vpop.f32.mrf.mxu0
      %v10458 = vadd.f32 0.0, %v10457
      %v10459 = vpop.f32.mrf.mxu0
      %10460 = vmatprep.mubr.f32.mxu0 0.0
      %10461 = vmatmul.mubr.f32.gmra.mxu0 %v10285
      %v10462 = vpop.f32.mrf.mxu0
      %v10463 = vadd.f32 0.0, %v10462
      %v10464 = vpop.f32.mrf.mxu0
      %10465 = vmatprep.mubr.f32.mxu0 0.0
      %10466 = vmatmul.mubr.f32.gmra.mxu0 %v10288
      %v10467 = vpop.f32.mrf.mxu0
      %v10468 = vadd.f32 0.0, %v10467
      %v10469 = vpop.f32.mrf.mxu0
      %10470 = vmatprep.mubr.f32.mxu0 0.0
      %10471 = vmatmul.mubr.f32.gmra.mxu0 %v10291
      %v10472 = vpop.f32.mrf.mxu0
      %v10473 = vadd.f32 0.0, %v10472
      %v10474 = vpop.f32.mrf.mxu0
      %10475 = vmatprep.mubr.f32.mxu0 0.0
      %10476 = vmatmul.mubr.f32.gmra.mxu0 %v10294
      %v10477 = vpop.f32.mrf.mxu0
      %v10478 = vadd.f32 0.0, %v10477
      %v10479 = vpop.f32.mrf.mxu0
      %10480 = vmatprep.mubr.f32.mxu0 0.0
      %10481 = vmatmul.mubr.f32.gmra.mxu0 %v10297
      %v10482 = vpop.f32.mrf.mxu0
      %v10483 = vadd.f32 0.0, %v10482
      %v10484 = vpop.f32.mrf.mxu0
      %10485 = vmatprep.mubr.f32.mxu0 0.0
      %10486 = vmatmul.mubr.f32.gmra.mxu0 %v10300
      %v10487 = vpop.f32.mrf.mxu0
      %v10488 = vadd.f32 0.0, %v10487
      %v10489 = vpop.f32.mrf.mxu0
      %10490 = vmatprep.mubr.f32.mxu0 0.0
      %10491 = vmatmul.mubr.f32.gmra.mxu0 %v10303
      %v10492 = vpop.f32.mrf.mxu0
      %v10493 = vadd.f32 0.0, %v10492
      %v10494 = vpop.f32.mrf.mxu0
      %10495 = vmatprep.mubr.f32.mxu0 0.0
      %10496 = vmatmul.mubr.f32.gmra.mxu0 %v10306
      %v10497 = vpop.f32.mrf.mxu0
      %v10498 = vadd.f32 0.0, %v10497
      %v10499 = vpop.f32.mrf.mxu0
      %10500 = vmatprep.mubr.f32.mxu0 0.0
      %10501 = vmatmul.mubr.f32.gmra.mxu0 %v10309
      %v10502 = vpop.f32.mrf.mxu0
      %v10503 = vadd.f32 0.0, %v10502
      %v10504 = vpop.f32.mrf.mxu0
      %10505 = vmatprep.mubr.f32.mxu0 0.0
      %10506 = vmatmul.mubr.f32.gmra.mxu0 %v10312
      %v10507 = vpop.f32.mrf.mxu0
      %v10508 = vadd.f32 0.0, %v10507
      %v10509 = vpop.f32.mrf.mxu0
      %10510 = vmatprep.mubr.f32.mxu0 0.0
      %10511 = vmatmul.mubr.f32.gmra.mxu0 %v10315
      %v10512 = vpop.f32.mrf.mxu0
      %v10513 = vadd.f32 0.0, %v10512
      %v10514 = vpop.f32.mrf.mxu0
      %10515 = vmatprep.mubr.f32.mxu0 0.0
      %10516 = vmatmul.mubr.f32.gmra.mxu0 %v10318
      %v10517 = vpop.f32.mrf.mxu0
      %v10518 = vadd.f32 0.0, %v10517
      %v10519 = vpop.f32.mrf.mxu0
      %10520 = vmatprep.mubr.f32.mxu0 0.0
      %10521 = vmatmul.mubr.f32.gmra.mxu0 %v10321
      %v10522 = vpop.f32.mrf.mxu0
      %v10523 = vadd.f32 0.0, %v10522
      %v10524 = vpop.f32.mrf.mxu0
      %10525 = vmatprep.mubr.f32.mxu0 0.0
      %10526 = vmatmul.mubr.f32.gmra.mxu0 %v10324
      %v10527 = vpop.f32.mrf.mxu0
      %v10528 = vadd.f32 0.0, %v10527
      %v10529 = vpop.f32.mrf.mxu0
      %10530 = vmatprep.mubr.f32.mxu0 0.0
      %10531 = vmatmul.mubr.f32.gmra.mxu0 %v10327
      %v10532 = vpop.f32.mrf.mxu0
      %v10533 = vadd.f32 0.0, %v10532
      %v10534 = vpop.f32.mrf.mxu0
      %10535 = vmatprep.mubr.f32.mxu0 0.0
      %10536 = vmatmul.mubr.f32.gmra.mxu0 %v10330
      %v10537 = vpop.f32.mrf.mxu0
      %v10538 = vadd.f32 0.0, %v10537
      %v10539 = vpop.f32.mrf.mxu0
      %10540 = vmatprep.mubr.f32.mxu0 0.0
      %10541 = vmatmul.mubr.f32.gmra.mxu0 %v10333
      %v10542 = vpop.f32.mrf.mxu0
      %v10543 = vadd.f32 0.0, %v10542
      %v10544 = vpop.f32.mrf.mxu0
      %10545 = vmatprep.mubr.f32.mxu0 0.0
      %10546 = vmatmul.mubr.f32.gmra.mxu0 %v10336
      %v10547 = vpop.f32.mrf.mxu0
      %v10548 = vadd.f32 0.0, %v10547
      %v10549 = vpop.f32.mrf.mxu0
      %10550 = vmatprep.mubr.f32.mxu0 0.0
      %10551 = vmatmul.mubr.f32.gmra.mxu0 %v10339
      %v10552 = vpop.f32.mrf.mxu0
      %v10553 = vadd.f32 0.0, %v10552
      %v10554 = vpop.f32.mrf.mxu0
      %10555 = vmatprep.mubr.f32.mxu0 0.0
      %10556 = vmatmul.mubr.f32.gmra.mxu0 %v10342
      %v10557 = vpop.f32.mrf.mxu0
      %v10558 = vadd.f32 0.0, %v10557
      %v10559 = vpop.f32.mrf.mxu0
      %10560 = vmatprep.mubr.f32.mxu0 0.0
      %10561 = vmatmul.mubr.f32.gmra.mxu0 %v10345
      %v10562 = vpop.f32.mrf.mxu0
      %v10563 = vadd.f32 0.0, %v10562
      %v10564 = vpop.f32.mrf.mxu0
      %10565 = vmatprep.mubr.f32.mxu0 0.0
      %10566 = vmatmul.mubr.f32.gmra.mxu0 %v10348
      %v10567 = vpop.f32.mrf.mxu0
      %v10568 = vadd.f32 0.0, %v10567
      %v10569 = vpop.f32.mrf.mxu0
      %10570 = vmatprep.mubr.f32.mxu0 0.0
      %10571 = vmatmul.mubr.f32.gmra.mxu0 %v10351
      %v10572 = vpop.f32.mrf.mxu0
      %v10573 = vadd.f32 0.0, %v10572
      %v10574 = vpop.f32.mrf.mxu0
      %10575 = vmatprep.mubr.f32.mxu0 0.0
      %10576 = vmatmul.mubr.f32.gmra.mxu0 %v10354
      %v10577 = vpop.f32.mrf.mxu0
      %v10578 = vadd.f32 0.0, %v10577
      %v10579 = vpop.f32.mrf.mxu0
      %10580 = vdwg.mxu0
      %v10581 = vadd.f32 %v10196, %v10423
      %v10582 = vadd.f32 %v10197, %v10428
      %v10583 = vadd.f32 %v10198, %v10433
      %v10584 = vadd.f32 %v10199, %v10438
      %v10585 = vadd.f32 %v10200, %v10443
      %v10586 = vadd.f32 %v10201, %v10448
      %v10587 = vadd.f32 %v10202, %v10453
      %v10588 = vadd.f32 %v10203, %v10458
      %v10589 = vadd.f32 %v10204, %v10463
      %v10590 = vadd.f32 %v10205, %v10468
      %v10591 = vadd.f32 %v10206, %v10473
      %v10592 = vadd.f32 %v10207, %v10478
      %v10593 = vadd.f32 %v10208, %v10483
      %v10594 = vadd.f32 %v10209, %v10488
      %v10595 = vadd.f32 %v10210, %v10493
      %v10596 = vadd.f32 %v10211, %v10498
      %v10597 = vadd.f32 %v10212, %v10503
      %v10598 = vadd.f32 %v10213, %v10508
      %v10599 = vadd.f32 %v10214, %v10513
      %v10600 = vadd.f32 %v10215, %v10518
      %v10601 = vadd.f32 %v10216, %v10523
      %v10602 = vadd.f32 %v10217, %v10528
      %v10603 = vadd.f32 %v10218, %v10533
      %v10604 = vadd.f32 %v10219, %v10538
      %v10605 = vadd.f32 %v10220, %v10543
      %v10606 = vadd.f32 %v10221, %v10548
      %v10607 = vadd.f32 %v10222, %v10553
      %v10608 = vadd.f32 %v10223, %v10558
      %v10609 = vadd.f32 %v10224, %v10563
      %v10610 = vadd.f32 %v10225, %v10568
      %v10611 = vadd.f32 %v10226, %v10573
      %v10612 = vadd.f32 %v10227, %v10578
      %v10613 = vld [vmem:[%s6302 + $0x9] sm:$0xff]
      %v10614 = vld [vmem:[%s6302 + $0x11] sm:$0xff]
      %v10615 = vld [vmem:[%s6302 + $0x29] sm:$0xff]
      %v10616 = vld [vmem:[%s6302 + $0x31] sm:$0xff]
      %v10617 = vld [vmem:[%s6302 + $0x49] sm:$0xff]
      %v10618 = vld [vmem:[%s6302 + $0x51] sm:$0xff]
      %v10619 = vld [vmem:[%s6302 + $0x69] sm:$0xff]
      %v10620 = vld [vmem:[%s6302 + $0x71] sm:$0xff]
      %v10621 = vld [vmem:[%s6302 + $0x89] sm:$0xff]
      %v10622 = vld [vmem:[%s6302 + $0x91] sm:$0xff]
      %v10623 = vld [vmem:[%s6302 + $0xa9] sm:$0xff]
      %v10624 = vld [vmem:[%s6302 + $0xb1] sm:$0xff]
      %v10625 = vld [vmem:[%s6302 + $0xc9] sm:$0xff]
      %v10626 = vld [vmem:[%s6302 + $0xd1] sm:$0xff]
      %v10627 = vld [vmem:[%s6302 + $0xe9] sm:$0xff]
      %v10628 = vld [vmem:[%s6302 + $0xf1] sm:$0xff]
      %v10629 = vld [vmem:[%s6302 + $0x109] sm:$0xff]
      %v10630 = vld [vmem:[%s6302 + $0x111] sm:$0xff]
      %v10631 = vld [vmem:[%s6302 + $0x129] sm:$0xff]
      %v10632 = vld [vmem:[%s6302 + $0x131] sm:$0xff]
      %v10633 = vld [vmem:[%s6302 + $0x149] sm:$0xff]
      %v10634 = vld [vmem:[%s6302 + $0x151] sm:$0xff]
      %v10635 = vld [vmem:[%s6302 + $0x169] sm:$0xff]
      %v10636 = vld [vmem:[%s6302 + $0x171] sm:$0xff]
      %v10637 = vld [vmem:[%s6302 + $0x189] sm:$0xff]
      %v10638 = vld [vmem:[%s6302 + $0x191] sm:$0xff]
      %v10639 = vld [vmem:[%s6302 + $0x1a9] sm:$0xff]
      %v10640 = vld [vmem:[%s6302 + $0x1b1] sm:$0xff]
      %v10641 = vld [vmem:[%s6302 + $0x1c9] sm:$0xff]
      %v10642 = vld [vmem:[%s6302 + $0x1d1] sm:$0xff]
      %v10643 = vld [vmem:[%s6302 + $0x1e9] sm:$0xff]
      %v10644 = vld [vmem:[%s6302 + $0x1f1] sm:$0xff]
      %v10646 = vsel %vm373, %v10613, 0
      %v10649 = vsel %vm373, %v10614, 0
      %v10652 = vsel %vm373, %v10615, 0
      %v10655 = vsel %vm373, %v10616, 0
      %v10658 = vsel %vm373, %v10617, 0
      %v10661 = vsel %vm373, %v10618, 0
      %v10664 = vsel %vm373, %v10619, 0
      %v10667 = vsel %vm373, %v10620, 0
      %v10670 = vsel %vm373, %v10621, 0
      %v10673 = vsel %vm373, %v10622, 0
      %v10676 = vsel %vm373, %v10623, 0
      %v10679 = vsel %vm373, %v10624, 0
      %v10682 = vsel %vm373, %v10625, 0
      %v10685 = vsel %vm373, %v10626, 0
      %v10688 = vsel %vm373, %v10627, 0
      %v10691 = vsel %vm373, %v10628, 0
      %v10694 = vsel %vm373, %v10629, 0
      %v10697 = vsel %vm373, %v10630, 0
      %v10700 = vsel %vm373, %v10631, 0
      %v10703 = vsel %vm373, %v10632, 0
      %v10706 = vsel %vm373, %v10633, 0
      %v10709 = vsel %vm373, %v10634, 0
      %v10712 = vsel %vm373, %v10635, 0
      %v10715 = vsel %vm373, %v10636, 0
      %v10718 = vsel %vm373, %v10637, 0
      %v10721 = vsel %vm373, %v10638, 0
      %v10724 = vsel %vm373, %v10639, 0
      %v10727 = vsel %vm373, %v10640, 0
      %v10730 = vsel %vm373, %v10641, 0
      %v10733 = vsel %vm373, %v10642, 0
      %v10736 = vsel %vm373, %v10643, 0
      %v10739 = vsel %vm373, %v10644, 0
      %10741 = vmatprep.subr.mxu0 0.0
      %10742 = vmatpush1.msra.mxu0 0.0
      %10743 = vmatprep.subr.mxu0 0.0
      %10744 = vmatpush1.msra.mxu0 0.0
      %10745 = vmatprep.subr.mxu0 0.0
      %10746 = vmatpush1.msra.mxu0 0.0
      %10747 = vmatprep.subr.mxu0 0.0
      %10748 = vmatpush1.msra.mxu0 0.0
      %10749 = vmatprep.subr.mxu0 0.0
      %10750 = vmatpush1.msra.mxu0 0.0
      %10751 = vmatprep.subr.mxu0 0.0
      %10752 = vmatpush1.msra.mxu0 0.0
      %10753 = vmatprep.subr.mxu0 0.0
      %10754 = vmatpush1.msra.mxu0 0.0
      %10755 = vmatprep.subr.mxu0 0.0
      %10756 = vmatpush1.msra.mxu0 0.0
      %10757 = vmatprep.subr.mxu0 0.0
      %10758 = vmatpush1.msra.mxu0 0.0
      %10759 = vmatprep.subr.mxu0 0.0
      %10760 = vmatpush1.msra.mxu0 0.0
      %10761 = vmatprep.subr.mxu0 0.0
      %10762 = vmatpush1.msra.mxu0 0.0
      %10763 = vmatprep.subr.mxu0 0.0
      %10764 = vmatpush1.msra.mxu0 0.0
      %10765 = vmatprep.subr.mxu0 0.0
      %10766 = vmatpush1.msra.mxu0 %v7595
      %10767 = vmatprep.subr.mxu0 0.0
      %10768 = vmatpush1.msra.mxu0 %v7594
      %10769 = vmatprep.subr.mxu0 0.0
      %10770 = vmatpush1.msra.mxu0 %v7593
      %10771 = vmatprep.subr.mxu0 0.0
      %10772 = vmatpush1.msra.mxu0 %v7592
      %10773 = vmatprep.subr.mxu0 0.0
      %10774 = vmatpush2.msra.mxu0 0.0
      %10775 = vmatprep.subr.mxu0 0.0
      %10776 = vmatpush2.msra.mxu0 0.0
      %10777 = vmatprep.subr.mxu0 0.0
      %10778 = vmatpush2.msra.mxu0 0.0
      %10779 = vmatprep.subr.mxu0 0.0
      %10780 = vmatpush2.msra.mxu0 0.0
      %10781 = vmatprep.subr.mxu0 0.0
      %10782 = vmatpush2.msra.mxu0 0.0
      %10783 = vmatprep.subr.mxu0 0.0
      %10784 = vmatpush2.msra.mxu0 0.0
      %10785 = vmatprep.subr.mxu0 0.0
      %10786 = vmatpush2.msra.mxu0 0.0
      %10787 = vmatprep.subr.mxu0 0.0
      %10788 = vmatpush2.msra.mxu0 0.0
      %10789 = vmatprep.subr.mxu0 0.0
      %10790 = vmatpush2.msra.mxu0 0.0
      %10791 = vmatprep.subr.mxu0 0.0
      %10792 = vmatpush2.msra.mxu0 0.0
      %10793 = vmatprep.subr.mxu0 0.0
      %10794 = vmatpush2.msra.mxu0 0.0
      %10795 = vmatprep.subr.mxu0 0.0
      %10796 = vmatpush2.msra.mxu0 0.0
      %10797 = vmatprep.subr.mxu0 0.0
      %10798 = vmatpush2.msra.mxu0 0.0
      %10799 = vmatprep.subr.mxu0 0.0
      %10800 = vmatpush2.msra.mxu0 0.0
      %10801 = vmatprep.subr.mxu0 0.0
      %10802 = vmatpush2.msra.mxu0 0.0
      %10803 = vmatprep.subr.mxu0 0.0
      %10804 = vmatpush2.msra.mxu0 0.0
      %10805 = vmatprep.mubr.f32.mxu0 0.0
      %10806 = vmatmul.mubr.f32.gmra.mxu0 %v10646
      %v10807 = vpop.f32.mrf.mxu0
      %v10808 = vadd.f32 0.0, %v10807
      %v10809 = vpop.f32.mrf.mxu0
      %10810 = vmatprep.mubr.f32.mxu0 0.0
      %10811 = vmatmul.mubr.f32.gmra.mxu0 %v10649
      %v10812 = vpop.f32.mrf.mxu0
      %v10813 = vadd.f32 0.0, %v10812
      %v10814 = vpop.f32.mrf.mxu0
      %10815 = vmatprep.mubr.f32.mxu0 0.0
      %10816 = vmatmul.mubr.f32.gmra.mxu0 %v10652
      %v10817 = vpop.f32.mrf.mxu0
      %v10818 = vadd.f32 0.0, %v10817
      %v10819 = vpop.f32.mrf.mxu0
      %10820 = vmatprep.mubr.f32.mxu0 0.0
      %10821 = vmatmul.mubr.f32.gmra.mxu0 %v10655
      %v10822 = vpop.f32.mrf.mxu0
      %v10823 = vadd.f32 0.0, %v10822
      %v10824 = vpop.f32.mrf.mxu0
      %10825 = vmatprep.mubr.f32.mxu0 0.0
      %10826 = vmatmul.mubr.f32.gmra.mxu0 %v10658
      %v10827 = vpop.f32.mrf.mxu0
      %v10828 = vadd.f32 0.0, %v10827
      %v10829 = vpop.f32.mrf.mxu0
      %10830 = vmatprep.mubr.f32.mxu0 0.0
      %10831 = vmatmul.mubr.f32.gmra.mxu0 %v10661
      %v10832 = vpop.f32.mrf.mxu0
      %v10833 = vadd.f32 0.0, %v10832
      %v10834 = vpop.f32.mrf.mxu0
      %10835 = vmatprep.mubr.f32.mxu0 0.0
      %10836 = vmatmul.mubr.f32.gmra.mxu0 %v10664
      %v10837 = vpop.f32.mrf.mxu0
      %v10838 = vadd.f32 0.0, %v10837
      %v10839 = vpop.f32.mrf.mxu0
      %10840 = vmatprep.mubr.f32.mxu0 0.0
      %10841 = vmatmul.mubr.f32.gmra.mxu0 %v10667
      %v10842 = vpop.f32.mrf.mxu0
      %v10843 = vadd.f32 0.0, %v10842
      %v10844 = vpop.f32.mrf.mxu0
      %10845 = vmatprep.mubr.f32.mxu0 0.0
      %10846 = vmatmul.mubr.f32.gmra.mxu0 %v10670
      %v10847 = vpop.f32.mrf.mxu0
      %v10848 = vadd.f32 0.0, %v10847
      %v10849 = vpop.f32.mrf.mxu0
      %10850 = vmatprep.mubr.f32.mxu0 0.0
      %10851 = vmatmul.mubr.f32.gmra.mxu0 %v10673
      %v10852 = vpop.f32.mrf.mxu0
      %v10853 = vadd.f32 0.0, %v10852
      %v10854 = vpop.f32.mrf.mxu0
      %10855 = vmatprep.mubr.f32.mxu0 0.0
      %10856 = vmatmul.mubr.f32.gmra.mxu0 %v10676
      %v10857 = vpop.f32.mrf.mxu0
      %v10858 = vadd.f32 0.0, %v10857
      %v10859 = vpop.f32.mrf.mxu0
      %10860 = vmatprep.mubr.f32.mxu0 0.0
      %10861 = vmatmul.mubr.f32.gmra.mxu0 %v10679
      %v10862 = vpop.f32.mrf.mxu0
      %v10863 = vadd.f32 0.0, %v10862
      %v10864 = vpop.f32.mrf.mxu0
      %10865 = vmatprep.mubr.f32.mxu0 0.0
      %10866 = vmatmul.mubr.f32.gmra.mxu0 %v10682
      %v10867 = vpop.f32.mrf.mxu0
      %v10868 = vadd.f32 0.0, %v10867
      %v10869 = vpop.f32.mrf.mxu0
      %10870 = vmatprep.mubr.f32.mxu0 0.0
      %10871 = vmatmul.mubr.f32.gmra.mxu0 %v10685
      %v10872 = vpop.f32.mrf.mxu0
      %v10873 = vadd.f32 0.0, %v10872
      %v10874 = vpop.f32.mrf.mxu0
      %10875 = vmatprep.mubr.f32.mxu0 0.0
      %10876 = vmatmul.mubr.f32.gmra.mxu0 %v10688
      %v10877 = vpop.f32.mrf.mxu0
      %v10878 = vadd.f32 0.0, %v10877
      %v10879 = vpop.f32.mrf.mxu0
      %10880 = vmatprep.mubr.f32.mxu0 0.0
      %10881 = vmatmul.mubr.f32.gmra.mxu0 %v10691
      %v10882 = vpop.f32.mrf.mxu0
      %v10883 = vadd.f32 0.0, %v10882
      %v10884 = vpop.f32.mrf.mxu0
      %10885 = vmatprep.mubr.f32.mxu0 0.0
      %10886 = vmatmul.mubr.f32.gmra.mxu0 %v10694
      %v10887 = vpop.f32.mrf.mxu0
      %v10888 = vadd.f32 0.0, %v10887
      %v10889 = vpop.f32.mrf.mxu0
      %10890 = vmatprep.mubr.f32.mxu0 0.0
      %10891 = vmatmul.mubr.f32.gmra.mxu0 %v10697
      %v10892 = vpop.f32.mrf.mxu0
      %v10893 = vadd.f32 0.0, %v10892
      %v10894 = vpop.f32.mrf.mxu0
      %10895 = vmatprep.mubr.f32.mxu0 0.0
      %10896 = vmatmul.mubr.f32.gmra.mxu0 %v10700
      %v10897 = vpop.f32.mrf.mxu0
      %v10898 = vadd.f32 0.0, %v10897
      %v10899 = vpop.f32.mrf.mxu0
      %10900 = vmatprep.mubr.f32.mxu0 0.0
      %10901 = vmatmul.mubr.f32.gmra.mxu0 %v10703
      %v10902 = vpop.f32.mrf.mxu0
      %v10903 = vadd.f32 0.0, %v10902
      %v10904 = vpop.f32.mrf.mxu0
      %10905 = vmatprep.mubr.f32.mxu0 0.0
      %10906 = vmatmul.mubr.f32.gmra.mxu0 %v10706
      %v10907 = vpop.f32.mrf.mxu0
      %v10908 = vadd.f32 0.0, %v10907
      %v10909 = vpop.f32.mrf.mxu0
      %10910 = vmatprep.mubr.f32.mxu0 0.0
      %10911 = vmatmul.mubr.f32.gmra.mxu0 %v10709
      %v10912 = vpop.f32.mrf.mxu0
      %v10913 = vadd.f32 0.0, %v10912
      %v10914 = vpop.f32.mrf.mxu0
      %10915 = vmatprep.mubr.f32.mxu0 0.0
      %10916 = vmatmul.mubr.f32.gmra.mxu0 %v10712
      %v10917 = vpop.f32.mrf.mxu0
      %v10918 = vadd.f32 0.0, %v10917
      %v10919 = vpop.f32.mrf.mxu0
      %10920 = vmatprep.mubr.f32.mxu0 0.0
      %10921 = vmatmul.mubr.f32.gmra.mxu0 %v10715
      %v10922 = vpop.f32.mrf.mxu0
      %v10923 = vadd.f32 0.0, %v10922
      %v10924 = vpop.f32.mrf.mxu0
      %10925 = vmatprep.mubr.f32.mxu0 0.0
      %10926 = vmatmul.mubr.f32.gmra.mxu0 %v10718
      %v10927 = vpop.f32.mrf.mxu0
      %v10928 = vadd.f32 0.0, %v10927
      %v10929 = vpop.f32.mrf.mxu0
      %10930 = vmatprep.mubr.f32.mxu0 0.0
      %10931 = vmatmul.mubr.f32.gmra.mxu0 %v10721
      %v10932 = vpop.f32.mrf.mxu0
      %v10933 = vadd.f32 0.0, %v10932
      %v10934 = vpop.f32.mrf.mxu0
      %10935 = vmatprep.mubr.f32.mxu0 0.0
      %10936 = vmatmul.mubr.f32.gmra.mxu0 %v10724
      %v10937 = vpop.f32.mrf.mxu0
      %v10938 = vadd.f32 0.0, %v10937
      %v10939 = vpop.f32.mrf.mxu0
      %10940 = vmatprep.mubr.f32.mxu0 0.0
      %10941 = vmatmul.mubr.f32.gmra.mxu0 %v10727
      %v10942 = vpop.f32.mrf.mxu0
      %v10943 = vadd.f32 0.0, %v10942
      %v10944 = vpop.f32.mrf.mxu0
      %10945 = vmatprep.mubr.f32.mxu0 0.0
      %10946 = vmatmul.mubr.f32.gmra.mxu0 %v10730
      %v10947 = vpop.f32.mrf.mxu0
      %v10948 = vadd.f32 0.0, %v10947
      %v10949 = vpop.f32.mrf.mxu0
      %10950 = vmatprep.mubr.f32.mxu0 0.0
      %10951 = vmatmul.mubr.f32.gmra.mxu0 %v10733
      %v10952 = vpop.f32.mrf.mxu0
      %v10953 = vadd.f32 0.0, %v10952
      %v10954 = vpop.f32.mrf.mxu0
      %10955 = vmatprep.mubr.f32.mxu0 0.0
      %10956 = vmatmul.mubr.f32.gmra.mxu0 %v10736
      %v10957 = vpop.f32.mrf.mxu0
      %v10958 = vadd.f32 0.0, %v10957
      %v10959 = vpop.f32.mrf.mxu0
      %10960 = vmatprep.mubr.f32.mxu0 0.0
      %10961 = vmatmul.mubr.f32.gmra.mxu0 %v10739
      %v10962 = vpop.f32.mrf.mxu0
      %v10963 = vadd.f32 0.0, %v10962
      %v10964 = vpop.f32.mrf.mxu0
      %10965 = vdwg.mxu0
      %v10966 = vadd.f32 %v10581, %v10808
      %v10967 = vadd.f32 %v10582, %v10813
      %v10968 = vadd.f32 %v10583, %v10818
      %v10969 = vadd.f32 %v10584, %v10823
      %v10970 = vadd.f32 %v10585, %v10828
      %v10971 = vadd.f32 %v10586, %v10833
      %v10972 = vadd.f32 %v10587, %v10838
      %v10973 = vadd.f32 %v10588, %v10843
      %v10974 = vadd.f32 %v10589, %v10848
      %v10975 = vadd.f32 %v10590, %v10853
      %v10976 = vadd.f32 %v10591, %v10858
      %v10977 = vadd.f32 %v10592, %v10863
      %v10978 = vadd.f32 %v10593, %v10868
      %v10979 = vadd.f32 %v10594, %v10873
      %v10980 = vadd.f32 %v10595, %v10878
      %v10981 = vadd.f32 %v10596, %v10883
      %v10982 = vadd.f32 %v10597, %v10888
      %v10983 = vadd.f32 %v10598, %v10893
      %v10984 = vadd.f32 %v10599, %v10898
      %v10985 = vadd.f32 %v10600, %v10903
      %v10986 = vadd.f32 %v10601, %v10908
      %v10987 = vadd.f32 %v10602, %v10913
      %v10988 = vadd.f32 %v10603, %v10918
      %v10989 = vadd.f32 %v10604, %v10923
      %v10990 = vadd.f32 %v10605, %v10928
      %v10991 = vadd.f32 %v10606, %v10933
      %v10992 = vadd.f32 %v10607, %v10938
      %v10993 = vadd.f32 %v10608, %v10943
      %v10994 = vadd.f32 %v10609, %v10948
      %v10995 = vadd.f32 %v10610, %v10953
      %v10996 = vadd.f32 %v10611, %v10958
      %v10997 = vadd.f32 %v10612, %v10963
      %v10999 = vlaneseq
      %v11000 = vshrl.u32 %v10999, 7
      %v11001 = vsub.s32 0, %v11000
      %v11002 = vrot.slane %v7596, %v11001
      %v11004 = vadd.f32 %v10966, %v11002
      %v11005 = vadd.f32 %v10967, %v11002
      %v11006 = vadd.f32 %v10968, %v11002
      %v11007 = vadd.f32 %v10969, %v11002
      %v11008 = vadd.f32 %v10970, %v11002
      %v11009 = vadd.f32 %v10971, %v11002
      %v11010 = vadd.f32 %v10972, %v11002
      %v11011 = vadd.f32 %v10973, %v11002
      %v11012 = vadd.f32 %v10974, %v11002
      %v11013 = vadd.f32 %v10975, %v11002
      %v11014 = vadd.f32 %v10976, %v11002
      %v11015 = vadd.f32 %v10977, %v11002
      %v11016 = vadd.f32 %v10978, %v11002
      %v11017 = vadd.f32 %v10979, %v11002
      %v11018 = vadd.f32 %v10980, %v11002
      %v11019 = vadd.f32 %v10981, %v11002
      %v11020 = vadd.f32 %v10982, %v11002
      %v11021 = vadd.f32 %v10983, %v11002
      %v11022 = vadd.f32 %v10984, %v11002
      %v11023 = vadd.f32 %v10985, %v11002
      %v11024 = vadd.f32 %v10986, %v11002
      %v11025 = vadd.f32 %v10987, %v11002
      %v11026 = vadd.f32 %v10988, %v11002
      %v11027 = vadd.f32 %v10989, %v11002
      %v11028 = vadd.f32 %v10990, %v11002
      %v11029 = vadd.f32 %v10991, %v11002
      %v11030 = vadd.f32 %v10992, %v11002
      %v11031 = vadd.f32 %v10993, %v11002
      %v11032 = vadd.f32 %v10994, %v11002
      %v11033 = vadd.f32 %v10995, %v11002
      %v11034 = vadd.f32 %v10996, %v11002
      %v11035 = vadd.f32 %v10997, %v11002
      %v11036 = vadd.f32 %v11004, %v3955
      %v11037 = vadd.f32 %v11005, %v3956
      %v11038 = vadd.f32 %v11006, %v3957
      %v11039 = vadd.f32 %v11007, %v3958
      %v11040 = vadd.f32 %v11008, %v3959
      %v11041 = vadd.f32 %v11009, %v3960
      %v11042 = vadd.f32 %v11010, %v3961
      %v11043 = vadd.f32 %v11011, %v3962
      %v11044 = vadd.f32 %v11012, %v3963
      %v11045 = vadd.f32 %v11013, %v3964
      %v11046 = vadd.f32 %v11014, %v3965
      %v11047 = vadd.f32 %v11015, %v3966
      %v11048 = vadd.f32 %v11016, %v3967
      %v11049 = vadd.f32 %v11017, %v3968
      %v11050 = vadd.f32 %v11018, %v3969
      %v11051 = vadd.f32 %v11019, %v3970
      %v11052 = vadd.f32 %v11020, %v3971
      %v11053 = vadd.f32 %v11021, %v3972
      %v11054 = vadd.f32 %v11022, %v3973
      %v11055 = vadd.f32 %v11023, %v3974
      %v11056 = vadd.f32 %v11024, %v3975
      %v11057 = vadd.f32 %v11025, %v3976
      %v11058 = vadd.f32 %v11026, %v3977
      %v11059 = vadd.f32 %v11027, %v3978
      %v11060 = vadd.f32 %v11028, %v3979
      %v11061 = vadd.f32 %v11029, %v3980
      %v11062 = vadd.f32 %v11030, %v3981
      %v11063 = vadd.f32 %v11031, %v3982
      %v11064 = vadd.f32 %v11032, %v3983
      %v11065 = vadd.f32 %v11033, %v3984
      %v11066 = vadd.f32 %v11034, %v3985
      %v11067 = vadd.f32 %v11035, %v3986
      %v11068 = vmax.f32 %v11036, 0.0
      %v11069 = vmax.f32 %v11037, 0.0
      %v11070 = vmax.f32 %v11038, 0.0
      %v11071 = vmax.f32 %v11039, 0.0
      %v11072 = vmax.f32 %v11040, 0.0
      %v11073 = vmax.f32 %v11041, 0.0
      %v11074 = vmax.f32 %v11042, 0.0
      %v11075 = vmax.f32 %v11043, 0.0
      %v11076 = vmax.f32 %v11044, 0.0
      %v11077 = vmax.f32 %v11045, 0.0
      %v11078 = vmax.f32 %v11046, 0.0
      %v11079 = vmax.f32 %v11047, 0.0
      %v11080 = vmax.f32 %v11048, 0.0
      %v11081 = vmax.f32 %v11049, 0.0
      %v11082 = vmax.f32 %v11050, 0.0
      %v11083 = vmax.f32 %v11051, 0.0
      %v11084 = vmax.f32 %v11052, 0.0
      %v11085 = vmax.f32 %v11053, 0.0
      %v11086 = vmax.f32 %v11054, 0.0
      %v11087 = vmax.f32 %v11055, 0.0
      %v11088 = vmax.f32 %v11056, 0.0
      %v11089 = vmax.f32 %v11057, 0.0
      %v11090 = vmax.f32 %v11058, 0.0
      %v11091 = vmax.f32 %v11059, 0.0
      %v11092 = vmax.f32 %v11060, 0.0
      %v11093 = vmax.f32 %v11061, 0.0
      %v11094 = vmax.f32 %v11062, 0.0
      %v11095 = vmax.f32 %v11063, 0.0
      %v11096 = vmax.f32 %v11064, 0.0
      %v11097 = vmax.f32 %v11065, 0.0
      %v11098 = vmax.f32 %v11066, 0.0
      %v11099 = vmax.f32 %v11067, 0.0
      %v11100 = vsel %vm373, %v11068, 0.0
      %v11101 = vsel %vm373, %v11069, 0.0
      %v11102 = vadd.f32 %v11100, %v11101
      %v11103 = vsel %vm373, %v11070, 0.0
      %v11104 = vadd.f32 %v11102, %v11103
      %v11105 = vsel %vm373, %v11071, 0.0
      %v11106 = vadd.f32 %v11104, %v11105
      %v11107 = vsel %vm373, %v11072, 0.0
      %v11108 = vadd.f32 %v11106, %v11107
      %v11109 = vsel %vm373, %v11073, 0.0
      %v11110 = vadd.f32 %v11108, %v11109
      %v11111 = vsel %vm373, %v11074, 0.0
      %v11112 = vadd.f32 %v11110, %v11111
      %v11113 = vsel %vm373, %v11075, 0.0
      %v11114 = vadd.f32 %v11112, %v11113
      %v11115 = vsel %vm373, %v11076, 0.0
      %v11116 = vadd.f32 %v11114, %v11115
      %v11117 = vsel %vm373, %v11077, 0.0
      %v11118 = vadd.f32 %v11116, %v11117
      %v11119 = vsel %vm373, %v11078, 0.0
      %v11120 = vadd.f32 %v11118, %v11119
      %v11121 = vsel %vm373, %v11079, 0.0
      %v11122 = vadd.f32 %v11120, %v11121
      %v11123 = vsel %vm373, %v11080, 0.0
      %v11124 = vadd.f32 %v11122, %v11123
      %v11125 = vsel %vm373, %v11081, 0.0
      %v11126 = vadd.f32 %v11124, %v11125
      %v11127 = vsel %vm373, %v11082, 0.0
      %v11128 = vadd.f32 %v11126, %v11127
      %v11129 = vsel %vm373, %v11083, 0.0
      %v11130 = vadd.f32 %v11128, %v11129
      %v11131 = vsel %vm373, %v11084, 0.0
      %v11132 = vadd.f32 %v11130, %v11131
      %v11133 = vsel %vm373, %v11085, 0.0
      %v11134 = vadd.f32 %v11132, %v11133
      %v11135 = vsel %vm373, %v11086, 0.0
      %v11136 = vadd.f32 %v11134, %v11135
      %v11137 = vsel %vm373, %v11087, 0.0
      %v11138 = vadd.f32 %v11136, %v11137
      %v11139 = vsel %vm373, %v11088, 0.0
      %v11140 = vadd.f32 %v11138, %v11139
      %v11141 = vsel %vm373, %v11089, 0.0
      %v11142 = vadd.f32 %v11140, %v11141
      %v11143 = vsel %vm373, %v11090, 0.0
      %v11144 = vadd.f32 %v11142, %v11143
      %v11145 = vsel %vm373, %v11091, 0.0
      %v11146 = vadd.f32 %v11144, %v11145
      %v11147 = vsel %vm373, %v11092, 0.0
      %v11148 = vadd.f32 %v11146, %v11147
      %v11149 = vsel %vm373, %v11093, 0.0
      %v11150 = vadd.f32 %v11148, %v11149
      %v11151 = vsel %vm373, %v11094, 0.0
      %v11152 = vadd.f32 %v11150, %v11151
      %v11153 = vsel %vm373, %v11095, 0.0
      %v11154 = vadd.f32 %v11152, %v11153
      %v11155 = vsel %vm373, %v11096, 0.0
      %v11156 = vadd.f32 %v11154, %v11155
      %v11157 = vsel %vm373, %v11097, 0.0
      %v11158 = vadd.f32 %v11156, %v11157
      %v11159 = vsel %vm373, %v11098, 0.0
      %v11160 = vadd.f32 %v11158, %v11159
      %v11161 = vsel %vm373, %v11099, 0.0
      %v11162 = vadd.f32 %v11160, %v11161
      %v11163 = vrot.slane %v11162, 4
      %v11164 = vadd.f32 %v11162, %v11163
      %v11165 = vrot.slane %v11164, 2
      %v11166 = vadd.f32 %v11164, %v11165
      %v11167 = vrot.slane %v11166, 1
      %v11168 = vadd.f32 %v11166, %v11167
      %v11169 = vrcp.pop 256.0
      %v11170 = vmul.f32 %v11168, %v11169
      %v11171 = vld [vmem:[%s7] sm:$0xff]
      %v11172 = vld [vmem:[%s7 + $0x8] sm:$0xff]
      %v11173 = vld [vmem:[%s7 + $0x10] sm:$0xff]
      %v11174 = vld [vmem:[%s7 + $0x18] sm:$0xff]
      %v11175 = vld [vmem:[%s8] sm:$0x1]
      %v11177 = vsel %vm373, %v11170, 0
      %11179 = vmatprep.subr.mxu0 0.0
      %11180 = vmatpush1.msra.mxu0 0.0
      %11181 = vmatprep.subr.mxu0 0.0
      %11182 = vmatpush1.msra.mxu0 0.0
      %11183 = vmatprep.subr.mxu0 0.0
      %11184 = vmatpush1.msra.mxu0 0.0
      %11185 = vmatprep.subr.mxu0 0.0
      %11186 = vmatpush1.msra.mxu0 0.0
      %11187 = vmatprep.subr.mxu0 0.0
      %11188 = vmatpush1.msra.mxu0 0.0
      %11189 = vmatprep.subr.mxu0 0.0
      %11190 = vmatpush1.msra.mxu0 0.0
      %11191 = vmatprep.subr.mxu0 0.0
      %11192 = vmatpush1.msra.mxu0 0.0
      %11193 = vmatprep.subr.mxu0 0.0
      %11194 = vmatpush1.msra.mxu0 0.0
      %11195 = vmatprep.subr.mxu0 0.0
      %11196 = vmatpush1.msra.mxu0 0.0
      %11197 = vmatprep.subr.mxu0 0.0
      %11198 = vmatpush1.msra.mxu0 0.0
      %11199 = vmatprep.subr.mxu0 0.0
      %11200 = vmatpush1.msra.mxu0 0.0
      %11201 = vmatprep.subr.mxu0 0.0
      %11202 = vmatpush1.msra.mxu0 0.0
      %11203 = vmatprep.subr.mxu0 0.0
      %11204 = vmatpush1.msra.mxu0 %v11174
      %11205 = vmatprep.subr.mxu0 0.0
      %11206 = vmatpush1.msra.mxu0 %v11173
      %11207 = vmatprep.subr.mxu0 0.0
      %11208 = vmatpush1.msra.mxu0 %v11172
      %11209 = vmatprep.subr.mxu0 0.0
      %11210 = vmatpush1.msra.mxu0 %v11171
      %11211 = vmatprep.subr.mxu0 0.0
      %11212 = vmatpush2.msra.mxu0 0.0
      %11213 = vmatprep.subr.mxu0 0.0
      %11214 = vmatpush2.msra.mxu0 0.0
      %11215 = vmatprep.subr.mxu0 0.0
      %11216 = vmatpush2.msra.mxu0 0.0
      %11217 = vmatprep.subr.mxu0 0.0
      %11218 = vmatpush2.msra.mxu0 0.0
      %11219 = vmatprep.subr.mxu0 0.0
      %11220 = vmatpush2.msra.mxu0 0.0
      %11221 = vmatprep.subr.mxu0 0.0
      %11222 = vmatpush2.msra.mxu0 0.0
      %11223 = vmatprep.subr.mxu0 0.0
      %11224 = vmatpush2.msra.mxu0 0.0
      %11225 = vmatprep.subr.mxu0 0.0
      %11226 = vmatpush2.msra.mxu0 0.0
      %11227 = vmatprep.subr.mxu0 0.0
      %11228 = vmatpush2.msra.mxu0 0.0
      %11229 = vmatprep.subr.mxu0 0.0
      %11230 = vmatpush2.msra.mxu0 0.0
      %11231 = vmatprep.subr.mxu0 0.0
      %11232 = vmatpush2.msra.mxu0 0.0
      %11233 = vmatprep.subr.mxu0 0.0
      %11234 = vmatpush2.msra.mxu0 0.0
      %11235 = vmatprep.subr.mxu0 0.0
      %11236 = vmatpush2.msra.mxu0 0.0
      %11237 = vmatprep.subr.mxu0 0.0
      %11238 = vmatpush2.msra.mxu0 0.0
      %11239 = vmatprep.subr.mxu0 0.0
      %11240 = vmatpush2.msra.mxu0 0.0
      %11241 = vmatprep.subr.mxu0 0.0
      %11242 = vmatpush2.msra.mxu0 0.0
      %11243 = vmatprep.mubr.f32.mxu0 0.0
      %11244 = vmatmul.mubr.f32.gmra.mxu0 %v11177
      %v11245 = vpop.f32.mrf.mxu0
      %v11246 = vadd.f32 %v11175, %v11245
      %v11247 = vpop.f32.mrf.mxu0
      %11248 = vdwg.mxu0
      %vm11249 = vcmask 49152
      %11250 = vst.msk [vmem:[%s328] sm:$0x1] %vm11249, %v11246
      %p11251 = scmp.lt.s32.totalorder %s20, 1
      %s11252 = scalar_select %p11251, %s20, 1
      %s11253 = scalar_lea.vmem %s9, %s11252
      // Predicated region
      $region57: #{pretrained_res_forward.1} parent=55 // pred_check
        %p11254 = pneg %p232
      $region58: #{pretrained_res_forward.1} parent=55 // pred_check_branch
        %11256 = sbr.rel (%p11254) target = $region60
      $region59: #{pretrained_res_forward.1} parent=55 // pred_region
        _
      $region60: #{pretrained_res_forward.1} parent=55 // pred_fallthru
        _
    $region56: #{pretrained_res_forward.1} parent=5 // pred_fallthru
      _
    %p11257 = scmp.le.s32.totalorder 2, %s15
    // Predicated region
    $region61: #{pretrained_res_forward.1} parent=5 // pred_check
      %p11258 = pneg %p11257
    $region62: #{pretrained_res_forward.1} parent=5 // pred_check_branch
      %11260 = sbr.rel (%p11258) target = $region64
    $region63: #{pretrained_res_forward.1} parent=5 // pred_region
      %s11261 = ssub.s32 %s15, 2
      // Predicated region
      $region65: #{pretrained_res_forward.1} parent=63 // pred_check
        %p11262 = pneg %p238
      $region66: #{pretrained_res_forward.1} parent=63 // pred_check_branch
        %11264 = sbr.rel (%p11262) target = $region68
      $region67: #{pretrained_res_forward.1} parent=63 // pred_region
        %p11265 = scmp.lt.s32.totalorder %s21, 1
        %s11266 = scalar_select %p11265, %s21, 1
        %s11267 = scalar_lea.vmem %s9, %s11266
      $region68: #{pretrained_res_forward.1} parent=63 // pred_fallthru
        _
    $region64: #{pretrained_res_forward.1} parent=5 // pred_fallthru
      _
  $region6: #{pretrained_res_forward.1} parent=0 // loop_footer
    %s19 = sadd.s32 1, %s15
  $region7: #{pretrained_res_forward.1} parent=0 // loop_footer_branch
    %14 = sbr.rel target = $region3
  $region8: #{pretrained_res_forward.1} parent=0 // loop_exit
    _

</llo_original>
